<compile_context>
chip_gen: v7x
topology: tpu7x:2x2x1
jax: 0.10.0
libtpu: 0.0.40
codegen_flags: <defaults>
</compile_context>

<pallas_src>
import math

import jax
import jax.numpy as jnp
import numpy as np
from jax import lax
from jax.experimental import pallas as pl
from jax.experimental.pallas import tpu as pltpu


def _unroll_for(T):
    # Full unroll only for short trajectories; modest unroll otherwise to avoid
    # instruction-memory bloat / vreg spills at large batch blocks.
    return True if T <= 16 else 4


# ----------------------------------------------------------------------------
# Kernel A: batch on sublanes, features on lanes (small batch blocks).
# ----------------------------------------------------------------------------
def _disc_kernel_feat(gi0_ref, mask_ref, wh_ref, wi_ref, bi_ref, bhn_ref,
                      ab_ref, w1h_ref, w2_ref, b2_ref, w3_ref, b3_ref,
                      w4_ref, b4_ref, out_ref, gi_sc):
    # gi0_ref : (T, bb, 3H) layer-0 input-gate projections (biases folded)
    # mask_ref: (T, bb, 1)  1.0 where t < seq_len[b]
    # wh_ref  : (L, H, 3H)  fused recurrent weights  (h @ W, gate order [r|z|n])
    # wi_ref  : (max(L-1,1), H, 3H) input weights for layers 1..L-1
    # bi_ref  : (max(L-1,1), 1, 3H) folded input bias for layers 1..L-1
    # bhn_ref : (L, 1, H)   b_hn (must stay inside r*(gh_n + b_hn))
    # ab_ref  : (bb, H)     W1_action[action] + b1
    # gi_sc   : (T, bb, 3H) next layer's input-gate projections
    T, bb, H3 = gi0_ref.shape
    H = H3 // 3
    L = wh_ref.shape[0]
    unroll = _unroll_for(T)

    h_top = jnp.zeros((bb, H), jnp.float32)
    for l in range(L):                    # static unroll over GRU layers
        wh_l = wh_ref[l]                                        # (H, 3H)
        bhn_l = jnp.broadcast_to(bhn_ref[l], (bb, H))           # hoisted broadcast
        last = (l == L - 1)
        if not last:
            wi_n = wi_ref[l]                                    # next layer in-proj
            bi_n = jnp.broadcast_to(bi_ref[l], (bb, 3 * H))
        src = gi0_ref if l == 0 else gi_sc

        def step(t, h_prev, _last=last):
            gi = src[t]                                         # (bb, 3H)
            gh = jnp.dot(h_prev, wh_l,
                         preferred_element_type=jnp.float32)    # (bb, 3H)
            r = jax.nn.sigmoid(gi[:, :H] + gh[:, :H])
            z = jax.nn.sigmoid(gi[:, H:2 * H] + gh[:, H:2 * H])
            n = jnp.tanh(gi[:, 2 * H:] + r * (gh[:, 2 * H:] + bhn_l))
            h_new = n + z * (h_prev - n)
            # pack_padded_sequence semantics: freeze hidden past each seq_len.
            h_cur = jnp.where(mask_ref[t] != 0.0, h_new, h_prev)
            if not _last:
                # Next layer's input projection: off the serial h chain.
                gi_sc[t] = (jnp.dot(h_cur, wi_n,
                                    preferred_element_type=jnp.float32)
                            + bi_n).astype(gi_sc.dtype)
            return h_cur

        h_top = lax.fori_loop(0, T, step, jnp.zeros((bb, H), jnp.float32),
                              unroll=unroll)

    # ---- MLP head: cat([h, one_hot]) -> fc1..fc4 -> sigmoid ----
    x = jax.nn.relu(jnp.dot(h_top, w1h_ref[...],
                            preferred_element_type=jnp.float32) + ab_ref[...])
    x = jax.nn.relu(jnp.dot(x, w2_ref[...],
                            preferred_element_type=jnp.float32) + b2_ref[...])
    x = jax.nn.relu(jnp.dot(x, w3_ref[...],
                            preferred_element_type=jnp.float32) + b3_ref[...])
    out_ref[...] = jax.nn.sigmoid(
        jnp.dot(x, w4_ref[...], preferred_element_type=jnp.float32) + b4_ref[...])


# ----------------------------------------------------------------------------
# Kernel B: batch on LANES, features on sublanes (large batch blocks).
# Gate slices are sublane-aligned (offsets 0/32/64), output is lane-dense.
# ----------------------------------------------------------------------------
def _disc_kernel_lane(gi0_ref, mask_ref, wh_ref, wi_ref, bi_ref, bhn_ref,
                      ab_ref, w1h_ref, w2_ref, b2_ref, w3_ref, b3_ref,
                      w4_ref, b4_ref, out_ref, gi_sc):
    # gi0_ref : (T, 3H, bb)   mask_ref: (T, 1, bb)
    # wh_ref  : (L, 3H, H)    wi_ref : (max(L-1,1), 3H, H)
    # bi_ref  : (max(L-1,1), 3H, 1)   bhn_ref: (L, H, 1)
    # ab_ref  : (H, bb)       fc weights in (out, in) layout, applied as W @ x
    # out_ref : (1, bb)       gi_sc: (T, 3H, bb)
    T, H3, bb = gi0_ref.shape
    H = H3 // 3
    L = wh_ref.shape[0]
    unroll = _unroll_for(T)

    h_top = jnp.zeros((H, bb), jnp.float32)
    for l in range(L):
        wh_l = wh_ref[l]                                        # (3H, H)
        bhn_l = jnp.broadcast_to(bhn_ref[l], (H, bb))
        last = (l == L - 1)
        if not last:
            wi_n = wi_ref[l]
            bi_n = jnp.broadcast_to(bi_ref[l], (3 * H, bb))
        src = gi0_ref if l == 0 else gi_sc

        def step(t, h_prev, _last=last):
            gi = src[t]                                         # (3H, bb)
            gh = jnp.dot(wh_l, h_prev,
                         preferred_element_type=jnp.float32)    # (3H, bb)
            r = jax.nn.sigmoid(gi[:H] + gh[:H])
            z = jax.nn.sigmoid(gi[H:2 * H] + gh[H:2 * H])
            n = jnp.tanh(gi[2 * H:] + r * (gh[2 * H:] + bhn_l))
            h_new = n + z * (h_prev - n)
            h_cur = jnp.where(mask_ref[t] != 0.0, h_new, h_prev)
            if not _last:
                gi_sc[t] = (jnp.dot(wi_n, h_cur,
                                    preferred_element_type=jnp.float32)
                            + bi_n).astype(gi_sc.dtype)
            return h_cur

        h_top = lax.fori_loop(0, T, step, jnp.zeros((H, bb), jnp.float32),
                              unroll=unroll)

    x = jax.nn.relu(jnp.dot(w1h_ref[...], h_top,
                            preferred_element_type=jnp.float32) + ab_ref[...])
    x = jax.nn.relu(jnp.dot(w2_ref[...], x,
                            preferred_element_type=jnp.float32) + b2_ref[...])
    x = jax.nn.relu(jnp.dot(w3_ref[...], x,
                            preferred_element_type=jnp.float32) + b3_ref[...])
    out_ref[...] = jax.nn.sigmoid(
        jnp.dot(w4_ref[...], x, preferred_element_type=jnp.float32) + b4_ref[...])


# ----------------------------------------------------------------------------
# Default batch block: generation-aware (v7x = 2 TensorCores) + VMEM budget.
# ----------------------------------------------------------------------------
def _default_batch_block(B, T, H, gi_dtype=jnp.float32):
    gi_bytes = jnp.dtype(gi_dtype).itemsize
    # Dominant VMEM per batch row: gi scratch + double-buffered gi0 block + mask.
    bytes_per_row = 3 * T * 3 * H * gi_bytes + 2 * T * 4
    try:
        kind = jax.devices()[0].device_kind.lower()
        n_cores = 2 if "v7" in kind else 1
    except Exception:  # pragma: no cover - CPU/interpret fallback
        n_cores = 1
    budget = 24 * 1024 * 1024        # headroom under v7x 64 MiB / 32 MiB scoped
    cap = max(8, budget // max(bytes_per_row, 1))
    want = B
    if n_cores >= 2 and B >= 16:
        want = max(8, B // 2)        # >= 2 grid steps -> both TCs get work
    bb = int(min(want, cap, B))
    if bb >= B:
        return B
    gran = 128 if bb >= 128 else 8   # lane / sublane granularity of the blocks
    bb = (bb // gran) * gran
    while bb >= gran and B % bb != 0:
        bb -= gran
    return bb if (bb >= gran and B % bb == 0) else B


# ----------------------------------------------------------------------------
# Wrapper: glue (table pre-projection, gathers, weight re-layout) + pallas_call.
# ----------------------------------------------------------------------------
def discriminator_forward(params, state_seq, action, seq_len, *, act_prob=None,
                          batch_block=None, lane_major=None,
                          gi_dtype=jnp.float32):
    H = params["hidden"]
    A = params["action_dim"]
    L = params["num_layers"]
    B, T = state_seq.shape

    wih = params["wih"].reshape(L, 3 * H, H)
    whh = params["whh"].reshape(L, 3 * H, H)
    bih = params["bih"].reshape(L, 3 * H)
    bhh = params["bhh"].reshape(L, 3 * H)

    # Fold b_hr/b_hz into the input-gate bias; b_hn must stay in-loop because
    # torch GRU computes n = tanh(gi_n + r * (gh_n + b_hn)).
    bi_full = bih + jnp.concatenate(
        [bhh[:, :2 * H], jnp.zeros((L, H), jnp.float32)], axis=1)     # (L, 3H)
    bhn = bhh[:, 2 * H:]                                              # (L, H)

    # Layer-0 input projection hoisted into the wrapper: project the embedding
    # table once (tiny), then gather rows per token -> (B, T, 3H).
    proj0 = jnp.dot(params["emb"].astype(jnp.float32), wih[0].T) + bi_full[0]
    gi0 = jnp.take(proj0, state_seq, axis=0)                          # (B, T, 3H)

    if L > 1:
        wi_rest, bi_rest = wih[1:], bi_full[1:]
    else:
        wi_rest = jnp.zeros((1, 3 * H, H), jnp.float32)
        bi_rest = jnp.zeros((1, 3 * H), jnp.float32)

    # fc1 split: cat([h, a]) @ W1^T == h @ W1[:, :H]^T + (W1[:, H:]^T)[action] + b1
    w1 = params["w1"]                                                 # (H, H+A)
    w1a = w1[:, H:].T                                                 # (A, H)
    if act_prob is not None:
        ab = jnp.dot(act_prob.astype(jnp.float32), w1a) + params["b1"][None, :]
    else:
        ab = jnp.take(w1a, action, axis=0) + params["b1"][None, :]    # (B, H)

    mask_tb = (jnp.arange(T)[:, None] < seq_len[None, :]).astype(jnp.float32)

    if batch_block is None:
        batch_block = _default_batch_block(B, T, H, gi_dtype)
    bb = int(batch_block)
    assert B % bb == 0, "batch_block must divide B"
    if lane_major is None:
        lane_major = bb >= 128
    if bb < B:
        need = 128 if lane_major else 8
        assert bb % need == 0, f"batch_block must be a multiple of {need} when < B"
    nb = B // bb

    def _rep(arr):
        n = arr.ndim
        return pl.BlockSpec(arr.shape, lambda i, n=n: (0,) * n)

    if lane_major:
        gi0_k = jnp.transpose(gi0, (1, 2, 0)).astype(gi_dtype)        # (T, 3H, B)
        mask_k = mask_tb[:, None, :]                                  # (T, 1, B)
        wh_k, wi_k = whh, wi_rest                                     # (., 3H, H)
        bi_k = bi_rest[:, :, None]                                    # (., 3H, 1)
        bhn_k = bhn[:, :, None]                                       # (L, H, 1)
        ab_k = ab.T                                                   # (H, B)
        w1h_k = w1[:, :H]                                             # (H, H)  W @ x
        w2_k, b2_k = params["w2"], params["b2"][:, None]
        w3_k, b3_k = params["w3"], params["b3"][:, None]
        w4_k, b4_k = params["w4"], params["b4"][:, None]              # (1,H),(1,1)
        in_specs = [
            pl.BlockSpec((T, 3 * H, bb), lambda i: (0, 0, i)),
            pl.BlockSpec((T, 1, bb), lambda i: (0, 0, i)),
            _rep(wh_k), _rep(wi_k), _rep(bi_k), _rep(bhn_k),
            pl.BlockSpec((H, bb), lambda i: (0, i)),
            _rep(w1h_k), _rep(w2_k), _rep(b2_k),
            _rep(w3_k), _rep(b3_k), _rep(w4_k), _rep(b4_k),
        ]
        out_specs = pl.BlockSpec((1, bb), lambda i: (0, i))
        out_shape = jax.ShapeDtypeStruct((1, B), jnp.float32)
        scratch = [pltpu.VMEM((T, 3 * H, bb), gi_dtype)]
        kernel = _disc_kernel_lane
    else:
        gi0_k = jnp.transpose(gi0, (1, 0, 2)).astype(gi_dtype)        # (T, B, 3H)
        mask_k = mask_tb[:, :, None]                                  # (T, B, 1)
        wh_k = jnp.transpose(whh, (0, 2, 1))                          # (L, H, 3H)
        wi_k = jnp.transpose(wi_rest, (0, 2, 1))                      # (., H, 3H)
        bi_k = bi_rest[:, None, :]                                    # (., 1, 3H)
        bhn_k = bhn[:, None, :]                                       # (L, 1, H)
        ab_k = ab                                                     # (B, H)
        w1h_k = w1[:, :H].T                                           # (H, H)  x @ W
        w2_k, b2_k = params["w2"].T, params["b2"][None, :]
        w3_k, b3_k = params["w3"].T, params["b3"][None, :]
        w4_k, b4_k = params["w4"].T, params["b4"][None, :]            # (H,1),(1,1)
        in_specs = [
            pl.BlockSpec((T, bb, 3 * H), lambda i: (0, i, 0)),
            pl.BlockSpec((T, bb, 1), lambda i: (0, i, 0)),
            _rep(wh_k), _rep(wi_k), _rep(bi_k), _rep(bhn_k),
            pl.BlockSpec((bb, H), lambda i: (i, 0)),
            _rep(w1h_k), _rep(w2_k), _rep(b2_k),
            _rep(w3_k), _rep(b3_k), _rep(w4_k), _rep(b4_k),
        ]
        out_specs = pl.BlockSpec((bb, 1), lambda i: (i, 0))
        out_shape = jax.ShapeDtypeStruct((B, 1), jnp.float32)
        scratch = [pltpu.VMEM((T, bb, 3 * H), gi_dtype)]
        kernel = _disc_kernel_feat

    out = pl.pallas_call(
        kernel,
        out_shape=out_shape,
        grid_spec=pltpu.PrefetchScalarGridSpec(
            num_scalar_prefetch=0,
            grid=(nb,),
            in_specs=in_specs,
            out_specs=out_specs,
            scratch_shapes=scratch),
        compiler_params=pltpu.CompilerParams(
            dimension_semantics=("parallel",)),
    )(gi0_k, mask_k, wh_k, wi_k, bi_k, bhn_k, ab_k,
      w1h_k, w2_k, b2_k, w3_k, b3_k, w4_k, b4_k)

    return out.reshape(B, 1) if lane_major else out


# ----------------------------------------------------------------------------
# Deterministic parameter init (shapes follow the torch module's __init__).
# ----------------------------------------------------------------------------
def init_params(key, state_dim, action_dim, hidden, num_layers):
    H, A, L = hidden, action_dim, num_layers
    keys = jax.random.split(key, 6 + 4 * L)

    def u(k, shape, bound):
        return jax.random.uniform(k, shape, jnp.float32, -bound, bound)

    emb = jax.random.normal(keys[0], (state_dim + 1, H), jnp.float32)
    emb = emb.at[state_dim].set(0.0)                 # padding_idx row

    gb = 1.0 / math.sqrt(H)
    wih, whh, bih, bhh = [], [], [], []
    for l in range(L):
        k0, k1, k2, k3 = keys[1 + 4 * l: 5 + 4 * l]
        wih.append(u(k0, (3 * H, H), gb))
        whh.append(u(k1, (3 * H, H), gb))
        bih.append(u(k2, (3 * H,), gb))
        bhh.append(u(k3, (3 * H,), gb))
    wih, whh = jnp.stack(wih), jnp.stack(whh)
    bih, bhh = jnp.stack(bih), jnp.stack(bhh)

    def lin(k, fan_in, fan_out):
        b = 1.0 / math.sqrt(fan_in)
        kw, kb = jax.random.split(k)
        return u(kw, (fan_out, fan_in), b), u(kb, (fan_out,), b)

    k_fc = keys[1 + 4 * L:]
    w1, b1 = lin(k_fc[0], H + A, H)
    w2, b2 = lin(k_fc[1], H, H)
    w3, b3 = lin(k_fc[2], H, H)
    w4, b4 = lin(k_fc[3], H, 1)

    return dict(state_dim=state_dim, action_dim=A, hidden=H, num_layers=L,
                emb=emb, wih=wih, whh=whh, bih=bih, bhh=bhh,
                w1=w1, b1=b1, w2=w2, b2=b2, w3=w3, b3=b3, w4=w4, b4=b4)


# ----------------------------------------------------------------------------
# Pure-JAX reference (same math, no Pallas).
# ----------------------------------------------------------------------------
def reference_forward(params, state_seq, action, seq_len):
    H, A, L = params["hidden"], params["action_dim"], params["num_layers"]
    B, T = state_seq.shape
    x = params["emb"][state_seq].astype(jnp.float32)
    mask = (jnp.arange(T)[None, :] < seq_len[:, None]).astype(jnp.float32)
    h = jnp.zeros((B, H), jnp.float32)
    for l in range(L):
        wih, whh = params["wih"][l], params["whh"][l]
        bih, bhh = params["bih"][l], params["bhh"][l]
        h = jnp.zeros((B, H), jnp.float32)
        outs = []
        for t in range(T):
            x_t = x[:, t, :]
            gi = x_t @ wih.T + bih
            gh = h @ whh.T + bhh
            r = jax.nn.sigmoid(gi[:, :H] + gh[:, :H])
            z = jax.nn.sigmoid(gi[:, H:2 * H] + gh[:, H:2 * H])
            n = jnp.tanh(gi[:, 2 * H:] + r * gh[:, 2 * H:])
            h_new = (1.0 - z) * n + z * h
            m = mask[:, t:t + 1]
            h = m * h_new + (1.0 - m) * h
            outs.append(h)
        x = jnp.stack(outs, axis=1)
    act_oh = jax.nn.one_hot(action, A, dtype=jnp.float32)
    xx = jnp.concatenate([h, act_oh], axis=1)
    xx = jax.nn.relu(xx @ params["w1"].T + params["b1"])
    xx = jax.nn.relu(xx @ params["w2"].T + params["b2"])
    xx = jax.nn.relu(xx @ params["w3"].T + params["b3"])
    return jax.nn.sigmoid(xx @ params["w4"].T + params["b4"])


if __name__ == "__main__":
    STATE_DIM, ACTION_DIM, HIDDEN, NUM_LAYERS = 16, 4, 32, 3
    key = jax.random.PRNGKey(0)
    kp, ks, ka, kl = jax.random.split(key, 4)
    params = init_params(kp, STATE_DIM, ACTION_DIM, HIDDEN, NUM_LAYERS)

    # ---- small case (B=2, T=8): feature-on-lanes kernel, single grid step ----
    B, T = 2, 8
    seq_len = jnp.array([8, 5], dtype=jnp.int32)        # decreasing, as torch expects
    state_seq = jax.random.randint(ks, (B, T), 0, STATE_DIM)
    pad = jnp.arange(T)[None, :] >= seq_len[:, None]
    state_seq = jnp.where(pad, STATE_DIM, state_seq).astype(jnp.int32)
    action = jax.random.randint(ka, (B,), 0, ACTION_DIM).astype(jnp.int32)

    prob = jax.block_until_ready(
        discriminator_forward(params, state_seq, action, seq_len))
    ref = reference_forward(params, state_seq, action, seq_len)
    assert prob.shape == (B, 1)
    np.testing.assert_allclose(np.asarray(prob), np.asarray(ref), atol=2e-3, rtol=2e-3)

    # ---- larger case (B=256): batch-on-lanes kernel, 2 parallel grid steps ----
    B2, T2 = 256, 8
    ks2, ka2, kl2 = jax.random.split(kl, 3)
    seq_len2 = jnp.sort(jax.random.randint(kl2, (B2,), 1, T2 + 1))[::-1].astype(jnp.int32)
    state_seq2 = jax.random.randint(ks2, (B2, T2), 0, STATE_DIM)
    pad2 = jnp.arange(T2)[None, :] >= seq_len2[:, None]
    state_seq2 = jnp.where(pad2, STATE_DIM, state_seq2).astype(jnp.int32)
    action2 = jax.random.randint(ka2, (B2,), 0, ACTION_DIM).astype(jnp.int32)

    prob2 = jax.block_until_ready(discriminator_forward(
        params, state_seq2, action2, seq_len2, batch_block=128))
    ref2 = reference_forward(params, state_seq2, action2, seq_len2)
    np.testing.assert_allclose(np.asarray(prob2), np.asarray(ref2), atol=2e-3, rtol=2e-3)

    # bf16 gi path (halves gi scratch / HBM bytes); gate math stays f32.
    prob2_bf16 = jax.block_until_ready(discriminator_forward(
        params, state_seq2, action2, seq_len2, batch_block=128,
        gi_dtype=jnp.bfloat16))
    np.testing.assert_allclose(np.asarray(prob2_bf16), np.asarray(ref2),
                               atol=2e-2, rtol=2e-2)

    print("KERNEL_OK")
</pallas_src>

<mosaic_0001>
module attributes {stable_mosaic.version = 11 : i64} {
  func.func @_disc_kernel_feat(%arg0: i32, %arg1: memref<8x2x96xf32, #tpu.memory_space<vmem>>, %arg2: memref<8x2x1xf32, #tpu.memory_space<vmem>>, %arg3: memref<3x32x96xf32, #tpu.memory_space<vmem>>, %arg4: memref<2x32x96xf32, #tpu.memory_space<vmem>>, %arg5: memref<2x1x96xf32, #tpu.memory_space<vmem>>, %arg6: memref<3x1x32xf32, #tpu.memory_space<vmem>>, %arg7: memref<2x32xf32, #tpu.memory_space<vmem>>, %arg8: memref<32x32xf32, #tpu.memory_space<vmem>>, %arg9: memref<32x32xf32, #tpu.memory_space<vmem>>, %arg10: memref<1x32xf32, #tpu.memory_space<vmem>>, %arg11: memref<32x32xf32, #tpu.memory_space<vmem>>, %arg12: memref<1x32xf32, #tpu.memory_space<vmem>>, %arg13: memref<32x1xf32, #tpu.memory_space<vmem>>, %arg14: memref<1x1xf32, #tpu.memory_space<vmem>>, %arg15: memref<2x1xf32, #tpu.memory_space<vmem>>, %arg16: memref<8x2x96xf32, #tpu.memory_space<vmem>>) attributes {dimension_semantics = [#tpu.dimension_semantics<parallel>], iteration_bounds = array<i64: 1>, scalar_prefetch = 0 : i64, scratch_operands = 1 : i64, tpu.core_type = #tpu.core_type<tc>, window_params = [{transform_indices = @transform_0, window_bounds = array<i64: 8, 2, 96>}, {transform_indices = @transform_1, window_bounds = array<i64: 8, 2, 1>}, {pipeline_mode = #tpu.pipeline_mode<synchronous>, transform_indices = @transform_2, window_bounds = array<i64: 3, 32, 96>}, {pipeline_mode = #tpu.pipeline_mode<synchronous>, transform_indices = @transform_3, window_bounds = array<i64: 2, 32, 96>}, {pipeline_mode = #tpu.pipeline_mode<synchronous>, transform_indices = @transform_4, window_bounds = array<i64: 2, 1, 96>}, {pipeline_mode = #tpu.pipeline_mode<synchronous>, transform_indices = @transform_5, window_bounds = array<i64: 3, 1, 32>}, {transform_indices = @transform_6, window_bounds = array<i64: 2, 32>}, {pipeline_mode = #tpu.pipeline_mode<synchronous>, transform_indices = @transform_7, window_bounds = array<i64: 32, 32>}, {pipeline_mode = #tpu.pipeline_mode<synchronous>, transform_indices = @transform_8, window_bounds = array<i64: 32, 32>}, {pipeline_mode = #tpu.pipeline_mode<synchronous>, transform_indices = @transform_9, window_bounds = array<i64: 1, 32>}, {pipeline_mode = #tpu.pipeline_mode<synchronous>, transform_indices = @transform_10, window_bounds = array<i64: 32, 32>}, {pipeline_mode = #tpu.pipeline_mode<synchronous>, transform_indices = @transform_11, window_bounds = array<i64: 1, 32>}, {pipeline_mode = #tpu.pipeline_mode<synchronous>, transform_indices = @transform_12, window_bounds = array<i64: 32, 1>}, {pipeline_mode = #tpu.pipeline_mode<synchronous>, transform_indices = @transform_13, window_bounds = array<i64: 1, 1>}, {transform_indices = @transform_14, window_bounds = array<i64: 2, 1>}]} {
    %c0 = arith.constant 0 : index
    %c0_0 = arith.constant 0 : index
    %c0_1 = arith.constant 0 : index
    %0 = vector.load %arg3[%c0, %c0_0, %c0_1] : memref<3x32x96xf32, #tpu.memory_space<vmem>>, vector<1x32x96xf32>
    %1 = vector.shape_cast %0 : vector<1x32x96xf32> to vector<32x96xf32>
    %c0_2 = arith.constant 0 : index
    %c0_3 = arith.constant 0 : index
    %c0_4 = arith.constant 0 : index
    %2 = vector.load %arg6[%c0_2, %c0_3, %c0_4] : memref<3x1x32xf32, #tpu.memory_space<vmem>>, vector<1x1x32xf32>
    %3 = vector.shape_cast %2 : vector<1x1x32xf32> to vector<1x32xf32>
    %4 = vector.shape_cast %3 : vector<1x32xf32> to vector<1x32xf32>
    %5 = vector.broadcast %4 : vector<1x32xf32> to vector<2x32xf32>
    %c0_5 = arith.constant 0 : index
    %c0_6 = arith.constant 0 : index
    %c0_7 = arith.constant 0 : index
    %6 = vector.load %arg4[%c0_5, %c0_6, %c0_7] : memref<2x32x96xf32, #tpu.memory_space<vmem>>, vector<1x32x96xf32>
    %7 = vector.shape_cast %6 : vector<1x32x96xf32> to vector<32x96xf32>
    %c0_8 = arith.constant 0 : index
    %c0_9 = arith.constant 0 : index
    %c0_10 = arith.constant 0 : index
    %8 = vector.load %arg5[%c0_8, %c0_9, %c0_10] : memref<2x1x96xf32, #tpu.memory_space<vmem>>, vector<1x1x96xf32>
    %9 = vector.shape_cast %8 : vector<1x1x96xf32> to vector<1x96xf32>
    %10 = vector.shape_cast %9 : vector<1x96xf32> to vector<1x96xf32>
    %11 = vector.broadcast %10 : vector<1x96xf32> to vector<2x96xf32>
    %cst = arith.constant 0.000000e+00 : f32
    %12 = vector.broadcast %cst : f32 to vector<2x32xf32>
    %c0_i32 = arith.constant 0 : i32
    %13 = arith.index_cast %c0_i32 : i32 to index
    %c0_11 = arith.constant 0 : index
    %c0_12 = arith.constant 0 : index
    %14 = vector.load %arg1[%13, %c0_11, %c0_12] : memref<8x2x96xf32, #tpu.memory_space<vmem>>, vector<1x2x96xf32>
    %15 = vector.shape_cast %14 : vector<1x2x96xf32> to vector<2x96xf32>
    %cst_13 = arith.constant dense<0.000000e+00> : vector<2x96xf32>
    %16 = tpu.matmul %12, %1, %cst_13 {dimension_numbers = #tpu.dot_dimension_numbers<[1], [0], [0], [1], [0, 0, 1, 1], [], []>} : vector<2x32xf32>, vector<32x96xf32>, vector<2x96xf32> -> vector<2x96xf32>
    %17 = vector.extract_strided_slice %15 {offsets = [0, 0], sizes = [2, 32], strides = [1, 1]} : vector<2x96xf32> to vector<2x32xf32>
    %18 = vector.extract_strided_slice %16 {offsets = [0, 0], sizes = [2, 32], strides = [1, 1]} : vector<2x96xf32> to vector<2x32xf32>
    %19 = arith.addf %17, %18 : vector<2x32xf32>
    %20 = arith.negf %19 : vector<2x32xf32>
    %21 = math.exp %20 : vector<2x32xf32>
    %cst_14 = arith.constant 1.000000e+00 : f32
    %22 = vector.broadcast %cst_14 : f32 to vector<2x32xf32>
    %23 = arith.addf %22, %21 : vector<2x32xf32>
    %24 = arith.divf %22, %23 : vector<2x32xf32>
    %25 = vector.extract_strided_slice %15 {offsets = [0, 32], sizes = [2, 32], strides = [1, 1]} : vector<2x96xf32> to vector<2x32xf32>
    %26 = vector.extract_strided_slice %16 {offsets = [0, 32], sizes = [2, 32], strides = [1, 1]} : vector<2x96xf32> to vector<2x32xf32>
    %27 = arith.addf %25, %26 : vector<2x32xf32>
    %28 = arith.negf %27 : vector<2x32xf32>
    %29 = math.exp %28 : vector<2x32xf32>
    %cst_15 = arith.constant 1.000000e+00 : f32
    %30 = vector.broadcast %cst_15 : f32 to vector<2x32xf32>
    %31 = arith.addf %30, %29 : vector<2x32xf32>
    %32 = arith.divf %30, %31 : vector<2x32xf32>
    %33 = vector.extract_strided_slice %15 {offsets = [0, 64], sizes = [2, 32], strides = [1, 1]} : vector<2x96xf32> to vector<2x32xf32>
    %34 = vector.extract_strided_slice %16 {offsets = [0, 64], sizes = [2, 32], strides = [1, 1]} : vector<2x96xf32> to vector<2x32xf32>
    %35 = arith.addf %34, %5 : vector<2x32xf32>
    %36 = arith.mulf %24, %35 : vector<2x32xf32>
    %37 = arith.addf %33, %36 : vector<2x32xf32>
    %38 = math.tanh %37 : vector<2x32xf32>
    %39 = arith.subf %12, %38 : vector<2x32xf32>
    %40 = arith.mulf %32, %39 : vector<2x32xf32>
    %41 = arith.addf %38, %40 : vector<2x32xf32>
    %42 = arith.index_cast %c0_i32 : i32 to index
    %c0_16 = arith.constant 0 : index
    %c0_17 = arith.constant 0 : index
    %43 = vector.load %arg2[%42, %c0_16, %c0_17] : memref<8x2x1xf32, #tpu.memory_space<vmem>>, vector<1x2x1xf32>
    %44 = vector.shape_cast %43 : vector<1x2x1xf32> to vector<2x1xf32>
    %cst_18 = arith.constant 0.000000e+00 : f32
    %45 = vector.broadcast %cst_18 : f32 to vector<2x1xf32>
    %46 = arith.cmpf one, %44, %45 : vector<2x1xf32>
    %47 = vector.shape_cast %46 : vector<2x1xi1> to vector<2x1xi1>
    %48 = vector.broadcast %47 : vector<2x1xi1> to vector<2x32xi1>
    %49 = arith.select %48, %41, %12 : vector<2x32xi1>, vector<2x32xf32>
    %cst_19 = arith.constant dense<0.000000e+00> : vector<2x96xf32>
    %50 = tpu.matmul %49, %7, %cst_19 {dimension_numbers = #tpu.dot_dimension_numbers<[1], [0], [0], [1], [0, 0, 1, 1], [], []>} : vector<2x32xf32>, vector<32x96xf32>, vector<2x96xf32> -> vector<2x96xf32>
    %51 = arith.addf %50, %11 : vector<2x96xf32>
    %52 = arith.index_cast %c0_i32 : i32 to index
    %c0_20 = arith.constant 0 : index
    %c0_21 = arith.constant 0 : index
    %53 = vector.load %arg16[%52, %c0_20, %c0_21] : memref<8x2x96xf32, #tpu.memory_space<vmem>>, vector<1x2x96xf32>
    %54 = vector.shape_cast %53 : vector<1x2x96xf32> to vector<2x96xf32>
    %55 = vector.shape_cast %51 : vector<2x96xf32> to vector<1x2x96xf32>
    tpu.vector_store %arg16[%52, %c0_20, %c0_21], %55 {strides = array<i32>} : memref<8x2x96xf32, #tpu.memory_space<vmem>>, vector<1x2x96xf32>,
    %c1_i32 = arith.constant 1 : i32
    %56 = arith.index_cast %c1_i32 : i32 to index
    %c0_22 = arith.constant 0 : index
    %c0_23 = arith.constant 0 : index
    %57 = vector.load %arg1[%56, %c0_22, %c0_23] : memref<8x2x96xf32, #tpu.memory_space<vmem>>, vector<1x2x96xf32>
    %58 = vector.shape_cast %57 : vector<1x2x96xf32> to vector<2x96xf32>
    %cst_24 = arith.constant dense<0.000000e+00> : vector<2x96xf32>
    %59 = tpu.matmul %49, %1, %cst_24 {dimension_numbers = #tpu.dot_dimension_numbers<[1], [0], [0], [1], [0, 0, 1, 1], [], []>} : vector<2x32xf32>, vector<32x96xf32>, vector<2x96xf32> -> vector<2x96xf32>
    %60 = vector.extract_strided_slice %58 {offsets = [0, 0], sizes = [2, 32], strides = [1, 1]} : vector<2x96xf32> to vector<2x32xf32>
    %61 = vector.extract_strided_slice %59 {offsets = [0, 0], sizes = [2, 32], strides = [1, 1]} : vector<2x96xf32> to vector<2x32xf32>
    %62 = arith.addf %60, %61 : vector<2x32xf32>
    %63 = arith.negf %62 : vector<2x32xf32>
    %64 = math.exp %63 : vector<2x32xf32>
    %cst_25 = arith.constant 1.000000e+00 : f32
    %65 = vector.broadcast %cst_25 : f32 to vector<2x32xf32>
    %66 = arith.addf %65, %64 : vector<2x32xf32>
    %67 = arith.divf %65, %66 : vector<2x32xf32>
    %68 = vector.extract_strided_slice %58 {offsets = [0, 32], sizes = [2, 32], strides = [1, 1]} : vector<2x96xf32> to vector<2x32xf32>
    %69 = vector.extract_strided_slice %59 {offsets = [0, 32], sizes = [2, 32], strides = [1, 1]} : vector<2x96xf32> to vector<2x32xf32>
    %70 = arith.addf %68, %69 : vector<2x32xf32>
    %71 = arith.negf %70 : vector<2x32xf32>
    %72 = math.exp %71 : vector<2x32xf32>
    %cst_26 = arith.constant 1.000000e+00 : f32
    %73 = vector.broadcast %cst_26 : f32 to vector<2x32xf32>
    %74 = arith.addf %73, %72 : vector<2x32xf32>
    %75 = arith.divf %73, %74 : vector<2x32xf32>
    %76 = vector.extract_strided_slice %58 {offsets = [0, 64], sizes = [2, 32], strides = [1, 1]} : vector<2x96xf32> to vector<2x32xf32>
    %77 = vector.extract_strided_slice %59 {offsets = [0, 64], sizes = [2, 32], strides = [1, 1]} : vector<2x96xf32> to vector<2x32xf32>
    %78 = arith.addf %77, %5 : vector<2x32xf32>
    %79 = arith.mulf %67, %78 : vector<2x32xf32>
    %80 = arith.addf %76, %79 : vector<2x32xf32>
    %81 = math.tanh %80 : vector<2x32xf32>
    %82 = arith.subf %49, %81 : vector<2x32xf32>
    %83 = arith.mulf %75, %82 : vector<2x32xf32>
    %84 = arith.addf %81, %83 : vector<2x32xf32>
    %85 = arith.index_cast %c1_i32 : i32 to index
    %c0_27 = arith.constant 0 : index
    %c0_28 = arith.constant 0 : index
    %86 = vector.load %arg2[%85, %c0_27, %c0_28] : memref<8x2x1xf32, #tpu.memory_space<vmem>>, vector<1x2x1xf32>
    %87 = vector.shape_cast %86 : vector<1x2x1xf32> to vector<2x1xf32>
    %cst_29 = arith.constant 0.000000e+00 : f32
    %88 = vector.broadcast %cst_29 : f32 to vector<2x1xf32>
    %89 = arith.cmpf one, %87, %88 : vector<2x1xf32>
    %90 = vector.shape_cast %89 : vector<2x1xi1> to vector<2x1xi1>
    %91 = vector.broadcast %90 : vector<2x1xi1> to vector<2x32xi1>
    %92 = arith.select %91, %84, %49 : vector<2x32xi1>, vector<2x32xf32>
    %cst_30 = arith.constant dense<0.000000e+00> : vector<2x96xf32>
    %93 = tpu.matmul %92, %7, %cst_30 {dimension_numbers = #tpu.dot_dimension_numbers<[1], [0], [0], [1], [0, 0, 1, 1], [], []>} : vector<2x32xf32>, vector<32x96xf32>, vector<2x96xf32> -> vector<2x96xf32>
    %94 = arith.addf %93, %11 : vector<2x96xf32>
    %95 = arith.index_cast %c1_i32 : i32 to index
    %c0_31 = arith.constant 0 : index
    %c0_32 = arith.constant 0 : index
    %96 = vector.load %arg16[%95, %c0_31, %c0_32] : memref<8x2x96xf32, #tpu.memory_space<vmem>>, vector<1x2x96xf32>
    %97 = vector.shape_cast %96 : vector<1x2x96xf32> to vector<2x96xf32>
    %98 = vector.shape_cast %94 : vector<2x96xf32> to vector<1x2x96xf32>
    tpu.vector_store %arg16[%95, %c0_31, %c0_32], %98 {strides = array<i32>} : memref<8x2x96xf32, #tpu.memory_space<vmem>>, vector<1x2x96xf32>,
    %c2_i32 = arith.constant 2 : i32
    %99 = arith.index_cast %c2_i32 : i32 to index
    %c0_33 = arith.constant 0 : index
    %c0_34 = arith.constant 0 : index
    %100 = vector.load %arg1[%99, %c0_33, %c0_34] : memref<8x2x96xf32, #tpu.memory_space<vmem>>, vector<1x2x96xf32>
    %101 = vector.shape_cast %100 : vector<1x2x96xf32> to vector<2x96xf32>
    %cst_35 = arith.constant dense<0.000000e+00> : vector<2x96xf32>
    %102 = tpu.matmul %92, %1, %cst_35 {dimension_numbers = #tpu.dot_dimension_numbers<[1], [0], [0], [1], [0, 0, 1, 1], [], []>} : vector<2x32xf32>, vector<32x96xf32>, vector<2x96xf32> -> vector<2x96xf32>
    %103 = vector.extract_strided_slice %101 {offsets = [0, 0], sizes = [2, 32], strides = [1, 1]} : vector<2x96xf32> to vector<2x32xf32>
    %104 = vector.extract_strided_slice %102 {offsets = [0, 0], sizes = [2, 32], strides = [1, 1]} : vector<2x96xf32> to vector<2x32xf32>
    %105 = arith.addf %103, %104 : vector<2x32xf32>
    %106 = arith.negf %105 : vector<2x32xf32>
    %107 = math.exp %106 : vector<2x32xf32>
    %cst_36 = arith.constant 1.000000e+00 : f32
    %108 = vector.broadcast %cst_36 : f32 to vector<2x32xf32>
    %109 = arith.addf %108, %107 : vector<2x32xf32>
    %110 = arith.divf %108, %109 : vector<2x32xf32>
    %111 = vector.extract_strided_slice %101 {offsets = [0, 32], sizes = [2, 32], strides = [1, 1]} : vector<2x96xf32> to vector<2x32xf32>
    %112 = vector.extract_strided_slice %102 {offsets = [0, 32], sizes = [2, 32], strides = [1, 1]} : vector<2x96xf32> to vector<2x32xf32>
    %113 = arith.addf %111, %112 : vector<2x32xf32>
    %114 = arith.negf %113 : vector<2x32xf32>
    %115 = math.exp %114 : vector<2x32xf32>
    %cst_37 = arith.constant 1.000000e+00 : f32
    %116 = vector.broadcast %cst_37 : f32 to vector<2x32xf32>
    %117 = arith.addf %116, %115 : vector<2x32xf32>
    %118 = arith.divf %116, %117 : vector<2x32xf32>
    %119 = vector.extract_strided_slice %101 {offsets = [0, 64], sizes = [2, 32], strides = [1, 1]} : vector<2x96xf32> to vector<2x32xf32>
    %120 = vector.extract_strided_slice %102 {offsets = [0, 64], sizes = [2, 32], strides = [1, 1]} : vector<2x96xf32> to vector<2x32xf32>
    %121 = arith.addf %120, %5 : vector<2x32xf32>
    %122 = arith.mulf %110, %121 : vector<2x32xf32>
    %123 = arith.addf %119, %122 : vector<2x32xf32>
    %124 = math.tanh %123 : vector<2x32xf32>
    %125 = arith.subf %92, %124 : vector<2x32xf32>
    %126 = arith.mulf %118, %125 : vector<2x32xf32>
    %127 = arith.addf %124, %126 : vector<2x32xf32>
    %128 = arith.index_cast %c2_i32 : i32 to index
    %c0_38 = arith.constant 0 : index
    %c0_39 = arith.constant 0 : index
    %129 = vector.load %arg2[%128, %c0_38, %c0_39] : memref<8x2x1xf32, #tpu.memory_space<vmem>>, vector<1x2x1xf32>
    %130 = vector.shape_cast %129 : vector<1x2x1xf32> to vector<2x1xf32>
    %cst_40 = arith.constant 0.000000e+00 : f32
    %131 = vector.broadcast %cst_40 : f32 to vector<2x1xf32>
    %132 = arith.cmpf one, %130, %131 : vector<2x1xf32>
    %133 = vector.shape_cast %132 : vector<2x1xi1> to vector<2x1xi1>
    %134 = vector.broadcast %133 : vector<2x1xi1> to vector<2x32xi1>
    %135 = arith.select %134, %127, %92 : vector<2x32xi1>, vector<2x32xf32>
    %cst_41 = arith.constant dense<0.000000e+00> : vector<2x96xf32>
    %136 = tpu.matmul %135, %7, %cst_41 {dimension_numbers = #tpu.dot_dimension_numbers<[1], [0], [0], [1], [0, 0, 1, 1], [], []>} : vector<2x32xf32>, vector<32x96xf32>, vector<2x96xf32> -> vector<2x96xf32>
    %137 = arith.addf %136, %11 : vector<2x96xf32>
    %138 = arith.index_cast %c2_i32 : i32 to index
    %c0_42 = arith.constant 0 : index
    %c0_43 = arith.constant 0 : index
    %139 = vector.load %arg16[%138, %c0_42, %c0_43] : memref<8x2x96xf32, #tpu.memory_space<vmem>>, vector<1x2x96xf32>
    %140 = vector.shape_cast %139 : vector<1x2x96xf32> to vector<2x96xf32>
    %141 = vector.shape_cast %137 : vector<2x96xf32> to vector<1x2x96xf32>
    tpu.vector_store %arg16[%138, %c0_42, %c0_43], %141 {strides = array<i32>} : memref<8x2x96xf32, #tpu.memory_space<vmem>>, vector<1x2x96xf32>,
    %c3_i32 = arith.constant 3 : i32
    %142 = arith.index_cast %c3_i32 : i32 to index
    %c0_44 = arith.constant 0 : index
    %c0_45 = arith.constant 0 : index
    %143 = vector.load %arg1[%142, %c0_44, %c0_45] : memref<8x2x96xf32, #tpu.memory_space<vmem>>, vector<1x2x96xf32>
    %144 = vector.shape_cast %143 : vector<1x2x96xf32> to vector<2x96xf32>
    %cst_46 = arith.constant dense<0.000000e+00> : vector<2x96xf32>
    %145 = tpu.matmul %135, %1, %cst_46 {dimension_numbers = #tpu.dot_dimension_numbers<[1], [0], [0], [1], [0, 0, 1, 1], [], []>} : vector<2x32xf32>, vector<32x96xf32>, vector<2x96xf32> -> vector<2x96xf32>
    %146 = vector.extract_strided_slice %144 {offsets = [0, 0], sizes = [2, 32], strides = [1, 1]} : vector<2x96xf32> to vector<2x32xf32>
    %147 = vector.extract_strided_slice %145 {offsets = [0, 0], sizes = [2, 32], strides = [1, 1]} : vector<2x96xf32> to vector<2x32xf32>
    %148 = arith.addf %146, %147 : vector<2x32xf32>
    %149 = arith.negf %148 : vector<2x32xf32>
    %150 = math.exp %149 : vector<2x32xf32>
    %cst_47 = arith.constant 1.000000e+00 : f32
    %151 = vector.broadcast %cst_47 : f32 to vector<2x32xf32>
    %152 = arith.addf %151, %150 : vector<2x32xf32>
    %153 = arith.divf %151, %152 : vector<2x32xf32>
    %154 = vector.extract_strided_slice %144 {offsets = [0, 32], sizes = [2, 32], strides = [1, 1]} : vector<2x96xf32> to vector<2x32xf32>
    %155 = vector.extract_strided_slice %145 {offsets = [0, 32], sizes = [2, 32], strides = [1, 1]} : vector<2x96xf32> to vector<2x32xf32>
    %156 = arith.addf %154, %155 : vector<2x32xf32>
    %157 = arith.negf %156 : vector<2x32xf32>
    %158 = math.exp %157 : vector<2x32xf32>
    %cst_48 = arith.constant 1.000000e+00 : f32
    %159 = vector.broadcast %cst_48 : f32 to vector<2x32xf32>
    %160 = arith.addf %159, %158 : vector<2x32xf32>
    %161 = arith.divf %159, %160 : vector<2x32xf32>
    %162 = vector.extract_strided_slice %144 {offsets = [0, 64], sizes = [2, 32], strides = [1, 1]} : vector<2x96xf32> to vector<2x32xf32>
    %163 = vector.extract_strided_slice %145 {offsets = [0, 64], sizes = [2, 32], strides = [1, 1]} : vector<2x96xf32> to vector<2x32xf32>
    %164 = arith.addf %163, %5 : vector<2x32xf32>
    %165 = arith.mulf %153, %164 : vector<2x32xf32>
    %166 = arith.addf %162, %165 : vector<2x32xf32>
    %167 = math.tanh %166 : vector<2x32xf32>
    %168 = arith.subf %135, %167 : vector<2x32xf32>
    %169 = arith.mulf %161, %168 : vector<2x32xf32>
    %170 = arith.addf %167, %169 : vector<2x32xf32>
    %171 = arith.index_cast %c3_i32 : i32 to index
    %c0_49 = arith.constant 0 : index
    %c0_50 = arith.constant 0 : index
    %172 = vector.load %arg2[%171, %c0_49, %c0_50] : memref<8x2x1xf32, #tpu.memory_space<vmem>>, vector<1x2x1xf32>
    %173 = vector.shape_cast %172 : vector<1x2x1xf32> to vector<2x1xf32>
    %cst_51 = arith.constant 0.000000e+00 : f32
    %174 = vector.broadcast %cst_51 : f32 to vector<2x1xf32>
    %175 = arith.cmpf one, %173, %174 : vector<2x1xf32>
    %176 = vector.shape_cast %175 : vector<2x1xi1> to vector<2x1xi1>
    %177 = vector.broadcast %176 : vector<2x1xi1> to vector<2x32xi1>
    %178 = arith.select %177, %170, %135 : vector<2x32xi1>, vector<2x32xf32>
    %cst_52 = arith.constant dense<0.000000e+00> : vector<2x96xf32>
    %179 = tpu.matmul %178, %7, %cst_52 {dimension_numbers = #tpu.dot_dimension_numbers<[1], [0], [0], [1], [0, 0, 1, 1], [], []>} : vector<2x32xf32>, vector<32x96xf32>, vector<2x96xf32> -> vector<2x96xf32>
    %180 = arith.addf %179, %11 : vector<2x96xf32>
    %181 = arith.index_cast %c3_i32 : i32 to index
    %c0_53 = arith.constant 0 : index
    %c0_54 = arith.constant 0 : index
    %182 = vector.load %arg16[%181, %c0_53, %c0_54] : memref<8x2x96xf32, #tpu.memory_space<vmem>>, vector<1x2x96xf32>
    %183 = vector.shape_cast %182 : vector<1x2x96xf32> to vector<2x96xf32>
    %184 = vector.shape_cast %180 : vector<2x96xf32> to vector<1x2x96xf32>
    tpu.vector_store %arg16[%181, %c0_53, %c0_54], %184 {strides = array<i32>} : memref<8x2x96xf32, #tpu.memory_space<vmem>>, vector<1x2x96xf32>,
    %c4_i32 = arith.constant 4 : i32
    %185 = arith.index_cast %c4_i32 : i32 to index
    %c0_55 = arith.constant 0 : index
    %c0_56 = arith.constant 0 : index
    %186 = vector.load %arg1[%185, %c0_55, %c0_56] : memref<8x2x96xf32, #tpu.memory_space<vmem>>, vector<1x2x96xf32>
    %187 = vector.shape_cast %186 : vector<1x2x96xf32> to vector<2x96xf32>
    %cst_57 = arith.constant dense<0.000000e+00> : vector<2x96xf32>
    %188 = tpu.matmul %178, %1, %cst_57 {dimension_numbers = #tpu.dot_dimension_numbers<[1], [0], [0], [1], [0, 0, 1, 1], [], []>} : vector<2x32xf32>, vector<32x96xf32>, vector<2x96xf32> -> vector<2x96xf32>
    %189 = vector.extract_strided_slice %187 {offsets = [0, 0], sizes = [2, 32], strides = [1, 1]} : vector<2x96xf32> to vector<2x32xf32>
    %190 = vector.extract_strided_slice %188 {offsets = [0, 0], sizes = [2, 32], strides = [1, 1]} : vector<2x96xf32> to vector<2x32xf32>
    %191 = arith.addf %189, %190 : vector<2x32xf32>
    %192 = arith.negf %191 : vector<2x32xf32>
    %193 = math.exp %192 : vector<2x32xf32>
    %cst_58 = arith.constant 1.000000e+00 : f32
    %194 = vector.broadcast %cst_58 : f32 to vector<2x32xf32>
    %195 = arith.addf %194, %193 : vector<2x32xf32>
    %196 = arith.divf %194, %195 : vector<2x32xf32>
    %197 = vector.extract_strided_slice %187 {offsets = [0, 32], sizes = [2, 32], strides = [1, 1]} : vector<2x96xf32> to vector<2x32xf32>
    %198 = vector.extract_strided_slice %188 {offsets = [0, 32], sizes = [2, 32], strides = [1, 1]} : vector<2x96xf32> to vector<2x32xf32>
    %199 = arith.addf %197, %198 : vector<2x32xf32>
    %200 = arith.negf %199 : vector<2x32xf32>
    %201 = math.exp %200 : vector<2x32xf32>
    %cst_59 = arith.constant 1.000000e+00 : f32
    %202 = vector.broadcast %cst_59 : f32 to vector<2x32xf32>
    %203 = arith.addf %202, %201 : vector<2x32xf32>
    %204 = arith.divf %202, %203 : vector<2x32xf32>
    %205 = vector.extract_strided_slice %187 {offsets = [0, 64], sizes = [2, 32], strides = [1, 1]} : vector<2x96xf32> to vector<2x32xf32>
    %206 = vector.extract_strided_slice %188 {offsets = [0, 64], sizes = [2, 32], strides = [1, 1]} : vector<2x96xf32> to vector<2x32xf32>
    %207 = arith.addf %206, %5 : vector<2x32xf32>
    %208 = arith.mulf %196, %207 : vector<2x32xf32>
    %209 = arith.addf %205, %208 : vector<2x32xf32>
    %210 = math.tanh %209 : vector<2x32xf32>
    %211 = arith.subf %178, %210 : vector<2x32xf32>
    %212 = arith.mulf %204, %211 : vector<2x32xf32>
    %213 = arith.addf %210, %212 : vector<2x32xf32>
    %214 = arith.index_cast %c4_i32 : i32 to index
    %c0_60 = arith.constant 0 : index
    %c0_61 = arith.constant 0 : index
    %215 = vector.load %arg2[%214, %c0_60, %c0_61] : memref<8x2x1xf32, #tpu.memory_space<vmem>>, vector<1x2x1xf32>
    %216 = vector.shape_cast %215 : vector<1x2x1xf32> to vector<2x1xf32>
    %cst_62 = arith.constant 0.000000e+00 : f32
    %217 = vector.broadcast %cst_62 : f32 to vector<2x1xf32>
    %218 = arith.cmpf one, %216, %217 : vector<2x1xf32>
    %219 = vector.shape_cast %218 : vector<2x1xi1> to vector<2x1xi1>
    %220 = vector.broadcast %219 : vector<2x1xi1> to vector<2x32xi1>
    %221 = arith.select %220, %213, %178 : vector<2x32xi1>, vector<2x32xf32>
    %cst_63 = arith.constant dense<0.000000e+00> : vector<2x96xf32>
    %222 = tpu.matmul %221, %7, %cst_63 {dimension_numbers = #tpu.dot_dimension_numbers<[1], [0], [0], [1], [0, 0, 1, 1], [], []>} : vector<2x32xf32>, vector<32x96xf32>, vector<2x96xf32> -> vector<2x96xf32>
    %223 = arith.addf %222, %11 : vector<2x96xf32>
    %224 = arith.index_cast %c4_i32 : i32 to index
    %c0_64 = arith.constant 0 : index
    %c0_65 = arith.constant 0 : index
    %225 = vector.load %arg16[%224, %c0_64, %c0_65] : memref<8x2x96xf32, #tpu.memory_space<vmem>>, vector<1x2x96xf32>
    %226 = vector.shape_cast %225 : vector<1x2x96xf32> to vector<2x96xf32>
    %227 = vector.shape_cast %223 : vector<2x96xf32> to vector<1x2x96xf32>
    tpu.vector_store %arg16[%224, %c0_64, %c0_65], %227 {strides = array<i32>} : memref<8x2x96xf32, #tpu.memory_space<vmem>>, vector<1x2x96xf32>,
    %c5_i32 = arith.constant 5 : i32
    %228 = arith.index_cast %c5_i32 : i32 to index
    %c0_66 = arith.constant 0 : index
    %c0_67 = arith.constant 0 : index
    %229 = vector.load %arg1[%228, %c0_66, %c0_67] : memref<8x2x96xf32, #tpu.memory_space<vmem>>, vector<1x2x96xf32>
    %230 = vector.shape_cast %229 : vector<1x2x96xf32> to vector<2x96xf32>
    %cst_68 = arith.constant dense<0.000000e+00> : vector<2x96xf32>
    %231 = tpu.matmul %221, %1, %cst_68 {dimension_numbers = #tpu.dot_dimension_numbers<[1], [0], [0], [1], [0, 0, 1, 1], [], []>} : vector<2x32xf32>, vector<32x96xf32>, vector<2x96xf32> -> vector<2x96xf32>
    %232 = vector.extract_strided_slice %230 {offsets = [0, 0], sizes = [2, 32], strides = [1, 1]} : vector<2x96xf32> to vector<2x32xf32>
    %233 = vector.extract_strided_slice %231 {offsets = [0, 0], sizes = [2, 32], strides = [1, 1]} : vector<2x96xf32> to vector<2x32xf32>
    %234 = arith.addf %232, %233 : vector<2x32xf32>
    %235 = arith.negf %234 : vector<2x32xf32>
    %236 = math.exp %235 : vector<2x32xf32>
    %cst_69 = arith.constant 1.000000e+00 : f32
    %237 = vector.broadcast %cst_69 : f32 to vector<2x32xf32>
    %238 = arith.addf %237, %236 : vector<2x32xf32>
    %239 = arith.divf %237, %238 : vector<2x32xf32>
    %240 = vector.extract_strided_slice %230 {offsets = [0, 32], sizes = [2, 32], strides = [1, 1]} : vector<2x96xf32> to vector<2x32xf32>
    %241 = vector.extract_strided_slice %231 {offsets = [0, 32], sizes = [2, 32], strides = [1, 1]} : vector<2x96xf32> to vector<2x32xf32>
    %242 = arith.addf %240, %241 : vector<2x32xf32>
    %243 = arith.negf %242 : vector<2x32xf32>
    %244 = math.exp %243 : vector<2x32xf32>
    %cst_70 = arith.constant 1.000000e+00 : f32
    %245 = vector.broadcast %cst_70 : f32 to vector<2x32xf32>
    %246 = arith.addf %245, %244 : vector<2x32xf32>
    %247 = arith.divf %245, %246 : vector<2x32xf32>
    %248 = vector.extract_strided_slice %230 {offsets = [0, 64], sizes = [2, 32], strides = [1, 1]} : vector<2x96xf32> to vector<2x32xf32>
    %249 = vector.extract_strided_slice %231 {offsets = [0, 64], sizes = [2, 32], strides = [1, 1]} : vector<2x96xf32> to vector<2x32xf32>
    %250 = arith.addf %249, %5 : vector<2x32xf32>
    %251 = arith.mulf %239, %250 : vector<2x32xf32>
    %252 = arith.addf %248, %251 : vector<2x32xf32>
    %253 = math.tanh %252 : vector<2x32xf32>
    %254 = arith.subf %221, %253 : vector<2x32xf32>
    %255 = arith.mulf %247, %254 : vector<2x32xf32>
    %256 = arith.addf %253, %255 : vector<2x32xf32>
    %257 = arith.index_cast %c5_i32 : i32 to index
    %c0_71 = arith.constant 0 : index
    %c0_72 = arith.constant 0 : index
    %258 = vector.load %arg2[%257, %c0_71, %c0_72] : memref<8x2x1xf32, #tpu.memory_space<vmem>>, vector<1x2x1xf32>
    %259 = vector.shape_cast %258 : vector<1x2x1xf32> to vector<2x1xf32>
    %cst_73 = arith.constant 0.000000e+00 : f32
    %260 = vector.broadcast %cst_73 : f32 to vector<2x1xf32>
    %261 = arith.cmpf one, %259, %260 : vector<2x1xf32>
    %262 = vector.shape_cast %261 : vector<2x1xi1> to vector<2x1xi1>
    %263 = vector.broadcast %262 : vector<2x1xi1> to vector<2x32xi1>
    %264 = arith.select %263, %256, %221 : vector<2x32xi1>, vector<2x32xf32>
    %cst_74 = arith.constant dense<0.000000e+00> : vector<2x96xf32>
    %265 = tpu.matmul %264, %7, %cst_74 {dimension_numbers = #tpu.dot_dimension_numbers<[1], [0], [0], [1], [0, 0, 1, 1], [], []>} : vector<2x32xf32>, vector<32x96xf32>, vector<2x96xf32> -> vector<2x96xf32>
    %266 = arith.addf %265, %11 : vector<2x96xf32>
    %267 = arith.index_cast %c5_i32 : i32 to index
    %c0_75 = arith.constant 0 : index
    %c0_76 = arith.constant 0 : index
    %268 = vector.load %arg16[%267, %c0_75, %c0_76] : memref<8x2x96xf32, #tpu.memory_space<vmem>>, vector<1x2x96xf32>
    %269 = vector.shape_cast %268 : vector<1x2x96xf32> to vector<2x96xf32>
    %270 = vector.shape_cast %266 : vector<2x96xf32> to vector<1x2x96xf32>
    tpu.vector_store %arg16[%267, %c0_75, %c0_76], %270 {strides = array<i32>} : memref<8x2x96xf32, #tpu.memory_space<vmem>>, vector<1x2x96xf32>,
    %c6_i32 = arith.constant 6 : i32
    %271 = arith.index_cast %c6_i32 : i32 to index
    %c0_77 = arith.constant 0 : index
    %c0_78 = arith.constant 0 : index
    %272 = vector.load %arg1[%271, %c0_77, %c0_78] : memref<8x2x96xf32, #tpu.memory_space<vmem>>, vector<1x2x96xf32>
    %273 = vector.shape_cast %272 : vector<1x2x96xf32> to vector<2x96xf32>
    %cst_79 = arith.constant dense<0.000000e+00> : vector<2x96xf32>
    %274 = tpu.matmul %264, %1, %cst_79 {dimension_numbers = #tpu.dot_dimension_numbers<[1], [0], [0], [1], [0, 0, 1, 1], [], []>} : vector<2x32xf32>, vector<32x96xf32>, vector<2x96xf32> -> vector<2x96xf32>
    %275 = vector.extract_strided_slice %273 {offsets = [0, 0], sizes = [2, 32], strides = [1, 1]} : vector<2x96xf32> to vector<2x32xf32>
    %276 = vector.extract_strided_slice %274 {offsets = [0, 0], sizes = [2, 32], strides = [1, 1]} : vector<2x96xf32> to vector<2x32xf32>
    %277 = arith.addf %275, %276 : vector<2x32xf32>
    %278 = arith.negf %277 : vector<2x32xf32>
    %279 = math.exp %278 : vector<2x32xf32>
    %cst_80 = arith.constant 1.000000e+00 : f32
    %280 = vector.broadcast %cst_80 : f32 to vector<2x32xf32>
    %281 = arith.addf %280, %279 : vector<2x32xf32>
    %282 = arith.divf %280, %281 : vector<2x32xf32>
    %283 = vector.extract_strided_slice %273 {offsets = [0, 32], sizes = [2, 32], strides = [1, 1]} : vector<2x96xf32> to vector<2x32xf32>
    %284 = vector.extract_strided_slice %274 {offsets = [0, 32], sizes = [2, 32], strides = [1, 1]} : vector<2x96xf32> to vector<2x32xf32>
    %285 = arith.addf %283, %284 : vector<2x32xf32>
    %286 = arith.negf %285 : vector<2x32xf32>
    %287 = math.exp %286 : vector<2x32xf32>
    %cst_81 = arith.constant 1.000000e+00 : f32
    %288 = vector.broadcast %cst_81 : f32 to vector<2x32xf32>
    %289 = arith.addf %288, %287 : vector<2x32xf32>
    %290 = arith.divf %288, %289 : vector<2x32xf32>
    %291 = vector.extract_strided_slice %273 {offsets = [0, 64], sizes = [2, 32], strides = [1, 1]} : vector<2x96xf32> to vector<2x32xf32>
    %292 = vector.extract_strided_slice %274 {offsets = [0, 64], sizes = [2, 32], strides = [1, 1]} : vector<2x96xf32> to vector<2x32xf32>
    %293 = arith.addf %292, %5 : vector<2x32xf32>
    %294 = arith.mulf %282, %293 : vector<2x32xf32>
    %295 = arith.addf %291, %294 : vector<2x32xf32>
    %296 = math.tanh %295 : vector<2x32xf32>
    %297 = arith.subf %264, %296 : vector<2x32xf32>
    %298 = arith.mulf %290, %297 : vector<2x32xf32>
    %299 = arith.addf %296, %298 : vector<2x32xf32>
    %300 = arith.index_cast %c6_i32 : i32 to index
    %c0_82 = arith.constant 0 : index
    %c0_83 = arith.constant 0 : index
    %301 = vector.load %arg2[%300, %c0_82, %c0_83] : memref<8x2x1xf32, #tpu.memory_space<vmem>>, vector<1x2x1xf32>
    %302 = vector.shape_cast %301 : vector<1x2x1xf32> to vector<2x1xf32>
    %cst_84 = arith.constant 0.000000e+00 : f32
    %303 = vector.broadcast %cst_84 : f32 to vector<2x1xf32>
    %304 = arith.cmpf one, %302, %303 : vector<2x1xf32>
    %305 = vector.shape_cast %304 : vector<2x1xi1> to vector<2x1xi1>
    %306 = vector.broadcast %305 : vector<2x1xi1> to vector<2x32xi1>
    %307 = arith.select %306, %299, %264 : vector<2x32xi1>, vector<2x32xf32>
    %cst_85 = arith.constant dense<0.000000e+00> : vector<2x96xf32>
    %308 = tpu.matmul %307, %7, %cst_85 {dimension_numbers = #tpu.dot_dimension_numbers<[1], [0], [0], [1], [0, 0, 1, 1], [], []>} : vector<2x32xf32>, vector<32x96xf32>, vector<2x96xf32> -> vector<2x96xf32>
    %309 = arith.addf %308, %11 : vector<2x96xf32>
    %310 = arith.index_cast %c6_i32 : i32 to index
    %c0_86 = arith.constant 0 : index
    %c0_87 = arith.constant 0 : index
    %311 = vector.load %arg16[%310, %c0_86, %c0_87] : memref<8x2x96xf32, #tpu.memory_space<vmem>>, vector<1x2x96xf32>
    %312 = vector.shape_cast %311 : vector<1x2x96xf32> to vector<2x96xf32>
    %313 = vector.shape_cast %309 : vector<2x96xf32> to vector<1x2x96xf32>
    tpu.vector_store %arg16[%310, %c0_86, %c0_87], %313 {strides = array<i32>} : memref<8x2x96xf32, #tpu.memory_space<vmem>>, vector<1x2x96xf32>,
    %c7_i32 = arith.constant 7 : i32
    %314 = arith.index_cast %c7_i32 : i32 to index
    %c0_88 = arith.constant 0 : index
    %c0_89 = arith.constant 0 : index
    %315 = vector.load %arg1[%314, %c0_88, %c0_89] : memref<8x2x96xf32, #tpu.memory_space<vmem>>, vector<1x2x96xf32>
    %316 = vector.shape_cast %315 : vector<1x2x96xf32> to vector<2x96xf32>
    %cst_90 = arith.constant dense<0.000000e+00> : vector<2x96xf32>
    %317 = tpu.matmul %307, %1, %cst_90 {dimension_numbers = #tpu.dot_dimension_numbers<[1], [0], [0], [1], [0, 0, 1, 1], [], []>} : vector<2x32xf32>, vector<32x96xf32>, vector<2x96xf32> -> vector<2x96xf32>
    %318 = vector.extract_strided_slice %316 {offsets = [0, 0], sizes = [2, 32], strides = [1, 1]} : vector<2x96xf32> to vector<2x32xf32>
    %319 = vector.extract_strided_slice %317 {offsets = [0, 0], sizes = [2, 32], strides = [1, 1]} : vector<2x96xf32> to vector<2x32xf32>
    %320 = arith.addf %318, %319 : vector<2x32xf32>
    %321 = arith.negf %320 : vector<2x32xf32>
    %322 = math.exp %321 : vector<2x32xf32>
    %cst_91 = arith.constant 1.000000e+00 : f32
    %323 = vector.broadcast %cst_91 : f32 to vector<2x32xf32>
    %324 = arith.addf %323, %322 : vector<2x32xf32>
    %325 = arith.divf %323, %324 : vector<2x32xf32>
    %326 = vector.extract_strided_slice %316 {offsets = [0, 32], sizes = [2, 32], strides = [1, 1]} : vector<2x96xf32> to vector<2x32xf32>
    %327 = vector.extract_strided_slice %317 {offsets = [0, 32], sizes = [2, 32], strides = [1, 1]} : vector<2x96xf32> to vector<2x32xf32>
    %328 = arith.addf %326, %327 : vector<2x32xf32>
    %329 = arith.negf %328 : vector<2x32xf32>
    %330 = math.exp %329 : vector<2x32xf32>
    %cst_92 = arith.constant 1.000000e+00 : f32
    %331 = vector.broadcast %cst_92 : f32 to vector<2x32xf32>
    %332 = arith.addf %331, %330 : vector<2x32xf32>
    %333 = arith.divf %331, %332 : vector<2x32xf32>
    %334 = vector.extract_strided_slice %316 {offsets = [0, 64], sizes = [2, 32], strides = [1, 1]} : vector<2x96xf32> to vector<2x32xf32>
    %335 = vector.extract_strided_slice %317 {offsets = [0, 64], sizes = [2, 32], strides = [1, 1]} : vector<2x96xf32> to vector<2x32xf32>
    %336 = arith.addf %335, %5 : vector<2x32xf32>
    %337 = arith.mulf %325, %336 : vector<2x32xf32>
    %338 = arith.addf %334, %337 : vector<2x32xf32>
    %339 = math.tanh %338 : vector<2x32xf32>
    %340 = arith.subf %307, %339 : vector<2x32xf32>
    %341 = arith.mulf %333, %340 : vector<2x32xf32>
    %342 = arith.addf %339, %341 : vector<2x32xf32>
    %343 = arith.index_cast %c7_i32 : i32 to index
    %c0_93 = arith.constant 0 : index
    %c0_94 = arith.constant 0 : index
    %344 = vector.load %arg2[%343, %c0_93, %c0_94] : memref<8x2x1xf32, #tpu.memory_space<vmem>>, vector<1x2x1xf32>
    %345 = vector.shape_cast %344 : vector<1x2x1xf32> to vector<2x1xf32>
    %cst_95 = arith.constant 0.000000e+00 : f32
    %346 = vector.broadcast %cst_95 : f32 to vector<2x1xf32>
    %347 = arith.cmpf one, %345, %346 : vector<2x1xf32>
    %348 = vector.shape_cast %347 : vector<2x1xi1> to vector<2x1xi1>
    %349 = vector.broadcast %348 : vector<2x1xi1> to vector<2x32xi1>
    %350 = arith.select %349, %342, %307 : vector<2x32xi1>, vector<2x32xf32>
    %cst_96 = arith.constant dense<0.000000e+00> : vector<2x96xf32>
    %351 = tpu.matmul %350, %7, %cst_96 {dimension_numbers = #tpu.dot_dimension_numbers<[1], [0], [0], [1], [0, 0, 1, 1], [], []>} : vector<2x32xf32>, vector<32x96xf32>, vector<2x96xf32> -> vector<2x96xf32>
    %352 = arith.addf %351, %11 : vector<2x96xf32>
    %353 = arith.index_cast %c7_i32 : i32 to index
    %c0_97 = arith.constant 0 : index
    %c0_98 = arith.constant 0 : index
    %354 = vector.load %arg16[%353, %c0_97, %c0_98] : memref<8x2x96xf32, #tpu.memory_space<vmem>>, vector<1x2x96xf32>
    %355 = vector.shape_cast %354 : vector<1x2x96xf32> to vector<2x96xf32>
    %356 = vector.shape_cast %352 : vector<2x96xf32> to vector<1x2x96xf32>
    tpu.vector_store %arg16[%353, %c0_97, %c0_98], %356 {strides = array<i32>} : memref<8x2x96xf32, #tpu.memory_space<vmem>>, vector<1x2x96xf32>,
    %c8_i32 = arith.constant 8 : i32
    %c1 = arith.constant 1 : index
    %c0_99 = arith.constant 0 : index
    %c0_100 = arith.constant 0 : index
    %357 = vector.load %arg3[%c1, %c0_99, %c0_100] : memref<3x32x96xf32, #tpu.memory_space<vmem>>, vector<1x32x96xf32>
    %358 = vector.shape_cast %357 : vector<1x32x96xf32> to vector<32x96xf32>
    %c1_101 = arith.constant 1 : index
    %c0_102 = arith.constant 0 : index
    %c0_103 = arith.constant 0 : index
    %359 = vector.load %arg6[%c1_101, %c0_102, %c0_103] : memref<3x1x32xf32, #tpu.memory_space<vmem>>, vector<1x1x32xf32>
    %360 = vector.shape_cast %359 : vector<1x1x32xf32> to vector<1x32xf32>
    %361 = vector.shape_cast %360 : vector<1x32xf32> to vector<1x32xf32>
    %362 = vector.broadcast %361 : vector<1x32xf32> to vector<2x32xf32>
    %c1_104 = arith.constant 1 : index
    %c0_105 = arith.constant 0 : index
    %c0_106 = arith.constant 0 : index
    %363 = vector.load %arg4[%c1_104, %c0_105, %c0_106] : memref<2x32x96xf32, #tpu.memory_space<vmem>>, vector<1x32x96xf32>
    %364 = vector.shape_cast %363 : vector<1x32x96xf32> to vector<32x96xf32>
    %c1_107 = arith.constant 1 : index
    %c0_108 = arith.constant 0 : index
    %c0_109 = arith.constant 0 : index
    %365 = vector.load %arg5[%c1_107, %c0_108, %c0_109] : memref<2x1x96xf32, #tpu.memory_space<vmem>>, vector<1x1x96xf32>
    %366 = vector.shape_cast %365 : vector<1x1x96xf32> to vector<1x96xf32>
    %367 = vector.shape_cast %366 : vector<1x96xf32> to vector<1x96xf32>
    %368 = vector.broadcast %367 : vector<1x96xf32> to vector<2x96xf32>
    %cst_110 = arith.constant 0.000000e+00 : f32
    %369 = vector.broadcast %cst_110 : f32 to vector<2x32xf32>
    %c0_i32_111 = arith.constant 0 : i32
    %370 = arith.index_cast %c0_i32_111 : i32 to index
    %c0_112 = arith.constant 0 : index
    %c0_113 = arith.constant 0 : index
    %371 = vector.load %arg16[%370, %c0_112, %c0_113] : memref<8x2x96xf32, #tpu.memory_space<vmem>>, vector<1x2x96xf32>
    %372 = vector.shape_cast %371 : vector<1x2x96xf32> to vector<2x96xf32>
    %cst_114 = arith.constant dense<0.000000e+00> : vector<2x96xf32>
    %373 = tpu.matmul %369, %358, %cst_114 {dimension_numbers = #tpu.dot_dimension_numbers<[1], [0], [0], [1], [0, 0, 1, 1], [], []>} : vector<2x32xf32>, vector<32x96xf32>, vector<2x96xf32> -> vector<2x96xf32>
    %374 = vector.extract_strided_slice %372 {offsets = [0, 0], sizes = [2, 32], strides = [1, 1]} : vector<2x96xf32> to vector<2x32xf32>
    %375 = vector.extract_strided_slice %373 {offsets = [0, 0], sizes = [2, 32], strides = [1, 1]} : vector<2x96xf32> to vector<2x32xf32>
    %376 = arith.addf %374, %375 : vector<2x32xf32>
    %377 = arith.negf %376 : vector<2x32xf32>
    %378 = math.exp %377 : vector<2x32xf32>
    %cst_115 = arith.constant 1.000000e+00 : f32
    %379 = vector.broadcast %cst_115 : f32 to vector<2x32xf32>
    %380 = arith.addf %379, %378 : vector<2x32xf32>
    %381 = arith.divf %379, %380 : vector<2x32xf32>
    %382 = vector.extract_strided_slice %372 {offsets = [0, 32], sizes = [2, 32], strides = [1, 1]} : vector<2x96xf32> to vector<2x32xf32>
    %383 = vector.extract_strided_slice %373 {offsets = [0, 32], sizes = [2, 32], strides = [1, 1]} : vector<2x96xf32> to vector<2x32xf32>
    %384 = arith.addf %382, %383 : vector<2x32xf32>
    %385 = arith.negf %384 : vector<2x32xf32>
    %386 = math.exp %385 : vector<2x32xf32>
    %cst_116 = arith.constant 1.000000e+00 : f32
    %387 = vector.broadcast %cst_116 : f32 to vector<2x32xf32>
    %388 = arith.addf %387, %386 : vector<2x32xf32>
    %389 = arith.divf %387, %388 : vector<2x32xf32>
    %390 = vector.extract_strided_slice %372 {offsets = [0, 64], sizes = [2, 32], strides = [1, 1]} : vector<2x96xf32> to vector<2x32xf32>
    %391 = vector.extract_strided_slice %373 {offsets = [0, 64], sizes = [2, 32], strides = [1, 1]} : vector<2x96xf32> to vector<2x32xf32>
    %392 = arith.addf %391, %362 : vector<2x32xf32>
    %393 = arith.mulf %381, %392 : vector<2x32xf32>
    %394 = arith.addf %390, %393 : vector<2x32xf32>
    %395 = math.tanh %394 : vector<2x32xf32>
    %396 = arith.subf %369, %395 : vector<2x32xf32>
    %397 = arith.mulf %389, %396 : vector<2x32xf32>
    %398 = arith.addf %395, %397 : vector<2x32xf32>
    %399 = arith.index_cast %c0_i32_111 : i32 to index
    %c0_117 = arith.constant 0 : index
    %c0_118 = arith.constant 0 : index
    %400 = vector.load %arg2[%399, %c0_117, %c0_118] : memref<8x2x1xf32, #tpu.memory_space<vmem>>, vector<1x2x1xf32>
    %401 = vector.shape_cast %400 : vector<1x2x1xf32> to vector<2x1xf32>
    %cst_119 = arith.constant 0.000000e+00 : f32
    %402 = vector.broadcast %cst_119 : f32 to vector<2x1xf32>
    %403 = arith.cmpf one, %401, %402 : vector<2x1xf32>
    %404 = vector.shape_cast %403 : vector<2x1xi1> to vector<2x1xi1>
    %405 = vector.broadcast %404 : vector<2x1xi1> to vector<2x32xi1>
    %406 = arith.select %405, %398, %369 : vector<2x32xi1>, vector<2x32xf32>
    %cst_120 = arith.constant dense<0.000000e+00> : vector<2x96xf32>
    %407 = tpu.matmul %406, %364, %cst_120 {dimension_numbers = #tpu.dot_dimension_numbers<[1], [0], [0], [1], [0, 0, 1, 1], [], []>} : vector<2x32xf32>, vector<32x96xf32>, vector<2x96xf32> -> vector<2x96xf32>
    %408 = arith.addf %407, %368 : vector<2x96xf32>
    %409 = arith.index_cast %c0_i32_111 : i32 to index
    %c0_121 = arith.constant 0 : index
    %c0_122 = arith.constant 0 : index
    %410 = vector.load %arg16[%409, %c0_121, %c0_122] : memref<8x2x96xf32, #tpu.memory_space<vmem>>, vector<1x2x96xf32>
    %411 = vector.shape_cast %410 : vector<1x2x96xf32> to vector<2x96xf32>
    %412 = vector.shape_cast %408 : vector<2x96xf32> to vector<1x2x96xf32>
    tpu.vector_store %arg16[%409, %c0_121, %c0_122], %412 {strides = array<i32>} : memref<8x2x96xf32, #tpu.memory_space<vmem>>, vector<1x2x96xf32>,
    %c1_i32_123 = arith.constant 1 : i32
    %413 = arith.index_cast %c1_i32_123 : i32 to index
    %c0_124 = arith.constant 0 : index
    %c0_125 = arith.constant 0 : index
    %414 = vector.load %arg16[%413, %c0_124, %c0_125] : memref<8x2x96xf32, #tpu.memory_space<vmem>>, vector<1x2x96xf32>
    %415 = vector.shape_cast %414 : vector<1x2x96xf32> to vector<2x96xf32>
    %cst_126 = arith.constant dense<0.000000e+00> : vector<2x96xf32>
    %416 = tpu.matmul %406, %358, %cst_126 {dimension_numbers = #tpu.dot_dimension_numbers<[1], [0], [0], [1], [0, 0, 1, 1], [], []>} : vector<2x32xf32>, vector<32x96xf32>, vector<2x96xf32> -> vector<2x96xf32>
    %417 = vector.extract_strided_slice %415 {offsets = [0, 0], sizes = [2, 32], strides = [1, 1]} : vector<2x96xf32> to vector<2x32xf32>
    %418 = vector.extract_strided_slice %416 {offsets = [0, 0], sizes = [2, 32], strides = [1, 1]} : vector<2x96xf32> to vector<2x32xf32>
    %419 = arith.addf %417, %418 : vector<2x32xf32>
    %420 = arith.negf %419 : vector<2x32xf32>
    %421 = math.exp %420 : vector<2x32xf32>
    %cst_127 = arith.constant 1.000000e+00 : f32
    %422 = vector.broadcast %cst_127 : f32 to vector<2x32xf32>
    %423 = arith.addf %422, %421 : vector<2x32xf32>
    %424 = arith.divf %422, %423 : vector<2x32xf32>
    %425 = vector.extract_strided_slice %415 {offsets = [0, 32], sizes = [2, 32], strides = [1, 1]} : vector<2x96xf32> to vector<2x32xf32>
    %426 = vector.extract_strided_slice %416 {offsets = [0, 32], sizes = [2, 32], strides = [1, 1]} : vector<2x96xf32> to vector<2x32xf32>
    %427 = arith.addf %425, %426 : vector<2x32xf32>
    %428 = arith.negf %427 : vector<2x32xf32>
    %429 = math.exp %428 : vector<2x32xf32>
    %cst_128 = arith.constant 1.000000e+00 : f32
    %430 = vector.broadcast %cst_128 : f32 to vector<2x32xf32>
    %431 = arith.addf %430, %429 : vector<2x32xf32>
    %432 = arith.divf %430, %431 : vector<2x32xf32>
    %433 = vector.extract_strided_slice %415 {offsets = [0, 64], sizes = [2, 32], strides = [1, 1]} : vector<2x96xf32> to vector<2x32xf32>
    %434 = vector.extract_strided_slice %416 {offsets = [0, 64], sizes = [2, 32], strides = [1, 1]} : vector<2x96xf32> to vector<2x32xf32>
    %435 = arith.addf %434, %362 : vector<2x32xf32>
    %436 = arith.mulf %424, %435 : vector<2x32xf32>
    %437 = arith.addf %433, %436 : vector<2x32xf32>
    %438 = math.tanh %437 : vector<2x32xf32>
    %439 = arith.subf %406, %438 : vector<2x32xf32>
    %440 = arith.mulf %432, %439 : vector<2x32xf32>
    %441 = arith.addf %438, %440 : vector<2x32xf32>
    %442 = arith.index_cast %c1_i32_123 : i32 to index
    %c0_129 = arith.constant 0 : index
    %c0_130 = arith.constant 0 : index
    %443 = vector.load %arg2[%442, %c0_129, %c0_130] : memref<8x2x1xf32, #tpu.memory_space<vmem>>, vector<1x2x1xf32>
    %444 = vector.shape_cast %443 : vector<1x2x1xf32> to vector<2x1xf32>
    %cst_131 = arith.constant 0.000000e+00 : f32
    %445 = vector.broadcast %cst_131 : f32 to vector<2x1xf32>
    %446 = arith.cmpf one, %444, %445 : vector<2x1xf32>
    %447 = vector.shape_cast %446 : vector<2x1xi1> to vector<2x1xi1>
    %448 = vector.broadcast %447 : vector<2x1xi1> to vector<2x32xi1>
    %449 = arith.select %448, %441, %406 : vector<2x32xi1>, vector<2x32xf32>
    %cst_132 = arith.constant dense<0.000000e+00> : vector<2x96xf32>
    %450 = tpu.matmul %449, %364, %cst_132 {dimension_numbers = #tpu.dot_dimension_numbers<[1], [0], [0], [1], [0, 0, 1, 1], [], []>} : vector<2x32xf32>, vector<32x96xf32>, vector<2x96xf32> -> vector<2x96xf32>
    %451 = arith.addf %450, %368 : vector<2x96xf32>
    %452 = arith.index_cast %c1_i32_123 : i32 to index
    %c0_133 = arith.constant 0 : index
    %c0_134 = arith.constant 0 : index
    %453 = vector.load %arg16[%452, %c0_133, %c0_134] : memref<8x2x96xf32, #tpu.memory_space<vmem>>, vector<1x2x96xf32>
    %454 = vector.shape_cast %453 : vector<1x2x96xf32> to vector<2x96xf32>
    %455 = vector.shape_cast %451 : vector<2x96xf32> to vector<1x2x96xf32>
    tpu.vector_store %arg16[%452, %c0_133, %c0_134], %455 {strides = array<i32>} : memref<8x2x96xf32, #tpu.memory_space<vmem>>, vector<1x2x96xf32>,
    %c2_i32_135 = arith.constant 2 : i32
    %456 = arith.index_cast %c2_i32_135 : i32 to index
    %c0_136 = arith.constant 0 : index
    %c0_137 = arith.constant 0 : index
    %457 = vector.load %arg16[%456, %c0_136, %c0_137] : memref<8x2x96xf32, #tpu.memory_space<vmem>>, vector<1x2x96xf32>
    %458 = vector.shape_cast %457 : vector<1x2x96xf32> to vector<2x96xf32>
    %cst_138 = arith.constant dense<0.000000e+00> : vector<2x96xf32>
    %459 = tpu.matmul %449, %358, %cst_138 {dimension_numbers = #tpu.dot_dimension_numbers<[1], [0], [0], [1], [0, 0, 1, 1], [], []>} : vector<2x32xf32>, vector<32x96xf32>, vector<2x96xf32> -> vector<2x96xf32>
    %460 = vector.extract_strided_slice %458 {offsets = [0, 0], sizes = [2, 32], strides = [1, 1]} : vector<2x96xf32> to vector<2x32xf32>
    %461 = vector.extract_strided_slice %459 {offsets = [0, 0], sizes = [2, 32], strides = [1, 1]} : vector<2x96xf32> to vector<2x32xf32>
    %462 = arith.addf %460, %461 : vector<2x32xf32>
    %463 = arith.negf %462 : vector<2x32xf32>
    %464 = math.exp %463 : vector<2x32xf32>
    %cst_139 = arith.constant 1.000000e+00 : f32
    %465 = vector.broadcast %cst_139 : f32 to vector<2x32xf32>
    %466 = arith.addf %465, %464 : vector<2x32xf32>
    %467 = arith.divf %465, %466 : vector<2x32xf32>
    %468 = vector.extract_strided_slice %458 {offsets = [0, 32], sizes = [2, 32], strides = [1, 1]} : vector<2x96xf32> to vector<2x32xf32>
    %469 = vector.extract_strided_slice %459 {offsets = [0, 32], sizes = [2, 32], strides = [1, 1]} : vector<2x96xf32> to vector<2x32xf32>
    %470 = arith.addf %468, %469 : vector<2x32xf32>
    %471 = arith.negf %470 : vector<2x32xf32>
    %472 = math.exp %471 : vector<2x32xf32>
    %cst_140 = arith.constant 1.000000e+00 : f32
    %473 = vector.broadcast %cst_140 : f32 to vector<2x32xf32>
    %474 = arith.addf %473, %472 : vector<2x32xf32>
    %475 = arith.divf %473, %474 : vector<2x32xf32>
    %476 = vector.extract_strided_slice %458 {offsets = [0, 64], sizes = [2, 32], strides = [1, 1]} : vector<2x96xf32> to vector<2x32xf32>
    %477 = vector.extract_strided_slice %459 {offsets = [0, 64], sizes = [2, 32], strides = [1, 1]} : vector<2x96xf32> to vector<2x32xf32>
    %478 = arith.addf %477, %362 : vector<2x32xf32>
    %479 = arith.mulf %467, %478 : vector<2x32xf32>
    %480 = arith.addf %476, %479 : vector<2x32xf32>
    %481 = math.tanh %480 : vector<2x32xf32>
    %482 = arith.subf %449, %481 : vector<2x32xf32>
    %483 = arith.mulf %475, %482 : vector<2x32xf32>
    %484 = arith.addf %481, %483 : vector<2x32xf32>
    %485 = arith.index_cast %c2_i32_135 : i32 to index
    %c0_141 = arith.constant 0 : index
    %c0_142 = arith.constant 0 : index
    %486 = vector.load %arg2[%485, %c0_141, %c0_142] : memref<8x2x1xf32, #tpu.memory_space<vmem>>, vector<1x2x1xf32>
    %487 = vector.shape_cast %486 : vector<1x2x1xf32> to vector<2x1xf32>
    %cst_143 = arith.constant 0.000000e+00 : f32
    %488 = vector.broadcast %cst_143 : f32 to vector<2x1xf32>
    %489 = arith.cmpf one, %487, %488 : vector<2x1xf32>
    %490 = vector.shape_cast %489 : vector<2x1xi1> to vector<2x1xi1>
    %491 = vector.broadcast %490 : vector<2x1xi1> to vector<2x32xi1>
    %492 = arith.select %491, %484, %449 : vector<2x32xi1>, vector<2x32xf32>
    %cst_144 = arith.constant dense<0.000000e+00> : vector<2x96xf32>
    %493 = tpu.matmul %492, %364, %cst_144 {dimension_numbers = #tpu.dot_dimension_numbers<[1], [0], [0], [1], [0, 0, 1, 1], [], []>} : vector<2x32xf32>, vector<32x96xf32>, vector<2x96xf32> -> vector<2x96xf32>
    %494 = arith.addf %493, %368 : vector<2x96xf32>
    %495 = arith.index_cast %c2_i32_135 : i32 to index
    %c0_145 = arith.constant 0 : index
    %c0_146 = arith.constant 0 : index
    %496 = vector.load %arg16[%495, %c0_145, %c0_146] : memref<8x2x96xf32, #tpu.memory_space<vmem>>, vector<1x2x96xf32>
    %497 = vector.shape_cast %496 : vector<1x2x96xf32> to vector<2x96xf32>
    %498 = vector.shape_cast %494 : vector<2x96xf32> to vector<1x2x96xf32>
    tpu.vector_store %arg16[%495, %c0_145, %c0_146], %498 {strides = array<i32>} : memref<8x2x96xf32, #tpu.memory_space<vmem>>, vector<1x2x96xf32>,
    %c3_i32_147 = arith.constant 3 : i32
    %499 = arith.index_cast %c3_i32_147 : i32 to index
    %c0_148 = arith.constant 0 : index
    %c0_149 = arith.constant 0 : index
    %500 = vector.load %arg16[%499, %c0_148, %c0_149] : memref<8x2x96xf32, #tpu.memory_space<vmem>>, vector<1x2x96xf32>
    %501 = vector.shape_cast %500 : vector<1x2x96xf32> to vector<2x96xf32>
    %cst_150 = arith.constant dense<0.000000e+00> : vector<2x96xf32>
    %502 = tpu.matmul %492, %358, %cst_150 {dimension_numbers = #tpu.dot_dimension_numbers<[1], [0], [0], [1], [0, 0, 1, 1], [], []>} : vector<2x32xf32>, vector<32x96xf32>, vector<2x96xf32> -> vector<2x96xf32>
    %503 = vector.extract_strided_slice %501 {offsets = [0, 0], sizes = [2, 32], strides = [1, 1]} : vector<2x96xf32> to vector<2x32xf32>
    %504 = vector.extract_strided_slice %502 {offsets = [0, 0], sizes = [2, 32], strides = [1, 1]} : vector<2x96xf32> to vector<2x32xf32>
    %505 = arith.addf %503, %504 : vector<2x32xf32>
    %506 = arith.negf %505 : vector<2x32xf32>
    %507 = math.exp %506 : vector<2x32xf32>
    %cst_151 = arith.constant 1.000000e+00 : f32
    %508 = vector.broadcast %cst_151 : f32 to vector<2x32xf32>
    %509 = arith.addf %508, %507 : vector<2x32xf32>
    %510 = arith.divf %508, %509 : vector<2x32xf32>
    %511 = vector.extract_strided_slice %501 {offsets = [0, 32], sizes = [2, 32], strides = [1, 1]} : vector<2x96xf32> to vector<2x32xf32>
    %512 = vector.extract_strided_slice %502 {offsets = [0, 32], sizes = [2, 32], strides = [1, 1]} : vector<2x96xf32> to vector<2x32xf32>
    %513 = arith.addf %511, %512 : vector<2x32xf32>
    %514 = arith.negf %513 : vector<2x32xf32>
    %515 = math.exp %514 : vector<2x32xf32>
    %cst_152 = arith.constant 1.000000e+00 : f32
    %516 = vector.broadcast %cst_152 : f32 to vector<2x32xf32>
    %517 = arith.addf %516, %515 : vector<2x32xf32>
    %518 = arith.divf %516, %517 : vector<2x32xf32>
    %519 = vector.extract_strided_slice %501 {offsets = [0, 64], sizes = [2, 32], strides = [1, 1]} : vector<2x96xf32> to vector<2x32xf32>
    %520 = vector.extract_strided_slice %502 {offsets = [0, 64], sizes = [2, 32], strides = [1, 1]} : vector<2x96xf32> to vector<2x32xf32>
    %521 = arith.addf %520, %362 : vector<2x32xf32>
    %522 = arith.mulf %510, %521 : vector<2x32xf32>
    %523 = arith.addf %519, %522 : vector<2x32xf32>
    %524 = math.tanh %523 : vector<2x32xf32>
    %525 = arith.subf %492, %524 : vector<2x32xf32>
    %526 = arith.mulf %518, %525 : vector<2x32xf32>
    %527 = arith.addf %524, %526 : vector<2x32xf32>
    %528 = arith.index_cast %c3_i32_147 : i32 to index
    %c0_153 = arith.constant 0 : index
    %c0_154 = arith.constant 0 : index
    %529 = vector.load %arg2[%528, %c0_153, %c0_154] : memref<8x2x1xf32, #tpu.memory_space<vmem>>, vector<1x2x1xf32>
    %530 = vector.shape_cast %529 : vector<1x2x1xf32> to vector<2x1xf32>
    %cst_155 = arith.constant 0.000000e+00 : f32
    %531 = vector.broadcast %cst_155 : f32 to vector<2x1xf32>
    %532 = arith.cmpf one, %530, %531 : vector<2x1xf32>
    %533 = vector.shape_cast %532 : vector<2x1xi1> to vector<2x1xi1>
    %534 = vector.broadcast %533 : vector<2x1xi1> to vector<2x32xi1>
    %535 = arith.select %534, %527, %492 : vector<2x32xi1>, vector<2x32xf32>
    %cst_156 = arith.constant dense<0.000000e+00> : vector<2x96xf32>
    %536 = tpu.matmul %535, %364, %cst_156 {dimension_numbers = #tpu.dot_dimension_numbers<[1], [0], [0], [1], [0, 0, 1, 1], [], []>} : vector<2x32xf32>, vector<32x96xf32>, vector<2x96xf32> -> vector<2x96xf32>
    %537 = arith.addf %536, %368 : vector<2x96xf32>
    %538 = arith.index_cast %c3_i32_147 : i32 to index
    %c0_157 = arith.constant 0 : index
    %c0_158 = arith.constant 0 : index
    %539 = vector.load %arg16[%538, %c0_157, %c0_158] : memref<8x2x96xf32, #tpu.memory_space<vmem>>, vector<1x2x96xf32>
    %540 = vector.shape_cast %539 : vector<1x2x96xf32> to vector<2x96xf32>
    %541 = vector.shape_cast %537 : vector<2x96xf32> to vector<1x2x96xf32>
    tpu.vector_store %arg16[%538, %c0_157, %c0_158], %541 {strides = array<i32>} : memref<8x2x96xf32, #tpu.memory_space<vmem>>, vector<1x2x96xf32>,
    %c4_i32_159 = arith.constant 4 : i32
    %542 = arith.index_cast %c4_i32_159 : i32 to index
    %c0_160 = arith.constant 0 : index
    %c0_161 = arith.constant 0 : index
    %543 = vector.load %arg16[%542, %c0_160, %c0_161] : memref<8x2x96xf32, #tpu.memory_space<vmem>>, vector<1x2x96xf32>
    %544 = vector.shape_cast %543 : vector<1x2x96xf32> to vector<2x96xf32>
    %cst_162 = arith.constant dense<0.000000e+00> : vector<2x96xf32>
    %545 = tpu.matmul %535, %358, %cst_162 {dimension_numbers = #tpu.dot_dimension_numbers<[1], [0], [0], [1], [0, 0, 1, 1], [], []>} : vector<2x32xf32>, vector<32x96xf32>, vector<2x96xf32> -> vector<2x96xf32>
    %546 = vector.extract_strided_slice %544 {offsets = [0, 0], sizes = [2, 32], strides = [1, 1]} : vector<2x96xf32> to vector<2x32xf32>
    %547 = vector.extract_strided_slice %545 {offsets = [0, 0], sizes = [2, 32], strides = [1, 1]} : vector<2x96xf32> to vector<2x32xf32>
    %548 = arith.addf %546, %547 : vector<2x32xf32>
    %549 = arith.negf %548 : vector<2x32xf32>
    %550 = math.exp %549 : vector<2x32xf32>
    %cst_163 = arith.constant 1.000000e+00 : f32
    %551 = vector.broadcast %cst_163 : f32 to vector<2x32xf32>
    %552 = arith.addf %551, %550 : vector<2x32xf32>
    %553 = arith.divf %551, %552 : vector<2x32xf32>
    %554 = vector.extract_strided_slice %544 {offsets = [0, 32], sizes = [2, 32], strides = [1, 1]} : vector<2x96xf32> to vector<2x32xf32>
    %555 = vector.extract_strided_slice %545 {offsets = [0, 32], sizes = [2, 32], strides = [1, 1]} : vector<2x96xf32> to vector<2x32xf32>
    %556 = arith.addf %554, %555 : vector<2x32xf32>
    %557 = arith.negf %556 : vector<2x32xf32>
    %558 = math.exp %557 : vector<2x32xf32>
    %cst_164 = arith.constant 1.000000e+00 : f32
    %559 = vector.broadcast %cst_164 : f32 to vector<2x32xf32>
    %560 = arith.addf %559, %558 : vector<2x32xf32>
    %561 = arith.divf %559, %560 : vector<2x32xf32>
    %562 = vector.extract_strided_slice %544 {offsets = [0, 64], sizes = [2, 32], strides = [1, 1]} : vector<2x96xf32> to vector<2x32xf32>
    %563 = vector.extract_strided_slice %545 {offsets = [0, 64], sizes = [2, 32], strides = [1, 1]} : vector<2x96xf32> to vector<2x32xf32>
    %564 = arith.addf %563, %362 : vector<2x32xf32>
    %565 = arith.mulf %553, %564 : vector<2x32xf32>
    %566 = arith.addf %562, %565 : vector<2x32xf32>
    %567 = math.tanh %566 : vector<2x32xf32>
    %568 = arith.subf %535, %567 : vector<2x32xf32>
    %569 = arith.mulf %561, %568 : vector<2x32xf32>
    %570 = arith.addf %567, %569 : vector<2x32xf32>
    %571 = arith.index_cast %c4_i32_159 : i32 to index
    %c0_165 = arith.constant 0 : index
    %c0_166 = arith.constant 0 : index
    %572 = vector.load %arg2[%571, %c0_165, %c0_166] : memref<8x2x1xf32, #tpu.memory_space<vmem>>, vector<1x2x1xf32>
    %573 = vector.shape_cast %572 : vector<1x2x1xf32> to vector<2x1xf32>
    %cst_167 = arith.constant 0.000000e+00 : f32
    %574 = vector.broadcast %cst_167 : f32 to vector<2x1xf32>
    %575 = arith.cmpf one, %573, %574 : vector<2x1xf32>
    %576 = vector.shape_cast %575 : vector<2x1xi1> to vector<2x1xi1>
    %577 = vector.broadcast %576 : vector<2x1xi1> to vector<2x32xi1>
    %578 = arith.select %577, %570, %535 : vector<2x32xi1>, vector<2x32xf32>
    %cst_168 = arith.constant dense<0.000000e+00> : vector<2x96xf32>
    %579 = tpu.matmul %578, %364, %cst_168 {dimension_numbers = #tpu.dot_dimension_numbers<[1], [0], [0], [1], [0, 0, 1, 1], [], []>} : vector<2x32xf32>, vector<32x96xf32>, vector<2x96xf32> -> vector<2x96xf32>
    %580 = arith.addf %579, %368 : vector<2x96xf32>
    %581 = arith.index_cast %c4_i32_159 : i32 to index
    %c0_169 = arith.constant 0 : index
    %c0_170 = arith.constant 0 : index
    %582 = vector.load %arg16[%581, %c0_169, %c0_170] : memref<8x2x96xf32, #tpu.memory_space<vmem>>, vector<1x2x96xf32>
    %583 = vector.shape_cast %582 : vector<1x2x96xf32> to vector<2x96xf32>
    %584 = vector.shape_cast %580 : vector<2x96xf32> to vector<1x2x96xf32>
    tpu.vector_store %arg16[%581, %c0_169, %c0_170], %584 {strides = array<i32>} : memref<8x2x96xf32, #tpu.memory_space<vmem>>, vector<1x2x96xf32>,
    %c5_i32_171 = arith.constant 5 : i32
    %585 = arith.index_cast %c5_i32_171 : i32 to index
    %c0_172 = arith.constant 0 : index
    %c0_173 = arith.constant 0 : index
    %586 = vector.load %arg16[%585, %c0_172, %c0_173] : memref<8x2x96xf32, #tpu.memory_space<vmem>>, vector<1x2x96xf32>
    %587 = vector.shape_cast %586 : vector<1x2x96xf32> to vector<2x96xf32>
    %cst_174 = arith.constant dense<0.000000e+00> : vector<2x96xf32>
    %588 = tpu.matmul %578, %358, %cst_174 {dimension_numbers = #tpu.dot_dimension_numbers<[1], [0], [0], [1], [0, 0, 1, 1], [], []>} : vector<2x32xf32>, vector<32x96xf32>, vector<2x96xf32> -> vector<2x96xf32>
    %589 = vector.extract_strided_slice %587 {offsets = [0, 0], sizes = [2, 32], strides = [1, 1]} : vector<2x96xf32> to vector<2x32xf32>
    %590 = vector.extract_strided_slice %588 {offsets = [0, 0], sizes = [2, 32], strides = [1, 1]} : vector<2x96xf32> to vector<2x32xf32>
    %591 = arith.addf %589, %590 : vector<2x32xf32>
    %592 = arith.negf %591 : vector<2x32xf32>
    %593 = math.exp %592 : vector<2x32xf32>
    %cst_175 = arith.constant 1.000000e+00 : f32
    %594 = vector.broadcast %cst_175 : f32 to vector<2x32xf32>
    %595 = arith.addf %594, %593 : vector<2x32xf32>
    %596 = arith.divf %594, %595 : vector<2x32xf32>
    %597 = vector.extract_strided_slice %587 {offsets = [0, 32], sizes = [2, 32], strides = [1, 1]} : vector<2x96xf32> to vector<2x32xf32>
    %598 = vector.extract_strided_slice %588 {offsets = [0, 32], sizes = [2, 32], strides = [1, 1]} : vector<2x96xf32> to vector<2x32xf32>
    %599 = arith.addf %597, %598 : vector<2x32xf32>
    %600 = arith.negf %599 : vector<2x32xf32>
    %601 = math.exp %600 : vector<2x32xf32>
    %cst_176 = arith.constant 1.000000e+00 : f32
    %602 = vector.broadcast %cst_176 : f32 to vector<2x32xf32>
    %603 = arith.addf %602, %601 : vector<2x32xf32>
    %604 = arith.divf %602, %603 : vector<2x32xf32>
    %605 = vector.extract_strided_slice %587 {offsets = [0, 64], sizes = [2, 32], strides = [1, 1]} : vector<2x96xf32> to vector<2x32xf32>
    %606 = vector.extract_strided_slice %588 {offsets = [0, 64], sizes = [2, 32], strides = [1, 1]} : vector<2x96xf32> to vector<2x32xf32>
    %607 = arith.addf %606, %362 : vector<2x32xf32>
    %608 = arith.mulf %596, %607 : vector<2x32xf32>
    %609 = arith.addf %605, %608 : vector<2x32xf32>
    %610 = math.tanh %609 : vector<2x32xf32>
    %611 = arith.subf %578, %610 : vector<2x32xf32>
    %612 = arith.mulf %604, %611 : vector<2x32xf32>
    %613 = arith.addf %610, %612 : vector<2x32xf32>
    %614 = arith.index_cast %c5_i32_171 : i32 to index
    %c0_177 = arith.constant 0 : index
    %c0_178 = arith.constant 0 : index
    %615 = vector.load %arg2[%614, %c0_177, %c0_178] : memref<8x2x1xf32, #tpu.memory_space<vmem>>, vector<1x2x1xf32>
    %616 = vector.shape_cast %615 : vector<1x2x1xf32> to vector<2x1xf32>
    %cst_179 = arith.constant 0.000000e+00 : f32
    %617 = vector.broadcast %cst_179 : f32 to vector<2x1xf32>
    %618 = arith.cmpf one, %616, %617 : vector<2x1xf32>
    %619 = vector.shape_cast %618 : vector<2x1xi1> to vector<2x1xi1>
    %620 = vector.broadcast %619 : vector<2x1xi1> to vector<2x32xi1>
    %621 = arith.select %620, %613, %578 : vector<2x32xi1>, vector<2x32xf32>
    %cst_180 = arith.constant dense<0.000000e+00> : vector<2x96xf32>
    %622 = tpu.matmul %621, %364, %cst_180 {dimension_numbers = #tpu.dot_dimension_numbers<[1], [0], [0], [1], [0, 0, 1, 1], [], []>} : vector<2x32xf32>, vector<32x96xf32>, vector<2x96xf32> -> vector<2x96xf32>
    %623 = arith.addf %622, %368 : vector<2x96xf32>
    %624 = arith.index_cast %c5_i32_171 : i32 to index
    %c0_181 = arith.constant 0 : index
    %c0_182 = arith.constant 0 : index
    %625 = vector.load %arg16[%624, %c0_181, %c0_182] : memref<8x2x96xf32, #tpu.memory_space<vmem>>, vector<1x2x96xf32>
    %626 = vector.shape_cast %625 : vector<1x2x96xf32> to vector<2x96xf32>
    %627 = vector.shape_cast %623 : vector<2x96xf32> to vector<1x2x96xf32>
    tpu.vector_store %arg16[%624, %c0_181, %c0_182], %627 {strides = array<i32>} : memref<8x2x96xf32, #tpu.memory_space<vmem>>, vector<1x2x96xf32>,
    %c6_i32_183 = arith.constant 6 : i32
    %628 = arith.index_cast %c6_i32_183 : i32 to index
    %c0_184 = arith.constant 0 : index
    %c0_185 = arith.constant 0 : index
    %629 = vector.load %arg16[%628, %c0_184, %c0_185] : memref<8x2x96xf32, #tpu.memory_space<vmem>>, vector<1x2x96xf32>
    %630 = vector.shape_cast %629 : vector<1x2x96xf32> to vector<2x96xf32>
    %cst_186 = arith.constant dense<0.000000e+00> : vector<2x96xf32>
    %631 = tpu.matmul %621, %358, %cst_186 {dimension_numbers = #tpu.dot_dimension_numbers<[1], [0], [0], [1], [0, 0, 1, 1], [], []>} : vector<2x32xf32>, vector<32x96xf32>, vector<2x96xf32> -> vector<2x96xf32>
    %632 = vector.extract_strided_slice %630 {offsets = [0, 0], sizes = [2, 32], strides = [1, 1]} : vector<2x96xf32> to vector<2x32xf32>
    %633 = vector.extract_strided_slice %631 {offsets = [0, 0], sizes = [2, 32], strides = [1, 1]} : vector<2x96xf32> to vector<2x32xf32>
    %634 = arith.addf %632, %633 : vector<2x32xf32>
    %635 = arith.negf %634 : vector<2x32xf32>
    %636 = math.exp %635 : vector<2x32xf32>
    %cst_187 = arith.constant 1.000000e+00 : f32
    %637 = vector.broadcast %cst_187 : f32 to vector<2x32xf32>
    %638 = arith.addf %637, %636 : vector<2x32xf32>
    %639 = arith.divf %637, %638 : vector<2x32xf32>
    %640 = vector.extract_strided_slice %630 {offsets = [0, 32], sizes = [2, 32], strides = [1, 1]} : vector<2x96xf32> to vector<2x32xf32>
    %641 = vector.extract_strided_slice %631 {offsets = [0, 32], sizes = [2, 32], strides = [1, 1]} : vector<2x96xf32> to vector<2x32xf32>
    %642 = arith.addf %640, %641 : vector<2x32xf32>
    %643 = arith.negf %642 : vector<2x32xf32>
    %644 = math.exp %643 : vector<2x32xf32>
    %cst_188 = arith.constant 1.000000e+00 : f32
    %645 = vector.broadcast %cst_188 : f32 to vector<2x32xf32>
    %646 = arith.addf %645, %644 : vector<2x32xf32>
    %647 = arith.divf %645, %646 : vector<2x32xf32>
    %648 = vector.extract_strided_slice %630 {offsets = [0, 64], sizes = [2, 32], strides = [1, 1]} : vector<2x96xf32> to vector<2x32xf32>
    %649 = vector.extract_strided_slice %631 {offsets = [0, 64], sizes = [2, 32], strides = [1, 1]} : vector<2x96xf32> to vector<2x32xf32>
    %650 = arith.addf %649, %362 : vector<2x32xf32>
    %651 = arith.mulf %639, %650 : vector<2x32xf32>
    %652 = arith.addf %648, %651 : vector<2x32xf32>
    %653 = math.tanh %652 : vector<2x32xf32>
    %654 = arith.subf %621, %653 : vector<2x32xf32>
    %655 = arith.mulf %647, %654 : vector<2x32xf32>
    %656 = arith.addf %653, %655 : vector<2x32xf32>
    %657 = arith.index_cast %c6_i32_183 : i32 to index
    %c0_189 = arith.constant 0 : index
    %c0_190 = arith.constant 0 : index
    %658 = vector.load %arg2[%657, %c0_189, %c0_190] : memref<8x2x1xf32, #tpu.memory_space<vmem>>, vector<1x2x1xf32>
    %659 = vector.shape_cast %658 : vector<1x2x1xf32> to vector<2x1xf32>
    %cst_191 = arith.constant 0.000000e+00 : f32
    %660 = vector.broadcast %cst_191 : f32 to vector<2x1xf32>
    %661 = arith.cmpf one, %659, %660 : vector<2x1xf32>
    %662 = vector.shape_cast %661 : vector<2x1xi1> to vector<2x1xi1>
    %663 = vector.broadcast %662 : vector<2x1xi1> to vector<2x32xi1>
    %664 = arith.select %663, %656, %621 : vector<2x32xi1>, vector<2x32xf32>
    %cst_192 = arith.constant dense<0.000000e+00> : vector<2x96xf32>
    %665 = tpu.matmul %664, %364, %cst_192 {dimension_numbers = #tpu.dot_dimension_numbers<[1], [0], [0], [1], [0, 0, 1, 1], [], []>} : vector<2x32xf32>, vector<32x96xf32>, vector<2x96xf32> -> vector<2x96xf32>
    %666 = arith.addf %665, %368 : vector<2x96xf32>
    %667 = arith.index_cast %c6_i32_183 : i32 to index
    %c0_193 = arith.constant 0 : index
    %c0_194 = arith.constant 0 : index
    %668 = vector.load %arg16[%667, %c0_193, %c0_194] : memref<8x2x96xf32, #tpu.memory_space<vmem>>, vector<1x2x96xf32>
    %669 = vector.shape_cast %668 : vector<1x2x96xf32> to vector<2x96xf32>
    %670 = vector.shape_cast %666 : vector<2x96xf32> to vector<1x2x96xf32>
    tpu.vector_store %arg16[%667, %c0_193, %c0_194], %670 {strides = array<i32>} : memref<8x2x96xf32, #tpu.memory_space<vmem>>, vector<1x2x96xf32>,
    %c7_i32_195 = arith.constant 7 : i32
    %671 = arith.index_cast %c7_i32_195 : i32 to index
    %c0_196 = arith.constant 0 : index
    %c0_197 = arith.constant 0 : index
    %672 = vector.load %arg16[%671, %c0_196, %c0_197] : memref<8x2x96xf32, #tpu.memory_space<vmem>>, vector<1x2x96xf32>
    %673 = vector.shape_cast %672 : vector<1x2x96xf32> to vector<2x96xf32>
    %cst_198 = arith.constant dense<0.000000e+00> : vector<2x96xf32>
    %674 = tpu.matmul %664, %358, %cst_198 {dimension_numbers = #tpu.dot_dimension_numbers<[1], [0], [0], [1], [0, 0, 1, 1], [], []>} : vector<2x32xf32>, vector<32x96xf32>, vector<2x96xf32> -> vector<2x96xf32>
    %675 = vector.extract_strided_slice %673 {offsets = [0, 0], sizes = [2, 32], strides = [1, 1]} : vector<2x96xf32> to vector<2x32xf32>
    %676 = vector.extract_strided_slice %674 {offsets = [0, 0], sizes = [2, 32], strides = [1, 1]} : vector<2x96xf32> to vector<2x32xf32>
    %677 = arith.addf %675, %676 : vector<2x32xf32>
    %678 = arith.negf %677 : vector<2x32xf32>
    %679 = math.exp %678 : vector<2x32xf32>
    %cst_199 = arith.constant 1.000000e+00 : f32
    %680 = vector.broadcast %cst_199 : f32 to vector<2x32xf32>
    %681 = arith.addf %680, %679 : vector<2x32xf32>
    %682 = arith.divf %680, %681 : vector<2x32xf32>
    %683 = vector.extract_strided_slice %673 {offsets = [0, 32], sizes = [2, 32], strides = [1, 1]} : vector<2x96xf32> to vector<2x32xf32>
    %684 = vector.extract_strided_slice %674 {offsets = [0, 32], sizes = [2, 32], strides = [1, 1]} : vector<2x96xf32> to vector<2x32xf32>
    %685 = arith.addf %683, %684 : vector<2x32xf32>
    %686 = arith.negf %685 : vector<2x32xf32>
    %687 = math.exp %686 : vector<2x32xf32>
    %cst_200 = arith.constant 1.000000e+00 : f32
    %688 = vector.broadcast %cst_200 : f32 to vector<2x32xf32>
    %689 = arith.addf %688, %687 : vector<2x32xf32>
    %690 = arith.divf %688, %689 : vector<2x32xf32>
    %691 = vector.extract_strided_slice %673 {offsets = [0, 64], sizes = [2, 32], strides = [1, 1]} : vector<2x96xf32> to vector<2x32xf32>
    %692 = vector.extract_strided_slice %674 {offsets = [0, 64], sizes = [2, 32], strides = [1, 1]} : vector<2x96xf32> to vector<2x32xf32>
    %693 = arith.addf %692, %362 : vector<2x32xf32>
    %694 = arith.mulf %682, %693 : vector<2x32xf32>
    %695 = arith.addf %691, %694 : vector<2x32xf32>
    %696 = math.tanh %695 : vector<2x32xf32>
    %697 = arith.subf %664, %696 : vector<2x32xf32>
    %698 = arith.mulf %690, %697 : vector<2x32xf32>
    %699 = arith.addf %696, %698 : vector<2x32xf32>
    %700 = arith.index_cast %c7_i32_195 : i32 to index
    %c0_201 = arith.constant 0 : index
    %c0_202 = arith.constant 0 : index
    %701 = vector.load %arg2[%700, %c0_201, %c0_202] : memref<8x2x1xf32, #tpu.memory_space<vmem>>, vector<1x2x1xf32>
    %702 = vector.shape_cast %701 : vector<1x2x1xf32> to vector<2x1xf32>
    %cst_203 = arith.constant 0.000000e+00 : f32
    %703 = vector.broadcast %cst_203 : f32 to vector<2x1xf32>
    %704 = arith.cmpf one, %702, %703 : vector<2x1xf32>
    %705 = vector.shape_cast %704 : vector<2x1xi1> to vector<2x1xi1>
    %706 = vector.broadcast %705 : vector<2x1xi1> to vector<2x32xi1>
    %707 = arith.select %706, %699, %664 : vector<2x32xi1>, vector<2x32xf32>
    %cst_204 = arith.constant dense<0.000000e+00> : vector<2x96xf32>
    %708 = tpu.matmul %707, %364, %cst_204 {dimension_numbers = #tpu.dot_dimension_numbers<[1], [0], [0], [1], [0, 0, 1, 1], [], []>} : vector<2x32xf32>, vector<32x96xf32>, vector<2x96xf32> -> vector<2x96xf32>
    %709 = arith.addf %708, %368 : vector<2x96xf32>
    %710 = arith.index_cast %c7_i32_195 : i32 to index
    %c0_205 = arith.constant 0 : index
    %c0_206 = arith.constant 0 : index
    %711 = vector.load %arg16[%710, %c0_205, %c0_206] : memref<8x2x96xf32, #tpu.memory_space<vmem>>, vector<1x2x96xf32>
    %712 = vector.shape_cast %711 : vector<1x2x96xf32> to vector<2x96xf32>
    %713 = vector.shape_cast %709 : vector<2x96xf32> to vector<1x2x96xf32>
    tpu.vector_store %arg16[%710, %c0_205, %c0_206], %713 {strides = array<i32>} : memref<8x2x96xf32, #tpu.memory_space<vmem>>, vector<1x2x96xf32>,
    %c8_i32_207 = arith.constant 8 : i32
    %c2 = arith.constant 2 : index
    %c0_208 = arith.constant 0 : index
    %c0_209 = arith.constant 0 : index
    %714 = vector.load %arg3[%c2, %c0_208, %c0_209] : memref<3x32x96xf32, #tpu.memory_space<vmem>>, vector<1x32x96xf32>
    %715 = vector.shape_cast %714 : vector<1x32x96xf32> to vector<32x96xf32>
    %c2_210 = arith.constant 2 : index
    %c0_211 = arith.constant 0 : index
    %c0_212 = arith.constant 0 : index
    %716 = vector.load %arg6[%c2_210, %c0_211, %c0_212] : memref<3x1x32xf32, #tpu.memory_space<vmem>>, vector<1x1x32xf32>
    %717 = vector.shape_cast %716 : vector<1x1x32xf32> to vector<1x32xf32>
    %718 = vector.shape_cast %717 : vector<1x32xf32> to vector<1x32xf32>
    %719 = vector.broadcast %718 : vector<1x32xf32> to vector<2x32xf32>
    %cst_213 = arith.constant 0.000000e+00 : f32
    %720 = vector.broadcast %cst_213 : f32 to vector<2x32xf32>
    %c0_i32_214 = arith.constant 0 : i32
    %721 = arith.index_cast %c0_i32_214 : i32 to index
    %c0_215 = arith.constant 0 : index
    %c0_216 = arith.constant 0 : index
    %722 = vector.load %arg16[%721, %c0_215, %c0_216] : memref<8x2x96xf32, #tpu.memory_space<vmem>>, vector<1x2x96xf32>
    %723 = vector.shape_cast %722 : vector<1x2x96xf32> to vector<2x96xf32>
    %cst_217 = arith.constant dense<0.000000e+00> : vector<2x96xf32>
    %724 = tpu.matmul %720, %715, %cst_217 {dimension_numbers = #tpu.dot_dimension_numbers<[1], [0], [0], [1], [0, 0, 1, 1], [], []>} : vector<2x32xf32>, vector<32x96xf32>, vector<2x96xf32> -> vector<2x96xf32>
    %725 = vector.extract_strided_slice %723 {offsets = [0, 0], sizes = [2, 32], strides = [1, 1]} : vector<2x96xf32> to vector<2x32xf32>
    %726 = vector.extract_strided_slice %724 {offsets = [0, 0], sizes = [2, 32], strides = [1, 1]} : vector<2x96xf32> to vector<2x32xf32>
    %727 = arith.addf %725, %726 : vector<2x32xf32>
    %728 = arith.negf %727 : vector<2x32xf32>
    %729 = math.exp %728 : vector<2x32xf32>
    %cst_218 = arith.constant 1.000000e+00 : f32
    %730 = vector.broadcast %cst_218 : f32 to vector<2x32xf32>
    %731 = arith.addf %730, %729 : vector<2x32xf32>
    %732 = arith.divf %730, %731 : vector<2x32xf32>
    %733 = vector.extract_strided_slice %723 {offsets = [0, 32], sizes = [2, 32], strides = [1, 1]} : vector<2x96xf32> to vector<2x32xf32>
    %734 = vector.extract_strided_slice %724 {offsets = [0, 32], sizes = [2, 32], strides = [1, 1]} : vector<2x96xf32> to vector<2x32xf32>
    %735 = arith.addf %733, %734 : vector<2x32xf32>
    %736 = arith.negf %735 : vector<2x32xf32>
    %737 = math.exp %736 : vector<2x32xf32>
    %cst_219 = arith.constant 1.000000e+00 : f32
    %738 = vector.broadcast %cst_219 : f32 to vector<2x32xf32>
    %739 = arith.addf %738, %737 : vector<2x32xf32>
    %740 = arith.divf %738, %739 : vector<2x32xf32>
    %741 = vector.extract_strided_slice %723 {offsets = [0, 64], sizes = [2, 32], strides = [1, 1]} : vector<2x96xf32> to vector<2x32xf32>
    %742 = vector.extract_strided_slice %724 {offsets = [0, 64], sizes = [2, 32], strides = [1, 1]} : vector<2x96xf32> to vector<2x32xf32>
    %743 = arith.addf %742, %719 : vector<2x32xf32>
    %744 = arith.mulf %732, %743 : vector<2x32xf32>
    %745 = arith.addf %741, %744 : vector<2x32xf32>
    %746 = math.tanh %745 : vector<2x32xf32>
    %747 = arith.subf %720, %746 : vector<2x32xf32>
    %748 = arith.mulf %740, %747 : vector<2x32xf32>
    %749 = arith.addf %746, %748 : vector<2x32xf32>
    %750 = arith.index_cast %c0_i32_214 : i32 to index
    %c0_220 = arith.constant 0 : index
    %c0_221 = arith.constant 0 : index
    %751 = vector.load %arg2[%750, %c0_220, %c0_221] : memref<8x2x1xf32, #tpu.memory_space<vmem>>, vector<1x2x1xf32>
    %752 = vector.shape_cast %751 : vector<1x2x1xf32> to vector<2x1xf32>
    %cst_222 = arith.constant 0.000000e+00 : f32
    %753 = vector.broadcast %cst_222 : f32 to vector<2x1xf32>
    %754 = arith.cmpf one, %752, %753 : vector<2x1xf32>
    %755 = vector.shape_cast %754 : vector<2x1xi1> to vector<2x1xi1>
    %756 = vector.broadcast %755 : vector<2x1xi1> to vector<2x32xi1>
    %757 = arith.select %756, %749, %720 : vector<2x32xi1>, vector<2x32xf32>
    %c1_i32_223 = arith.constant 1 : i32
    %758 = arith.index_cast %c1_i32_223 : i32 to index
    %c0_224 = arith.constant 0 : index
    %c0_225 = arith.constant 0 : index
    %759 = vector.load %arg16[%758, %c0_224, %c0_225] : memref<8x2x96xf32, #tpu.memory_space<vmem>>, vector<1x2x96xf32>
    %760 = vector.shape_cast %759 : vector<1x2x96xf32> to vector<2x96xf32>
    %cst_226 = arith.constant dense<0.000000e+00> : vector<2x96xf32>
    %761 = tpu.matmul %757, %715, %cst_226 {dimension_numbers = #tpu.dot_dimension_numbers<[1], [0], [0], [1], [0, 0, 1, 1], [], []>} : vector<2x32xf32>, vector<32x96xf32>, vector<2x96xf32> -> vector<2x96xf32>
    %762 = vector.extract_strided_slice %760 {offsets = [0, 0], sizes = [2, 32], strides = [1, 1]} : vector<2x96xf32> to vector<2x32xf32>
    %763 = vector.extract_strided_slice %761 {offsets = [0, 0], sizes = [2, 32], strides = [1, 1]} : vector<2x96xf32> to vector<2x32xf32>
    %764 = arith.addf %762, %763 : vector<2x32xf32>
    %765 = arith.negf %764 : vector<2x32xf32>
    %766 = math.exp %765 : vector<2x32xf32>
    %cst_227 = arith.constant 1.000000e+00 : f32
    %767 = vector.broadcast %cst_227 : f32 to vector<2x32xf32>
    %768 = arith.addf %767, %766 : vector<2x32xf32>
    %769 = arith.divf %767, %768 : vector<2x32xf32>
    %770 = vector.extract_strided_slice %760 {offsets = [0, 32], sizes = [2, 32], strides = [1, 1]} : vector<2x96xf32> to vector<2x32xf32>
    %771 = vector.extract_strided_slice %761 {offsets = [0, 32], sizes = [2, 32], strides = [1, 1]} : vector<2x96xf32> to vector<2x32xf32>
    %772 = arith.addf %770, %771 : vector<2x32xf32>
    %773 = arith.negf %772 : vector<2x32xf32>
    %774 = math.exp %773 : vector<2x32xf32>
    %cst_228 = arith.constant 1.000000e+00 : f32
    %775 = vector.broadcast %cst_228 : f32 to vector<2x32xf32>
    %776 = arith.addf %775, %774 : vector<2x32xf32>
    %777 = arith.divf %775, %776 : vector<2x32xf32>
    %778 = vector.extract_strided_slice %760 {offsets = [0, 64], sizes = [2, 32], strides = [1, 1]} : vector<2x96xf32> to vector<2x32xf32>
    %779 = vector.extract_strided_slice %761 {offsets = [0, 64], sizes = [2, 32], strides = [1, 1]} : vector<2x96xf32> to vector<2x32xf32>
    %780 = arith.addf %779, %719 : vector<2x32xf32>
    %781 = arith.mulf %769, %780 : vector<2x32xf32>
    %782 = arith.addf %778, %781 : vector<2x32xf32>
    %783 = math.tanh %782 : vector<2x32xf32>
    %784 = arith.subf %757, %783 : vector<2x32xf32>
    %785 = arith.mulf %777, %784 : vector<2x32xf32>
    %786 = arith.addf %783, %785 : vector<2x32xf32>
    %787 = arith.index_cast %c1_i32_223 : i32 to index
    %c0_229 = arith.constant 0 : index
    %c0_230 = arith.constant 0 : index
    %788 = vector.load %arg2[%787, %c0_229, %c0_230] : memref<8x2x1xf32, #tpu.memory_space<vmem>>, vector<1x2x1xf32>
    %789 = vector.shape_cast %788 : vector<1x2x1xf32> to vector<2x1xf32>
    %cst_231 = arith.constant 0.000000e+00 : f32
    %790 = vector.broadcast %cst_231 : f32 to vector<2x1xf32>
    %791 = arith.cmpf one, %789, %790 : vector<2x1xf32>
    %792 = vector.shape_cast %791 : vector<2x1xi1> to vector<2x1xi1>
    %793 = vector.broadcast %792 : vector<2x1xi1> to vector<2x32xi1>
    %794 = arith.select %793, %786, %757 : vector<2x32xi1>, vector<2x32xf32>
    %c2_i32_232 = arith.constant 2 : i32
    %795 = arith.index_cast %c2_i32_232 : i32 to index
    %c0_233 = arith.constant 0 : index
    %c0_234 = arith.constant 0 : index
    %796 = vector.load %arg16[%795, %c0_233, %c0_234] : memref<8x2x96xf32, #tpu.memory_space<vmem>>, vector<1x2x96xf32>
    %797 = vector.shape_cast %796 : vector<1x2x96xf32> to vector<2x96xf32>
    %cst_235 = arith.constant dense<0.000000e+00> : vector<2x96xf32>
    %798 = tpu.matmul %794, %715, %cst_235 {dimension_numbers = #tpu.dot_dimension_numbers<[1], [0], [0], [1], [0, 0, 1, 1], [], []>} : vector<2x32xf32>, vector<32x96xf32>, vector<2x96xf32> -> vector<2x96xf32>
    %799 = vector.extract_strided_slice %797 {offsets = [0, 0], sizes = [2, 32], strides = [1, 1]} : vector<2x96xf32> to vector<2x32xf32>
    %800 = vector.extract_strided_slice %798 {offsets = [0, 0], sizes = [2, 32], strides = [1, 1]} : vector<2x96xf32> to vector<2x32xf32>
    %801 = arith.addf %799, %800 : vector<2x32xf32>
    %802 = arith.negf %801 : vector<2x32xf32>
    %803 = math.exp %802 : vector<2x32xf32>
    %cst_236 = arith.constant 1.000000e+00 : f32
    %804 = vector.broadcast %cst_236 : f32 to vector<2x32xf32>
    %805 = arith.addf %804, %803 : vector<2x32xf32>
    %806 = arith.divf %804, %805 : vector<2x32xf32>
    %807 = vector.extract_strided_slice %797 {offsets = [0, 32], sizes = [2, 32], strides = [1, 1]} : vector<2x96xf32> to vector<2x32xf32>
    %808 = vector.extract_strided_slice %798 {offsets = [0, 32], sizes = [2, 32], strides = [1, 1]} : vector<2x96xf32> to vector<2x32xf32>
    %809 = arith.addf %807, %808 : vector<2x32xf32>
    %810 = arith.negf %809 : vector<2x32xf32>
    %811 = math.exp %810 : vector<2x32xf32>
    %cst_237 = arith.constant 1.000000e+00 : f32
    %812 = vector.broadcast %cst_237 : f32 to vector<2x32xf32>
    %813 = arith.addf %812, %811 : vector<2x32xf32>
    %814 = arith.divf %812, %813 : vector<2x32xf32>
    %815 = vector.extract_strided_slice %797 {offsets = [0, 64], sizes = [2, 32], strides = [1, 1]} : vector<2x96xf32> to vector<2x32xf32>
    %816 = vector.extract_strided_slice %798 {offsets = [0, 64], sizes = [2, 32], strides = [1, 1]} : vector<2x96xf32> to vector<2x32xf32>
    %817 = arith.addf %816, %719 : vector<2x32xf32>
    %818 = arith.mulf %806, %817 : vector<2x32xf32>
    %819 = arith.addf %815, %818 : vector<2x32xf32>
    %820 = math.tanh %819 : vector<2x32xf32>
    %821 = arith.subf %794, %820 : vector<2x32xf32>
    %822 = arith.mulf %814, %821 : vector<2x32xf32>
    %823 = arith.addf %820, %822 : vector<2x32xf32>
    %824 = arith.index_cast %c2_i32_232 : i32 to index
    %c0_238 = arith.constant 0 : index
    %c0_239 = arith.constant 0 : index
    %825 = vector.load %arg2[%824, %c0_238, %c0_239] : memref<8x2x1xf32, #tpu.memory_space<vmem>>, vector<1x2x1xf32>
    %826 = vector.shape_cast %825 : vector<1x2x1xf32> to vector<2x1xf32>
    %cst_240 = arith.constant 0.000000e+00 : f32
    %827 = vector.broadcast %cst_240 : f32 to vector<2x1xf32>
    %828 = arith.cmpf one, %826, %827 : vector<2x1xf32>
    %829 = vector.shape_cast %828 : vector<2x1xi1> to vector<2x1xi1>
    %830 = vector.broadcast %829 : vector<2x1xi1> to vector<2x32xi1>
    %831 = arith.select %830, %823, %794 : vector<2x32xi1>, vector<2x32xf32>
    %c3_i32_241 = arith.constant 3 : i32
    %832 = arith.index_cast %c3_i32_241 : i32 to index
    %c0_242 = arith.constant 0 : index
    %c0_243 = arith.constant 0 : index
    %833 = vector.load %arg16[%832, %c0_242, %c0_243] : memref<8x2x96xf32, #tpu.memory_space<vmem>>, vector<1x2x96xf32>
    %834 = vector.shape_cast %833 : vector<1x2x96xf32> to vector<2x96xf32>
    %cst_244 = arith.constant dense<0.000000e+00> : vector<2x96xf32>
    %835 = tpu.matmul %831, %715, %cst_244 {dimension_numbers = #tpu.dot_dimension_numbers<[1], [0], [0], [1], [0, 0, 1, 1], [], []>} : vector<2x32xf32>, vector<32x96xf32>, vector<2x96xf32> -> vector<2x96xf32>
    %836 = vector.extract_strided_slice %834 {offsets = [0, 0], sizes = [2, 32], strides = [1, 1]} : vector<2x96xf32> to vector<2x32xf32>
    %837 = vector.extract_strided_slice %835 {offsets = [0, 0], sizes = [2, 32], strides = [1, 1]} : vector<2x96xf32> to vector<2x32xf32>
    %838 = arith.addf %836, %837 : vector<2x32xf32>
    %839 = arith.negf %838 : vector<2x32xf32>
    %840 = math.exp %839 : vector<2x32xf32>
    %cst_245 = arith.constant 1.000000e+00 : f32
    %841 = vector.broadcast %cst_245 : f32 to vector<2x32xf32>
    %842 = arith.addf %841, %840 : vector<2x32xf32>
    %843 = arith.divf %841, %842 : vector<2x32xf32>
    %844 = vector.extract_strided_slice %834 {offsets = [0, 32], sizes = [2, 32], strides = [1, 1]} : vector<2x96xf32> to vector<2x32xf32>
    %845 = vector.extract_strided_slice %835 {offsets = [0, 32], sizes = [2, 32], strides = [1, 1]} : vector<2x96xf32> to vector<2x32xf32>
    %846 = arith.addf %844, %845 : vector<2x32xf32>
    %847 = arith.negf %846 : vector<2x32xf32>
    %848 = math.exp %847 : vector<2x32xf32>
    %cst_246 = arith.constant 1.000000e+00 : f32
    %849 = vector.broadcast %cst_246 : f32 to vector<2x32xf32>
    %850 = arith.addf %849, %848 : vector<2x32xf32>
    %851 = arith.divf %849, %850 : vector<2x32xf32>
    %852 = vector.extract_strided_slice %834 {offsets = [0, 64], sizes = [2, 32], strides = [1, 1]} : vector<2x96xf32> to vector<2x32xf32>
    %853 = vector.extract_strided_slice %835 {offsets = [0, 64], sizes = [2, 32], strides = [1, 1]} : vector<2x96xf32> to vector<2x32xf32>
    %854 = arith.addf %853, %719 : vector<2x32xf32>
    %855 = arith.mulf %843, %854 : vector<2x32xf32>
    %856 = arith.addf %852, %855 : vector<2x32xf32>
    %857 = math.tanh %856 : vector<2x32xf32>
    %858 = arith.subf %831, %857 : vector<2x32xf32>
    %859 = arith.mulf %851, %858 : vector<2x32xf32>
    %860 = arith.addf %857, %859 : vector<2x32xf32>
    %861 = arith.index_cast %c3_i32_241 : i32 to index
    %c0_247 = arith.constant 0 : index
    %c0_248 = arith.constant 0 : index
    %862 = vector.load %arg2[%861, %c0_247, %c0_248] : memref<8x2x1xf32, #tpu.memory_space<vmem>>, vector<1x2x1xf32>
    %863 = vector.shape_cast %862 : vector<1x2x1xf32> to vector<2x1xf32>
    %cst_249 = arith.constant 0.000000e+00 : f32
    %864 = vector.broadcast %cst_249 : f32 to vector<2x1xf32>
    %865 = arith.cmpf one, %863, %864 : vector<2x1xf32>
    %866 = vector.shape_cast %865 : vector<2x1xi1> to vector<2x1xi1>
    %867 = vector.broadcast %866 : vector<2x1xi1> to vector<2x32xi1>
    %868 = arith.select %867, %860, %831 : vector<2x32xi1>, vector<2x32xf32>
    %c4_i32_250 = arith.constant 4 : i32
    %869 = arith.index_cast %c4_i32_250 : i32 to index
    %c0_251 = arith.constant 0 : index
    %c0_252 = arith.constant 0 : index
    %870 = vector.load %arg16[%869, %c0_251, %c0_252] : memref<8x2x96xf32, #tpu.memory_space<vmem>>, vector<1x2x96xf32>
    %871 = vector.shape_cast %870 : vector<1x2x96xf32> to vector<2x96xf32>
    %cst_253 = arith.constant dense<0.000000e+00> : vector<2x96xf32>
    %872 = tpu.matmul %868, %715, %cst_253 {dimension_numbers = #tpu.dot_dimension_numbers<[1], [0], [0], [1], [0, 0, 1, 1], [], []>} : vector<2x32xf32>, vector<32x96xf32>, vector<2x96xf32> -> vector<2x96xf32>
    %873 = vector.extract_strided_slice %871 {offsets = [0, 0], sizes = [2, 32], strides = [1, 1]} : vector<2x96xf32> to vector<2x32xf32>
    %874 = vector.extract_strided_slice %872 {offsets = [0, 0], sizes = [2, 32], strides = [1, 1]} : vector<2x96xf32> to vector<2x32xf32>
    %875 = arith.addf %873, %874 : vector<2x32xf32>
    %876 = arith.negf %875 : vector<2x32xf32>
    %877 = math.exp %876 : vector<2x32xf32>
    %cst_254 = arith.constant 1.000000e+00 : f32
    %878 = vector.broadcast %cst_254 : f32 to vector<2x32xf32>
    %879 = arith.addf %878, %877 : vector<2x32xf32>
    %880 = arith.divf %878, %879 : vector<2x32xf32>
    %881 = vector.extract_strided_slice %871 {offsets = [0, 32], sizes = [2, 32], strides = [1, 1]} : vector<2x96xf32> to vector<2x32xf32>
    %882 = vector.extract_strided_slice %872 {offsets = [0, 32], sizes = [2, 32], strides = [1, 1]} : vector<2x96xf32> to vector<2x32xf32>
    %883 = arith.addf %881, %882 : vector<2x32xf32>
    %884 = arith.negf %883 : vector<2x32xf32>
    %885 = math.exp %884 : vector<2x32xf32>
    %cst_255 = arith.constant 1.000000e+00 : f32
    %886 = vector.broadcast %cst_255 : f32 to vector<2x32xf32>
    %887 = arith.addf %886, %885 : vector<2x32xf32>
    %888 = arith.divf %886, %887 : vector<2x32xf32>
    %889 = vector.extract_strided_slice %871 {offsets = [0, 64], sizes = [2, 32], strides = [1, 1]} : vector<2x96xf32> to vector<2x32xf32>
    %890 = vector.extract_strided_slice %872 {offsets = [0, 64], sizes = [2, 32], strides = [1, 1]} : vector<2x96xf32> to vector<2x32xf32>
    %891 = arith.addf %890, %719 : vector<2x32xf32>
    %892 = arith.mulf %880, %891 : vector<2x32xf32>
    %893 = arith.addf %889, %892 : vector<2x32xf32>
    %894 = math.tanh %893 : vector<2x32xf32>
    %895 = arith.subf %868, %894 : vector<2x32xf32>
    %896 = arith.mulf %888, %895 : vector<2x32xf32>
    %897 = arith.addf %894, %896 : vector<2x32xf32>
    %898 = arith.index_cast %c4_i32_250 : i32 to index
    %c0_256 = arith.constant 0 : index
    %c0_257 = arith.constant 0 : index
    %899 = vector.load %arg2[%898, %c0_256, %c0_257] : memref<8x2x1xf32, #tpu.memory_space<vmem>>, vector<1x2x1xf32>
    %900 = vector.shape_cast %899 : vector<1x2x1xf32> to vector<2x1xf32>
    %cst_258 = arith.constant 0.000000e+00 : f32
    %901 = vector.broadcast %cst_258 : f32 to vector<2x1xf32>
    %902 = arith.cmpf one, %900, %901 : vector<2x1xf32>
    %903 = vector.shape_cast %902 : vector<2x1xi1> to vector<2x1xi1>
    %904 = vector.broadcast %903 : vector<2x1xi1> to vector<2x32xi1>
    %905 = arith.select %904, %897, %868 : vector<2x32xi1>, vector<2x32xf32>
    %c5_i32_259 = arith.constant 5 : i32
    %906 = arith.index_cast %c5_i32_259 : i32 to index
    %c0_260 = arith.constant 0 : index
    %c0_261 = arith.constant 0 : index
    %907 = vector.load %arg16[%906, %c0_260, %c0_261] : memref<8x2x96xf32, #tpu.memory_space<vmem>>, vector<1x2x96xf32>
    %908 = vector.shape_cast %907 : vector<1x2x96xf32> to vector<2x96xf32>
    %cst_262 = arith.constant dense<0.000000e+00> : vector<2x96xf32>
    %909 = tpu.matmul %905, %715, %cst_262 {dimension_numbers = #tpu.dot_dimension_numbers<[1], [0], [0], [1], [0, 0, 1, 1], [], []>} : vector<2x32xf32>, vector<32x96xf32>, vector<2x96xf32> -> vector<2x96xf32>
    %910 = vector.extract_strided_slice %908 {offsets = [0, 0], sizes = [2, 32], strides = [1, 1]} : vector<2x96xf32> to vector<2x32xf32>
    %911 = vector.extract_strided_slice %909 {offsets = [0, 0], sizes = [2, 32], strides = [1, 1]} : vector<2x96xf32> to vector<2x32xf32>
    %912 = arith.addf %910, %911 : vector<2x32xf32>
    %913 = arith.negf %912 : vector<2x32xf32>
    %914 = math.exp %913 : vector<2x32xf32>
    %cst_263 = arith.constant 1.000000e+00 : f32
    %915 = vector.broadcast %cst_263 : f32 to vector<2x32xf32>
    %916 = arith.addf %915, %914 : vector<2x32xf32>
    %917 = arith.divf %915, %916 : vector<2x32xf32>
    %918 = vector.extract_strided_slice %908 {offsets = [0, 32], sizes = [2, 32], strides = [1, 1]} : vector<2x96xf32> to vector<2x32xf32>
    %919 = vector.extract_strided_slice %909 {offsets = [0, 32], sizes = [2, 32], strides = [1, 1]} : vector<2x96xf32> to vector<2x32xf32>
    %920 = arith.addf %918, %919 : vector<2x32xf32>
    %921 = arith.negf %920 : vector<2x32xf32>
    %922 = math.exp %921 : vector<2x32xf32>
    %cst_264 = arith.constant 1.000000e+00 : f32
    %923 = vector.broadcast %cst_264 : f32 to vector<2x32xf32>
    %924 = arith.addf %923, %922 : vector<2x32xf32>
    %925 = arith.divf %923, %924 : vector<2x32xf32>
    %926 = vector.extract_strided_slice %908 {offsets = [0, 64], sizes = [2, 32], strides = [1, 1]} : vector<2x96xf32> to vector<2x32xf32>
    %927 = vector.extract_strided_slice %909 {offsets = [0, 64], sizes = [2, 32], strides = [1, 1]} : vector<2x96xf32> to vector<2x32xf32>
    %928 = arith.addf %927, %719 : vector<2x32xf32>
    %929 = arith.mulf %917, %928 : vector<2x32xf32>
    %930 = arith.addf %926, %929 : vector<2x32xf32>
    %931 = math.tanh %930 : vector<2x32xf32>
    %932 = arith.subf %905, %931 : vector<2x32xf32>
    %933 = arith.mulf %925, %932 : vector<2x32xf32>
    %934 = arith.addf %931, %933 : vector<2x32xf32>
    %935 = arith.index_cast %c5_i32_259 : i32 to index
    %c0_265 = arith.constant 0 : index
    %c0_266 = arith.constant 0 : index
    %936 = vector.load %arg2[%935, %c0_265, %c0_266] : memref<8x2x1xf32, #tpu.memory_space<vmem>>, vector<1x2x1xf32>
    %937 = vector.shape_cast %936 : vector<1x2x1xf32> to vector<2x1xf32>
    %cst_267 = arith.constant 0.000000e+00 : f32
    %938 = vector.broadcast %cst_267 : f32 to vector<2x1xf32>
    %939 = arith.cmpf one, %937, %938 : vector<2x1xf32>
    %940 = vector.shape_cast %939 : vector<2x1xi1> to vector<2x1xi1>
    %941 = vector.broadcast %940 : vector<2x1xi1> to vector<2x32xi1>
    %942 = arith.select %941, %934, %905 : vector<2x32xi1>, vector<2x32xf32>
    %c6_i32_268 = arith.constant 6 : i32
    %943 = arith.index_cast %c6_i32_268 : i32 to index
    %c0_269 = arith.constant 0 : index
    %c0_270 = arith.constant 0 : index
    %944 = vector.load %arg16[%943, %c0_269, %c0_270] : memref<8x2x96xf32, #tpu.memory_space<vmem>>, vector<1x2x96xf32>
    %945 = vector.shape_cast %944 : vector<1x2x96xf32> to vector<2x96xf32>
    %cst_271 = arith.constant dense<0.000000e+00> : vector<2x96xf32>
    %946 = tpu.matmul %942, %715, %cst_271 {dimension_numbers = #tpu.dot_dimension_numbers<[1], [0], [0], [1], [0, 0, 1, 1], [], []>} : vector<2x32xf32>, vector<32x96xf32>, vector<2x96xf32> -> vector<2x96xf32>
    %947 = vector.extract_strided_slice %945 {offsets = [0, 0], sizes = [2, 32], strides = [1, 1]} : vector<2x96xf32> to vector<2x32xf32>
    %948 = vector.extract_strided_slice %946 {offsets = [0, 0], sizes = [2, 32], strides = [1, 1]} : vector<2x96xf32> to vector<2x32xf32>
    %949 = arith.addf %947, %948 : vector<2x32xf32>
    %950 = arith.negf %949 : vector<2x32xf32>
    %951 = math.exp %950 : vector<2x32xf32>
    %cst_272 = arith.constant 1.000000e+00 : f32
    %952 = vector.broadcast %cst_272 : f32 to vector<2x32xf32>
    %953 = arith.addf %952, %951 : vector<2x32xf32>
    %954 = arith.divf %952, %953 : vector<2x32xf32>
    %955 = vector.extract_strided_slice %945 {offsets = [0, 32], sizes = [2, 32], strides = [1, 1]} : vector<2x96xf32> to vector<2x32xf32>
    %956 = vector.extract_strided_slice %946 {offsets = [0, 32], sizes = [2, 32], strides = [1, 1]} : vector<2x96xf32> to vector<2x32xf32>
    %957 = arith.addf %955, %956 : vector<2x32xf32>
    %958 = arith.negf %957 : vector<2x32xf32>
    %959 = math.exp %958 : vector<2x32xf32>
    %cst_273 = arith.constant 1.000000e+00 : f32
    %960 = vector.broadcast %cst_273 : f32 to vector<2x32xf32>
    %961 = arith.addf %960, %959 : vector<2x32xf32>
    %962 = arith.divf %960, %961 : vector<2x32xf32>
    %963 = vector.extract_strided_slice %945 {offsets = [0, 64], sizes = [2, 32], strides = [1, 1]} : vector<2x96xf32> to vector<2x32xf32>
    %964 = vector.extract_strided_slice %946 {offsets = [0, 64], sizes = [2, 32], strides = [1, 1]} : vector<2x96xf32> to vector<2x32xf32>
    %965 = arith.addf %964, %719 : vector<2x32xf32>
    %966 = arith.mulf %954, %965 : vector<2x32xf32>
    %967 = arith.addf %963, %966 : vector<2x32xf32>
    %968 = math.tanh %967 : vector<2x32xf32>
    %969 = arith.subf %942, %968 : vector<2x32xf32>
    %970 = arith.mulf %962, %969 : vector<2x32xf32>
    %971 = arith.addf %968, %970 : vector<2x32xf32>
    %972 = arith.index_cast %c6_i32_268 : i32 to index
    %c0_274 = arith.constant 0 : index
    %c0_275 = arith.constant 0 : index
    %973 = vector.load %arg2[%972, %c0_274, %c0_275] : memref<8x2x1xf32, #tpu.memory_space<vmem>>, vector<1x2x1xf32>
    %974 = vector.shape_cast %973 : vector<1x2x1xf32> to vector<2x1xf32>
    %cst_276 = arith.constant 0.000000e+00 : f32
    %975 = vector.broadcast %cst_276 : f32 to vector<2x1xf32>
    %976 = arith.cmpf one, %974, %975 : vector<2x1xf32>
    %977 = vector.shape_cast %976 : vector<2x1xi1> to vector<2x1xi1>
    %978 = vector.broadcast %977 : vector<2x1xi1> to vector<2x32xi1>
    %979 = arith.select %978, %971, %942 : vector<2x32xi1>, vector<2x32xf32>
    %c7_i32_277 = arith.constant 7 : i32
    %980 = arith.index_cast %c7_i32_277 : i32 to index
    %c0_278 = arith.constant 0 : index
    %c0_279 = arith.constant 0 : index
    %981 = vector.load %arg16[%980, %c0_278, %c0_279] : memref<8x2x96xf32, #tpu.memory_space<vmem>>, vector<1x2x96xf32>
    %982 = vector.shape_cast %981 : vector<1x2x96xf32> to vector<2x96xf32>
    %cst_280 = arith.constant dense<0.000000e+00> : vector<2x96xf32>
    %983 = tpu.matmul %979, %715, %cst_280 {dimension_numbers = #tpu.dot_dimension_numbers<[1], [0], [0], [1], [0, 0, 1, 1], [], []>} : vector<2x32xf32>, vector<32x96xf32>, vector<2x96xf32> -> vector<2x96xf32>
    %984 = vector.extract_strided_slice %982 {offsets = [0, 0], sizes = [2, 32], strides = [1, 1]} : vector<2x96xf32> to vector<2x32xf32>
    %985 = vector.extract_strided_slice %983 {offsets = [0, 0], sizes = [2, 32], strides = [1, 1]} : vector<2x96xf32> to vector<2x32xf32>
    %986 = arith.addf %984, %985 : vector<2x32xf32>
    %987 = arith.negf %986 : vector<2x32xf32>
    %988 = math.exp %987 : vector<2x32xf32>
    %cst_281 = arith.constant 1.000000e+00 : f32
    %989 = vector.broadcast %cst_281 : f32 to vector<2x32xf32>
    %990 = arith.addf %989, %988 : vector<2x32xf32>
    %991 = arith.divf %989, %990 : vector<2x32xf32>
    %992 = vector.extract_strided_slice %982 {offsets = [0, 32], sizes = [2, 32], strides = [1, 1]} : vector<2x96xf32> to vector<2x32xf32>
    %993 = vector.extract_strided_slice %983 {offsets = [0, 32], sizes = [2, 32], strides = [1, 1]} : vector<2x96xf32> to vector<2x32xf32>
    %994 = arith.addf %992, %993 : vector<2x32xf32>
    %995 = arith.negf %994 : vector<2x32xf32>
    %996 = math.exp %995 : vector<2x32xf32>
    %cst_282 = arith.constant 1.000000e+00 : f32
    %997 = vector.broadcast %cst_282 : f32 to vector<2x32xf32>
    %998 = arith.addf %997, %996 : vector<2x32xf32>
    %999 = arith.divf %997, %998 : vector<2x32xf32>
    %1000 = vector.extract_strided_slice %982 {offsets = [0, 64], sizes = [2, 32], strides = [1, 1]} : vector<2x96xf32> to vector<2x32xf32>
    %1001 = vector.extract_strided_slice %983 {offsets = [0, 64], sizes = [2, 32], strides = [1, 1]} : vector<2x96xf32> to vector<2x32xf32>
    %1002 = arith.addf %1001, %719 : vector<2x32xf32>
    %1003 = arith.mulf %991, %1002 : vector<2x32xf32>
    %1004 = arith.addf %1000, %1003 : vector<2x32xf32>
    %1005 = math.tanh %1004 : vector<2x32xf32>
    %1006 = arith.subf %979, %1005 : vector<2x32xf32>
    %1007 = arith.mulf %999, %1006 : vector<2x32xf32>
    %1008 = arith.addf %1005, %1007 : vector<2x32xf32>
    %1009 = arith.index_cast %c7_i32_277 : i32 to index
    %c0_283 = arith.constant 0 : index
    %c0_284 = arith.constant 0 : index
    %1010 = vector.load %arg2[%1009, %c0_283, %c0_284] : memref<8x2x1xf32, #tpu.memory_space<vmem>>, vector<1x2x1xf32>
    %1011 = vector.shape_cast %1010 : vector<1x2x1xf32> to vector<2x1xf32>
    %cst_285 = arith.constant 0.000000e+00 : f32
    %1012 = vector.broadcast %cst_285 : f32 to vector<2x1xf32>
    %1013 = arith.cmpf one, %1011, %1012 : vector<2x1xf32>
    %1014 = vector.shape_cast %1013 : vector<2x1xi1> to vector<2x1xi1>
    %1015 = vector.broadcast %1014 : vector<2x1xi1> to vector<2x32xi1>
    %1016 = arith.select %1015, %1008, %979 : vector<2x32xi1>, vector<2x32xf32>
    %c8_i32_286 = arith.constant 8 : i32
    %c0_287 = arith.constant 0 : index
    %c0_288 = arith.constant 0 : index
    %1017 = vector.load %arg8[%c0_287, %c0_288] : memref<32x32xf32, #tpu.memory_space<vmem>>, vector<32x32xf32>
    %cst_289 = arith.constant dense<0.000000e+00> : vector<2x32xf32>
    %1018 = tpu.matmul %1016, %1017, %cst_289 {dimension_numbers = #tpu.dot_dimension_numbers<[1], [0], [0], [1], [0, 0, 1, 1], [], []>} : vector<2x32xf32>, vector<32x32xf32>, vector<2x32xf32> -> vector<2x32xf32>
    %c0_290 = arith.constant 0 : index
    %c0_291 = arith.constant 0 : index
    %1019 = vector.load %arg7[%c0_290, %c0_291] : memref<2x32xf32, #tpu.memory_space<vmem>>, vector<2x32xf32>
    %1020 = arith.addf %1018, %1019 : vector<2x32xf32>
    %cst_292 = arith.constant 0.000000e+00 : f32
    %1021 = vector.broadcast %cst_292 : f32 to vector<2x32xf32>
    %1022 = arith.maximumf %1020, %1021 : vector<2x32xf32>
    %c0_293 = arith.constant 0 : index
    %c0_294 = arith.constant 0 : index
    %1023 = vector.load %arg9[%c0_293, %c0_294] : memref<32x32xf32, #tpu.memory_space<vmem>>, vector<32x32xf32>
    %cst_295 = arith.constant dense<0.000000e+00> : vector<2x32xf32>
    %1024 = tpu.matmul %1022, %1023, %cst_295 {dimension_numbers = #tpu.dot_dimension_numbers<[1], [0], [0], [1], [0, 0, 1, 1], [], []>} : vector<2x32xf32>, vector<32x32xf32>, vector<2x32xf32> -> vector<2x32xf32>
    %c0_296 = arith.constant 0 : index
    %c0_297 = arith.constant 0 : index
    %1025 = vector.load %arg10[%c0_296, %c0_297] : memref<1x32xf32, #tpu.memory_space<vmem>>, vector<1x32xf32>
    %1026 = vector.broadcast %1025 : vector<1x32xf32> to vector<2x32xf32>
    %1027 = arith.addf %1024, %1026 : vector<2x32xf32>
    %cst_298 = arith.constant 0.000000e+00 : f32
    %1028 = vector.broadcast %cst_298 : f32 to vector<2x32xf32>
    %1029 = arith.maximumf %1027, %1028 : vector<2x32xf32>
    %c0_299 = arith.constant 0 : index
    %c0_300 = arith.constant 0 : index
    %1030 = vector.load %arg11[%c0_299, %c0_300] : memref<32x32xf32, #tpu.memory_space<vmem>>, vector<32x32xf32>
    %cst_301 = arith.constant dense<0.000000e+00> : vector<2x32xf32>
    %1031 = tpu.matmul %1029, %1030, %cst_301 {dimension_numbers = #tpu.dot_dimension_numbers<[1], [0], [0], [1], [0, 0, 1, 1], [], []>} : vector<2x32xf32>, vector<32x32xf32>, vector<2x32xf32> -> vector<2x32xf32>
    %c0_302 = arith.constant 0 : index
    %c0_303 = arith.constant 0 : index
    %1032 = vector.load %arg12[%c0_302, %c0_303] : memref<1x32xf32, #tpu.memory_space<vmem>>, vector<1x32xf32>
    %1033 = vector.broadcast %1032 : vector<1x32xf32> to vector<2x32xf32>
    %1034 = arith.addf %1031, %1033 : vector<2x32xf32>
    %cst_304 = arith.constant 0.000000e+00 : f32
    %1035 = vector.broadcast %cst_304 : f32 to vector<2x32xf32>
    %1036 = arith.maximumf %1034, %1035 : vector<2x32xf32>
    %c0_305 = arith.constant 0 : index
    %c0_306 = arith.constant 0 : index
    %1037 = vector.load %arg13[%c0_305, %c0_306] : memref<32x1xf32, #tpu.memory_space<vmem>>, vector<32x1xf32>
    %cst_307 = arith.constant dense<0.000000e+00> : vector<2x1xf32>
    %1038 = tpu.matmul %1036, %1037, %cst_307 {dimension_numbers = #tpu.dot_dimension_numbers<[1], [0], [0], [1], [0, 0, 1, 1], [], []>} : vector<2x32xf32>, vector<32x1xf32>, vector<2x1xf32> -> vector<2x1xf32>
    %c0_308 = arith.constant 0 : index
    %c0_309 = arith.constant 0 : index
    %1039 = vector.load %arg14[%c0_308, %c0_309] : memref<1x1xf32, #tpu.memory_space<vmem>>, vector<1x1xf32>
    %1040 = vector.broadcast %1039 : vector<1x1xf32> to vector<2x1xf32>
    %1041 = arith.addf %1038, %1040 : vector<2x1xf32>
    %1042 = arith.negf %1041 : vector<2x1xf32>
    %1043 = math.exp %1042 : vector<2x1xf32>
    %cst_310 = arith.constant 1.000000e+00 : f32
    %1044 = vector.broadcast %cst_310 : f32 to vector<2x1xf32>
    %1045 = arith.addf %1044, %1043 : vector<2x1xf32>
    %1046 = arith.divf %1044, %1045 : vector<2x1xf32>
    %c0_311 = arith.constant 0 : index
    %c0_312 = arith.constant 0 : index
    %1047 = vector.load %arg15[%c0_311, %c0_312] : memref<2x1xf32, #tpu.memory_space<vmem>>, vector<2x1xf32>
    tpu.vector_store %arg15[%c0_311, %c0_312], %1046 {strides = array<i32>} : memref<2x1xf32, #tpu.memory_space<vmem>>, vector<2x1xf32>,
    return
  }
  func.func @transform_0(%arg0: i32) -> (i32, i32, i32) {
    %c0_i32 = arith.constant 0 : i32
    %c0_i32_0 = arith.constant 0 : i32
    %c0_i32_1 = arith.constant 0 : i32
    return %c0_i32, %arg0, %c0_i32_0 : i32, i32, i32
  }
  func.func @transform_1(%arg0: i32) -> (i32, i32, i32) {
    %c0_i32 = arith.constant 0 : i32
    %c0_i32_0 = arith.constant 0 : i32
    %c0_i32_1 = arith.constant 0 : i32
    return %c0_i32, %arg0, %c0_i32_0 : i32, i32, i32
  }
  func.func @transform_2(%arg0: i32) -> (i32, i32, i32) {
    %c0_i32 = arith.constant 0 : i32
    %c0_i32_0 = arith.constant 0 : i32
    %c0_i32_1 = arith.constant 0 : i32
    %c0_i32_2 = arith.constant 0 : i32
    return %c0_i32, %c0_i32_0, %c0_i32_1 : i32, i32, i32
  }
  func.func @transform_3(%arg0: i32) -> (i32, i32, i32) {
    %c0_i32 = arith.constant 0 : i32
    %c0_i32_0 = arith.constant 0 : i32
    %c0_i32_1 = arith.constant 0 : i32
    %c0_i32_2 = arith.constant 0 : i32
    return %c0_i32, %c0_i32_0, %c0_i32_1 : i32, i32, i32
  }
  func.func @transform_4(%arg0: i32) -> (i32, i32, i32) {
    %c0_i32 = arith.constant 0 : i32
    %c0_i32_0 = arith.constant 0 : i32
    %c0_i32_1 = arith.constant 0 : i32
    %c0_i32_2 = arith.constant 0 : i32
    return %c0_i32, %c0_i32_0, %c0_i32_1 : i32, i32, i32
  }
  func.func @transform_5(%arg0: i32) -> (i32, i32, i32) {
    %c0_i32 = arith.constant 0 : i32
    %c0_i32_0 = arith.constant 0 : i32
    %c0_i32_1 = arith.constant 0 : i32
    %c0_i32_2 = arith.constant 0 : i32
    return %c0_i32, %c0_i32_0, %c0_i32_1 : i32, i32, i32
  }
  func.func @transform_6(%arg0: i32) -> (i32, i32) {
    %c0_i32 = arith.constant 0 : i32
    %c0_i32_0 = arith.constant 0 : i32
    return %arg0, %c0_i32 : i32, i32
  }
  func.func @transform_7(%arg0: i32) -> (i32, i32) {
    %c0_i32 = arith.constant 0 : i32
    %c0_i32_0 = arith.constant 0 : i32
    %c0_i32_1 = arith.constant 0 : i32
    return %c0_i32, %c0_i32_0 : i32, i32
  }
  func.func @transform_8(%arg0: i32) -> (i32, i32) {
    %c0_i32 = arith.constant 0 : i32
    %c0_i32_0 = arith.constant 0 : i32
    %c0_i32_1 = arith.constant 0 : i32
    return %c0_i32, %c0_i32_0 : i32, i32
  }
  func.func @transform_9(%arg0: i32) -> (i32, i32) {
    %c0_i32 = arith.constant 0 : i32
    %c0_i32_0 = arith.constant 0 : i32
    %c0_i32_1 = arith.constant 0 : i32
    return %c0_i32, %c0_i32_0 : i32, i32
  }
  func.func @transform_10(%arg0: i32) -> (i32, i32) {
    %c0_i32 = arith.constant 0 : i32
    %c0_i32_0 = arith.constant 0 : i32
    %c0_i32_1 = arith.constant 0 : i32
    return %c0_i32, %c0_i32_0 : i32, i32
  }
  func.func @transform_11(%arg0: i32) -> (i32, i32) {
    %c0_i32 = arith.constant 0 : i32
    %c0_i32_0 = arith.constant 0 : i32
    %c0_i32_1 = arith.constant 0 : i32
    return %c0_i32, %c0_i32_0 : i32, i32
  }
  func.func @transform_12(%arg0: i32) -> (i32, i32) {
    %c0_i32 = arith.constant 0 : i32
    %c0_i32_0 = arith.constant 0 : i32
    %c0_i32_1 = arith.constant 0 : i32
    return %c0_i32, %c0_i32_0 : i32, i32
  }
  func.func @transform_13(%arg0: i32) -> (i32, i32) {
    %c0_i32 = arith.constant 0 : i32
    %c0_i32_0 = arith.constant 0 : i32
    %c0_i32_1 = arith.constant 0 : i32
    return %c0_i32, %c0_i32_0 : i32, i32
  }
  func.func @transform_14(%arg0: i32) -> (i32, i32) {
    %c0_i32 = arith.constant 0 : i32
    %c0_i32_0 = arith.constant 0 : i32
    return %arg0, %c0_i32 : i32, i32
  }
}

</mosaic_0001>

<llo_original>
// kernel: tpu_custom_call.1
$region0: #{tpu_custom_call.1}
  #allocation0 [shape = 'u32[]', space=smem, size = 0x4, offset = 0x4, fixed_abs, tag = 'smem constant byte address 0x4 - core index']
  #allocation1 [shape = 'u32[144,128]{1,0:T(1,128)}', space=vmem, size = 0x12000, scoped, tag = 'internal scratch']
  #allocation2 [shape = 'f32[8,2,96]{2,1,0:T(2,128)}', space=vmem, size = 0x2000, scoped, tag = 'scratch operand']
  #allocation3 [shape = 'f32[1,1]{1,0:T(1,128)S(1)}', space=vmem, size = 0x200, scoped, tag = 'scoped memory for tpu_custom_call.1']
  %s0 = inlined_call_operand.hbm [shape: f32[8,2,96], index: 0, kind: input, shape index: {}]
  %s1 = inlined_call_operand.vmem [shape: f32[8,2,1], index: 1, kind: input, shape index: {}]
  %s2 = inlined_call_operand.hbm [shape: f32[3,32,96], index: 2, kind: input, shape index: {}]
  %s3 = inlined_call_operand.vmem [shape: f32[2,32,96], index: 3, kind: input, shape index: {}]
  %s4 = inlined_call_operand.vmem [shape: f32[2,1,96], index: 4, kind: input, shape index: {}]
  %s5 = inlined_call_operand.vmem [shape: f32[3,1,32], index: 5, kind: input, shape index: {}]
  %s6 = inlined_call_operand.vmem [shape: f32[2,32], index: 6, kind: input, shape index: {}]
  %s7 = inlined_call_operand.hbm [shape: f32[32,32], index: 7, kind: input, shape index: {}]
  %s8 = inlined_call_operand.hbm [shape: f32[32,32], index: 8, kind: input, shape index: {}]
  %s9 = inlined_call_operand.vmem [shape: f32[1,32], index: 9, kind: input, shape index: {}]
  %s10 = inlined_call_operand.hbm [shape: f32[32,32], index: 10, kind: input, shape index: {}]
  %s11 = inlined_call_operand.vmem [shape: f32[1,32], index: 11, kind: input, shape index: {}]
  %s12 = inlined_call_operand.vmem [shape: f32[32,1], index: 12, kind: input, shape index: {}]
  %s13 = inlined_call_operand.<no memory space> [shape: f32[1,1], index: 13, kind: input, shape index: {}]
  %s14 = inlined_call_operand.vmem [shape: f32[2,1], index: 14, kind: output, shape index: {}]
  %s15 = sld [smem:[#allocation0]]
  $region86: #{tpu_custom_call.1} parent=0
    _
  %s17 = ssub.s32 1, %s15
  %s18 = scalar_select 0, %s17, %s15
  %v19 = vstv %s13
  %20 = vst [vmem:[#allocation3] sm:$0x1] %v19
  $region1: #{tpu_custom_call.1} parent=0
    #allocation4 [shape = 'u8[8192]{0}', space=vmem, size = 0x2000, scoped, tag = 'input window, operand 0, single buffered']
    #allocation5 [shape = 's32[1]{0}', space=sflag, size = 0x4, scoped, tag = 'scoped memory for tpu_custom_call.1']
    #allocation6 [shape = 'u8[49152]{0}', space=vmem, size = 0xc000, scoped, tag = 'input window, operand 2, single buffered']
    #allocation7 [shape = 's32[1]{0}', space=sflag, size = 0x4, scoped, tag = 'scoped memory for tpu_custom_call.1']
    #allocation8 [shape = 'u8[16384]{0}', space=vmem, size = 0x4000, scoped, tag = 'input window, operand 7, single buffered']
    #allocation9 [shape = 'u8[16384]{0}', space=vmem, size = 0x4000, scoped, tag = 'input window, operand 8, single buffered']
    #allocation10 [shape = 's32[1]{0}', space=sflag, size = 0x4, scoped, tag = 'scoped memory for tpu_custom_call.1']
    #allocation11 [shape = 'u8[16384]{0}', space=vmem, size = 0x4000, scoped, tag = 'input window, operand 10, single buffered']
    %21 = vsyncpa [#allocation5], 0
    %22 = vsyncpa [#allocation7], 0
    %23 = vsyncpa [#allocation10], 0
    // Predicated region
    $region2: #{tpu_custom_call.1} parent=1 // pred_check
      _
    $region3: #{tpu_custom_call.1} parent=1 // pred_check_branch
      %25 = sbr.rel (0) target = $region5
    $region4: #{tpu_custom_call.1} parent=1 // pred_region
      %s27 = ssub.s32 256, 256
      %28 = vsyncadd [#allocation5], %s27
      %s29 = sshll.u32 [#allocation4], 4
      %s30 = int_to_ptr.vmem [resolvable:$true] %s29
      %35 = dma.hbm_to_vmem [thread:$0]  %s0, 256, %s30, [#allocation5], 32, 32, 2
    $region5: #{tpu_custom_call.1} parent=1 // pred_fallthru
      _
    // Predicated region
    $region6: #{tpu_custom_call.1} parent=1 // pred_check
      _
    $region7: #{tpu_custom_call.1} parent=1 // pred_check_branch
      %37 = sbr.rel (0) target = $region9
    $region8: #{tpu_custom_call.1} parent=1 // pred_region
      _
    $region9: #{tpu_custom_call.1} parent=1 // pred_fallthru
      _
    // Predicated region
    $region10: #{tpu_custom_call.1} parent=1 // pred_check
      _
    $region11: #{tpu_custom_call.1} parent=1 // pred_check_branch
      %39 = sbr.rel (0) target = $region13
    $region12: #{tpu_custom_call.1} parent=1 // pred_region
      %s41 = ssub.s32 1536, 1536
      %42 = vsyncadd [#allocation7], %s41
      %s43 = sshll.u32 [#allocation6], 4
      %s44 = int_to_ptr.vmem [resolvable:$true] %s43
      %49 = dma.hbm_to_vmem [thread:$0]  %s2, 1536, %s44, [#allocation7], 128, 128, 8
    $region13: #{tpu_custom_call.1} parent=1 // pred_fallthru
      _
    // Predicated region
    $region14: #{tpu_custom_call.1} parent=1 // pred_check
      _
    $region15: #{tpu_custom_call.1} parent=1 // pred_check_branch
      %51 = sbr.rel (0) target = $region17
    $region16: #{tpu_custom_call.1} parent=1 // pred_region
      _
    $region17: #{tpu_custom_call.1} parent=1 // pred_fallthru
      _
    // Predicated region
    $region18: #{tpu_custom_call.1} parent=1 // pred_check
      _
    $region19: #{tpu_custom_call.1} parent=1 // pred_check_branch
      %53 = sbr.rel (0) target = $region21
    $region20: #{tpu_custom_call.1} parent=1 // pred_region
      _
    $region21: #{tpu_custom_call.1} parent=1 // pred_fallthru
      _
    // Predicated region
    $region22: #{tpu_custom_call.1} parent=1 // pred_check
      _
    $region23: #{tpu_custom_call.1} parent=1 // pred_check_branch
      %55 = sbr.rel (0) target = $region25
    $region24: #{tpu_custom_call.1} parent=1 // pred_region
      _
    $region25: #{tpu_custom_call.1} parent=1 // pred_fallthru
      _
    // Predicated region
    $region26: #{tpu_custom_call.1} parent=1 // pred_check
      _
    $region27: #{tpu_custom_call.1} parent=1 // pred_check_branch
      %57 = sbr.rel (0) target = $region29
    $region28: #{tpu_custom_call.1} parent=1 // pred_region
      _
    $region29: #{tpu_custom_call.1} parent=1 // pred_fallthru
      _
    // Predicated region
    $region30: #{tpu_custom_call.1} parent=1 // pred_check
      _
    $region31: #{tpu_custom_call.1} parent=1 // pred_check_branch
      %59 = sbr.rel (0) target = $region33
    $region32: #{tpu_custom_call.1} parent=1 // pred_region
      %s61 = ssub.s32 512, 512
      %62 = vsyncadd [#allocation7], %s61
      %s63 = sshll.u32 [#allocation8], 4
      %s64 = int_to_ptr.vmem [resolvable:$true] %s63
      %69 = dma.hbm_to_vmem [thread:$0]  %s7, 512, %s64, [#allocation7], 128, 128, 8
    $region33: #{tpu_custom_call.1} parent=1 // pred_fallthru
      _
    // Predicated region
    $region34: #{tpu_custom_call.1} parent=1 // pred_check
      _
    $region35: #{tpu_custom_call.1} parent=1 // pred_check_branch
      %71 = sbr.rel (0) target = $region37
    $region36: #{tpu_custom_call.1} parent=1 // pred_region
      %s73 = ssub.s32 512, 512
      %74 = vsyncadd [#allocation10], %s73
      %s75 = sshll.u32 [#allocation9], 4
      %s76 = int_to_ptr.vmem [resolvable:$true] %s75
      %81 = dma.hbm_to_vmem [thread:$0]  %s8, 512, %s76, [#allocation10], 128, 128, 8
    $region37: #{tpu_custom_call.1} parent=1 // pred_fallthru
      _
    // Predicated region
    $region38: #{tpu_custom_call.1} parent=1 // pred_check
      _
    $region39: #{tpu_custom_call.1} parent=1 // pred_check_branch
      %83 = sbr.rel (0) target = $region41
    $region40: #{tpu_custom_call.1} parent=1 // pred_region
      _
    $region41: #{tpu_custom_call.1} parent=1 // pred_fallthru
      _
    // Predicated region
    $region42: #{tpu_custom_call.1} parent=1 // pred_check
      _
    $region43: #{tpu_custom_call.1} parent=1 // pred_check_branch
      %85 = sbr.rel (0) target = $region45
    $region44: #{tpu_custom_call.1} parent=1 // pred_region
      %s87 = ssub.s32 512, 512
      %88 = vsyncadd [#allocation10], %s87
      %s89 = sshll.u32 [#allocation11], 4
      %s90 = int_to_ptr.vmem [resolvable:$true] %s89
      %95 = dma.hbm_to_vmem [thread:$0]  %s10, 512, %s90, [#allocation10], 128, 128, 8
    $region45: #{tpu_custom_call.1} parent=1 // pred_fallthru
      _
    // Predicated region
    $region46: #{tpu_custom_call.1} parent=1 // pred_check
      _
    $region47: #{tpu_custom_call.1} parent=1 // pred_check_branch
      %97 = sbr.rel (0) target = $region49
    $region48: #{tpu_custom_call.1} parent=1 // pred_region
      _
    $region49: #{tpu_custom_call.1} parent=1 // pred_fallthru
      _
    // Predicated region
    $region50: #{tpu_custom_call.1} parent=1 // pred_check
      _
    $region51: #{tpu_custom_call.1} parent=1 // pred_check_branch
      %99 = sbr.rel (0) target = $region53
    $region52: #{tpu_custom_call.1} parent=1 // pred_region
      _
    $region53: #{tpu_custom_call.1} parent=1 // pred_fallthru
      _
    // Predicated region
    $region54: #{tpu_custom_call.1} parent=1 // pred_check
      _
    $region55: #{tpu_custom_call.1} parent=1 // pred_check_branch
      %101 = sbr.rel (0) target = $region57
    $region56: #{tpu_custom_call.1} parent=1 // pred_region
      _
    $region57: #{tpu_custom_call.1} parent=1 // pred_fallthru
      _
    // Predicated region
    $region58: #{tpu_custom_call.1} parent=1 // pred_check
      _
    $region59: #{tpu_custom_call.1} parent=1 // pred_check_branch
      %103 = sbr.rel (0) target = $region61
    $region60: #{tpu_custom_call.1} parent=1 // pred_region
      %104 = dma.done [#allocation5], 256
    $region61: #{tpu_custom_call.1} parent=1 // pred_fallthru
      _
    // Predicated region
    $region62: #{tpu_custom_call.1} parent=1 // pred_check
      _
    $region63: #{tpu_custom_call.1} parent=1 // pred_check_branch
      %106 = sbr.rel (0) target = $region65
    $region64: #{tpu_custom_call.1} parent=1 // pred_region
      %107 = dma.done [#allocation7], 1536
    $region65: #{tpu_custom_call.1} parent=1 // pred_fallthru
      _
    // Predicated region
    $region66: #{tpu_custom_call.1} parent=1 // pred_check
      _
    $region67: #{tpu_custom_call.1} parent=1 // pred_check_branch
      %109 = sbr.rel (0) target = $region69
    $region68: #{tpu_custom_call.1} parent=1 // pred_region
      %110 = dma.done [#allocation7], 512
    $region69: #{tpu_custom_call.1} parent=1 // pred_fallthru
      _
    // Predicated region
    $region70: #{tpu_custom_call.1} parent=1 // pred_check
      _
    $region71: #{tpu_custom_call.1} parent=1 // pred_check_branch
      %112 = sbr.rel (0) target = $region73
    $region72: #{tpu_custom_call.1} parent=1 // pred_region
      %113 = dma.done [#allocation10], 512
    $region73: #{tpu_custom_call.1} parent=1 // pred_fallthru
      _
    // Predicated region
    $region74: #{tpu_custom_call.1} parent=1 // pred_check
      _
    $region75: #{tpu_custom_call.1} parent=1 // pred_check_branch
      %115 = sbr.rel (0) target = $region77
    $region76: #{tpu_custom_call.1} parent=1 // pred_region
      %116 = dma.done [#allocation10], 512
    $region77: #{tpu_custom_call.1} parent=1 // pred_fallthru
      _
    %v117 = vld [vmem:[#allocation6] sm:$0xff]
    %v118 = vld [vmem:[#allocation6 + $0x8] sm:$0xff]
    %v119 = vld [vmem:[#allocation6 + $0x10] sm:$0xff]
    %v120 = vld [vmem:[#allocation6 + $0x18] sm:$0xff]
    %v121 = vld [vmem:[%s5] sm:$0x1]
    %v123 = vlaneseq
    %v124 = vshrl.u32 %v123, 7
    %v125 = vsub.s32 0, %v124
    %v126 = vrot.slane %v121, %v125
    %v127 = vld [vmem:[%s3] sm:$0xff]
    %v128 = vld [vmem:[%s3 + $0x8] sm:$0xff]
    %v129 = vld [vmem:[%s3 + $0x10] sm:$0xff]
    %v130 = vld [vmem:[%s3 + $0x18] sm:$0xff]
    %v131 = vld [vmem:[%s4] sm:$0x1]
    %v133 = vlaneseq
    %v134 = vshrl.u32 %v133, 7
    %v135 = vsub.s32 0, %v134
    %v136 = vrot.slane %v131, %v135
    %v138 = vld [vmem:[#allocation4] sm:$0x3]
    %vm139 = vcmask 261120
    %v141 = vsel %vm139, 0.0, 0
    %143 = vmatprep.subr.mxu0 0.0
    %144 = vmatpush1.msra.mxu0 %v117
    %145 = vmatprep.subr.mxu0 0.0
    %146 = vmatpush1.msra.mxu0 %v118
    %147 = vmatprep.subr.mxu0 0.0
    %148 = vmatpush1.msra.mxu0 %v119
    %149 = vmatprep.subr.mxu0 0.0
    %150 = vmatpush1.msra.mxu0 %v120
    %151 = vmatprep.subr.mxu0 0.0
    %152 = vmatpush1.msra.mxu0 0.0
    %153 = vmatprep.subr.mxu0 0.0
    %154 = vmatpush1.msra.mxu0 0.0
    %155 = vmatprep.subr.mxu0 0.0
    %156 = vmatpush1.msra.mxu0 0.0
    %157 = vmatprep.subr.mxu0 0.0
    %158 = vmatpush1.msra.mxu0 0.0
    %159 = vmatprep.subr.mxu0 0.0
    %160 = vmatpush1.msra.mxu0 0.0
    %161 = vmatprep.subr.mxu0 0.0
    %162 = vmatpush1.msra.mxu0 0.0
    %163 = vmatprep.subr.mxu0 0.0
    %164 = vmatpush1.msra.mxu0 0.0
    %165 = vmatprep.subr.mxu0 0.0
    %166 = vmatpush1.msra.mxu0 0.0
    %167 = vmatprep.subr.mxu0 0.0
    %168 = vmatpush1.msra.mxu0 0.0
    %169 = vmatprep.subr.mxu0 0.0
    %170 = vmatpush1.msra.mxu0 0.0
    %171 = vmatprep.subr.mxu0 0.0
    %172 = vmatpush1.msra.mxu0 0.0
    %173 = vmatprep.subr.mxu0 0.0
    %174 = vmatpush1.msra.mxu0 0.0
    %175 = vmatprep.subr.mxu0 0.0
    %176 = vmatpush1.msra.mxu0 0.0
    %177 = vmatprep.subr.mxu0 0.0
    %178 = vmatpush1.msra.mxu0 0.0
    %179 = vmatprep.subr.mxu0 0.0
    %180 = vmatpush1.msra.mxu0 0.0
    %181 = vmatprep.subr.mxu0 0.0
    %182 = vmatpush1.msra.mxu0 0.0
    %183 = vmatprep.subr.mxu0 0.0
    %184 = vmatpush1.msra.mxu0 0.0
    %185 = vmatprep.subr.mxu0 0.0
    %186 = vmatpush1.msra.mxu0 0.0
    %187 = vmatprep.subr.mxu0 0.0
    %188 = vmatpush1.msra.mxu0 0.0
    %189 = vmatprep.subr.mxu0 0.0
    %190 = vmatpush1.msra.mxu0 0.0
    %191 = vmatprep.subr.mxu0 0.0
    %192 = vmatpush1.msra.mxu0 0.0
    %193 = vmatprep.subr.mxu0 0.0
    %194 = vmatpush1.msra.mxu0 0.0
    %195 = vmatprep.subr.mxu0 0.0
    %196 = vmatpush1.msra.mxu0 0.0
    %197 = vmatprep.subr.mxu0 0.0
    %198 = vmatpush1.msra.mxu0 0.0
    %199 = vmatprep.subr.mxu0 0.0
    %200 = vmatpush1.msra.mxu0 0.0
    %201 = vmatprep.subr.mxu0 0.0
    %202 = vmatpush1.msra.mxu0 0.0
    %203 = vmatprep.subr.mxu0 0.0
    %204 = vmatpush1.msra.mxu0 0.0
    %205 = vmatprep.subr.mxu0 0.0
    %206 = vmatpush1.msra.mxu0 0.0
    %207 = vmatprep.mubr.f32.mxu0 0.0
    %208 = vmatmul.mubr.f32.gmra.mrb[0].mxu0 %v141
    %v209 = vpop.f32.mrb[0].mxu0
    %v210 = vadd.f32 0.0, %v209
    %v211 = vpop.f32.mrb[0].mxu0
    %212 = vdwg.mxu0
    %v213 = vadd.f32 %v138, %v210
    %v214 = vxor.u32 %v213, 2147483648
    %v215 = vmul.f32 %v214, 1.442695
    %v216 = vpow.pop %v215
    %v217 = vadd.f32 %v216, 1.0
    %v218 = vrcp.pop %v217
    %v219 = vmul.f32 1.0, %v218
    %220 = vrot.lane.b32.xlu0 %v126, 64
    %v221 = vpop.permute.xlu0 %220
    %v223 = vadd.f32 %v210, %v221
    %225 = vrot.lane.b32.xlu0 %v223, 64
    %v226 = vpop.permute.xlu0 %225
    %v228 = vmul.f32 %v219, %v226
    %230 = vrot.lane.b32.xlu0 %v228, 64
    %v231 = vpop.permute.xlu0 %230
    %v233 = vadd.f32 %v138, %v231
    %v234 = vtanh.pop %v233
    %v235 = vsub.f32 0.0, %v234
    %237 = vrot.lane.b32.xlu0 %v235, 96
    %v238 = vpop.permute.xlu0 %237
    %v240 = vmul.f32 %v219, %v238
    %242 = vrot.lane.b32.xlu0 %v240, 32
    %v243 = vpop.permute.xlu0 %242
    %v245 = vadd.f32 %v234, %v243
    %v246 = vld [vmem:[%s1] sm:$0x3]
    %vm247 = vcmp.ne.f32.partialorder %v246, 0.0
    %v248 = vsel %vm247, 1, 0
    %249 = vset.pattern.permute.xlu0 0
    %250 = vperm.xlu0 %249, %v248
    %v251 = vpop.permute.xlu0 %250
    %vm252 = vcmp.eq.s32.totalorder %v251, 1
    %v253 = vsel %vm252, %v245, 0.0
    %255 = vrot.lane.b32.xlu0 %v253, 64
    %v256 = vpop.permute.xlu0 %255
    %v257 = vsel %vm139, %v256, 0
    %259 = vmatprep.subr.mxu0 0.0
    %260 = vmatpush1.msra.mxu0 %v127
    %261 = vmatprep.subr.mxu0 0.0
    %262 = vmatpush1.msra.mxu0 %v128
    %263 = vmatprep.subr.mxu0 0.0
    %264 = vmatpush1.msra.mxu0 %v129
    %265 = vmatprep.subr.mxu0 0.0
    %266 = vmatpush1.msra.mxu0 %v130
    %267 = vmatprep.subr.mxu0 0.0
    %268 = vmatpush1.msra.mxu0 0.0
    %269 = vmatprep.subr.mxu0 0.0
    %270 = vmatpush1.msra.mxu0 0.0
    %271 = vmatprep.subr.mxu0 0.0
    %272 = vmatpush1.msra.mxu0 0.0
    %273 = vmatprep.subr.mxu0 0.0
    %274 = vmatpush1.msra.mxu0 0.0
    %275 = vmatprep.subr.mxu0 0.0
    %276 = vmatpush1.msra.mxu0 0.0
    %277 = vmatprep.subr.mxu0 0.0
    %278 = vmatpush1.msra.mxu0 0.0
    %279 = vmatprep.subr.mxu0 0.0
    %280 = vmatpush1.msra.mxu0 0.0
    %281 = vmatprep.subr.mxu0 0.0
    %282 = vmatpush1.msra.mxu0 0.0
    %283 = vmatprep.subr.mxu0 0.0
    %284 = vmatpush1.msra.mxu0 0.0
    %285 = vmatprep.subr.mxu0 0.0
    %286 = vmatpush1.msra.mxu0 0.0
    %287 = vmatprep.subr.mxu0 0.0
    %288 = vmatpush1.msra.mxu0 0.0
    %289 = vmatprep.subr.mxu0 0.0
    %290 = vmatpush1.msra.mxu0 0.0
    %291 = vmatprep.subr.mxu0 0.0
    %292 = vmatpush1.msra.mxu0 0.0
    %293 = vmatprep.subr.mxu0 0.0
    %294 = vmatpush1.msra.mxu0 0.0
    %295 = vmatprep.subr.mxu0 0.0
    %296 = vmatpush1.msra.mxu0 0.0
    %297 = vmatprep.subr.mxu0 0.0
    %298 = vmatpush1.msra.mxu0 0.0
    %299 = vmatprep.subr.mxu0 0.0
    %300 = vmatpush1.msra.mxu0 0.0
    %301 = vmatprep.subr.mxu0 0.0
    %302 = vmatpush1.msra.mxu0 0.0
    %303 = vmatprep.subr.mxu0 0.0
    %304 = vmatpush1.msra.mxu0 0.0
    %305 = vmatprep.subr.mxu0 0.0
    %306 = vmatpush1.msra.mxu0 0.0
    %307 = vmatprep.subr.mxu0 0.0
    %308 = vmatpush1.msra.mxu0 0.0
    %309 = vmatprep.subr.mxu0 0.0
    %310 = vmatpush1.msra.mxu0 0.0
    %311 = vmatprep.subr.mxu0 0.0
    %312 = vmatpush1.msra.mxu0 0.0
    %313 = vmatprep.subr.mxu0 0.0
    %314 = vmatpush1.msra.mxu0 0.0
    %315 = vmatprep.subr.mxu0 0.0
    %316 = vmatpush1.msra.mxu0 0.0
    %317 = vmatprep.subr.mxu0 0.0
    %318 = vmatpush1.msra.mxu0 0.0
    %319 = vmatprep.subr.mxu0 0.0
    %320 = vmatpush1.msra.mxu0 0.0
    %321 = vmatprep.subr.mxu0 0.0
    %322 = vmatpush1.msra.mxu0 0.0
    %323 = vmatprep.mubr.f32.mxu0 0.0
    %324 = vmatmul.mubr.f32.gmra.mrb[0].mxu0 %v257
    %v325 = vpop.f32.mrb[0].mxu0
    %v326 = vadd.f32 %v136, %v325
    %v327 = vpop.f32.mrb[0].mxu0
    %328 = vdwg.mxu0
    %vm329 = vcmask 779264
    %330 = vst.msk [vmem:[#allocation2] sm:$0x3] %vm329, %v326
    %s331 = scalar_lea.vmem [#allocation4], 2
    %v332 = vld [vmem:[%s331] sm:$0x3]
    %333 = vmatprep.subr.mxu0 0.0
    %334 = vmatpush1.msra.mxu0 %v117
    %335 = vmatprep.subr.mxu0 0.0
    %336 = vmatpush1.msra.mxu0 %v118
    %337 = vmatprep.subr.mxu0 0.0
    %338 = vmatpush1.msra.mxu0 %v119
    %339 = vmatprep.subr.mxu0 0.0
    %340 = vmatpush1.msra.mxu0 %v120
    %341 = vmatprep.subr.mxu0 0.0
    %342 = vmatpush1.msra.mxu0 0.0
    %343 = vmatprep.subr.mxu0 0.0
    %344 = vmatpush1.msra.mxu0 0.0
    %345 = vmatprep.subr.mxu0 0.0
    %346 = vmatpush1.msra.mxu0 0.0
    %347 = vmatprep.subr.mxu0 0.0
    %348 = vmatpush1.msra.mxu0 0.0
    %349 = vmatprep.subr.mxu0 0.0
    %350 = vmatpush1.msra.mxu0 0.0
    %351 = vmatprep.subr.mxu0 0.0
    %352 = vmatpush1.msra.mxu0 0.0
    %353 = vmatprep.subr.mxu0 0.0
    %354 = vmatpush1.msra.mxu0 0.0
    %355 = vmatprep.subr.mxu0 0.0
    %356 = vmatpush1.msra.mxu0 0.0
    %357 = vmatprep.subr.mxu0 0.0
    %358 = vmatpush1.msra.mxu0 0.0
    %359 = vmatprep.subr.mxu0 0.0
    %360 = vmatpush1.msra.mxu0 0.0
    %361 = vmatprep.subr.mxu0 0.0
    %362 = vmatpush1.msra.mxu0 0.0
    %363 = vmatprep.subr.mxu0 0.0
    %364 = vmatpush1.msra.mxu0 0.0
    %365 = vmatprep.subr.mxu0 0.0
    %366 = vmatpush1.msra.mxu0 0.0
    %367 = vmatprep.subr.mxu0 0.0
    %368 = vmatpush1.msra.mxu0 0.0
    %369 = vmatprep.subr.mxu0 0.0
    %370 = vmatpush1.msra.mxu0 0.0
    %371 = vmatprep.subr.mxu0 0.0
    %372 = vmatpush1.msra.mxu0 0.0
    %373 = vmatprep.subr.mxu0 0.0
    %374 = vmatpush1.msra.mxu0 0.0
    %375 = vmatprep.subr.mxu0 0.0
    %376 = vmatpush1.msra.mxu0 0.0
    %377 = vmatprep.subr.mxu0 0.0
    %378 = vmatpush1.msra.mxu0 0.0
    %379 = vmatprep.subr.mxu0 0.0
    %380 = vmatpush1.msra.mxu0 0.0
    %381 = vmatprep.subr.mxu0 0.0
    %382 = vmatpush1.msra.mxu0 0.0
    %383 = vmatprep.subr.mxu0 0.0
    %384 = vmatpush1.msra.mxu0 0.0
    %385 = vmatprep.subr.mxu0 0.0
    %386 = vmatpush1.msra.mxu0 0.0
    %387 = vmatprep.subr.mxu0 0.0
    %388 = vmatpush1.msra.mxu0 0.0
    %389 = vmatprep.subr.mxu0 0.0
    %390 = vmatpush1.msra.mxu0 0.0
    %391 = vmatprep.subr.mxu0 0.0
    %392 = vmatpush1.msra.mxu0 0.0
    %393 = vmatprep.subr.mxu0 0.0
    %394 = vmatpush1.msra.mxu0 0.0
    %395 = vmatprep.subr.mxu0 0.0
    %396 = vmatpush1.msra.mxu0 0.0
    %397 = vmatprep.mubr.f32.mxu0 0.0
    %398 = vmatmul.mubr.f32.gmra.mrb[0].mxu0 %v257
    %v399 = vpop.f32.mrb[0].mxu0
    %v400 = vadd.f32 0.0, %v399
    %v401 = vpop.f32.mrb[0].mxu0
    %402 = vdwg.mxu0
    %v403 = vadd.f32 %v332, %v400
    %v404 = vxor.u32 %v403, 2147483648
    %v405 = vmul.f32 %v404, 1.442695
    %v406 = vpow.pop %v405
    %v407 = vadd.f32 %v406, 1.0
    %v408 = vrcp.pop %v407
    %v409 = vmul.f32 1.0, %v408
    %v410 = vadd.f32 %v400, %v221
    %412 = vrot.lane.b32.xlu0 %v410, 64
    %v413 = vpop.permute.xlu0 %412
    %v415 = vmul.f32 %v409, %v413
    %417 = vrot.lane.b32.xlu0 %v415, 64
    %v418 = vpop.permute.xlu0 %417
    %v420 = vadd.f32 %v332, %v418
    %v421 = vtanh.pop %v420
    %v422 = vsub.f32 %v253, %v421
    %424 = vrot.lane.b32.xlu0 %v422, 96
    %v425 = vpop.permute.xlu0 %424
    %v427 = vmul.f32 %v409, %v425
    %429 = vrot.lane.b32.xlu0 %v427, 32
    %v430 = vpop.permute.xlu0 %429
    %v432 = vadd.f32 %v421, %v430
    %s433 = scalar_lea.vmem %s1, 2
    %v434 = vld [vmem:[%s433] sm:$0x3]
    %vm435 = vcmp.ne.f32.partialorder %v434, 0.0
    %v436 = vsel %vm435, 1, 0
    %437 = vset.pattern.permute.xlu0 0
    %438 = vperm.xlu0 %437, %v436
    %v439 = vpop.permute.xlu0 %438
    %vm440 = vcmp.eq.s32.totalorder %v439, 1
    %v441 = vsel %vm440, %v432, %v253
    %443 = vrot.lane.b32.xlu0 %v441, 64
    %v444 = vpop.permute.xlu0 %443
    %v445 = vsel %vm139, %v444, 0
    %447 = vmatprep.subr.mxu0 0.0
    %448 = vmatpush1.msra.mxu0 %v127
    %449 = vmatprep.subr.mxu0 0.0
    %450 = vmatpush1.msra.mxu0 %v128
    %451 = vmatprep.subr.mxu0 0.0
    %452 = vmatpush1.msra.mxu0 %v129
    %453 = vmatprep.subr.mxu0 0.0
    %454 = vmatpush1.msra.mxu0 %v130
    %455 = vmatprep.subr.mxu0 0.0
    %456 = vmatpush1.msra.mxu0 0.0
    %457 = vmatprep.subr.mxu0 0.0
    %458 = vmatpush1.msra.mxu0 0.0
    %459 = vmatprep.subr.mxu0 0.0
    %460 = vmatpush1.msra.mxu0 0.0
    %461 = vmatprep.subr.mxu0 0.0
    %462 = vmatpush1.msra.mxu0 0.0
    %463 = vmatprep.subr.mxu0 0.0
    %464 = vmatpush1.msra.mxu0 0.0
    %465 = vmatprep.subr.mxu0 0.0
    %466 = vmatpush1.msra.mxu0 0.0
    %467 = vmatprep.subr.mxu0 0.0
    %468 = vmatpush1.msra.mxu0 0.0
    %469 = vmatprep.subr.mxu0 0.0
    %470 = vmatpush1.msra.mxu0 0.0
    %471 = vmatprep.subr.mxu0 0.0
    %472 = vmatpush1.msra.mxu0 0.0
    %473 = vmatprep.subr.mxu0 0.0
    %474 = vmatpush1.msra.mxu0 0.0
    %475 = vmatprep.subr.mxu0 0.0
    %476 = vmatpush1.msra.mxu0 0.0
    %477 = vmatprep.subr.mxu0 0.0
    %478 = vmatpush1.msra.mxu0 0.0
    %479 = vmatprep.subr.mxu0 0.0
    %480 = vmatpush1.msra.mxu0 0.0
    %481 = vmatprep.subr.mxu0 0.0
    %482 = vmatpush1.msra.mxu0 0.0
    %483 = vmatprep.subr.mxu0 0.0
    %484 = vmatpush1.msra.mxu0 0.0
    %485 = vmatprep.subr.mxu0 0.0
    %486 = vmatpush1.msra.mxu0 0.0
    %487 = vmatprep.subr.mxu0 0.0
    %488 = vmatpush1.msra.mxu0 0.0
    %489 = vmatprep.subr.mxu0 0.0
    %490 = vmatpush1.msra.mxu0 0.0
    %491 = vmatprep.subr.mxu0 0.0
    %492 = vmatpush1.msra.mxu0 0.0
    %493 = vmatprep.subr.mxu0 0.0
    %494 = vmatpush1.msra.mxu0 0.0
    %495 = vmatprep.subr.mxu0 0.0
    %496 = vmatpush1.msra.mxu0 0.0
    %497 = vmatprep.subr.mxu0 0.0
    %498 = vmatpush1.msra.mxu0 0.0
    %499 = vmatprep.subr.mxu0 0.0
    %500 = vmatpush1.msra.mxu0 0.0
    %501 = vmatprep.subr.mxu0 0.0
    %502 = vmatpush1.msra.mxu0 0.0
    %503 = vmatprep.subr.mxu0 0.0
    %504 = vmatpush1.msra.mxu0 0.0
    %505 = vmatprep.subr.mxu0 0.0
    %506 = vmatpush1.msra.mxu0 0.0
    %507 = vmatprep.subr.mxu0 0.0
    %508 = vmatpush1.msra.mxu0 0.0
    %509 = vmatprep.subr.mxu0 0.0
    %510 = vmatpush1.msra.mxu0 0.0
    %511 = vmatprep.mubr.f32.mxu0 0.0
    %512 = vmatmul.mubr.f32.gmra.mrb[0].mxu0 %v445
    %v513 = vpop.f32.mrb[0].mxu0
    %v514 = vadd.f32 %v136, %v513
    %v515 = vpop.f32.mrb[0].mxu0
    %516 = vdwg.mxu0
    %s517 = scalar_lea.vmem [#allocation2], 2
    %518 = vst.msk [vmem:[%s517] sm:$0x3] %vm329, %v514
    %s519 = scalar_lea.vmem [#allocation4], 4
    %v520 = vld [vmem:[%s519] sm:$0x3]
    %521 = vmatprep.subr.mxu0 0.0
    %522 = vmatpush1.msra.mxu0 %v117
    %523 = vmatprep.subr.mxu0 0.0
    %524 = vmatpush1.msra.mxu0 %v118
    %525 = vmatprep.subr.mxu0 0.0
    %526 = vmatpush1.msra.mxu0 %v119
    %527 = vmatprep.subr.mxu0 0.0
    %528 = vmatpush1.msra.mxu0 %v120
    %529 = vmatprep.subr.mxu0 0.0
    %530 = vmatpush1.msra.mxu0 0.0
    %531 = vmatprep.subr.mxu0 0.0
    %532 = vmatpush1.msra.mxu0 0.0
    %533 = vmatprep.subr.mxu0 0.0
    %534 = vmatpush1.msra.mxu0 0.0
    %535 = vmatprep.subr.mxu0 0.0
    %536 = vmatpush1.msra.mxu0 0.0
    %537 = vmatprep.subr.mxu0 0.0
    %538 = vmatpush1.msra.mxu0 0.0
    %539 = vmatprep.subr.mxu0 0.0
    %540 = vmatpush1.msra.mxu0 0.0
    %541 = vmatprep.subr.mxu0 0.0
    %542 = vmatpush1.msra.mxu0 0.0
    %543 = vmatprep.subr.mxu0 0.0
    %544 = vmatpush1.msra.mxu0 0.0
    %545 = vmatprep.subr.mxu0 0.0
    %546 = vmatpush1.msra.mxu0 0.0
    %547 = vmatprep.subr.mxu0 0.0
    %548 = vmatpush1.msra.mxu0 0.0
    %549 = vmatprep.subr.mxu0 0.0
    %550 = vmatpush1.msra.mxu0 0.0
    %551 = vmatprep.subr.mxu0 0.0
    %552 = vmatpush1.msra.mxu0 0.0
    %553 = vmatprep.subr.mxu0 0.0
    %554 = vmatpush1.msra.mxu0 0.0
    %555 = vmatprep.subr.mxu0 0.0
    %556 = vmatpush1.msra.mxu0 0.0
    %557 = vmatprep.subr.mxu0 0.0
    %558 = vmatpush1.msra.mxu0 0.0
    %559 = vmatprep.subr.mxu0 0.0
    %560 = vmatpush1.msra.mxu0 0.0
    %561 = vmatprep.subr.mxu0 0.0
    %562 = vmatpush1.msra.mxu0 0.0
    %563 = vmatprep.subr.mxu0 0.0
    %564 = vmatpush1.msra.mxu0 0.0
    %565 = vmatprep.subr.mxu0 0.0
    %566 = vmatpush1.msra.mxu0 0.0
    %567 = vmatprep.subr.mxu0 0.0
    %568 = vmatpush1.msra.mxu0 0.0
    %569 = vmatprep.subr.mxu0 0.0
    %570 = vmatpush1.msra.mxu0 0.0
    %571 = vmatprep.subr.mxu0 0.0
    %572 = vmatpush1.msra.mxu0 0.0
    %573 = vmatprep.subr.mxu0 0.0
    %574 = vmatpush1.msra.mxu0 0.0
    %575 = vmatprep.subr.mxu0 0.0
    %576 = vmatpush1.msra.mxu0 0.0
    %577 = vmatprep.subr.mxu0 0.0
    %578 = vmatpush1.msra.mxu0 0.0
    %579 = vmatprep.subr.mxu0 0.0
    %580 = vmatpush1.msra.mxu0 0.0
    %581 = vmatprep.subr.mxu0 0.0
    %582 = vmatpush1.msra.mxu0 0.0
    %583 = vmatprep.subr.mxu0 0.0
    %584 = vmatpush1.msra.mxu0 0.0
    %585 = vmatprep.mubr.f32.mxu0 0.0
    %586 = vmatmul.mubr.f32.gmra.mrb[0].mxu0 %v445
    %v587 = vpop.f32.mrb[0].mxu0
    %v588 = vadd.f32 0.0, %v587
    %v589 = vpop.f32.mrb[0].mxu0
    %590 = vdwg.mxu0
    %v591 = vadd.f32 %v520, %v588
    %v592 = vxor.u32 %v591, 2147483648
    %v593 = vmul.f32 %v592, 1.442695
    %v594 = vpow.pop %v593
    %v595 = vadd.f32 %v594, 1.0
    %v596 = vrcp.pop %v595
    %v597 = vmul.f32 1.0, %v596
    %v598 = vadd.f32 %v588, %v221
    %600 = vrot.lane.b32.xlu0 %v598, 64
    %v601 = vpop.permute.xlu0 %600
    %v603 = vmul.f32 %v597, %v601
    %605 = vrot.lane.b32.xlu0 %v603, 64
    %v606 = vpop.permute.xlu0 %605
    %v608 = vadd.f32 %v520, %v606
    %v609 = vtanh.pop %v608
    %v610 = vsub.f32 %v441, %v609
    %612 = vrot.lane.b32.xlu0 %v610, 96
    %v613 = vpop.permute.xlu0 %612
    %v615 = vmul.f32 %v597, %v613
    %617 = vrot.lane.b32.xlu0 %v615, 32
    %v618 = vpop.permute.xlu0 %617
    %v620 = vadd.f32 %v609, %v618
    %s621 = scalar_lea.vmem %s1, 4
    %v622 = vld [vmem:[%s621] sm:$0x3]
    %vm623 = vcmp.ne.f32.partialorder %v622, 0.0
    %v624 = vsel %vm623, 1, 0
    %625 = vset.pattern.permute.xlu0 0
    %626 = vperm.xlu0 %625, %v624
    %v627 = vpop.permute.xlu0 %626
    %vm628 = vcmp.eq.s32.totalorder %v627, 1
    %v629 = vsel %vm628, %v620, %v441
    %631 = vrot.lane.b32.xlu0 %v629, 64
    %v632 = vpop.permute.xlu0 %631
    %v633 = vsel %vm139, %v632, 0
    %635 = vmatprep.subr.mxu0 0.0
    %636 = vmatpush1.msra.mxu0 %v127
    %637 = vmatprep.subr.mxu0 0.0
    %638 = vmatpush1.msra.mxu0 %v128
    %639 = vmatprep.subr.mxu0 0.0
    %640 = vmatpush1.msra.mxu0 %v129
    %641 = vmatprep.subr.mxu0 0.0
    %642 = vmatpush1.msra.mxu0 %v130
    %643 = vmatprep.subr.mxu0 0.0
    %644 = vmatpush1.msra.mxu0 0.0
    %645 = vmatprep.subr.mxu0 0.0
    %646 = vmatpush1.msra.mxu0 0.0
    %647 = vmatprep.subr.mxu0 0.0
    %648 = vmatpush1.msra.mxu0 0.0
    %649 = vmatprep.subr.mxu0 0.0
    %650 = vmatpush1.msra.mxu0 0.0
    %651 = vmatprep.subr.mxu0 0.0
    %652 = vmatpush1.msra.mxu0 0.0
    %653 = vmatprep.subr.mxu0 0.0
    %654 = vmatpush1.msra.mxu0 0.0
    %655 = vmatprep.subr.mxu0 0.0
    %656 = vmatpush1.msra.mxu0 0.0
    %657 = vmatprep.subr.mxu0 0.0
    %658 = vmatpush1.msra.mxu0 0.0
    %659 = vmatprep.subr.mxu0 0.0
    %660 = vmatpush1.msra.mxu0 0.0
    %661 = vmatprep.subr.mxu0 0.0
    %662 = vmatpush1.msra.mxu0 0.0
    %663 = vmatprep.subr.mxu0 0.0
    %664 = vmatpush1.msra.mxu0 0.0
    %665 = vmatprep.subr.mxu0 0.0
    %666 = vmatpush1.msra.mxu0 0.0
    %667 = vmatprep.subr.mxu0 0.0
    %668 = vmatpush1.msra.mxu0 0.0
    %669 = vmatprep.subr.mxu0 0.0
    %670 = vmatpush1.msra.mxu0 0.0
    %671 = vmatprep.subr.mxu0 0.0
    %672 = vmatpush1.msra.mxu0 0.0
    %673 = vmatprep.subr.mxu0 0.0
    %674 = vmatpush1.msra.mxu0 0.0
    %675 = vmatprep.subr.mxu0 0.0
    %676 = vmatpush1.msra.mxu0 0.0
    %677 = vmatprep.subr.mxu0 0.0
    %678 = vmatpush1.msra.mxu0 0.0
    %679 = vmatprep.subr.mxu0 0.0
    %680 = vmatpush1.msra.mxu0 0.0
    %681 = vmatprep.subr.mxu0 0.0
    %682 = vmatpush1.msra.mxu0 0.0
    %683 = vmatprep.subr.mxu0 0.0
    %684 = vmatpush1.msra.mxu0 0.0
    %685 = vmatprep.subr.mxu0 0.0
    %686 = vmatpush1.msra.mxu0 0.0
    %687 = vmatprep.subr.mxu0 0.0
    %688 = vmatpush1.msra.mxu0 0.0
    %689 = vmatprep.subr.mxu0 0.0
    %690 = vmatpush1.msra.mxu0 0.0
    %691 = vmatprep.subr.mxu0 0.0
    %692 = vmatpush1.msra.mxu0 0.0
    %693 = vmatprep.subr.mxu0 0.0
    %694 = vmatpush1.msra.mxu0 0.0
    %695 = vmatprep.subr.mxu0 0.0
    %696 = vmatpush1.msra.mxu0 0.0
    %697 = vmatprep.subr.mxu0 0.0
    %698 = vmatpush1.msra.mxu0 0.0
    %699 = vmatprep.mubr.f32.mxu0 0.0
    %700 = vmatmul.mubr.f32.gmra.mrb[0].mxu0 %v633
    %v701 = vpop.f32.mrb[0].mxu0
    %v702 = vadd.f32 %v136, %v701
    %v703 = vpop.f32.mrb[0].mxu0
    %704 = vdwg.mxu0
    %s705 = scalar_lea.vmem [#allocation2], 4
    %706 = vst.msk [vmem:[%s705] sm:$0x3] %vm329, %v702
    %s707 = scalar_lea.vmem [#allocation4], 6
    %v708 = vld [vmem:[%s707] sm:$0x3]
    %709 = vmatprep.subr.mxu0 0.0
    %710 = vmatpush1.msra.mxu0 %v117
    %711 = vmatprep.subr.mxu0 0.0
    %712 = vmatpush1.msra.mxu0 %v118
    %713 = vmatprep.subr.mxu0 0.0
    %714 = vmatpush1.msra.mxu0 %v119
    %715 = vmatprep.subr.mxu0 0.0
    %716 = vmatpush1.msra.mxu0 %v120
    %717 = vmatprep.subr.mxu0 0.0
    %718 = vmatpush1.msra.mxu0 0.0
    %719 = vmatprep.subr.mxu0 0.0
    %720 = vmatpush1.msra.mxu0 0.0
    %721 = vmatprep.subr.mxu0 0.0
    %722 = vmatpush1.msra.mxu0 0.0
    %723 = vmatprep.subr.mxu0 0.0
    %724 = vmatpush1.msra.mxu0 0.0
    %725 = vmatprep.subr.mxu0 0.0
    %726 = vmatpush1.msra.mxu0 0.0
    %727 = vmatprep.subr.mxu0 0.0
    %728 = vmatpush1.msra.mxu0 0.0
    %729 = vmatprep.subr.mxu0 0.0
    %730 = vmatpush1.msra.mxu0 0.0
    %731 = vmatprep.subr.mxu0 0.0
    %732 = vmatpush1.msra.mxu0 0.0
    %733 = vmatprep.subr.mxu0 0.0
    %734 = vmatpush1.msra.mxu0 0.0
    %735 = vmatprep.subr.mxu0 0.0
    %736 = vmatpush1.msra.mxu0 0.0
    %737 = vmatprep.subr.mxu0 0.0
    %738 = vmatpush1.msra.mxu0 0.0
    %739 = vmatprep.subr.mxu0 0.0
    %740 = vmatpush1.msra.mxu0 0.0
    %741 = vmatprep.subr.mxu0 0.0
    %742 = vmatpush1.msra.mxu0 0.0
    %743 = vmatprep.subr.mxu0 0.0
    %744 = vmatpush1.msra.mxu0 0.0
    %745 = vmatprep.subr.mxu0 0.0
    %746 = vmatpush1.msra.mxu0 0.0
    %747 = vmatprep.subr.mxu0 0.0
    %748 = vmatpush1.msra.mxu0 0.0
    %749 = vmatprep.subr.mxu0 0.0
    %750 = vmatpush1.msra.mxu0 0.0
    %751 = vmatprep.subr.mxu0 0.0
    %752 = vmatpush1.msra.mxu0 0.0
    %753 = vmatprep.subr.mxu0 0.0
    %754 = vmatpush1.msra.mxu0 0.0
    %755 = vmatprep.subr.mxu0 0.0
    %756 = vmatpush1.msra.mxu0 0.0
    %757 = vmatprep.subr.mxu0 0.0
    %758 = vmatpush1.msra.mxu0 0.0
    %759 = vmatprep.subr.mxu0 0.0
    %760 = vmatpush1.msra.mxu0 0.0
    %761 = vmatprep.subr.mxu0 0.0
    %762 = vmatpush1.msra.mxu0 0.0
    %763 = vmatprep.subr.mxu0 0.0
    %764 = vmatpush1.msra.mxu0 0.0
    %765 = vmatprep.subr.mxu0 0.0
    %766 = vmatpush1.msra.mxu0 0.0
    %767 = vmatprep.subr.mxu0 0.0
    %768 = vmatpush1.msra.mxu0 0.0
    %769 = vmatprep.subr.mxu0 0.0
    %770 = vmatpush1.msra.mxu0 0.0
    %771 = vmatprep.subr.mxu0 0.0
    %772 = vmatpush1.msra.mxu0 0.0
    %773 = vmatprep.mubr.f32.mxu0 0.0
    %774 = vmatmul.mubr.f32.gmra.mrb[0].mxu0 %v633
    %v775 = vpop.f32.mrb[0].mxu0
    %v776 = vadd.f32 0.0, %v775
    %v777 = vpop.f32.mrb[0].mxu0
    %778 = vdwg.mxu0
    %v779 = vadd.f32 %v708, %v776
    %v780 = vxor.u32 %v779, 2147483648
    %v781 = vmul.f32 %v780, 1.442695
    %v782 = vpow.pop %v781
    %v783 = vadd.f32 %v782, 1.0
    %v784 = vrcp.pop %v783
    %v785 = vmul.f32 1.0, %v784
    %v786 = vadd.f32 %v776, %v221
    %788 = vrot.lane.b32.xlu0 %v786, 64
    %v789 = vpop.permute.xlu0 %788
    %v791 = vmul.f32 %v785, %v789
    %793 = vrot.lane.b32.xlu0 %v791, 64
    %v794 = vpop.permute.xlu0 %793
    %v796 = vadd.f32 %v708, %v794
    %v797 = vtanh.pop %v796
    %v798 = vsub.f32 %v629, %v797
    %800 = vrot.lane.b32.xlu0 %v798, 96
    %v801 = vpop.permute.xlu0 %800
    %v803 = vmul.f32 %v785, %v801
    %805 = vrot.lane.b32.xlu0 %v803, 32
    %v806 = vpop.permute.xlu0 %805
    %v808 = vadd.f32 %v797, %v806
    %s809 = scalar_lea.vmem %s1, 6
    %v810 = vld [vmem:[%s809] sm:$0x3]
    %vm811 = vcmp.ne.f32.partialorder %v810, 0.0
    %v812 = vsel %vm811, 1, 0
    %813 = vset.pattern.permute.xlu0 0
    %814 = vperm.xlu0 %813, %v812
    %v815 = vpop.permute.xlu0 %814
    %vm816 = vcmp.eq.s32.totalorder %v815, 1
    %v817 = vsel %vm816, %v808, %v629
    %819 = vrot.lane.b32.xlu0 %v817, 64
    %v820 = vpop.permute.xlu0 %819
    %v821 = vsel %vm139, %v820, 0
    %823 = vmatprep.subr.mxu0 0.0
    %824 = vmatpush1.msra.mxu0 %v127
    %825 = vmatprep.subr.mxu0 0.0
    %826 = vmatpush1.msra.mxu0 %v128
    %827 = vmatprep.subr.mxu0 0.0
    %828 = vmatpush1.msra.mxu0 %v129
    %829 = vmatprep.subr.mxu0 0.0
    %830 = vmatpush1.msra.mxu0 %v130
    %831 = vmatprep.subr.mxu0 0.0
    %832 = vmatpush1.msra.mxu0 0.0
    %833 = vmatprep.subr.mxu0 0.0
    %834 = vmatpush1.msra.mxu0 0.0
    %835 = vmatprep.subr.mxu0 0.0
    %836 = vmatpush1.msra.mxu0 0.0
    %837 = vmatprep.subr.mxu0 0.0
    %838 = vmatpush1.msra.mxu0 0.0
    %839 = vmatprep.subr.mxu0 0.0
    %840 = vmatpush1.msra.mxu0 0.0
    %841 = vmatprep.subr.mxu0 0.0
    %842 = vmatpush1.msra.mxu0 0.0
    %843 = vmatprep.subr.mxu0 0.0
    %844 = vmatpush1.msra.mxu0 0.0
    %845 = vmatprep.subr.mxu0 0.0
    %846 = vmatpush1.msra.mxu0 0.0
    %847 = vmatprep.subr.mxu0 0.0
    %848 = vmatpush1.msra.mxu0 0.0
    %849 = vmatprep.subr.mxu0 0.0
    %850 = vmatpush1.msra.mxu0 0.0
    %851 = vmatprep.subr.mxu0 0.0
    %852 = vmatpush1.msra.mxu0 0.0
    %853 = vmatprep.subr.mxu0 0.0
    %854 = vmatpush1.msra.mxu0 0.0
    %855 = vmatprep.subr.mxu0 0.0
    %856 = vmatpush1.msra.mxu0 0.0
    %857 = vmatprep.subr.mxu0 0.0
    %858 = vmatpush1.msra.mxu0 0.0
    %859 = vmatprep.subr.mxu0 0.0
    %860 = vmatpush1.msra.mxu0 0.0
    %861 = vmatprep.subr.mxu0 0.0
    %862 = vmatpush1.msra.mxu0 0.0
    %863 = vmatprep.subr.mxu0 0.0
    %864 = vmatpush1.msra.mxu0 0.0
    %865 = vmatprep.subr.mxu0 0.0
    %866 = vmatpush1.msra.mxu0 0.0
    %867 = vmatprep.subr.mxu0 0.0
    %868 = vmatpush1.msra.mxu0 0.0
    %869 = vmatprep.subr.mxu0 0.0
    %870 = vmatpush1.msra.mxu0 0.0
    %871 = vmatprep.subr.mxu0 0.0
    %872 = vmatpush1.msra.mxu0 0.0
    %873 = vmatprep.subr.mxu0 0.0
    %874 = vmatpush1.msra.mxu0 0.0
    %875 = vmatprep.subr.mxu0 0.0
    %876 = vmatpush1.msra.mxu0 0.0
    %877 = vmatprep.subr.mxu0 0.0
    %878 = vmatpush1.msra.mxu0 0.0
    %879 = vmatprep.subr.mxu0 0.0
    %880 = vmatpush1.msra.mxu0 0.0
    %881 = vmatprep.subr.mxu0 0.0
    %882 = vmatpush1.msra.mxu0 0.0
    %883 = vmatprep.subr.mxu0 0.0
    %884 = vmatpush1.msra.mxu0 0.0
    %885 = vmatprep.subr.mxu0 0.0
    %886 = vmatpush1.msra.mxu0 0.0
    %887 = vmatprep.mubr.f32.mxu0 0.0
    %888 = vmatmul.mubr.f32.gmra.mrb[0].mxu0 %v821
    %v889 = vpop.f32.mrb[0].mxu0
    %v890 = vadd.f32 %v136, %v889
    %v891 = vpop.f32.mrb[0].mxu0
    %892 = vdwg.mxu0
    %s893 = scalar_lea.vmem [#allocation2], 6
    %894 = vst.msk [vmem:[%s893] sm:$0x3] %vm329, %v890
    %s895 = scalar_lea.vmem [#allocation4], 8
    %v896 = vld [vmem:[%s895] sm:$0x3]
    %897 = vmatprep.subr.mxu0 0.0
    %898 = vmatpush1.msra.mxu0 %v117
    %899 = vmatprep.subr.mxu0 0.0
    %900 = vmatpush1.msra.mxu0 %v118
    %901 = vmatprep.subr.mxu0 0.0
    %902 = vmatpush1.msra.mxu0 %v119
    %903 = vmatprep.subr.mxu0 0.0
    %904 = vmatpush1.msra.mxu0 %v120
    %905 = vmatprep.subr.mxu0 0.0
    %906 = vmatpush1.msra.mxu0 0.0
    %907 = vmatprep.subr.mxu0 0.0
    %908 = vmatpush1.msra.mxu0 0.0
    %909 = vmatprep.subr.mxu0 0.0
    %910 = vmatpush1.msra.mxu0 0.0
    %911 = vmatprep.subr.mxu0 0.0
    %912 = vmatpush1.msra.mxu0 0.0
    %913 = vmatprep.subr.mxu0 0.0
    %914 = vmatpush1.msra.mxu0 0.0
    %915 = vmatprep.subr.mxu0 0.0
    %916 = vmatpush1.msra.mxu0 0.0
    %917 = vmatprep.subr.mxu0 0.0
    %918 = vmatpush1.msra.mxu0 0.0
    %919 = vmatprep.subr.mxu0 0.0
    %920 = vmatpush1.msra.mxu0 0.0
    %921 = vmatprep.subr.mxu0 0.0
    %922 = vmatpush1.msra.mxu0 0.0
    %923 = vmatprep.subr.mxu0 0.0
    %924 = vmatpush1.msra.mxu0 0.0
    %925 = vmatprep.subr.mxu0 0.0
    %926 = vmatpush1.msra.mxu0 0.0
    %927 = vmatprep.subr.mxu0 0.0
    %928 = vmatpush1.msra.mxu0 0.0
    %929 = vmatprep.subr.mxu0 0.0
    %930 = vmatpush1.msra.mxu0 0.0
    %931 = vmatprep.subr.mxu0 0.0
    %932 = vmatpush1.msra.mxu0 0.0
    %933 = vmatprep.subr.mxu0 0.0
    %934 = vmatpush1.msra.mxu0 0.0
    %935 = vmatprep.subr.mxu0 0.0
    %936 = vmatpush1.msra.mxu0 0.0
    %937 = vmatprep.subr.mxu0 0.0
    %938 = vmatpush1.msra.mxu0 0.0
    %939 = vmatprep.subr.mxu0 0.0
    %940 = vmatpush1.msra.mxu0 0.0
    %941 = vmatprep.subr.mxu0 0.0
    %942 = vmatpush1.msra.mxu0 0.0
    %943 = vmatprep.subr.mxu0 0.0
    %944 = vmatpush1.msra.mxu0 0.0
    %945 = vmatprep.subr.mxu0 0.0
    %946 = vmatpush1.msra.mxu0 0.0
    %947 = vmatprep.subr.mxu0 0.0
    %948 = vmatpush1.msra.mxu0 0.0
    %949 = vmatprep.subr.mxu0 0.0
    %950 = vmatpush1.msra.mxu0 0.0
    %951 = vmatprep.subr.mxu0 0.0
    %952 = vmatpush1.msra.mxu0 0.0
    %953 = vmatprep.subr.mxu0 0.0
    %954 = vmatpush1.msra.mxu0 0.0
    %955 = vmatprep.subr.mxu0 0.0
    %956 = vmatpush1.msra.mxu0 0.0
    %957 = vmatprep.subr.mxu0 0.0
    %958 = vmatpush1.msra.mxu0 0.0
    %959 = vmatprep.subr.mxu0 0.0
    %960 = vmatpush1.msra.mxu0 0.0
    %961 = vmatprep.mubr.f32.mxu0 0.0
    %962 = vmatmul.mubr.f32.gmra.mrb[0].mxu0 %v821
    %v963 = vpop.f32.mrb[0].mxu0
    %v964 = vadd.f32 0.0, %v963
    %v965 = vpop.f32.mrb[0].mxu0
    %966 = vdwg.mxu0
    %v967 = vadd.f32 %v896, %v964
    %v968 = vxor.u32 %v967, 2147483648
    %v969 = vmul.f32 %v968, 1.442695
    %v970 = vpow.pop %v969
    %v971 = vadd.f32 %v970, 1.0
    %v972 = vrcp.pop %v971
    %v973 = vmul.f32 1.0, %v972
    %v974 = vadd.f32 %v964, %v221
    %976 = vrot.lane.b32.xlu0 %v974, 64
    %v977 = vpop.permute.xlu0 %976
    %v979 = vmul.f32 %v973, %v977
    %981 = vrot.lane.b32.xlu0 %v979, 64
    %v982 = vpop.permute.xlu0 %981
    %v984 = vadd.f32 %v896, %v982
    %v985 = vtanh.pop %v984
    %v986 = vsub.f32 %v817, %v985
    %988 = vrot.lane.b32.xlu0 %v986, 96
    %v989 = vpop.permute.xlu0 %988
    %v991 = vmul.f32 %v973, %v989
    %993 = vrot.lane.b32.xlu0 %v991, 32
    %v994 = vpop.permute.xlu0 %993
    %v996 = vadd.f32 %v985, %v994
    %s997 = scalar_lea.vmem %s1, 8
    %v998 = vld [vmem:[%s997] sm:$0x3]
    %vm999 = vcmp.ne.f32.partialorder %v998, 0.0
    %v1000 = vsel %vm999, 1, 0
    %1001 = vset.pattern.permute.xlu0 0
    %1002 = vperm.xlu0 %1001, %v1000
    %v1003 = vpop.permute.xlu0 %1002
    %vm1004 = vcmp.eq.s32.totalorder %v1003, 1
    %v1005 = vsel %vm1004, %v996, %v817
    %1007 = vrot.lane.b32.xlu0 %v1005, 64
    %v1008 = vpop.permute.xlu0 %1007
    %v1009 = vsel %vm139, %v1008, 0
    %1011 = vmatprep.subr.mxu0 0.0
    %1012 = vmatpush1.msra.mxu0 %v127
    %1013 = vmatprep.subr.mxu0 0.0
    %1014 = vmatpush1.msra.mxu0 %v128
    %1015 = vmatprep.subr.mxu0 0.0
    %1016 = vmatpush1.msra.mxu0 %v129
    %1017 = vmatprep.subr.mxu0 0.0
    %1018 = vmatpush1.msra.mxu0 %v130
    %1019 = vmatprep.subr.mxu0 0.0
    %1020 = vmatpush1.msra.mxu0 0.0
    %1021 = vmatprep.subr.mxu0 0.0
    %1022 = vmatpush1.msra.mxu0 0.0
    %1023 = vmatprep.subr.mxu0 0.0
    %1024 = vmatpush1.msra.mxu0 0.0
    %1025 = vmatprep.subr.mxu0 0.0
    %1026 = vmatpush1.msra.mxu0 0.0
    %1027 = vmatprep.subr.mxu0 0.0
    %1028 = vmatpush1.msra.mxu0 0.0
    %1029 = vmatprep.subr.mxu0 0.0
    %1030 = vmatpush1.msra.mxu0 0.0
    %1031 = vmatprep.subr.mxu0 0.0
    %1032 = vmatpush1.msra.mxu0 0.0
    %1033 = vmatprep.subr.mxu0 0.0
    %1034 = vmatpush1.msra.mxu0 0.0
    %1035 = vmatprep.subr.mxu0 0.0
    %1036 = vmatpush1.msra.mxu0 0.0
    %1037 = vmatprep.subr.mxu0 0.0
    %1038 = vmatpush1.msra.mxu0 0.0
    %1039 = vmatprep.subr.mxu0 0.0
    %1040 = vmatpush1.msra.mxu0 0.0
    %1041 = vmatprep.subr.mxu0 0.0
    %1042 = vmatpush1.msra.mxu0 0.0
    %1043 = vmatprep.subr.mxu0 0.0
    %1044 = vmatpush1.msra.mxu0 0.0
    %1045 = vmatprep.subr.mxu0 0.0
    %1046 = vmatpush1.msra.mxu0 0.0
    %1047 = vmatprep.subr.mxu0 0.0
    %1048 = vmatpush1.msra.mxu0 0.0
    %1049 = vmatprep.subr.mxu0 0.0
    %1050 = vmatpush1.msra.mxu0 0.0
    %1051 = vmatprep.subr.mxu0 0.0
    %1052 = vmatpush1.msra.mxu0 0.0
    %1053 = vmatprep.subr.mxu0 0.0
    %1054 = vmatpush1.msra.mxu0 0.0
    %1055 = vmatprep.subr.mxu0 0.0
    %1056 = vmatpush1.msra.mxu0 0.0
    %1057 = vmatprep.subr.mxu0 0.0
    %1058 = vmatpush1.msra.mxu0 0.0
    %1059 = vmatprep.subr.mxu0 0.0
    %1060 = vmatpush1.msra.mxu0 0.0
    %1061 = vmatprep.subr.mxu0 0.0
    %1062 = vmatpush1.msra.mxu0 0.0
    %1063 = vmatprep.subr.mxu0 0.0
    %1064 = vmatpush1.msra.mxu0 0.0
    %1065 = vmatprep.subr.mxu0 0.0
    %1066 = vmatpush1.msra.mxu0 0.0
    %1067 = vmatprep.subr.mxu0 0.0
    %1068 = vmatpush1.msra.mxu0 0.0
    %1069 = vmatprep.subr.mxu0 0.0
    %1070 = vmatpush1.msra.mxu0 0.0
    %1071 = vmatprep.subr.mxu0 0.0
    %1072 = vmatpush1.msra.mxu0 0.0
    %1073 = vmatprep.subr.mxu0 0.0
    %1074 = vmatpush1.msra.mxu0 0.0
    %1075 = vmatprep.mubr.f32.mxu0 0.0
    %1076 = vmatmul.mubr.f32.gmra.mrb[0].mxu0 %v1009
    %v1077 = vpop.f32.mrb[0].mxu0
    %v1078 = vadd.f32 %v136, %v1077
    %v1079 = vpop.f32.mrb[0].mxu0
    %1080 = vdwg.mxu0
    %s1081 = scalar_lea.vmem [#allocation2], 8
    %1082 = vst.msk [vmem:[%s1081] sm:$0x3] %vm329, %v1078
    %s1083 = scalar_lea.vmem [#allocation4], 10
    %v1084 = vld [vmem:[%s1083] sm:$0x3]
    %1085 = vmatprep.subr.mxu0 0.0
    %1086 = vmatpush1.msra.mxu0 %v117
    %1087 = vmatprep.subr.mxu0 0.0
    %1088 = vmatpush1.msra.mxu0 %v118
    %1089 = vmatprep.subr.mxu0 0.0
    %1090 = vmatpush1.msra.mxu0 %v119
    %1091 = vmatprep.subr.mxu0 0.0
    %1092 = vmatpush1.msra.mxu0 %v120
    %1093 = vmatprep.subr.mxu0 0.0
    %1094 = vmatpush1.msra.mxu0 0.0
    %1095 = vmatprep.subr.mxu0 0.0
    %1096 = vmatpush1.msra.mxu0 0.0
    %1097 = vmatprep.subr.mxu0 0.0
    %1098 = vmatpush1.msra.mxu0 0.0
    %1099 = vmatprep.subr.mxu0 0.0
    %1100 = vmatpush1.msra.mxu0 0.0
    %1101 = vmatprep.subr.mxu0 0.0
    %1102 = vmatpush1.msra.mxu0 0.0
    %1103 = vmatprep.subr.mxu0 0.0
    %1104 = vmatpush1.msra.mxu0 0.0
    %1105 = vmatprep.subr.mxu0 0.0
    %1106 = vmatpush1.msra.mxu0 0.0
    %1107 = vmatprep.subr.mxu0 0.0
    %1108 = vmatpush1.msra.mxu0 0.0
    %1109 = vmatprep.subr.mxu0 0.0
    %1110 = vmatpush1.msra.mxu0 0.0
    %1111 = vmatprep.subr.mxu0 0.0
    %1112 = vmatpush1.msra.mxu0 0.0
    %1113 = vmatprep.subr.mxu0 0.0
    %1114 = vmatpush1.msra.mxu0 0.0
    %1115 = vmatprep.subr.mxu0 0.0
    %1116 = vmatpush1.msra.mxu0 0.0
    %1117 = vmatprep.subr.mxu0 0.0
    %1118 = vmatpush1.msra.mxu0 0.0
    %1119 = vmatprep.subr.mxu0 0.0
    %1120 = vmatpush1.msra.mxu0 0.0
    %1121 = vmatprep.subr.mxu0 0.0
    %1122 = vmatpush1.msra.mxu0 0.0
    %1123 = vmatprep.subr.mxu0 0.0
    %1124 = vmatpush1.msra.mxu0 0.0
    %1125 = vmatprep.subr.mxu0 0.0
    %1126 = vmatpush1.msra.mxu0 0.0
    %1127 = vmatprep.subr.mxu0 0.0
    %1128 = vmatpush1.msra.mxu0 0.0
    %1129 = vmatprep.subr.mxu0 0.0
    %1130 = vmatpush1.msra.mxu0 0.0
    %1131 = vmatprep.subr.mxu0 0.0
    %1132 = vmatpush1.msra.mxu0 0.0
    %1133 = vmatprep.subr.mxu0 0.0
    %1134 = vmatpush1.msra.mxu0 0.0
    %1135 = vmatprep.subr.mxu0 0.0
    %1136 = vmatpush1.msra.mxu0 0.0
    %1137 = vmatprep.subr.mxu0 0.0
    %1138 = vmatpush1.msra.mxu0 0.0
    %1139 = vmatprep.subr.mxu0 0.0
    %1140 = vmatpush1.msra.mxu0 0.0
    %1141 = vmatprep.subr.mxu0 0.0
    %1142 = vmatpush1.msra.mxu0 0.0
    %1143 = vmatprep.subr.mxu0 0.0
    %1144 = vmatpush1.msra.mxu0 0.0
    %1145 = vmatprep.subr.mxu0 0.0
    %1146 = vmatpush1.msra.mxu0 0.0
    %1147 = vmatprep.subr.mxu0 0.0
    %1148 = vmatpush1.msra.mxu0 0.0
    %1149 = vmatprep.mubr.f32.mxu0 0.0
    %1150 = vmatmul.mubr.f32.gmra.mrb[0].mxu0 %v1009
    %v1151 = vpop.f32.mrb[0].mxu0
    %v1152 = vadd.f32 0.0, %v1151
    %v1153 = vpop.f32.mrb[0].mxu0
    %1154 = vdwg.mxu0
    %v1155 = vadd.f32 %v1084, %v1152
    %v1156 = vxor.u32 %v1155, 2147483648
    %v1157 = vmul.f32 %v1156, 1.442695
    %v1158 = vpow.pop %v1157
    %v1159 = vadd.f32 %v1158, 1.0
    %v1160 = vrcp.pop %v1159
    %v1161 = vmul.f32 1.0, %v1160
    %v1162 = vadd.f32 %v1152, %v221
    %1164 = vrot.lane.b32.xlu0 %v1162, 64
    %v1165 = vpop.permute.xlu0 %1164
    %v1167 = vmul.f32 %v1161, %v1165
    %1169 = vrot.lane.b32.xlu0 %v1167, 64
    %v1170 = vpop.permute.xlu0 %1169
    %v1172 = vadd.f32 %v1084, %v1170
    %v1173 = vtanh.pop %v1172
    %v1174 = vsub.f32 %v1005, %v1173
    %1176 = vrot.lane.b32.xlu0 %v1174, 96
    %v1177 = vpop.permute.xlu0 %1176
    %v1179 = vmul.f32 %v1161, %v1177
    %1181 = vrot.lane.b32.xlu0 %v1179, 32
    %v1182 = vpop.permute.xlu0 %1181
    %v1184 = vadd.f32 %v1173, %v1182
    %s1185 = scalar_lea.vmem %s1, 10
    %v1186 = vld [vmem:[%s1185] sm:$0x3]
    %vm1187 = vcmp.ne.f32.partialorder %v1186, 0.0
    %v1188 = vsel %vm1187, 1, 0
    %1189 = vset.pattern.permute.xlu0 0
    %1190 = vperm.xlu0 %1189, %v1188
    %v1191 = vpop.permute.xlu0 %1190
    %vm1192 = vcmp.eq.s32.totalorder %v1191, 1
    %v1193 = vsel %vm1192, %v1184, %v1005
    %1195 = vrot.lane.b32.xlu0 %v1193, 64
    %v1196 = vpop.permute.xlu0 %1195
    %v1197 = vsel %vm139, %v1196, 0
    %1199 = vmatprep.subr.mxu0 0.0
    %1200 = vmatpush1.msra.mxu0 %v127
    %1201 = vmatprep.subr.mxu0 0.0
    %1202 = vmatpush1.msra.mxu0 %v128
    %1203 = vmatprep.subr.mxu0 0.0
    %1204 = vmatpush1.msra.mxu0 %v129
    %1205 = vmatprep.subr.mxu0 0.0
    %1206 = vmatpush1.msra.mxu0 %v130
    %1207 = vmatprep.subr.mxu0 0.0
    %1208 = vmatpush1.msra.mxu0 0.0
    %1209 = vmatprep.subr.mxu0 0.0
    %1210 = vmatpush1.msra.mxu0 0.0
    %1211 = vmatprep.subr.mxu0 0.0
    %1212 = vmatpush1.msra.mxu0 0.0
    %1213 = vmatprep.subr.mxu0 0.0
    %1214 = vmatpush1.msra.mxu0 0.0
    %1215 = vmatprep.subr.mxu0 0.0
    %1216 = vmatpush1.msra.mxu0 0.0
    %1217 = vmatprep.subr.mxu0 0.0
    %1218 = vmatpush1.msra.mxu0 0.0
    %1219 = vmatprep.subr.mxu0 0.0
    %1220 = vmatpush1.msra.mxu0 0.0
    %1221 = vmatprep.subr.mxu0 0.0
    %1222 = vmatpush1.msra.mxu0 0.0
    %1223 = vmatprep.subr.mxu0 0.0
    %1224 = vmatpush1.msra.mxu0 0.0
    %1225 = vmatprep.subr.mxu0 0.0
    %1226 = vmatpush1.msra.mxu0 0.0
    %1227 = vmatprep.subr.mxu0 0.0
    %1228 = vmatpush1.msra.mxu0 0.0
    %1229 = vmatprep.subr.mxu0 0.0
    %1230 = vmatpush1.msra.mxu0 0.0
    %1231 = vmatprep.subr.mxu0 0.0
    %1232 = vmatpush1.msra.mxu0 0.0
    %1233 = vmatprep.subr.mxu0 0.0
    %1234 = vmatpush1.msra.mxu0 0.0
    %1235 = vmatprep.subr.mxu0 0.0
    %1236 = vmatpush1.msra.mxu0 0.0
    %1237 = vmatprep.subr.mxu0 0.0
    %1238 = vmatpush1.msra.mxu0 0.0
    %1239 = vmatprep.subr.mxu0 0.0
    %1240 = vmatpush1.msra.mxu0 0.0
    %1241 = vmatprep.subr.mxu0 0.0
    %1242 = vmatpush1.msra.mxu0 0.0
    %1243 = vmatprep.subr.mxu0 0.0
    %1244 = vmatpush1.msra.mxu0 0.0
    %1245 = vmatprep.subr.mxu0 0.0
    %1246 = vmatpush1.msra.mxu0 0.0
    %1247 = vmatprep.subr.mxu0 0.0
    %1248 = vmatpush1.msra.mxu0 0.0
    %1249 = vmatprep.subr.mxu0 0.0
    %1250 = vmatpush1.msra.mxu0 0.0
    %1251 = vmatprep.subr.mxu0 0.0
    %1252 = vmatpush1.msra.mxu0 0.0
    %1253 = vmatprep.subr.mxu0 0.0
    %1254 = vmatpush1.msra.mxu0 0.0
    %1255 = vmatprep.subr.mxu0 0.0
    %1256 = vmatpush1.msra.mxu0 0.0
    %1257 = vmatprep.subr.mxu0 0.0
    %1258 = vmatpush1.msra.mxu0 0.0
    %1259 = vmatprep.subr.mxu0 0.0
    %1260 = vmatpush1.msra.mxu0 0.0
    %1261 = vmatprep.subr.mxu0 0.0
    %1262 = vmatpush1.msra.mxu0 0.0
    %1263 = vmatprep.mubr.f32.mxu0 0.0
    %1264 = vmatmul.mubr.f32.gmra.mrb[0].mxu0 %v1197
    %v1265 = vpop.f32.mrb[0].mxu0
    %v1266 = vadd.f32 %v136, %v1265
    %v1267 = vpop.f32.mrb[0].mxu0
    %1268 = vdwg.mxu0
    %s1269 = scalar_lea.vmem [#allocation2], 10
    %1270 = vst.msk [vmem:[%s1269] sm:$0x3] %vm329, %v1266
    %s1271 = scalar_lea.vmem [#allocation4], 12
    %v1272 = vld [vmem:[%s1271] sm:$0x3]
    %1273 = vmatprep.subr.mxu0 0.0
    %1274 = vmatpush1.msra.mxu0 %v117
    %1275 = vmatprep.subr.mxu0 0.0
    %1276 = vmatpush1.msra.mxu0 %v118
    %1277 = vmatprep.subr.mxu0 0.0
    %1278 = vmatpush1.msra.mxu0 %v119
    %1279 = vmatprep.subr.mxu0 0.0
    %1280 = vmatpush1.msra.mxu0 %v120
    %1281 = vmatprep.subr.mxu0 0.0
    %1282 = vmatpush1.msra.mxu0 0.0
    %1283 = vmatprep.subr.mxu0 0.0
    %1284 = vmatpush1.msra.mxu0 0.0
    %1285 = vmatprep.subr.mxu0 0.0
    %1286 = vmatpush1.msra.mxu0 0.0
    %1287 = vmatprep.subr.mxu0 0.0
    %1288 = vmatpush1.msra.mxu0 0.0
    %1289 = vmatprep.subr.mxu0 0.0
    %1290 = vmatpush1.msra.mxu0 0.0
    %1291 = vmatprep.subr.mxu0 0.0
    %1292 = vmatpush1.msra.mxu0 0.0
    %1293 = vmatprep.subr.mxu0 0.0
    %1294 = vmatpush1.msra.mxu0 0.0
    %1295 = vmatprep.subr.mxu0 0.0
    %1296 = vmatpush1.msra.mxu0 0.0
    %1297 = vmatprep.subr.mxu0 0.0
    %1298 = vmatpush1.msra.mxu0 0.0
    %1299 = vmatprep.subr.mxu0 0.0
    %1300 = vmatpush1.msra.mxu0 0.0
    %1301 = vmatprep.subr.mxu0 0.0
    %1302 = vmatpush1.msra.mxu0 0.0
    %1303 = vmatprep.subr.mxu0 0.0
    %1304 = vmatpush1.msra.mxu0 0.0
    %1305 = vmatprep.subr.mxu0 0.0
    %1306 = vmatpush1.msra.mxu0 0.0
    %1307 = vmatprep.subr.mxu0 0.0
    %1308 = vmatpush1.msra.mxu0 0.0
    %1309 = vmatprep.subr.mxu0 0.0
    %1310 = vmatpush1.msra.mxu0 0.0
    %1311 = vmatprep.subr.mxu0 0.0
    %1312 = vmatpush1.msra.mxu0 0.0
    %1313 = vmatprep.subr.mxu0 0.0
    %1314 = vmatpush1.msra.mxu0 0.0
    %1315 = vmatprep.subr.mxu0 0.0
    %1316 = vmatpush1.msra.mxu0 0.0
    %1317 = vmatprep.subr.mxu0 0.0
    %1318 = vmatpush1.msra.mxu0 0.0
    %1319 = vmatprep.subr.mxu0 0.0
    %1320 = vmatpush1.msra.mxu0 0.0
    %1321 = vmatprep.subr.mxu0 0.0
    %1322 = vmatpush1.msra.mxu0 0.0
    %1323 = vmatprep.subr.mxu0 0.0
    %1324 = vmatpush1.msra.mxu0 0.0
    %1325 = vmatprep.subr.mxu0 0.0
    %1326 = vmatpush1.msra.mxu0 0.0
    %1327 = vmatprep.subr.mxu0 0.0
    %1328 = vmatpush1.msra.mxu0 0.0
    %1329 = vmatprep.subr.mxu0 0.0
    %1330 = vmatpush1.msra.mxu0 0.0
    %1331 = vmatprep.subr.mxu0 0.0
    %1332 = vmatpush1.msra.mxu0 0.0
    %1333 = vmatprep.subr.mxu0 0.0
    %1334 = vmatpush1.msra.mxu0 0.0
    %1335 = vmatprep.subr.mxu0 0.0
    %1336 = vmatpush1.msra.mxu0 0.0
    %1337 = vmatprep.mubr.f32.mxu0 0.0
    %1338 = vmatmul.mubr.f32.gmra.mrb[0].mxu0 %v1197
    %v1339 = vpop.f32.mrb[0].mxu0
    %v1340 = vadd.f32 0.0, %v1339
    %v1341 = vpop.f32.mrb[0].mxu0
    %1342 = vdwg.mxu0
    %v1343 = vadd.f32 %v1272, %v1340
    %v1344 = vxor.u32 %v1343, 2147483648
    %v1345 = vmul.f32 %v1344, 1.442695
    %v1346 = vpow.pop %v1345
    %v1347 = vadd.f32 %v1346, 1.0
    %v1348 = vrcp.pop %v1347
    %v1349 = vmul.f32 1.0, %v1348
    %v1350 = vadd.f32 %v1340, %v221
    %1352 = vrot.lane.b32.xlu0 %v1350, 64
    %v1353 = vpop.permute.xlu0 %1352
    %v1355 = vmul.f32 %v1349, %v1353
    %1357 = vrot.lane.b32.xlu0 %v1355, 64
    %v1358 = vpop.permute.xlu0 %1357
    %v1360 = vadd.f32 %v1272, %v1358
    %v1361 = vtanh.pop %v1360
    %v1362 = vsub.f32 %v1193, %v1361
    %1364 = vrot.lane.b32.xlu0 %v1362, 96
    %v1365 = vpop.permute.xlu0 %1364
    %v1367 = vmul.f32 %v1349, %v1365
    %1369 = vrot.lane.b32.xlu0 %v1367, 32
    %v1370 = vpop.permute.xlu0 %1369
    %v1372 = vadd.f32 %v1361, %v1370
    %s1373 = scalar_lea.vmem %s1, 12
    %v1374 = vld [vmem:[%s1373] sm:$0x3]
    %vm1375 = vcmp.ne.f32.partialorder %v1374, 0.0
    %v1376 = vsel %vm1375, 1, 0
    %1377 = vset.pattern.permute.xlu0 0
    %1378 = vperm.xlu0 %1377, %v1376
    %v1379 = vpop.permute.xlu0 %1378
    %vm1380 = vcmp.eq.s32.totalorder %v1379, 1
    %v1381 = vsel %vm1380, %v1372, %v1193
    %1383 = vrot.lane.b32.xlu0 %v1381, 64
    %v1384 = vpop.permute.xlu0 %1383
    %v1385 = vsel %vm139, %v1384, 0
    %1387 = vmatprep.subr.mxu0 0.0
    %1388 = vmatpush1.msra.mxu0 %v127
    %1389 = vmatprep.subr.mxu0 0.0
    %1390 = vmatpush1.msra.mxu0 %v128
    %1391 = vmatprep.subr.mxu0 0.0
    %1392 = vmatpush1.msra.mxu0 %v129
    %1393 = vmatprep.subr.mxu0 0.0
    %1394 = vmatpush1.msra.mxu0 %v130
    %1395 = vmatprep.subr.mxu0 0.0
    %1396 = vmatpush1.msra.mxu0 0.0
    %1397 = vmatprep.subr.mxu0 0.0
    %1398 = vmatpush1.msra.mxu0 0.0
    %1399 = vmatprep.subr.mxu0 0.0
    %1400 = vmatpush1.msra.mxu0 0.0
    %1401 = vmatprep.subr.mxu0 0.0
    %1402 = vmatpush1.msra.mxu0 0.0
    %1403 = vmatprep.subr.mxu0 0.0
    %1404 = vmatpush1.msra.mxu0 0.0
    %1405 = vmatprep.subr.mxu0 0.0
    %1406 = vmatpush1.msra.mxu0 0.0
    %1407 = vmatprep.subr.mxu0 0.0
    %1408 = vmatpush1.msra.mxu0 0.0
    %1409 = vmatprep.subr.mxu0 0.0
    %1410 = vmatpush1.msra.mxu0 0.0
    %1411 = vmatprep.subr.mxu0 0.0
    %1412 = vmatpush1.msra.mxu0 0.0
    %1413 = vmatprep.subr.mxu0 0.0
    %1414 = vmatpush1.msra.mxu0 0.0
    %1415 = vmatprep.subr.mxu0 0.0
    %1416 = vmatpush1.msra.mxu0 0.0
    %1417 = vmatprep.subr.mxu0 0.0
    %1418 = vmatpush1.msra.mxu0 0.0
    %1419 = vmatprep.subr.mxu0 0.0
    %1420 = vmatpush1.msra.mxu0 0.0
    %1421 = vmatprep.subr.mxu0 0.0
    %1422 = vmatpush1.msra.mxu0 0.0
    %1423 = vmatprep.subr.mxu0 0.0
    %1424 = vmatpush1.msra.mxu0 0.0
    %1425 = vmatprep.subr.mxu0 0.0
    %1426 = vmatpush1.msra.mxu0 0.0
    %1427 = vmatprep.subr.mxu0 0.0
    %1428 = vmatpush1.msra.mxu0 0.0
    %1429 = vmatprep.subr.mxu0 0.0
    %1430 = vmatpush1.msra.mxu0 0.0
    %1431 = vmatprep.subr.mxu0 0.0
    %1432 = vmatpush1.msra.mxu0 0.0
    %1433 = vmatprep.subr.mxu0 0.0
    %1434 = vmatpush1.msra.mxu0 0.0
    %1435 = vmatprep.subr.mxu0 0.0
    %1436 = vmatpush1.msra.mxu0 0.0
    %1437 = vmatprep.subr.mxu0 0.0
    %1438 = vmatpush1.msra.mxu0 0.0
    %1439 = vmatprep.subr.mxu0 0.0
    %1440 = vmatpush1.msra.mxu0 0.0
    %1441 = vmatprep.subr.mxu0 0.0
    %1442 = vmatpush1.msra.mxu0 0.0
    %1443 = vmatprep.subr.mxu0 0.0
    %1444 = vmatpush1.msra.mxu0 0.0
    %1445 = vmatprep.subr.mxu0 0.0
    %1446 = vmatpush1.msra.mxu0 0.0
    %1447 = vmatprep.subr.mxu0 0.0
    %1448 = vmatpush1.msra.mxu0 0.0
    %1449 = vmatprep.subr.mxu0 0.0
    %1450 = vmatpush1.msra.mxu0 0.0
    %1451 = vmatprep.mubr.f32.mxu0 0.0
    %1452 = vmatmul.mubr.f32.gmra.mrb[0].mxu0 %v1385
    %v1453 = vpop.f32.mrb[0].mxu0
    %v1454 = vadd.f32 %v136, %v1453
    %v1455 = vpop.f32.mrb[0].mxu0
    %1456 = vdwg.mxu0
    %s1457 = scalar_lea.vmem [#allocation2], 12
    %1458 = vst.msk [vmem:[%s1457] sm:$0x3] %vm329, %v1454
    %s1459 = scalar_lea.vmem [#allocation4], 14
    %v1460 = vld [vmem:[%s1459] sm:$0x3]
    %1461 = vmatprep.subr.mxu0 0.0
    %1462 = vmatpush1.msra.mxu0 %v117
    %1463 = vmatprep.subr.mxu0 0.0
    %1464 = vmatpush1.msra.mxu0 %v118
    %1465 = vmatprep.subr.mxu0 0.0
    %1466 = vmatpush1.msra.mxu0 %v119
    %1467 = vmatprep.subr.mxu0 0.0
    %1468 = vmatpush1.msra.mxu0 %v120
    %1469 = vmatprep.subr.mxu0 0.0
    %1470 = vmatpush1.msra.mxu0 0.0
    %1471 = vmatprep.subr.mxu0 0.0
    %1472 = vmatpush1.msra.mxu0 0.0
    %1473 = vmatprep.subr.mxu0 0.0
    %1474 = vmatpush1.msra.mxu0 0.0
    %1475 = vmatprep.subr.mxu0 0.0
    %1476 = vmatpush1.msra.mxu0 0.0
    %1477 = vmatprep.subr.mxu0 0.0
    %1478 = vmatpush1.msra.mxu0 0.0
    %1479 = vmatprep.subr.mxu0 0.0
    %1480 = vmatpush1.msra.mxu0 0.0
    %1481 = vmatprep.subr.mxu0 0.0
    %1482 = vmatpush1.msra.mxu0 0.0
    %1483 = vmatprep.subr.mxu0 0.0
    %1484 = vmatpush1.msra.mxu0 0.0
    %1485 = vmatprep.subr.mxu0 0.0
    %1486 = vmatpush1.msra.mxu0 0.0
    %1487 = vmatprep.subr.mxu0 0.0
    %1488 = vmatpush1.msra.mxu0 0.0
    %1489 = vmatprep.subr.mxu0 0.0
    %1490 = vmatpush1.msra.mxu0 0.0
    %1491 = vmatprep.subr.mxu0 0.0
    %1492 = vmatpush1.msra.mxu0 0.0
    %1493 = vmatprep.subr.mxu0 0.0
    %1494 = vmatpush1.msra.mxu0 0.0
    %1495 = vmatprep.subr.mxu0 0.0
    %1496 = vmatpush1.msra.mxu0 0.0
    %1497 = vmatprep.subr.mxu0 0.0
    %1498 = vmatpush1.msra.mxu0 0.0
    %1499 = vmatprep.subr.mxu0 0.0
    %1500 = vmatpush1.msra.mxu0 0.0
    %1501 = vmatprep.subr.mxu0 0.0
    %1502 = vmatpush1.msra.mxu0 0.0
    %1503 = vmatprep.subr.mxu0 0.0
    %1504 = vmatpush1.msra.mxu0 0.0
    %1505 = vmatprep.subr.mxu0 0.0
    %1506 = vmatpush1.msra.mxu0 0.0
    %1507 = vmatprep.subr.mxu0 0.0
    %1508 = vmatpush1.msra.mxu0 0.0
    %1509 = vmatprep.subr.mxu0 0.0
    %1510 = vmatpush1.msra.mxu0 0.0
    %1511 = vmatprep.subr.mxu0 0.0
    %1512 = vmatpush1.msra.mxu0 0.0
    %1513 = vmatprep.subr.mxu0 0.0
    %1514 = vmatpush1.msra.mxu0 0.0
    %1515 = vmatprep.subr.mxu0 0.0
    %1516 = vmatpush1.msra.mxu0 0.0
    %1517 = vmatprep.subr.mxu0 0.0
    %1518 = vmatpush1.msra.mxu0 0.0
    %1519 = vmatprep.subr.mxu0 0.0
    %1520 = vmatpush1.msra.mxu0 0.0
    %1521 = vmatprep.subr.mxu0 0.0
    %1522 = vmatpush1.msra.mxu0 0.0
    %1523 = vmatprep.subr.mxu0 0.0
    %1524 = vmatpush1.msra.mxu0 0.0
    %1525 = vmatprep.mubr.f32.mxu0 0.0
    %1526 = vmatmul.mubr.f32.gmra.mrb[0].mxu0 %v1385
    %v1527 = vpop.f32.mrb[0].mxu0
    %v1528 = vadd.f32 0.0, %v1527
    %v1529 = vpop.f32.mrb[0].mxu0
    %1530 = vdwg.mxu0
    %v1531 = vadd.f32 %v1460, %v1528
    %v1532 = vxor.u32 %v1531, 2147483648
    %v1533 = vmul.f32 %v1532, 1.442695
    %v1534 = vpow.pop %v1533
    %v1535 = vadd.f32 %v1534, 1.0
    %v1536 = vrcp.pop %v1535
    %v1537 = vmul.f32 1.0, %v1536
    %v1538 = vadd.f32 %v1528, %v221
    %1540 = vrot.lane.b32.xlu0 %v1538, 64
    %v1541 = vpop.permute.xlu0 %1540
    %v1543 = vmul.f32 %v1537, %v1541
    %1545 = vrot.lane.b32.xlu0 %v1543, 64
    %v1546 = vpop.permute.xlu0 %1545
    %v1548 = vadd.f32 %v1460, %v1546
    %v1549 = vtanh.pop %v1548
    %v1550 = vsub.f32 %v1381, %v1549
    %1552 = vrot.lane.b32.xlu0 %v1550, 96
    %v1553 = vpop.permute.xlu0 %1552
    %v1555 = vmul.f32 %v1537, %v1553
    %1557 = vrot.lane.b32.xlu0 %v1555, 32
    %v1558 = vpop.permute.xlu0 %1557
    %v1560 = vadd.f32 %v1549, %v1558
    %s1561 = scalar_lea.vmem %s1, 14
    %v1562 = vld [vmem:[%s1561] sm:$0x3]
    %vm1563 = vcmp.ne.f32.partialorder %v1562, 0.0
    %v1564 = vsel %vm1563, 1, 0
    %1565 = vset.pattern.permute.xlu0 0
    %1566 = vperm.xlu0 %1565, %v1564
    %v1567 = vpop.permute.xlu0 %1566
    %vm1568 = vcmp.eq.s32.totalorder %v1567, 1
    %v1569 = vsel %vm1568, %v1560, %v1381
    %1571 = vrot.lane.b32.xlu0 %v1569, 64
    %v1572 = vpop.permute.xlu0 %1571
    %v1573 = vsel %vm139, %v1572, 0
    %1575 = vmatprep.subr.mxu0 0.0
    %1576 = vmatpush1.msra.mxu0 %v127
    %1577 = vmatprep.subr.mxu0 0.0
    %1578 = vmatpush1.msra.mxu0 %v128
    %1579 = vmatprep.subr.mxu0 0.0
    %1580 = vmatpush1.msra.mxu0 %v129
    %1581 = vmatprep.subr.mxu0 0.0
    %1582 = vmatpush1.msra.mxu0 %v130
    %1583 = vmatprep.subr.mxu0 0.0
    %1584 = vmatpush1.msra.mxu0 0.0
    %1585 = vmatprep.subr.mxu0 0.0
    %1586 = vmatpush1.msra.mxu0 0.0
    %1587 = vmatprep.subr.mxu0 0.0
    %1588 = vmatpush1.msra.mxu0 0.0
    %1589 = vmatprep.subr.mxu0 0.0
    %1590 = vmatpush1.msra.mxu0 0.0
    %1591 = vmatprep.subr.mxu0 0.0
    %1592 = vmatpush1.msra.mxu0 0.0
    %1593 = vmatprep.subr.mxu0 0.0
    %1594 = vmatpush1.msra.mxu0 0.0
    %1595 = vmatprep.subr.mxu0 0.0
    %1596 = vmatpush1.msra.mxu0 0.0
    %1597 = vmatprep.subr.mxu0 0.0
    %1598 = vmatpush1.msra.mxu0 0.0
    %1599 = vmatprep.subr.mxu0 0.0
    %1600 = vmatpush1.msra.mxu0 0.0
    %1601 = vmatprep.subr.mxu0 0.0
    %1602 = vmatpush1.msra.mxu0 0.0
    %1603 = vmatprep.subr.mxu0 0.0
    %1604 = vmatpush1.msra.mxu0 0.0
    %1605 = vmatprep.subr.mxu0 0.0
    %1606 = vmatpush1.msra.mxu0 0.0
    %1607 = vmatprep.subr.mxu0 0.0
    %1608 = vmatpush1.msra.mxu0 0.0
    %1609 = vmatprep.subr.mxu0 0.0
    %1610 = vmatpush1.msra.mxu0 0.0
    %1611 = vmatprep.subr.mxu0 0.0
    %1612 = vmatpush1.msra.mxu0 0.0
    %1613 = vmatprep.subr.mxu0 0.0
    %1614 = vmatpush1.msra.mxu0 0.0
    %1615 = vmatprep.subr.mxu0 0.0
    %1616 = vmatpush1.msra.mxu0 0.0
    %1617 = vmatprep.subr.mxu0 0.0
    %1618 = vmatpush1.msra.mxu0 0.0
    %1619 = vmatprep.subr.mxu0 0.0
    %1620 = vmatpush1.msra.mxu0 0.0
    %1621 = vmatprep.subr.mxu0 0.0
    %1622 = vmatpush1.msra.mxu0 0.0
    %1623 = vmatprep.subr.mxu0 0.0
    %1624 = vmatpush1.msra.mxu0 0.0
    %1625 = vmatprep.subr.mxu0 0.0
    %1626 = vmatpush1.msra.mxu0 0.0
    %1627 = vmatprep.subr.mxu0 0.0
    %1628 = vmatpush1.msra.mxu0 0.0
    %1629 = vmatprep.subr.mxu0 0.0
    %1630 = vmatpush1.msra.mxu0 0.0
    %1631 = vmatprep.subr.mxu0 0.0
    %1632 = vmatpush1.msra.mxu0 0.0
    %1633 = vmatprep.subr.mxu0 0.0
    %1634 = vmatpush1.msra.mxu0 0.0
    %1635 = vmatprep.subr.mxu0 0.0
    %1636 = vmatpush1.msra.mxu0 0.0
    %1637 = vmatprep.subr.mxu0 0.0
    %1638 = vmatpush1.msra.mxu0 0.0
    %1639 = vmatprep.mubr.f32.mxu0 0.0
    %1640 = vmatmul.mubr.f32.gmra.mrb[0].mxu0 %v1573
    %v1641 = vpop.f32.mrb[0].mxu0
    %v1642 = vadd.f32 %v136, %v1641
    %v1643 = vpop.f32.mrb[0].mxu0
    %1644 = vdwg.mxu0
    %s1645 = scalar_lea.vmem [#allocation2], 14
    %1646 = vst.msk [vmem:[%s1645] sm:$0x3] %vm329, %v1642
    %s1647 = scalar_lea.vmem [#allocation6], 32
    %v1648 = vld [vmem:[%s1647] sm:$0xff]
    %v1649 = vld [vmem:[%s1647 + $0x8] sm:$0xff]
    %v1650 = vld [vmem:[%s1647 + $0x10] sm:$0xff]
    %v1651 = vld [vmem:[%s1647 + $0x18] sm:$0xff]
    %s1652 = scalar_lea.vmem %s5, 1
    %v1653 = vld [vmem:[%s1652] sm:$0x1]
    %v1655 = vlaneseq
    %v1656 = vshrl.u32 %v1655, 7
    %v1657 = vsub.s32 0, %v1656
    %v1658 = vrot.slane %v1653, %v1657
    %s1659 = scalar_lea.vmem %s3, 32
    %v1660 = vld [vmem:[%s1659] sm:$0xff]
    %v1661 = vld [vmem:[%s1659 + $0x8] sm:$0xff]
    %v1662 = vld [vmem:[%s1659 + $0x10] sm:$0xff]
    %v1663 = vld [vmem:[%s1659 + $0x18] sm:$0xff]
    %s1664 = scalar_lea.vmem %s4, 1
    %v1665 = vld [vmem:[%s1664] sm:$0x1]
    %v1667 = vlaneseq
    %v1668 = vshrl.u32 %v1667, 7
    %v1669 = vsub.s32 0, %v1668
    %v1670 = vrot.slane %v1665, %v1669
    %v1672 = vld [vmem:[#allocation2] sm:$0x3]
    %1673 = vmatprep.subr.mxu0 0.0
    %1674 = vmatpush1.msra.mxu0 %v1648
    %1675 = vmatprep.subr.mxu0 0.0
    %1676 = vmatpush1.msra.mxu0 %v1649
    %1677 = vmatprep.subr.mxu0 0.0
    %1678 = vmatpush1.msra.mxu0 %v1650
    %1679 = vmatprep.subr.mxu0 0.0
    %1680 = vmatpush1.msra.mxu0 %v1651
    %1681 = vmatprep.subr.mxu0 0.0
    %1682 = vmatpush1.msra.mxu0 0.0
    %1683 = vmatprep.subr.mxu0 0.0
    %1684 = vmatpush1.msra.mxu0 0.0
    %1685 = vmatprep.subr.mxu0 0.0
    %1686 = vmatpush1.msra.mxu0 0.0
    %1687 = vmatprep.subr.mxu0 0.0
    %1688 = vmatpush1.msra.mxu0 0.0
    %1689 = vmatprep.subr.mxu0 0.0
    %1690 = vmatpush1.msra.mxu0 0.0
    %1691 = vmatprep.subr.mxu0 0.0
    %1692 = vmatpush1.msra.mxu0 0.0
    %1693 = vmatprep.subr.mxu0 0.0
    %1694 = vmatpush1.msra.mxu0 0.0
    %1695 = vmatprep.subr.mxu0 0.0
    %1696 = vmatpush1.msra.mxu0 0.0
    %1697 = vmatprep.subr.mxu0 0.0
    %1698 = vmatpush1.msra.mxu0 0.0
    %1699 = vmatprep.subr.mxu0 0.0
    %1700 = vmatpush1.msra.mxu0 0.0
    %1701 = vmatprep.subr.mxu0 0.0
    %1702 = vmatpush1.msra.mxu0 0.0
    %1703 = vmatprep.subr.mxu0 0.0
    %1704 = vmatpush1.msra.mxu0 0.0
    %1705 = vmatprep.subr.mxu0 0.0
    %1706 = vmatpush1.msra.mxu0 0.0
    %1707 = vmatprep.subr.mxu0 0.0
    %1708 = vmatpush1.msra.mxu0 0.0
    %1709 = vmatprep.subr.mxu0 0.0
    %1710 = vmatpush1.msra.mxu0 0.0
    %1711 = vmatprep.subr.mxu0 0.0
    %1712 = vmatpush1.msra.mxu0 0.0
    %1713 = vmatprep.subr.mxu0 0.0
    %1714 = vmatpush1.msra.mxu0 0.0
    %1715 = vmatprep.subr.mxu0 0.0
    %1716 = vmatpush1.msra.mxu0 0.0
    %1717 = vmatprep.subr.mxu0 0.0
    %1718 = vmatpush1.msra.mxu0 0.0
    %1719 = vmatprep.subr.mxu0 0.0
    %1720 = vmatpush1.msra.mxu0 0.0
    %1721 = vmatprep.subr.mxu0 0.0
    %1722 = vmatpush1.msra.mxu0 0.0
    %1723 = vmatprep.subr.mxu0 0.0
    %1724 = vmatpush1.msra.mxu0 0.0
    %1725 = vmatprep.subr.mxu0 0.0
    %1726 = vmatpush1.msra.mxu0 0.0
    %1727 = vmatprep.subr.mxu0 0.0
    %1728 = vmatpush1.msra.mxu0 0.0
    %1729 = vmatprep.subr.mxu0 0.0
    %1730 = vmatpush1.msra.mxu0 0.0
    %1731 = vmatprep.subr.mxu0 0.0
    %1732 = vmatpush1.msra.mxu0 0.0
    %1733 = vmatprep.subr.mxu0 0.0
    %1734 = vmatpush1.msra.mxu0 0.0
    %1735 = vmatprep.subr.mxu0 0.0
    %1736 = vmatpush1.msra.mxu0 0.0
    %1737 = vmatprep.mubr.f32.mxu0 0.0
    %1738 = vmatmul.mubr.f32.gmra.mrb[0].mxu0 %v141
    %v1739 = vpop.f32.mrb[0].mxu0
    %v1740 = vadd.f32 0.0, %v1739
    %v1741 = vpop.f32.mrb[0].mxu0
    %1742 = vdwg.mxu0
    %v1743 = vadd.f32 %v1672, %v1740
    %v1744 = vxor.u32 %v1743, 2147483648
    %v1745 = vmul.f32 %v1744, 1.442695
    %v1746 = vpow.pop %v1745
    %v1747 = vadd.f32 %v1746, 1.0
    %v1748 = vrcp.pop %v1747
    %v1749 = vmul.f32 1.0, %v1748
    %1750 = vrot.lane.b32.xlu0 %v1658, 64
    %v1751 = vpop.permute.xlu0 %1750
    %v1753 = vadd.f32 %v1740, %v1751
    %1755 = vrot.lane.b32.xlu0 %v1753, 64
    %v1756 = vpop.permute.xlu0 %1755
    %v1758 = vmul.f32 %v1749, %v1756
    %1760 = vrot.lane.b32.xlu0 %v1758, 64
    %v1761 = vpop.permute.xlu0 %1760
    %v1763 = vadd.f32 %v1672, %v1761
    %v1764 = vtanh.pop %v1763
    %v1765 = vsub.f32 0.0, %v1764
    %1767 = vrot.lane.b32.xlu0 %v1765, 96
    %v1768 = vpop.permute.xlu0 %1767
    %v1770 = vmul.f32 %v1749, %v1768
    %1772 = vrot.lane.b32.xlu0 %v1770, 32
    %v1773 = vpop.permute.xlu0 %1772
    %v1775 = vadd.f32 %v1764, %v1773
    %v1776 = vld [vmem:[%s1] sm:$0x3]
    %vm1777 = vcmp.ne.f32.partialorder %v1776, 0.0
    %v1778 = vsel %vm1777, 1, 0
    %1779 = vset.pattern.permute.xlu0 0
    %1780 = vperm.xlu0 %1779, %v1778
    %v1781 = vpop.permute.xlu0 %1780
    %vm1782 = vcmp.eq.s32.totalorder %v1781, 1
    %v1783 = vsel %vm1782, %v1775, 0.0
    %1785 = vrot.lane.b32.xlu0 %v1783, 64
    %v1786 = vpop.permute.xlu0 %1785
    %v1787 = vsel %vm139, %v1786, 0
    %1789 = vmatprep.subr.mxu0 0.0
    %1790 = vmatpush1.msra.mxu0 %v1660
    %1791 = vmatprep.subr.mxu0 0.0
    %1792 = vmatpush1.msra.mxu0 %v1661
    %1793 = vmatprep.subr.mxu0 0.0
    %1794 = vmatpush1.msra.mxu0 %v1662
    %1795 = vmatprep.subr.mxu0 0.0
    %1796 = vmatpush1.msra.mxu0 %v1663
    %1797 = vmatprep.subr.mxu0 0.0
    %1798 = vmatpush1.msra.mxu0 0.0
    %1799 = vmatprep.subr.mxu0 0.0
    %1800 = vmatpush1.msra.mxu0 0.0
    %1801 = vmatprep.subr.mxu0 0.0
    %1802 = vmatpush1.msra.mxu0 0.0
    %1803 = vmatprep.subr.mxu0 0.0
    %1804 = vmatpush1.msra.mxu0 0.0
    %1805 = vmatprep.subr.mxu0 0.0
    %1806 = vmatpush1.msra.mxu0 0.0
    %1807 = vmatprep.subr.mxu0 0.0
    %1808 = vmatpush1.msra.mxu0 0.0
    %1809 = vmatprep.subr.mxu0 0.0
    %1810 = vmatpush1.msra.mxu0 0.0
    %1811 = vmatprep.subr.mxu0 0.0
    %1812 = vmatpush1.msra.mxu0 0.0
    %1813 = vmatprep.subr.mxu0 0.0
    %1814 = vmatpush1.msra.mxu0 0.0
    %1815 = vmatprep.subr.mxu0 0.0
    %1816 = vmatpush1.msra.mxu0 0.0
    %1817 = vmatprep.subr.mxu0 0.0
    %1818 = vmatpush1.msra.mxu0 0.0
    %1819 = vmatprep.subr.mxu0 0.0
    %1820 = vmatpush1.msra.mxu0 0.0
    %1821 = vmatprep.subr.mxu0 0.0
    %1822 = vmatpush1.msra.mxu0 0.0
    %1823 = vmatprep.subr.mxu0 0.0
    %1824 = vmatpush1.msra.mxu0 0.0
    %1825 = vmatprep.subr.mxu0 0.0
    %1826 = vmatpush1.msra.mxu0 0.0
    %1827 = vmatprep.subr.mxu0 0.0
    %1828 = vmatpush1.msra.mxu0 0.0
    %1829 = vmatprep.subr.mxu0 0.0
    %1830 = vmatpush1.msra.mxu0 0.0
    %1831 = vmatprep.subr.mxu0 0.0
    %1832 = vmatpush1.msra.mxu0 0.0
    %1833 = vmatprep.subr.mxu0 0.0
    %1834 = vmatpush1.msra.mxu0 0.0
    %1835 = vmatprep.subr.mxu0 0.0
    %1836 = vmatpush1.msra.mxu0 0.0
    %1837 = vmatprep.subr.mxu0 0.0
    %1838 = vmatpush1.msra.mxu0 0.0
    %1839 = vmatprep.subr.mxu0 0.0
    %1840 = vmatpush1.msra.mxu0 0.0
    %1841 = vmatprep.subr.mxu0 0.0
    %1842 = vmatpush1.msra.mxu0 0.0
    %1843 = vmatprep.subr.mxu0 0.0
    %1844 = vmatpush1.msra.mxu0 0.0
    %1845 = vmatprep.subr.mxu0 0.0
    %1846 = vmatpush1.msra.mxu0 0.0
    %1847 = vmatprep.subr.mxu0 0.0
    %1848 = vmatpush1.msra.mxu0 0.0
    %1849 = vmatprep.subr.mxu0 0.0
    %1850 = vmatpush1.msra.mxu0 0.0
    %1851 = vmatprep.subr.mxu0 0.0
    %1852 = vmatpush1.msra.mxu0 0.0
    %1853 = vmatprep.mubr.f32.mxu0 0.0
    %1854 = vmatmul.mubr.f32.gmra.mrb[0].mxu0 %v1787
    %v1855 = vpop.f32.mrb[0].mxu0
    %v1856 = vadd.f32 %v1670, %v1855
    %v1857 = vpop.f32.mrb[0].mxu0
    %1858 = vdwg.mxu0
    %1859 = vst.msk [vmem:[#allocation2] sm:$0x3] %vm329, %v1856
    %v1860 = vld [vmem:[%s517] sm:$0x3]
    %1861 = vmatprep.subr.mxu0 0.0
    %1862 = vmatpush1.msra.mxu0 %v1648
    %1863 = vmatprep.subr.mxu0 0.0
    %1864 = vmatpush1.msra.mxu0 %v1649
    %1865 = vmatprep.subr.mxu0 0.0
    %1866 = vmatpush1.msra.mxu0 %v1650
    %1867 = vmatprep.subr.mxu0 0.0
    %1868 = vmatpush1.msra.mxu0 %v1651
    %1869 = vmatprep.subr.mxu0 0.0
    %1870 = vmatpush1.msra.mxu0 0.0
    %1871 = vmatprep.subr.mxu0 0.0
    %1872 = vmatpush1.msra.mxu0 0.0
    %1873 = vmatprep.subr.mxu0 0.0
    %1874 = vmatpush1.msra.mxu0 0.0
    %1875 = vmatprep.subr.mxu0 0.0
    %1876 = vmatpush1.msra.mxu0 0.0
    %1877 = vmatprep.subr.mxu0 0.0
    %1878 = vmatpush1.msra.mxu0 0.0
    %1879 = vmatprep.subr.mxu0 0.0
    %1880 = vmatpush1.msra.mxu0 0.0
    %1881 = vmatprep.subr.mxu0 0.0
    %1882 = vmatpush1.msra.mxu0 0.0
    %1883 = vmatprep.subr.mxu0 0.0
    %1884 = vmatpush1.msra.mxu0 0.0
    %1885 = vmatprep.subr.mxu0 0.0
    %1886 = vmatpush1.msra.mxu0 0.0
    %1887 = vmatprep.subr.mxu0 0.0
    %1888 = vmatpush1.msra.mxu0 0.0
    %1889 = vmatprep.subr.mxu0 0.0
    %1890 = vmatpush1.msra.mxu0 0.0
    %1891 = vmatprep.subr.mxu0 0.0
    %1892 = vmatpush1.msra.mxu0 0.0
    %1893 = vmatprep.subr.mxu0 0.0
    %1894 = vmatpush1.msra.mxu0 0.0
    %1895 = vmatprep.subr.mxu0 0.0
    %1896 = vmatpush1.msra.mxu0 0.0
    %1897 = vmatprep.subr.mxu0 0.0
    %1898 = vmatpush1.msra.mxu0 0.0
    %1899 = vmatprep.subr.mxu0 0.0
    %1900 = vmatpush1.msra.mxu0 0.0
    %1901 = vmatprep.subr.mxu0 0.0
    %1902 = vmatpush1.msra.mxu0 0.0
    %1903 = vmatprep.subr.mxu0 0.0
    %1904 = vmatpush1.msra.mxu0 0.0
    %1905 = vmatprep.subr.mxu0 0.0
    %1906 = vmatpush1.msra.mxu0 0.0
    %1907 = vmatprep.subr.mxu0 0.0
    %1908 = vmatpush1.msra.mxu0 0.0
    %1909 = vmatprep.subr.mxu0 0.0
    %1910 = vmatpush1.msra.mxu0 0.0
    %1911 = vmatprep.subr.mxu0 0.0
    %1912 = vmatpush1.msra.mxu0 0.0
    %1913 = vmatprep.subr.mxu0 0.0
    %1914 = vmatpush1.msra.mxu0 0.0
    %1915 = vmatprep.subr.mxu0 0.0
    %1916 = vmatpush1.msra.mxu0 0.0
    %1917 = vmatprep.subr.mxu0 0.0
    %1918 = vmatpush1.msra.mxu0 0.0
    %1919 = vmatprep.subr.mxu0 0.0
    %1920 = vmatpush1.msra.mxu0 0.0
    %1921 = vmatprep.subr.mxu0 0.0
    %1922 = vmatpush1.msra.mxu0 0.0
    %1923 = vmatprep.subr.mxu0 0.0
    %1924 = vmatpush1.msra.mxu0 0.0
    %1925 = vmatprep.mubr.f32.mxu0 0.0
    %1926 = vmatmul.mubr.f32.gmra.mrb[0].mxu0 %v1787
    %v1927 = vpop.f32.mrb[0].mxu0
    %v1928 = vadd.f32 0.0, %v1927
    %v1929 = vpop.f32.mrb[0].mxu0
    %1930 = vdwg.mxu0
    %v1931 = vadd.f32 %v1860, %v1928
    %v1932 = vxor.u32 %v1931, 2147483648
    %v1933 = vmul.f32 %v1932, 1.442695
    %v1934 = vpow.pop %v1933
    %v1935 = vadd.f32 %v1934, 1.0
    %v1936 = vrcp.pop %v1935
    %v1937 = vmul.f32 1.0, %v1936
    %v1938 = vadd.f32 %v1928, %v1751
    %1940 = vrot.lane.b32.xlu0 %v1938, 64
    %v1941 = vpop.permute.xlu0 %1940
    %v1943 = vmul.f32 %v1937, %v1941
    %1945 = vrot.lane.b32.xlu0 %v1943, 64
    %v1946 = vpop.permute.xlu0 %1945
    %v1948 = vadd.f32 %v1860, %v1946
    %v1949 = vtanh.pop %v1948
    %v1950 = vsub.f32 %v1783, %v1949
    %1952 = vrot.lane.b32.xlu0 %v1950, 96
    %v1953 = vpop.permute.xlu0 %1952
    %v1955 = vmul.f32 %v1937, %v1953
    %1957 = vrot.lane.b32.xlu0 %v1955, 32
    %v1958 = vpop.permute.xlu0 %1957
    %v1960 = vadd.f32 %v1949, %v1958
    %v1961 = vld [vmem:[%s433] sm:$0x3]
    %vm1962 = vcmp.ne.f32.partialorder %v1961, 0.0
    %v1963 = vsel %vm1962, 1, 0
    %1964 = vset.pattern.permute.xlu0 0
    %1965 = vperm.xlu0 %1964, %v1963
    %v1966 = vpop.permute.xlu0 %1965
    %vm1967 = vcmp.eq.s32.totalorder %v1966, 1
    %v1968 = vsel %vm1967, %v1960, %v1783
    %1970 = vrot.lane.b32.xlu0 %v1968, 64
    %v1971 = vpop.permute.xlu0 %1970
    %v1972 = vsel %vm139, %v1971, 0
    %1974 = vmatprep.subr.mxu0 0.0
    %1975 = vmatpush1.msra.mxu0 %v1660
    %1976 = vmatprep.subr.mxu0 0.0
    %1977 = vmatpush1.msra.mxu0 %v1661
    %1978 = vmatprep.subr.mxu0 0.0
    %1979 = vmatpush1.msra.mxu0 %v1662
    %1980 = vmatprep.subr.mxu0 0.0
    %1981 = vmatpush1.msra.mxu0 %v1663
    %1982 = vmatprep.subr.mxu0 0.0
    %1983 = vmatpush1.msra.mxu0 0.0
    %1984 = vmatprep.subr.mxu0 0.0
    %1985 = vmatpush1.msra.mxu0 0.0
    %1986 = vmatprep.subr.mxu0 0.0
    %1987 = vmatpush1.msra.mxu0 0.0
    %1988 = vmatprep.subr.mxu0 0.0
    %1989 = vmatpush1.msra.mxu0 0.0
    %1990 = vmatprep.subr.mxu0 0.0
    %1991 = vmatpush1.msra.mxu0 0.0
    %1992 = vmatprep.subr.mxu0 0.0
    %1993 = vmatpush1.msra.mxu0 0.0
    %1994 = vmatprep.subr.mxu0 0.0
    %1995 = vmatpush1.msra.mxu0 0.0
    %1996 = vmatprep.subr.mxu0 0.0
    %1997 = vmatpush1.msra.mxu0 0.0
    %1998 = vmatprep.subr.mxu0 0.0
    %1999 = vmatpush1.msra.mxu0 0.0
    %2000 = vmatprep.subr.mxu0 0.0
    %2001 = vmatpush1.msra.mxu0 0.0
    %2002 = vmatprep.subr.mxu0 0.0
    %2003 = vmatpush1.msra.mxu0 0.0
    %2004 = vmatprep.subr.mxu0 0.0
    %2005 = vmatpush1.msra.mxu0 0.0
    %2006 = vmatprep.subr.mxu0 0.0
    %2007 = vmatpush1.msra.mxu0 0.0
    %2008 = vmatprep.subr.mxu0 0.0
    %2009 = vmatpush1.msra.mxu0 0.0
    %2010 = vmatprep.subr.mxu0 0.0
    %2011 = vmatpush1.msra.mxu0 0.0
    %2012 = vmatprep.subr.mxu0 0.0
    %2013 = vmatpush1.msra.mxu0 0.0
    %2014 = vmatprep.subr.mxu0 0.0
    %2015 = vmatpush1.msra.mxu0 0.0
    %2016 = vmatprep.subr.mxu0 0.0
    %2017 = vmatpush1.msra.mxu0 0.0
    %2018 = vmatprep.subr.mxu0 0.0
    %2019 = vmatpush1.msra.mxu0 0.0
    %2020 = vmatprep.subr.mxu0 0.0
    %2021 = vmatpush1.msra.mxu0 0.0
    %2022 = vmatprep.subr.mxu0 0.0
    %2023 = vmatpush1.msra.mxu0 0.0
    %2024 = vmatprep.subr.mxu0 0.0
    %2025 = vmatpush1.msra.mxu0 0.0
    %2026 = vmatprep.subr.mxu0 0.0
    %2027 = vmatpush1.msra.mxu0 0.0
    %2028 = vmatprep.subr.mxu0 0.0
    %2029 = vmatpush1.msra.mxu0 0.0
    %2030 = vmatprep.subr.mxu0 0.0
    %2031 = vmatpush1.msra.mxu0 0.0
    %2032 = vmatprep.subr.mxu0 0.0
    %2033 = vmatpush1.msra.mxu0 0.0
    %2034 = vmatprep.subr.mxu0 0.0
    %2035 = vmatpush1.msra.mxu0 0.0
    %2036 = vmatprep.subr.mxu0 0.0
    %2037 = vmatpush1.msra.mxu0 0.0
    %2038 = vmatprep.mubr.f32.mxu0 0.0
    %2039 = vmatmul.mubr.f32.gmra.mrb[0].mxu0 %v1972
    %v2040 = vpop.f32.mrb[0].mxu0
    %v2041 = vadd.f32 %v1670, %v2040
    %v2042 = vpop.f32.mrb[0].mxu0
    %2043 = vdwg.mxu0
    %2044 = vst.msk [vmem:[%s517] sm:$0x3] %vm329, %v2041
    %v2045 = vld [vmem:[%s705] sm:$0x3]
    %2046 = vmatprep.subr.mxu0 0.0
    %2047 = vmatpush1.msra.mxu0 %v1648
    %2048 = vmatprep.subr.mxu0 0.0
    %2049 = vmatpush1.msra.mxu0 %v1649
    %2050 = vmatprep.subr.mxu0 0.0
    %2051 = vmatpush1.msra.mxu0 %v1650
    %2052 = vmatprep.subr.mxu0 0.0
    %2053 = vmatpush1.msra.mxu0 %v1651
    %2054 = vmatprep.subr.mxu0 0.0
    %2055 = vmatpush1.msra.mxu0 0.0
    %2056 = vmatprep.subr.mxu0 0.0
    %2057 = vmatpush1.msra.mxu0 0.0
    %2058 = vmatprep.subr.mxu0 0.0
    %2059 = vmatpush1.msra.mxu0 0.0
    %2060 = vmatprep.subr.mxu0 0.0
    %2061 = vmatpush1.msra.mxu0 0.0
    %2062 = vmatprep.subr.mxu0 0.0
    %2063 = vmatpush1.msra.mxu0 0.0
    %2064 = vmatprep.subr.mxu0 0.0
    %2065 = vmatpush1.msra.mxu0 0.0
    %2066 = vmatprep.subr.mxu0 0.0
    %2067 = vmatpush1.msra.mxu0 0.0
    %2068 = vmatprep.subr.mxu0 0.0
    %2069 = vmatpush1.msra.mxu0 0.0
    %2070 = vmatprep.subr.mxu0 0.0
    %2071 = vmatpush1.msra.mxu0 0.0
    %2072 = vmatprep.subr.mxu0 0.0
    %2073 = vmatpush1.msra.mxu0 0.0
    %2074 = vmatprep.subr.mxu0 0.0
    %2075 = vmatpush1.msra.mxu0 0.0
    %2076 = vmatprep.subr.mxu0 0.0
    %2077 = vmatpush1.msra.mxu0 0.0
    %2078 = vmatprep.subr.mxu0 0.0
    %2079 = vmatpush1.msra.mxu0 0.0
    %2080 = vmatprep.subr.mxu0 0.0
    %2081 = vmatpush1.msra.mxu0 0.0
    %2082 = vmatprep.subr.mxu0 0.0
    %2083 = vmatpush1.msra.mxu0 0.0
    %2084 = vmatprep.subr.mxu0 0.0
    %2085 = vmatpush1.msra.mxu0 0.0
    %2086 = vmatprep.subr.mxu0 0.0
    %2087 = vmatpush1.msra.mxu0 0.0
    %2088 = vmatprep.subr.mxu0 0.0
    %2089 = vmatpush1.msra.mxu0 0.0
    %2090 = vmatprep.subr.mxu0 0.0
    %2091 = vmatpush1.msra.mxu0 0.0
    %2092 = vmatprep.subr.mxu0 0.0
    %2093 = vmatpush1.msra.mxu0 0.0
    %2094 = vmatprep.subr.mxu0 0.0
    %2095 = vmatpush1.msra.mxu0 0.0
    %2096 = vmatprep.subr.mxu0 0.0
    %2097 = vmatpush1.msra.mxu0 0.0
    %2098 = vmatprep.subr.mxu0 0.0
    %2099 = vmatpush1.msra.mxu0 0.0
    %2100 = vmatprep.subr.mxu0 0.0
    %2101 = vmatpush1.msra.mxu0 0.0
    %2102 = vmatprep.subr.mxu0 0.0
    %2103 = vmatpush1.msra.mxu0 0.0
    %2104 = vmatprep.subr.mxu0 0.0
    %2105 = vmatpush1.msra.mxu0 0.0
    %2106 = vmatprep.subr.mxu0 0.0
    %2107 = vmatpush1.msra.mxu0 0.0
    %2108 = vmatprep.subr.mxu0 0.0
    %2109 = vmatpush1.msra.mxu0 0.0
    %2110 = vmatprep.mubr.f32.mxu0 0.0
    %2111 = vmatmul.mubr.f32.gmra.mrb[0].mxu0 %v1972
    %v2112 = vpop.f32.mrb[0].mxu0
    %v2113 = vadd.f32 0.0, %v2112
    %v2114 = vpop.f32.mrb[0].mxu0
    %2115 = vdwg.mxu0
    %v2116 = vadd.f32 %v2045, %v2113
    %v2117 = vxor.u32 %v2116, 2147483648
    %v2118 = vmul.f32 %v2117, 1.442695
    %v2119 = vpow.pop %v2118
    %v2120 = vadd.f32 %v2119, 1.0
    %v2121 = vrcp.pop %v2120
    %v2122 = vmul.f32 1.0, %v2121
    %v2123 = vadd.f32 %v2113, %v1751
    %2125 = vrot.lane.b32.xlu0 %v2123, 64
    %v2126 = vpop.permute.xlu0 %2125
    %v2128 = vmul.f32 %v2122, %v2126
    %2130 = vrot.lane.b32.xlu0 %v2128, 64
    %v2131 = vpop.permute.xlu0 %2130
    %v2133 = vadd.f32 %v2045, %v2131
    %v2134 = vtanh.pop %v2133
    %v2135 = vsub.f32 %v1968, %v2134
    %2137 = vrot.lane.b32.xlu0 %v2135, 96
    %v2138 = vpop.permute.xlu0 %2137
    %v2140 = vmul.f32 %v2122, %v2138
    %2142 = vrot.lane.b32.xlu0 %v2140, 32
    %v2143 = vpop.permute.xlu0 %2142
    %v2145 = vadd.f32 %v2134, %v2143
    %v2146 = vld [vmem:[%s621] sm:$0x3]
    %vm2147 = vcmp.ne.f32.partialorder %v2146, 0.0
    %v2148 = vsel %vm2147, 1, 0
    %2149 = vset.pattern.permute.xlu0 0
    %2150 = vperm.xlu0 %2149, %v2148
    %v2151 = vpop.permute.xlu0 %2150
    %vm2152 = vcmp.eq.s32.totalorder %v2151, 1
    %v2153 = vsel %vm2152, %v2145, %v1968
    %2155 = vrot.lane.b32.xlu0 %v2153, 64
    %v2156 = vpop.permute.xlu0 %2155
    %v2157 = vsel %vm139, %v2156, 0
    %2159 = vmatprep.subr.mxu0 0.0
    %2160 = vmatpush1.msra.mxu0 %v1660
    %2161 = vmatprep.subr.mxu0 0.0
    %2162 = vmatpush1.msra.mxu0 %v1661
    %2163 = vmatprep.subr.mxu0 0.0
    %2164 = vmatpush1.msra.mxu0 %v1662
    %2165 = vmatprep.subr.mxu0 0.0
    %2166 = vmatpush1.msra.mxu0 %v1663
    %2167 = vmatprep.subr.mxu0 0.0
    %2168 = vmatpush1.msra.mxu0 0.0
    %2169 = vmatprep.subr.mxu0 0.0
    %2170 = vmatpush1.msra.mxu0 0.0
    %2171 = vmatprep.subr.mxu0 0.0
    %2172 = vmatpush1.msra.mxu0 0.0
    %2173 = vmatprep.subr.mxu0 0.0
    %2174 = vmatpush1.msra.mxu0 0.0
    %2175 = vmatprep.subr.mxu0 0.0
    %2176 = vmatpush1.msra.mxu0 0.0
    %2177 = vmatprep.subr.mxu0 0.0
    %2178 = vmatpush1.msra.mxu0 0.0
    %2179 = vmatprep.subr.mxu0 0.0
    %2180 = vmatpush1.msra.mxu0 0.0
    %2181 = vmatprep.subr.mxu0 0.0
    %2182 = vmatpush1.msra.mxu0 0.0
    %2183 = vmatprep.subr.mxu0 0.0
    %2184 = vmatpush1.msra.mxu0 0.0
    %2185 = vmatprep.subr.mxu0 0.0
    %2186 = vmatpush1.msra.mxu0 0.0
    %2187 = vmatprep.subr.mxu0 0.0
    %2188 = vmatpush1.msra.mxu0 0.0
    %2189 = vmatprep.subr.mxu0 0.0
    %2190 = vmatpush1.msra.mxu0 0.0
    %2191 = vmatprep.subr.mxu0 0.0
    %2192 = vmatpush1.msra.mxu0 0.0
    %2193 = vmatprep.subr.mxu0 0.0
    %2194 = vmatpush1.msra.mxu0 0.0
    %2195 = vmatprep.subr.mxu0 0.0
    %2196 = vmatpush1.msra.mxu0 0.0
    %2197 = vmatprep.subr.mxu0 0.0
    %2198 = vmatpush1.msra.mxu0 0.0
    %2199 = vmatprep.subr.mxu0 0.0
    %2200 = vmatpush1.msra.mxu0 0.0
    %2201 = vmatprep.subr.mxu0 0.0
    %2202 = vmatpush1.msra.mxu0 0.0
    %2203 = vmatprep.subr.mxu0 0.0
    %2204 = vmatpush1.msra.mxu0 0.0
    %2205 = vmatprep.subr.mxu0 0.0
    %2206 = vmatpush1.msra.mxu0 0.0
    %2207 = vmatprep.subr.mxu0 0.0
    %2208 = vmatpush1.msra.mxu0 0.0
    %2209 = vmatprep.subr.mxu0 0.0
    %2210 = vmatpush1.msra.mxu0 0.0
    %2211 = vmatprep.subr.mxu0 0.0
    %2212 = vmatpush1.msra.mxu0 0.0
    %2213 = vmatprep.subr.mxu0 0.0
    %2214 = vmatpush1.msra.mxu0 0.0
    %2215 = vmatprep.subr.mxu0 0.0
    %2216 = vmatpush1.msra.mxu0 0.0
    %2217 = vmatprep.subr.mxu0 0.0
    %2218 = vmatpush1.msra.mxu0 0.0
    %2219 = vmatprep.subr.mxu0 0.0
    %2220 = vmatpush1.msra.mxu0 0.0
    %2221 = vmatprep.subr.mxu0 0.0
    %2222 = vmatpush1.msra.mxu0 0.0
    %2223 = vmatprep.mubr.f32.mxu0 0.0
    %2224 = vmatmul.mubr.f32.gmra.mrb[0].mxu0 %v2157
    %v2225 = vpop.f32.mrb[0].mxu0
    %v2226 = vadd.f32 %v1670, %v2225
    %v2227 = vpop.f32.mrb[0].mxu0
    %2228 = vdwg.mxu0
    %2229 = vst.msk [vmem:[%s705] sm:$0x3] %vm329, %v2226
    %v2230 = vld [vmem:[%s893] sm:$0x3]
    %2231 = vmatprep.subr.mxu0 0.0
    %2232 = vmatpush1.msra.mxu0 %v1648
    %2233 = vmatprep.subr.mxu0 0.0
    %2234 = vmatpush1.msra.mxu0 %v1649
    %2235 = vmatprep.subr.mxu0 0.0
    %2236 = vmatpush1.msra.mxu0 %v1650
    %2237 = vmatprep.subr.mxu0 0.0
    %2238 = vmatpush1.msra.mxu0 %v1651
    %2239 = vmatprep.subr.mxu0 0.0
    %2240 = vmatpush1.msra.mxu0 0.0
    %2241 = vmatprep.subr.mxu0 0.0
    %2242 = vmatpush1.msra.mxu0 0.0
    %2243 = vmatprep.subr.mxu0 0.0
    %2244 = vmatpush1.msra.mxu0 0.0
    %2245 = vmatprep.subr.mxu0 0.0
    %2246 = vmatpush1.msra.mxu0 0.0
    %2247 = vmatprep.subr.mxu0 0.0
    %2248 = vmatpush1.msra.mxu0 0.0
    %2249 = vmatprep.subr.mxu0 0.0
    %2250 = vmatpush1.msra.mxu0 0.0
    %2251 = vmatprep.subr.mxu0 0.0
    %2252 = vmatpush1.msra.mxu0 0.0
    %2253 = vmatprep.subr.mxu0 0.0
    %2254 = vmatpush1.msra.mxu0 0.0
    %2255 = vmatprep.subr.mxu0 0.0
    %2256 = vmatpush1.msra.mxu0 0.0
    %2257 = vmatprep.subr.mxu0 0.0
    %2258 = vmatpush1.msra.mxu0 0.0
    %2259 = vmatprep.subr.mxu0 0.0
    %2260 = vmatpush1.msra.mxu0 0.0
    %2261 = vmatprep.subr.mxu0 0.0
    %2262 = vmatpush1.msra.mxu0 0.0
    %2263 = vmatprep.subr.mxu0 0.0
    %2264 = vmatpush1.msra.mxu0 0.0
    %2265 = vmatprep.subr.mxu0 0.0
    %2266 = vmatpush1.msra.mxu0 0.0
    %2267 = vmatprep.subr.mxu0 0.0
    %2268 = vmatpush1.msra.mxu0 0.0
    %2269 = vmatprep.subr.mxu0 0.0
    %2270 = vmatpush1.msra.mxu0 0.0
    %2271 = vmatprep.subr.mxu0 0.0
    %2272 = vmatpush1.msra.mxu0 0.0
    %2273 = vmatprep.subr.mxu0 0.0
    %2274 = vmatpush1.msra.mxu0 0.0
    %2275 = vmatprep.subr.mxu0 0.0
    %2276 = vmatpush1.msra.mxu0 0.0
    %2277 = vmatprep.subr.mxu0 0.0
    %2278 = vmatpush1.msra.mxu0 0.0
    %2279 = vmatprep.subr.mxu0 0.0
    %2280 = vmatpush1.msra.mxu0 0.0
    %2281 = vmatprep.subr.mxu0 0.0
    %2282 = vmatpush1.msra.mxu0 0.0
    %2283 = vmatprep.subr.mxu0 0.0
    %2284 = vmatpush1.msra.mxu0 0.0
    %2285 = vmatprep.subr.mxu0 0.0
    %2286 = vmatpush1.msra.mxu0 0.0
    %2287 = vmatprep.subr.mxu0 0.0
    %2288 = vmatpush1.msra.mxu0 0.0
    %2289 = vmatprep.subr.mxu0 0.0
    %2290 = vmatpush1.msra.mxu0 0.0
    %2291 = vmatprep.subr.mxu0 0.0
    %2292 = vmatpush1.msra.mxu0 0.0
    %2293 = vmatprep.subr.mxu0 0.0
    %2294 = vmatpush1.msra.mxu0 0.0
    %2295 = vmatprep.mubr.f32.mxu0 0.0
    %2296 = vmatmul.mubr.f32.gmra.mrb[0].mxu0 %v2157
    %v2297 = vpop.f32.mrb[0].mxu0
    %v2298 = vadd.f32 0.0, %v2297
    %v2299 = vpop.f32.mrb[0].mxu0
    %2300 = vdwg.mxu0
    %v2301 = vadd.f32 %v2230, %v2298
    %v2302 = vxor.u32 %v2301, 2147483648
    %v2303 = vmul.f32 %v2302, 1.442695
    %v2304 = vpow.pop %v2303
    %v2305 = vadd.f32 %v2304, 1.0
    %v2306 = vrcp.pop %v2305
    %v2307 = vmul.f32 1.0, %v2306
    %v2308 = vadd.f32 %v2298, %v1751
    %2310 = vrot.lane.b32.xlu0 %v2308, 64
    %v2311 = vpop.permute.xlu0 %2310
    %v2313 = vmul.f32 %v2307, %v2311
    %2315 = vrot.lane.b32.xlu0 %v2313, 64
    %v2316 = vpop.permute.xlu0 %2315
    %v2318 = vadd.f32 %v2230, %v2316
    %v2319 = vtanh.pop %v2318
    %v2320 = vsub.f32 %v2153, %v2319
    %2322 = vrot.lane.b32.xlu0 %v2320, 96
    %v2323 = vpop.permute.xlu0 %2322
    %v2325 = vmul.f32 %v2307, %v2323
    %2327 = vrot.lane.b32.xlu0 %v2325, 32
    %v2328 = vpop.permute.xlu0 %2327
    %v2330 = vadd.f32 %v2319, %v2328
    %v2331 = vld [vmem:[%s809] sm:$0x3]
    %vm2332 = vcmp.ne.f32.partialorder %v2331, 0.0
    %v2333 = vsel %vm2332, 1, 0
    %2334 = vset.pattern.permute.xlu0 0
    %2335 = vperm.xlu0 %2334, %v2333
    %v2336 = vpop.permute.xlu0 %2335
    %vm2337 = vcmp.eq.s32.totalorder %v2336, 1
    %v2338 = vsel %vm2337, %v2330, %v2153
    %2340 = vrot.lane.b32.xlu0 %v2338, 64
    %v2341 = vpop.permute.xlu0 %2340
    %v2342 = vsel %vm139, %v2341, 0
    %2344 = vmatprep.subr.mxu0 0.0
    %2345 = vmatpush1.msra.mxu0 %v1660
    %2346 = vmatprep.subr.mxu0 0.0
    %2347 = vmatpush1.msra.mxu0 %v1661
    %2348 = vmatprep.subr.mxu0 0.0
    %2349 = vmatpush1.msra.mxu0 %v1662
    %2350 = vmatprep.subr.mxu0 0.0
    %2351 = vmatpush1.msra.mxu0 %v1663
    %2352 = vmatprep.subr.mxu0 0.0
    %2353 = vmatpush1.msra.mxu0 0.0
    %2354 = vmatprep.subr.mxu0 0.0
    %2355 = vmatpush1.msra.mxu0 0.0
    %2356 = vmatprep.subr.mxu0 0.0
    %2357 = vmatpush1.msra.mxu0 0.0
    %2358 = vmatprep.subr.mxu0 0.0
    %2359 = vmatpush1.msra.mxu0 0.0
    %2360 = vmatprep.subr.mxu0 0.0
    %2361 = vmatpush1.msra.mxu0 0.0
    %2362 = vmatprep.subr.mxu0 0.0
    %2363 = vmatpush1.msra.mxu0 0.0
    %2364 = vmatprep.subr.mxu0 0.0
    %2365 = vmatpush1.msra.mxu0 0.0
    %2366 = vmatprep.subr.mxu0 0.0
    %2367 = vmatpush1.msra.mxu0 0.0
    %2368 = vmatprep.subr.mxu0 0.0
    %2369 = vmatpush1.msra.mxu0 0.0
    %2370 = vmatprep.subr.mxu0 0.0
    %2371 = vmatpush1.msra.mxu0 0.0
    %2372 = vmatprep.subr.mxu0 0.0
    %2373 = vmatpush1.msra.mxu0 0.0
    %2374 = vmatprep.subr.mxu0 0.0
    %2375 = vmatpush1.msra.mxu0 0.0
    %2376 = vmatprep.subr.mxu0 0.0
    %2377 = vmatpush1.msra.mxu0 0.0
    %2378 = vmatprep.subr.mxu0 0.0
    %2379 = vmatpush1.msra.mxu0 0.0
    %2380 = vmatprep.subr.mxu0 0.0
    %2381 = vmatpush1.msra.mxu0 0.0
    %2382 = vmatprep.subr.mxu0 0.0
    %2383 = vmatpush1.msra.mxu0 0.0
    %2384 = vmatprep.subr.mxu0 0.0
    %2385 = vmatpush1.msra.mxu0 0.0
    %2386 = vmatprep.subr.mxu0 0.0
    %2387 = vmatpush1.msra.mxu0 0.0
    %2388 = vmatprep.subr.mxu0 0.0
    %2389 = vmatpush1.msra.mxu0 0.0
    %2390 = vmatprep.subr.mxu0 0.0
    %2391 = vmatpush1.msra.mxu0 0.0
    %2392 = vmatprep.subr.mxu0 0.0
    %2393 = vmatpush1.msra.mxu0 0.0
    %2394 = vmatprep.subr.mxu0 0.0
    %2395 = vmatpush1.msra.mxu0 0.0
    %2396 = vmatprep.subr.mxu0 0.0
    %2397 = vmatpush1.msra.mxu0 0.0
    %2398 = vmatprep.subr.mxu0 0.0
    %2399 = vmatpush1.msra.mxu0 0.0
    %2400 = vmatprep.subr.mxu0 0.0
    %2401 = vmatpush1.msra.mxu0 0.0
    %2402 = vmatprep.subr.mxu0 0.0
    %2403 = vmatpush1.msra.mxu0 0.0
    %2404 = vmatprep.subr.mxu0 0.0
    %2405 = vmatpush1.msra.mxu0 0.0
    %2406 = vmatprep.subr.mxu0 0.0
    %2407 = vmatpush1.msra.mxu0 0.0
    %2408 = vmatprep.mubr.f32.mxu0 0.0
    %2409 = vmatmul.mubr.f32.gmra.mrb[0].mxu0 %v2342
    %v2410 = vpop.f32.mrb[0].mxu0
    %v2411 = vadd.f32 %v1670, %v2410
    %v2412 = vpop.f32.mrb[0].mxu0
    %2413 = vdwg.mxu0
    %2414 = vst.msk [vmem:[%s893] sm:$0x3] %vm329, %v2411
    %v2415 = vld [vmem:[%s1081] sm:$0x3]
    %2416 = vmatprep.subr.mxu0 0.0
    %2417 = vmatpush1.msra.mxu0 %v1648
    %2418 = vmatprep.subr.mxu0 0.0
    %2419 = vmatpush1.msra.mxu0 %v1649
    %2420 = vmatprep.subr.mxu0 0.0
    %2421 = vmatpush1.msra.mxu0 %v1650
    %2422 = vmatprep.subr.mxu0 0.0
    %2423 = vmatpush1.msra.mxu0 %v1651
    %2424 = vmatprep.subr.mxu0 0.0
    %2425 = vmatpush1.msra.mxu0 0.0
    %2426 = vmatprep.subr.mxu0 0.0
    %2427 = vmatpush1.msra.mxu0 0.0
    %2428 = vmatprep.subr.mxu0 0.0
    %2429 = vmatpush1.msra.mxu0 0.0
    %2430 = vmatprep.subr.mxu0 0.0
    %2431 = vmatpush1.msra.mxu0 0.0
    %2432 = vmatprep.subr.mxu0 0.0
    %2433 = vmatpush1.msra.mxu0 0.0
    %2434 = vmatprep.subr.mxu0 0.0
    %2435 = vmatpush1.msra.mxu0 0.0
    %2436 = vmatprep.subr.mxu0 0.0
    %2437 = vmatpush1.msra.mxu0 0.0
    %2438 = vmatprep.subr.mxu0 0.0
    %2439 = vmatpush1.msra.mxu0 0.0
    %2440 = vmatprep.subr.mxu0 0.0
    %2441 = vmatpush1.msra.mxu0 0.0
    %2442 = vmatprep.subr.mxu0 0.0
    %2443 = vmatpush1.msra.mxu0 0.0
    %2444 = vmatprep.subr.mxu0 0.0
    %2445 = vmatpush1.msra.mxu0 0.0
    %2446 = vmatprep.subr.mxu0 0.0
    %2447 = vmatpush1.msra.mxu0 0.0
    %2448 = vmatprep.subr.mxu0 0.0
    %2449 = vmatpush1.msra.mxu0 0.0
    %2450 = vmatprep.subr.mxu0 0.0
    %2451 = vmatpush1.msra.mxu0 0.0
    %2452 = vmatprep.subr.mxu0 0.0
    %2453 = vmatpush1.msra.mxu0 0.0
    %2454 = vmatprep.subr.mxu0 0.0
    %2455 = vmatpush1.msra.mxu0 0.0
    %2456 = vmatprep.subr.mxu0 0.0
    %2457 = vmatpush1.msra.mxu0 0.0
    %2458 = vmatprep.subr.mxu0 0.0
    %2459 = vmatpush1.msra.mxu0 0.0
    %2460 = vmatprep.subr.mxu0 0.0
    %2461 = vmatpush1.msra.mxu0 0.0
    %2462 = vmatprep.subr.mxu0 0.0
    %2463 = vmatpush1.msra.mxu0 0.0
    %2464 = vmatprep.subr.mxu0 0.0
    %2465 = vmatpush1.msra.mxu0 0.0
    %2466 = vmatprep.subr.mxu0 0.0
    %2467 = vmatpush1.msra.mxu0 0.0
    %2468 = vmatprep.subr.mxu0 0.0
    %2469 = vmatpush1.msra.mxu0 0.0
    %2470 = vmatprep.subr.mxu0 0.0
    %2471 = vmatpush1.msra.mxu0 0.0
    %2472 = vmatprep.subr.mxu0 0.0
    %2473 = vmatpush1.msra.mxu0 0.0
    %2474 = vmatprep.subr.mxu0 0.0
    %2475 = vmatpush1.msra.mxu0 0.0
    %2476 = vmatprep.subr.mxu0 0.0
    %2477 = vmatpush1.msra.mxu0 0.0
    %2478 = vmatprep.subr.mxu0 0.0
    %2479 = vmatpush1.msra.mxu0 0.0
    %2480 = vmatprep.mubr.f32.mxu0 0.0
    %2481 = vmatmul.mubr.f32.gmra.mrb[0].mxu0 %v2342
    %v2482 = vpop.f32.mrb[0].mxu0
    %v2483 = vadd.f32 0.0, %v2482
    %v2484 = vpop.f32.mrb[0].mxu0
    %2485 = vdwg.mxu0
    %v2486 = vadd.f32 %v2415, %v2483
    %v2487 = vxor.u32 %v2486, 2147483648
    %v2488 = vmul.f32 %v2487, 1.442695
    %v2489 = vpow.pop %v2488
    %v2490 = vadd.f32 %v2489, 1.0
    %v2491 = vrcp.pop %v2490
    %v2492 = vmul.f32 1.0, %v2491
    %v2493 = vadd.f32 %v2483, %v1751
    %2495 = vrot.lane.b32.xlu0 %v2493, 64
    %v2496 = vpop.permute.xlu0 %2495
    %v2498 = vmul.f32 %v2492, %v2496
    %2500 = vrot.lane.b32.xlu0 %v2498, 64
    %v2501 = vpop.permute.xlu0 %2500
    %v2503 = vadd.f32 %v2415, %v2501
    %v2504 = vtanh.pop %v2503
    %v2505 = vsub.f32 %v2338, %v2504
    %2507 = vrot.lane.b32.xlu0 %v2505, 96
    %v2508 = vpop.permute.xlu0 %2507
    %v2510 = vmul.f32 %v2492, %v2508
    %2512 = vrot.lane.b32.xlu0 %v2510, 32
    %v2513 = vpop.permute.xlu0 %2512
    %v2515 = vadd.f32 %v2504, %v2513
    %v2516 = vld [vmem:[%s997] sm:$0x3]
    %vm2517 = vcmp.ne.f32.partialorder %v2516, 0.0
    %v2518 = vsel %vm2517, 1, 0
    %2519 = vset.pattern.permute.xlu0 0
    %2520 = vperm.xlu0 %2519, %v2518
    %v2521 = vpop.permute.xlu0 %2520
    %vm2522 = vcmp.eq.s32.totalorder %v2521, 1
    %v2523 = vsel %vm2522, %v2515, %v2338
    %2525 = vrot.lane.b32.xlu0 %v2523, 64
    %v2526 = vpop.permute.xlu0 %2525
    %v2527 = vsel %vm139, %v2526, 0
    %2529 = vmatprep.subr.mxu0 0.0
    %2530 = vmatpush1.msra.mxu0 %v1660
    %2531 = vmatprep.subr.mxu0 0.0
    %2532 = vmatpush1.msra.mxu0 %v1661
    %2533 = vmatprep.subr.mxu0 0.0
    %2534 = vmatpush1.msra.mxu0 %v1662
    %2535 = vmatprep.subr.mxu0 0.0
    %2536 = vmatpush1.msra.mxu0 %v1663
    %2537 = vmatprep.subr.mxu0 0.0
    %2538 = vmatpush1.msra.mxu0 0.0
    %2539 = vmatprep.subr.mxu0 0.0
    %2540 = vmatpush1.msra.mxu0 0.0
    %2541 = vmatprep.subr.mxu0 0.0
    %2542 = vmatpush1.msra.mxu0 0.0
    %2543 = vmatprep.subr.mxu0 0.0
    %2544 = vmatpush1.msra.mxu0 0.0
    %2545 = vmatprep.subr.mxu0 0.0
    %2546 = vmatpush1.msra.mxu0 0.0
    %2547 = vmatprep.subr.mxu0 0.0
    %2548 = vmatpush1.msra.mxu0 0.0
    %2549 = vmatprep.subr.mxu0 0.0
    %2550 = vmatpush1.msra.mxu0 0.0
    %2551 = vmatprep.subr.mxu0 0.0
    %2552 = vmatpush1.msra.mxu0 0.0
    %2553 = vmatprep.subr.mxu0 0.0
    %2554 = vmatpush1.msra.mxu0 0.0
    %2555 = vmatprep.subr.mxu0 0.0
    %2556 = vmatpush1.msra.mxu0 0.0
    %2557 = vmatprep.subr.mxu0 0.0
    %2558 = vmatpush1.msra.mxu0 0.0
    %2559 = vmatprep.subr.mxu0 0.0
    %2560 = vmatpush1.msra.mxu0 0.0
    %2561 = vmatprep.subr.mxu0 0.0
    %2562 = vmatpush1.msra.mxu0 0.0
    %2563 = vmatprep.subr.mxu0 0.0
    %2564 = vmatpush1.msra.mxu0 0.0
    %2565 = vmatprep.subr.mxu0 0.0
    %2566 = vmatpush1.msra.mxu0 0.0
    %2567 = vmatprep.subr.mxu0 0.0
    %2568 = vmatpush1.msra.mxu0 0.0
    %2569 = vmatprep.subr.mxu0 0.0
    %2570 = vmatpush1.msra.mxu0 0.0
    %2571 = vmatprep.subr.mxu0 0.0
    %2572 = vmatpush1.msra.mxu0 0.0
    %2573 = vmatprep.subr.mxu0 0.0
    %2574 = vmatpush1.msra.mxu0 0.0
    %2575 = vmatprep.subr.mxu0 0.0
    %2576 = vmatpush1.msra.mxu0 0.0
    %2577 = vmatprep.subr.mxu0 0.0
    %2578 = vmatpush1.msra.mxu0 0.0
    %2579 = vmatprep.subr.mxu0 0.0
    %2580 = vmatpush1.msra.mxu0 0.0
    %2581 = vmatprep.subr.mxu0 0.0
    %2582 = vmatpush1.msra.mxu0 0.0
    %2583 = vmatprep.subr.mxu0 0.0
    %2584 = vmatpush1.msra.mxu0 0.0
    %2585 = vmatprep.subr.mxu0 0.0
    %2586 = vmatpush1.msra.mxu0 0.0
    %2587 = vmatprep.subr.mxu0 0.0
    %2588 = vmatpush1.msra.mxu0 0.0
    %2589 = vmatprep.subr.mxu0 0.0
    %2590 = vmatpush1.msra.mxu0 0.0
    %2591 = vmatprep.subr.mxu0 0.0
    %2592 = vmatpush1.msra.mxu0 0.0
    %2593 = vmatprep.mubr.f32.mxu0 0.0
    %2594 = vmatmul.mubr.f32.gmra.mrb[0].mxu0 %v2527
    %v2595 = vpop.f32.mrb[0].mxu0
    %v2596 = vadd.f32 %v1670, %v2595
    %v2597 = vpop.f32.mrb[0].mxu0
    %2598 = vdwg.mxu0
    %2599 = vst.msk [vmem:[%s1081] sm:$0x3] %vm329, %v2596
    %v2600 = vld [vmem:[%s1269] sm:$0x3]
    %2601 = vmatprep.subr.mxu0 0.0
    %2602 = vmatpush1.msra.mxu0 %v1648
    %2603 = vmatprep.subr.mxu0 0.0
    %2604 = vmatpush1.msra.mxu0 %v1649
    %2605 = vmatprep.subr.mxu0 0.0
    %2606 = vmatpush1.msra.mxu0 %v1650
    %2607 = vmatprep.subr.mxu0 0.0
    %2608 = vmatpush1.msra.mxu0 %v1651
    %2609 = vmatprep.subr.mxu0 0.0
    %2610 = vmatpush1.msra.mxu0 0.0
    %2611 = vmatprep.subr.mxu0 0.0
    %2612 = vmatpush1.msra.mxu0 0.0
    %2613 = vmatprep.subr.mxu0 0.0
    %2614 = vmatpush1.msra.mxu0 0.0
    %2615 = vmatprep.subr.mxu0 0.0
    %2616 = vmatpush1.msra.mxu0 0.0
    %2617 = vmatprep.subr.mxu0 0.0
    %2618 = vmatpush1.msra.mxu0 0.0
    %2619 = vmatprep.subr.mxu0 0.0
    %2620 = vmatpush1.msra.mxu0 0.0
    %2621 = vmatprep.subr.mxu0 0.0
    %2622 = vmatpush1.msra.mxu0 0.0
    %2623 = vmatprep.subr.mxu0 0.0
    %2624 = vmatpush1.msra.mxu0 0.0
    %2625 = vmatprep.subr.mxu0 0.0
    %2626 = vmatpush1.msra.mxu0 0.0
    %2627 = vmatprep.subr.mxu0 0.0
    %2628 = vmatpush1.msra.mxu0 0.0
    %2629 = vmatprep.subr.mxu0 0.0
    %2630 = vmatpush1.msra.mxu0 0.0
    %2631 = vmatprep.subr.mxu0 0.0
    %2632 = vmatpush1.msra.mxu0 0.0
    %2633 = vmatprep.subr.mxu0 0.0
    %2634 = vmatpush1.msra.mxu0 0.0
    %2635 = vmatprep.subr.mxu0 0.0
    %2636 = vmatpush1.msra.mxu0 0.0
    %2637 = vmatprep.subr.mxu0 0.0
    %2638 = vmatpush1.msra.mxu0 0.0
    %2639 = vmatprep.subr.mxu0 0.0
    %2640 = vmatpush1.msra.mxu0 0.0
    %2641 = vmatprep.subr.mxu0 0.0
    %2642 = vmatpush1.msra.mxu0 0.0
    %2643 = vmatprep.subr.mxu0 0.0
    %2644 = vmatpush1.msra.mxu0 0.0
    %2645 = vmatprep.subr.mxu0 0.0
    %2646 = vmatpush1.msra.mxu0 0.0
    %2647 = vmatprep.subr.mxu0 0.0
    %2648 = vmatpush1.msra.mxu0 0.0
    %2649 = vmatprep.subr.mxu0 0.0
    %2650 = vmatpush1.msra.mxu0 0.0
    %2651 = vmatprep.subr.mxu0 0.0
    %2652 = vmatpush1.msra.mxu0 0.0
    %2653 = vmatprep.subr.mxu0 0.0
    %2654 = vmatpush1.msra.mxu0 0.0
    %2655 = vmatprep.subr.mxu0 0.0
    %2656 = vmatpush1.msra.mxu0 0.0
    %2657 = vmatprep.subr.mxu0 0.0
    %2658 = vmatpush1.msra.mxu0 0.0
    %2659 = vmatprep.subr.mxu0 0.0
    %2660 = vmatpush1.msra.mxu0 0.0
    %2661 = vmatprep.subr.mxu0 0.0
    %2662 = vmatpush1.msra.mxu0 0.0
    %2663 = vmatprep.subr.mxu0 0.0
    %2664 = vmatpush1.msra.mxu0 0.0
    %2665 = vmatprep.mubr.f32.mxu0 0.0
    %2666 = vmatmul.mubr.f32.gmra.mrb[0].mxu0 %v2527
    %v2667 = vpop.f32.mrb[0].mxu0
    %v2668 = vadd.f32 0.0, %v2667
    %v2669 = vpop.f32.mrb[0].mxu0
    %2670 = vdwg.mxu0
    %v2671 = vadd.f32 %v2600, %v2668
    %v2672 = vxor.u32 %v2671, 2147483648
    %v2673 = vmul.f32 %v2672, 1.442695
    %v2674 = vpow.pop %v2673
    %v2675 = vadd.f32 %v2674, 1.0
    %v2676 = vrcp.pop %v2675
    %v2677 = vmul.f32 1.0, %v2676
    %v2678 = vadd.f32 %v2668, %v1751
    %2680 = vrot.lane.b32.xlu0 %v2678, 64
    %v2681 = vpop.permute.xlu0 %2680
    %v2683 = vmul.f32 %v2677, %v2681
    %2685 = vrot.lane.b32.xlu0 %v2683, 64
    %v2686 = vpop.permute.xlu0 %2685
    %v2688 = vadd.f32 %v2600, %v2686
    %v2689 = vtanh.pop %v2688
    %v2690 = vsub.f32 %v2523, %v2689
    %2692 = vrot.lane.b32.xlu0 %v2690, 96
    %v2693 = vpop.permute.xlu0 %2692
    %v2695 = vmul.f32 %v2677, %v2693
    %2697 = vrot.lane.b32.xlu0 %v2695, 32
    %v2698 = vpop.permute.xlu0 %2697
    %v2700 = vadd.f32 %v2689, %v2698
    %v2701 = vld [vmem:[%s1185] sm:$0x3]
    %vm2702 = vcmp.ne.f32.partialorder %v2701, 0.0
    %v2703 = vsel %vm2702, 1, 0
    %2704 = vset.pattern.permute.xlu0 0
    %2705 = vperm.xlu0 %2704, %v2703
    %v2706 = vpop.permute.xlu0 %2705
    %vm2707 = vcmp.eq.s32.totalorder %v2706, 1
    %v2708 = vsel %vm2707, %v2700, %v2523
    %2710 = vrot.lane.b32.xlu0 %v2708, 64
    %v2711 = vpop.permute.xlu0 %2710
    %v2712 = vsel %vm139, %v2711, 0
    %2714 = vmatprep.subr.mxu0 0.0
    %2715 = vmatpush1.msra.mxu0 %v1660
    %2716 = vmatprep.subr.mxu0 0.0
    %2717 = vmatpush1.msra.mxu0 %v1661
    %2718 = vmatprep.subr.mxu0 0.0
    %2719 = vmatpush1.msra.mxu0 %v1662
    %2720 = vmatprep.subr.mxu0 0.0
    %2721 = vmatpush1.msra.mxu0 %v1663
    %2722 = vmatprep.subr.mxu0 0.0
    %2723 = vmatpush1.msra.mxu0 0.0
    %2724 = vmatprep.subr.mxu0 0.0
    %2725 = vmatpush1.msra.mxu0 0.0
    %2726 = vmatprep.subr.mxu0 0.0
    %2727 = vmatpush1.msra.mxu0 0.0
    %2728 = vmatprep.subr.mxu0 0.0
    %2729 = vmatpush1.msra.mxu0 0.0
    %2730 = vmatprep.subr.mxu0 0.0
    %2731 = vmatpush1.msra.mxu0 0.0
    %2732 = vmatprep.subr.mxu0 0.0
    %2733 = vmatpush1.msra.mxu0 0.0
    %2734 = vmatprep.subr.mxu0 0.0
    %2735 = vmatpush1.msra.mxu0 0.0
    %2736 = vmatprep.subr.mxu0 0.0
    %2737 = vmatpush1.msra.mxu0 0.0
    %2738 = vmatprep.subr.mxu0 0.0
    %2739 = vmatpush1.msra.mxu0 0.0
    %2740 = vmatprep.subr.mxu0 0.0
    %2741 = vmatpush1.msra.mxu0 0.0
    %2742 = vmatprep.subr.mxu0 0.0
    %2743 = vmatpush1.msra.mxu0 0.0
    %2744 = vmatprep.subr.mxu0 0.0
    %2745 = vmatpush1.msra.mxu0 0.0
    %2746 = vmatprep.subr.mxu0 0.0
    %2747 = vmatpush1.msra.mxu0 0.0
    %2748 = vmatprep.subr.mxu0 0.0
    %2749 = vmatpush1.msra.mxu0 0.0
    %2750 = vmatprep.subr.mxu0 0.0
    %2751 = vmatpush1.msra.mxu0 0.0
    %2752 = vmatprep.subr.mxu0 0.0
    %2753 = vmatpush1.msra.mxu0 0.0
    %2754 = vmatprep.subr.mxu0 0.0
    %2755 = vmatpush1.msra.mxu0 0.0
    %2756 = vmatprep.subr.mxu0 0.0
    %2757 = vmatpush1.msra.mxu0 0.0
    %2758 = vmatprep.subr.mxu0 0.0
    %2759 = vmatpush1.msra.mxu0 0.0
    %2760 = vmatprep.subr.mxu0 0.0
    %2761 = vmatpush1.msra.mxu0 0.0
    %2762 = vmatprep.subr.mxu0 0.0
    %2763 = vmatpush1.msra.mxu0 0.0
    %2764 = vmatprep.subr.mxu0 0.0
    %2765 = vmatpush1.msra.mxu0 0.0
    %2766 = vmatprep.subr.mxu0 0.0
    %2767 = vmatpush1.msra.mxu0 0.0
    %2768 = vmatprep.subr.mxu0 0.0
    %2769 = vmatpush1.msra.mxu0 0.0
    %2770 = vmatprep.subr.mxu0 0.0
    %2771 = vmatpush1.msra.mxu0 0.0
    %2772 = vmatprep.subr.mxu0 0.0
    %2773 = vmatpush1.msra.mxu0 0.0
    %2774 = vmatprep.subr.mxu0 0.0
    %2775 = vmatpush1.msra.mxu0 0.0
    %2776 = vmatprep.subr.mxu0 0.0
    %2777 = vmatpush1.msra.mxu0 0.0
    %2778 = vmatprep.mubr.f32.mxu0 0.0
    %2779 = vmatmul.mubr.f32.gmra.mrb[0].mxu0 %v2712
    %v2780 = vpop.f32.mrb[0].mxu0
    %v2781 = vadd.f32 %v1670, %v2780
    %v2782 = vpop.f32.mrb[0].mxu0
    %2783 = vdwg.mxu0
    %2784 = vst.msk [vmem:[%s1269] sm:$0x3] %vm329, %v2781
    %v2785 = vld [vmem:[%s1457] sm:$0x3]
    %2786 = vmatprep.subr.mxu0 0.0
    %2787 = vmatpush1.msra.mxu0 %v1648
    %2788 = vmatprep.subr.mxu0 0.0
    %2789 = vmatpush1.msra.mxu0 %v1649
    %2790 = vmatprep.subr.mxu0 0.0
    %2791 = vmatpush1.msra.mxu0 %v1650
    %2792 = vmatprep.subr.mxu0 0.0
    %2793 = vmatpush1.msra.mxu0 %v1651
    %2794 = vmatprep.subr.mxu0 0.0
    %2795 = vmatpush1.msra.mxu0 0.0
    %2796 = vmatprep.subr.mxu0 0.0
    %2797 = vmatpush1.msra.mxu0 0.0
    %2798 = vmatprep.subr.mxu0 0.0
    %2799 = vmatpush1.msra.mxu0 0.0
    %2800 = vmatprep.subr.mxu0 0.0
    %2801 = vmatpush1.msra.mxu0 0.0
    %2802 = vmatprep.subr.mxu0 0.0
    %2803 = vmatpush1.msra.mxu0 0.0
    %2804 = vmatprep.subr.mxu0 0.0
    %2805 = vmatpush1.msra.mxu0 0.0
    %2806 = vmatprep.subr.mxu0 0.0
    %2807 = vmatpush1.msra.mxu0 0.0
    %2808 = vmatprep.subr.mxu0 0.0
    %2809 = vmatpush1.msra.mxu0 0.0
    %2810 = vmatprep.subr.mxu0 0.0
    %2811 = vmatpush1.msra.mxu0 0.0
    %2812 = vmatprep.subr.mxu0 0.0
    %2813 = vmatpush1.msra.mxu0 0.0
    %2814 = vmatprep.subr.mxu0 0.0
    %2815 = vmatpush1.msra.mxu0 0.0
    %2816 = vmatprep.subr.mxu0 0.0
    %2817 = vmatpush1.msra.mxu0 0.0
    %2818 = vmatprep.subr.mxu0 0.0
    %2819 = vmatpush1.msra.mxu0 0.0
    %2820 = vmatprep.subr.mxu0 0.0
    %2821 = vmatpush1.msra.mxu0 0.0
    %2822 = vmatprep.subr.mxu0 0.0
    %2823 = vmatpush1.msra.mxu0 0.0
    %2824 = vmatprep.subr.mxu0 0.0
    %2825 = vmatpush1.msra.mxu0 0.0
    %2826 = vmatprep.subr.mxu0 0.0
    %2827 = vmatpush1.msra.mxu0 0.0
    %2828 = vmatprep.subr.mxu0 0.0
    %2829 = vmatpush1.msra.mxu0 0.0
    %2830 = vmatprep.subr.mxu0 0.0
    %2831 = vmatpush1.msra.mxu0 0.0
    %2832 = vmatprep.subr.mxu0 0.0
    %2833 = vmatpush1.msra.mxu0 0.0
    %2834 = vmatprep.subr.mxu0 0.0
    %2835 = vmatpush1.msra.mxu0 0.0
    %2836 = vmatprep.subr.mxu0 0.0
    %2837 = vmatpush1.msra.mxu0 0.0
    %2838 = vmatprep.subr.mxu0 0.0
    %2839 = vmatpush1.msra.mxu0 0.0
    %2840 = vmatprep.subr.mxu0 0.0
    %2841 = vmatpush1.msra.mxu0 0.0
    %2842 = vmatprep.subr.mxu0 0.0
    %2843 = vmatpush1.msra.mxu0 0.0
    %2844 = vmatprep.subr.mxu0 0.0
    %2845 = vmatpush1.msra.mxu0 0.0
    %2846 = vmatprep.subr.mxu0 0.0
    %2847 = vmatpush1.msra.mxu0 0.0
    %2848 = vmatprep.subr.mxu0 0.0
    %2849 = vmatpush1.msra.mxu0 0.0
    %2850 = vmatprep.mubr.f32.mxu0 0.0
    %2851 = vmatmul.mubr.f32.gmra.mrb[0].mxu0 %v2712
    %v2852 = vpop.f32.mrb[0].mxu0
    %v2853 = vadd.f32 0.0, %v2852
    %v2854 = vpop.f32.mrb[0].mxu0
    %2855 = vdwg.mxu0
    %v2856 = vadd.f32 %v2785, %v2853
    %v2857 = vxor.u32 %v2856, 2147483648
    %v2858 = vmul.f32 %v2857, 1.442695
    %v2859 = vpow.pop %v2858
    %v2860 = vadd.f32 %v2859, 1.0
    %v2861 = vrcp.pop %v2860
    %v2862 = vmul.f32 1.0, %v2861
    %v2863 = vadd.f32 %v2853, %v1751
    %2865 = vrot.lane.b32.xlu0 %v2863, 64
    %v2866 = vpop.permute.xlu0 %2865
    %v2868 = vmul.f32 %v2862, %v2866
    %2870 = vrot.lane.b32.xlu0 %v2868, 64
    %v2871 = vpop.permute.xlu0 %2870
    %v2873 = vadd.f32 %v2785, %v2871
    %v2874 = vtanh.pop %v2873
    %v2875 = vsub.f32 %v2708, %v2874
    %2877 = vrot.lane.b32.xlu0 %v2875, 96
    %v2878 = vpop.permute.xlu0 %2877
    %v2880 = vmul.f32 %v2862, %v2878
    %2882 = vrot.lane.b32.xlu0 %v2880, 32
    %v2883 = vpop.permute.xlu0 %2882
    %v2885 = vadd.f32 %v2874, %v2883
    %v2886 = vld [vmem:[%s1373] sm:$0x3]
    %vm2887 = vcmp.ne.f32.partialorder %v2886, 0.0
    %v2888 = vsel %vm2887, 1, 0
    %2889 = vset.pattern.permute.xlu0 0
    %2890 = vperm.xlu0 %2889, %v2888
    %v2891 = vpop.permute.xlu0 %2890
    %vm2892 = vcmp.eq.s32.totalorder %v2891, 1
    %v2893 = vsel %vm2892, %v2885, %v2708
    %2895 = vrot.lane.b32.xlu0 %v2893, 64
    %v2896 = vpop.permute.xlu0 %2895
    %v2897 = vsel %vm139, %v2896, 0
    %2899 = vmatprep.subr.mxu0 0.0
    %2900 = vmatpush1.msra.mxu0 %v1660
    %2901 = vmatprep.subr.mxu0 0.0
    %2902 = vmatpush1.msra.mxu0 %v1661
    %2903 = vmatprep.subr.mxu0 0.0
    %2904 = vmatpush1.msra.mxu0 %v1662
    %2905 = vmatprep.subr.mxu0 0.0
    %2906 = vmatpush1.msra.mxu0 %v1663
    %2907 = vmatprep.subr.mxu0 0.0
    %2908 = vmatpush1.msra.mxu0 0.0
    %2909 = vmatprep.subr.mxu0 0.0
    %2910 = vmatpush1.msra.mxu0 0.0
    %2911 = vmatprep.subr.mxu0 0.0
    %2912 = vmatpush1.msra.mxu0 0.0
    %2913 = vmatprep.subr.mxu0 0.0
    %2914 = vmatpush1.msra.mxu0 0.0
    %2915 = vmatprep.subr.mxu0 0.0
    %2916 = vmatpush1.msra.mxu0 0.0
    %2917 = vmatprep.subr.mxu0 0.0
    %2918 = vmatpush1.msra.mxu0 0.0
    %2919 = vmatprep.subr.mxu0 0.0
    %2920 = vmatpush1.msra.mxu0 0.0
    %2921 = vmatprep.subr.mxu0 0.0
    %2922 = vmatpush1.msra.mxu0 0.0
    %2923 = vmatprep.subr.mxu0 0.0
    %2924 = vmatpush1.msra.mxu0 0.0
    %2925 = vmatprep.subr.mxu0 0.0
    %2926 = vmatpush1.msra.mxu0 0.0
    %2927 = vmatprep.subr.mxu0 0.0
    %2928 = vmatpush1.msra.mxu0 0.0
    %2929 = vmatprep.subr.mxu0 0.0
    %2930 = vmatpush1.msra.mxu0 0.0
    %2931 = vmatprep.subr.mxu0 0.0
    %2932 = vmatpush1.msra.mxu0 0.0
    %2933 = vmatprep.subr.mxu0 0.0
    %2934 = vmatpush1.msra.mxu0 0.0
    %2935 = vmatprep.subr.mxu0 0.0
    %2936 = vmatpush1.msra.mxu0 0.0
    %2937 = vmatprep.subr.mxu0 0.0
    %2938 = vmatpush1.msra.mxu0 0.0
    %2939 = vmatprep.subr.mxu0 0.0
    %2940 = vmatpush1.msra.mxu0 0.0
    %2941 = vmatprep.subr.mxu0 0.0
    %2942 = vmatpush1.msra.mxu0 0.0
    %2943 = vmatprep.subr.mxu0 0.0
    %2944 = vmatpush1.msra.mxu0 0.0
    %2945 = vmatprep.subr.mxu0 0.0
    %2946 = vmatpush1.msra.mxu0 0.0
    %2947 = vmatprep.subr.mxu0 0.0
    %2948 = vmatpush1.msra.mxu0 0.0
    %2949 = vmatprep.subr.mxu0 0.0
    %2950 = vmatpush1.msra.mxu0 0.0
    %2951 = vmatprep.subr.mxu0 0.0
    %2952 = vmatpush1.msra.mxu0 0.0
    %2953 = vmatprep.subr.mxu0 0.0
    %2954 = vmatpush1.msra.mxu0 0.0
    %2955 = vmatprep.subr.mxu0 0.0
    %2956 = vmatpush1.msra.mxu0 0.0
    %2957 = vmatprep.subr.mxu0 0.0
    %2958 = vmatpush1.msra.mxu0 0.0
    %2959 = vmatprep.subr.mxu0 0.0
    %2960 = vmatpush1.msra.mxu0 0.0
    %2961 = vmatprep.subr.mxu0 0.0
    %2962 = vmatpush1.msra.mxu0 0.0
    %2963 = vmatprep.mubr.f32.mxu0 0.0
    %2964 = vmatmul.mubr.f32.gmra.mrb[0].mxu0 %v2897
    %v2965 = vpop.f32.mrb[0].mxu0
    %v2966 = vadd.f32 %v1670, %v2965
    %v2967 = vpop.f32.mrb[0].mxu0
    %2968 = vdwg.mxu0
    %2969 = vst.msk [vmem:[%s1457] sm:$0x3] %vm329, %v2966
    %v2970 = vld [vmem:[%s1645] sm:$0x3]
    %2971 = vmatprep.subr.mxu0 0.0
    %2972 = vmatpush1.msra.mxu0 %v1648
    %2973 = vmatprep.subr.mxu0 0.0
    %2974 = vmatpush1.msra.mxu0 %v1649
    %2975 = vmatprep.subr.mxu0 0.0
    %2976 = vmatpush1.msra.mxu0 %v1650
    %2977 = vmatprep.subr.mxu0 0.0
    %2978 = vmatpush1.msra.mxu0 %v1651
    %2979 = vmatprep.subr.mxu0 0.0
    %2980 = vmatpush1.msra.mxu0 0.0
    %2981 = vmatprep.subr.mxu0 0.0
    %2982 = vmatpush1.msra.mxu0 0.0
    %2983 = vmatprep.subr.mxu0 0.0
    %2984 = vmatpush1.msra.mxu0 0.0
    %2985 = vmatprep.subr.mxu0 0.0
    %2986 = vmatpush1.msra.mxu0 0.0
    %2987 = vmatprep.subr.mxu0 0.0
    %2988 = vmatpush1.msra.mxu0 0.0
    %2989 = vmatprep.subr.mxu0 0.0
    %2990 = vmatpush1.msra.mxu0 0.0
    %2991 = vmatprep.subr.mxu0 0.0
    %2992 = vmatpush1.msra.mxu0 0.0
    %2993 = vmatprep.subr.mxu0 0.0
    %2994 = vmatpush1.msra.mxu0 0.0
    %2995 = vmatprep.subr.mxu0 0.0
    %2996 = vmatpush1.msra.mxu0 0.0
    %2997 = vmatprep.subr.mxu0 0.0
    %2998 = vmatpush1.msra.mxu0 0.0
    %2999 = vmatprep.subr.mxu0 0.0
    %3000 = vmatpush1.msra.mxu0 0.0
    %3001 = vmatprep.subr.mxu0 0.0
    %3002 = vmatpush1.msra.mxu0 0.0
    %3003 = vmatprep.subr.mxu0 0.0
    %3004 = vmatpush1.msra.mxu0 0.0
    %3005 = vmatprep.subr.mxu0 0.0
    %3006 = vmatpush1.msra.mxu0 0.0
    %3007 = vmatprep.subr.mxu0 0.0
    %3008 = vmatpush1.msra.mxu0 0.0
    %3009 = vmatprep.subr.mxu0 0.0
    %3010 = vmatpush1.msra.mxu0 0.0
    %3011 = vmatprep.subr.mxu0 0.0
    %3012 = vmatpush1.msra.mxu0 0.0
    %3013 = vmatprep.subr.mxu0 0.0
    %3014 = vmatpush1.msra.mxu0 0.0
    %3015 = vmatprep.subr.mxu0 0.0
    %3016 = vmatpush1.msra.mxu0 0.0
    %3017 = vmatprep.subr.mxu0 0.0
    %3018 = vmatpush1.msra.mxu0 0.0
    %3019 = vmatprep.subr.mxu0 0.0
    %3020 = vmatpush1.msra.mxu0 0.0
    %3021 = vmatprep.subr.mxu0 0.0
    %3022 = vmatpush1.msra.mxu0 0.0
    %3023 = vmatprep.subr.mxu0 0.0
    %3024 = vmatpush1.msra.mxu0 0.0
    %3025 = vmatprep.subr.mxu0 0.0
    %3026 = vmatpush1.msra.mxu0 0.0
    %3027 = vmatprep.subr.mxu0 0.0
    %3028 = vmatpush1.msra.mxu0 0.0
    %3029 = vmatprep.subr.mxu0 0.0
    %3030 = vmatpush1.msra.mxu0 0.0
    %3031 = vmatprep.subr.mxu0 0.0
    %3032 = vmatpush1.msra.mxu0 0.0
    %3033 = vmatprep.subr.mxu0 0.0
    %3034 = vmatpush1.msra.mxu0 0.0
    %3035 = vmatprep.mubr.f32.mxu0 0.0
    %3036 = vmatmul.mubr.f32.gmra.mrb[0].mxu0 %v2897
    %v3037 = vpop.f32.mrb[0].mxu0
    %v3038 = vadd.f32 0.0, %v3037
    %v3039 = vpop.f32.mrb[0].mxu0
    %3040 = vdwg.mxu0
    %v3041 = vadd.f32 %v2970, %v3038
    %v3042 = vxor.u32 %v3041, 2147483648
    %v3043 = vmul.f32 %v3042, 1.442695
    %v3044 = vpow.pop %v3043
    %v3045 = vadd.f32 %v3044, 1.0
    %v3046 = vrcp.pop %v3045
    %v3047 = vmul.f32 1.0, %v3046
    %v3048 = vadd.f32 %v3038, %v1751
    %3050 = vrot.lane.b32.xlu0 %v3048, 64
    %v3051 = vpop.permute.xlu0 %3050
    %v3053 = vmul.f32 %v3047, %v3051
    %3055 = vrot.lane.b32.xlu0 %v3053, 64
    %v3056 = vpop.permute.xlu0 %3055
    %v3058 = vadd.f32 %v2970, %v3056
    %v3059 = vtanh.pop %v3058
    %v3060 = vsub.f32 %v2893, %v3059
    %3062 = vrot.lane.b32.xlu0 %v3060, 96
    %v3063 = vpop.permute.xlu0 %3062
    %v3065 = vmul.f32 %v3047, %v3063
    %3067 = vrot.lane.b32.xlu0 %v3065, 32
    %v3068 = vpop.permute.xlu0 %3067
    %v3070 = vadd.f32 %v3059, %v3068
    %v3071 = vld [vmem:[%s1561] sm:$0x3]
    %vm3072 = vcmp.ne.f32.partialorder %v3071, 0.0
    %v3073 = vsel %vm3072, 1, 0
    %3074 = vset.pattern.permute.xlu0 0
    %3075 = vperm.xlu0 %3074, %v3073
    %v3076 = vpop.permute.xlu0 %3075
    %vm3077 = vcmp.eq.s32.totalorder %v3076, 1
    %v3078 = vsel %vm3077, %v3070, %v2893
    %3080 = vrot.lane.b32.xlu0 %v3078, 64
    %v3081 = vpop.permute.xlu0 %3080
    %v3082 = vsel %vm139, %v3081, 0
    %3084 = vmatprep.subr.mxu0 0.0
    %3085 = vmatpush1.msra.mxu0 %v1660
    %3086 = vmatprep.subr.mxu0 0.0
    %3087 = vmatpush1.msra.mxu0 %v1661
    %3088 = vmatprep.subr.mxu0 0.0
    %3089 = vmatpush1.msra.mxu0 %v1662
    %3090 = vmatprep.subr.mxu0 0.0
    %3091 = vmatpush1.msra.mxu0 %v1663
    %3092 = vmatprep.subr.mxu0 0.0
    %3093 = vmatpush1.msra.mxu0 0.0
    %3094 = vmatprep.subr.mxu0 0.0
    %3095 = vmatpush1.msra.mxu0 0.0
    %3096 = vmatprep.subr.mxu0 0.0
    %3097 = vmatpush1.msra.mxu0 0.0
    %3098 = vmatprep.subr.mxu0 0.0
    %3099 = vmatpush1.msra.mxu0 0.0
    %3100 = vmatprep.subr.mxu0 0.0
    %3101 = vmatpush1.msra.mxu0 0.0
    %3102 = vmatprep.subr.mxu0 0.0
    %3103 = vmatpush1.msra.mxu0 0.0
    %3104 = vmatprep.subr.mxu0 0.0
    %3105 = vmatpush1.msra.mxu0 0.0
    %3106 = vmatprep.subr.mxu0 0.0
    %3107 = vmatpush1.msra.mxu0 0.0
    %3108 = vmatprep.subr.mxu0 0.0
    %3109 = vmatpush1.msra.mxu0 0.0
    %3110 = vmatprep.subr.mxu0 0.0
    %3111 = vmatpush1.msra.mxu0 0.0
    %3112 = vmatprep.subr.mxu0 0.0
    %3113 = vmatpush1.msra.mxu0 0.0
    %3114 = vmatprep.subr.mxu0 0.0
    %3115 = vmatpush1.msra.mxu0 0.0
    %3116 = vmatprep.subr.mxu0 0.0
    %3117 = vmatpush1.msra.mxu0 0.0
    %3118 = vmatprep.subr.mxu0 0.0
    %3119 = vmatpush1.msra.mxu0 0.0
    %3120 = vmatprep.subr.mxu0 0.0
    %3121 = vmatpush1.msra.mxu0 0.0
    %3122 = vmatprep.subr.mxu0 0.0
    %3123 = vmatpush1.msra.mxu0 0.0
    %3124 = vmatprep.subr.mxu0 0.0
    %3125 = vmatpush1.msra.mxu0 0.0
    %3126 = vmatprep.subr.mxu0 0.0
    %3127 = vmatpush1.msra.mxu0 0.0
    %3128 = vmatprep.subr.mxu0 0.0
    %3129 = vmatpush1.msra.mxu0 0.0
    %3130 = vmatprep.subr.mxu0 0.0
    %3131 = vmatpush1.msra.mxu0 0.0
    %3132 = vmatprep.subr.mxu0 0.0
    %3133 = vmatpush1.msra.mxu0 0.0
    %3134 = vmatprep.subr.mxu0 0.0
    %3135 = vmatpush1.msra.mxu0 0.0
    %3136 = vmatprep.subr.mxu0 0.0
    %3137 = vmatpush1.msra.mxu0 0.0
    %3138 = vmatprep.subr.mxu0 0.0
    %3139 = vmatpush1.msra.mxu0 0.0
    %3140 = vmatprep.subr.mxu0 0.0
    %3141 = vmatpush1.msra.mxu0 0.0
    %3142 = vmatprep.subr.mxu0 0.0
    %3143 = vmatpush1.msra.mxu0 0.0
    %3144 = vmatprep.subr.mxu0 0.0
    %3145 = vmatpush1.msra.mxu0 0.0
    %3146 = vmatprep.subr.mxu0 0.0
    %3147 = vmatpush1.msra.mxu0 0.0
    %3148 = vmatprep.mubr.f32.mxu0 0.0
    %3149 = vmatmul.mubr.f32.gmra.mrb[0].mxu0 %v3082
    %v3150 = vpop.f32.mrb[0].mxu0
    %v3151 = vadd.f32 %v1670, %v3150
    %v3152 = vpop.f32.mrb[0].mxu0
    %3153 = vdwg.mxu0
    %3154 = vst.msk [vmem:[%s1645] sm:$0x3] %vm329, %v3151
    %s3155 = scalar_lea.vmem [#allocation6], 64
    %v3156 = vld [vmem:[%s3155] sm:$0xff]
    %v3157 = vld [vmem:[%s3155 + $0x8] sm:$0xff]
    %v3158 = vld [vmem:[%s3155 + $0x10] sm:$0xff]
    %v3159 = vld [vmem:[%s3155 + $0x18] sm:$0xff]
    %s3160 = scalar_lea.vmem %s5, 2
    %v3161 = vld [vmem:[%s3160] sm:$0x1]
    %v3163 = vlaneseq
    %v3164 = vshrl.u32 %v3163, 7
    %v3165 = vsub.s32 0, %v3164
    %v3166 = vrot.slane %v3161, %v3165
    %v3167 = vld [vmem:[#allocation2] sm:$0x3]
    %3168 = vmatprep.subr.mxu0 0.0
    %3169 = vmatpush1.msra.mxu0 %v3156
    %3170 = vmatprep.subr.mxu0 0.0
    %3171 = vmatpush1.msra.mxu0 %v3157
    %3172 = vmatprep.subr.mxu0 0.0
    %3173 = vmatpush1.msra.mxu0 %v3158
    %3174 = vmatprep.subr.mxu0 0.0
    %3175 = vmatpush1.msra.mxu0 %v3159
    %3176 = vmatprep.subr.mxu0 0.0
    %3177 = vmatpush1.msra.mxu0 0.0
    %3178 = vmatprep.subr.mxu0 0.0
    %3179 = vmatpush1.msra.mxu0 0.0
    %3180 = vmatprep.subr.mxu0 0.0
    %3181 = vmatpush1.msra.mxu0 0.0
    %3182 = vmatprep.subr.mxu0 0.0
    %3183 = vmatpush1.msra.mxu0 0.0
    %3184 = vmatprep.subr.mxu0 0.0
    %3185 = vmatpush1.msra.mxu0 0.0
    %3186 = vmatprep.subr.mxu0 0.0
    %3187 = vmatpush1.msra.mxu0 0.0
    %3188 = vmatprep.subr.mxu0 0.0
    %3189 = vmatpush1.msra.mxu0 0.0
    %3190 = vmatprep.subr.mxu0 0.0
    %3191 = vmatpush1.msra.mxu0 0.0
    %3192 = vmatprep.subr.mxu0 0.0
    %3193 = vmatpush1.msra.mxu0 0.0
    %3194 = vmatprep.subr.mxu0 0.0
    %3195 = vmatpush1.msra.mxu0 0.0
    %3196 = vmatprep.subr.mxu0 0.0
    %3197 = vmatpush1.msra.mxu0 0.0
    %3198 = vmatprep.subr.mxu0 0.0
    %3199 = vmatpush1.msra.mxu0 0.0
    %3200 = vmatprep.subr.mxu0 0.0
    %3201 = vmatpush1.msra.mxu0 0.0
    %3202 = vmatprep.subr.mxu0 0.0
    %3203 = vmatpush1.msra.mxu0 0.0
    %3204 = vmatprep.subr.mxu0 0.0
    %3205 = vmatpush1.msra.mxu0 0.0
    %3206 = vmatprep.subr.mxu0 0.0
    %3207 = vmatpush1.msra.mxu0 0.0
    %3208 = vmatprep.subr.mxu0 0.0
    %3209 = vmatpush1.msra.mxu0 0.0
    %3210 = vmatprep.subr.mxu0 0.0
    %3211 = vmatpush1.msra.mxu0 0.0
    %3212 = vmatprep.subr.mxu0 0.0
    %3213 = vmatpush1.msra.mxu0 0.0
    %3214 = vmatprep.subr.mxu0 0.0
    %3215 = vmatpush1.msra.mxu0 0.0
    %3216 = vmatprep.subr.mxu0 0.0
    %3217 = vmatpush1.msra.mxu0 0.0
    %3218 = vmatprep.subr.mxu0 0.0
    %3219 = vmatpush1.msra.mxu0 0.0
    %3220 = vmatprep.subr.mxu0 0.0
    %3221 = vmatpush1.msra.mxu0 0.0
    %3222 = vmatprep.subr.mxu0 0.0
    %3223 = vmatpush1.msra.mxu0 0.0
    %3224 = vmatprep.subr.mxu0 0.0
    %3225 = vmatpush1.msra.mxu0 0.0
    %3226 = vmatprep.subr.mxu0 0.0
    %3227 = vmatpush1.msra.mxu0 0.0
    %3228 = vmatprep.subr.mxu0 0.0
    %3229 = vmatpush1.msra.mxu0 0.0
    %3230 = vmatprep.subr.mxu0 0.0
    %3231 = vmatpush1.msra.mxu0 0.0
    %3232 = vmatprep.mubr.f32.mxu0 0.0
    %3233 = vmatmul.mubr.f32.gmra.mrb[0].mxu0 %v141
    %v3234 = vpop.f32.mrb[0].mxu0
    %v3235 = vadd.f32 0.0, %v3234
    %v3236 = vpop.f32.mrb[0].mxu0
    %3237 = vdwg.mxu0
    %v3238 = vadd.f32 %v3167, %v3235
    %v3239 = vxor.u32 %v3238, 2147483648
    %v3240 = vmul.f32 %v3239, 1.442695
    %v3241 = vpow.pop %v3240
    %v3242 = vadd.f32 %v3241, 1.0
    %v3243 = vrcp.pop %v3242
    %v3244 = vmul.f32 1.0, %v3243
    %3245 = vrot.lane.b32.xlu0 %v3166, 64
    %v3246 = vpop.permute.xlu0 %3245
    %v3248 = vadd.f32 %v3235, %v3246
    %3250 = vrot.lane.b32.xlu0 %v3248, 64
    %v3251 = vpop.permute.xlu0 %3250
    %v3253 = vmul.f32 %v3244, %v3251
    %3255 = vrot.lane.b32.xlu0 %v3253, 64
    %v3256 = vpop.permute.xlu0 %3255
    %v3258 = vadd.f32 %v3167, %v3256
    %v3259 = vtanh.pop %v3258
    %v3260 = vsub.f32 0.0, %v3259
    %3262 = vrot.lane.b32.xlu0 %v3260, 96
    %v3263 = vpop.permute.xlu0 %3262
    %v3265 = vmul.f32 %v3244, %v3263
    %3267 = vrot.lane.b32.xlu0 %v3265, 32
    %v3268 = vpop.permute.xlu0 %3267
    %v3270 = vadd.f32 %v3259, %v3268
    %v3271 = vld [vmem:[%s1] sm:$0x3]
    %vm3272 = vcmp.ne.f32.partialorder %v3271, 0.0
    %v3273 = vsel %vm3272, 1, 0
    %3274 = vset.pattern.permute.xlu0 0
    %3275 = vperm.xlu0 %3274, %v3273
    %v3276 = vpop.permute.xlu0 %3275
    %vm3277 = vcmp.eq.s32.totalorder %v3276, 1
    %v3278 = vsel %vm3277, %v3270, 0.0
    %v3279 = vld [vmem:[%s517] sm:$0x3]
    %3281 = vrot.lane.b32.xlu0 %v3278, 64
    %v3282 = vpop.permute.xlu0 %3281
    %v3283 = vsel %vm139, %v3282, 0
    %3285 = vmatprep.subr.mxu0 0.0
    %3286 = vmatpush1.msra.mxu0 %v3156
    %3287 = vmatprep.subr.mxu0 0.0
    %3288 = vmatpush1.msra.mxu0 %v3157
    %3289 = vmatprep.subr.mxu0 0.0
    %3290 = vmatpush1.msra.mxu0 %v3158
    %3291 = vmatprep.subr.mxu0 0.0
    %3292 = vmatpush1.msra.mxu0 %v3159
    %3293 = vmatprep.subr.mxu0 0.0
    %3294 = vmatpush1.msra.mxu0 0.0
    %3295 = vmatprep.subr.mxu0 0.0
    %3296 = vmatpush1.msra.mxu0 0.0
    %3297 = vmatprep.subr.mxu0 0.0
    %3298 = vmatpush1.msra.mxu0 0.0
    %3299 = vmatprep.subr.mxu0 0.0
    %3300 = vmatpush1.msra.mxu0 0.0
    %3301 = vmatprep.subr.mxu0 0.0
    %3302 = vmatpush1.msra.mxu0 0.0
    %3303 = vmatprep.subr.mxu0 0.0
    %3304 = vmatpush1.msra.mxu0 0.0
    %3305 = vmatprep.subr.mxu0 0.0
    %3306 = vmatpush1.msra.mxu0 0.0
    %3307 = vmatprep.subr.mxu0 0.0
    %3308 = vmatpush1.msra.mxu0 0.0
    %3309 = vmatprep.subr.mxu0 0.0
    %3310 = vmatpush1.msra.mxu0 0.0
    %3311 = vmatprep.subr.mxu0 0.0
    %3312 = vmatpush1.msra.mxu0 0.0
    %3313 = vmatprep.subr.mxu0 0.0
    %3314 = vmatpush1.msra.mxu0 0.0
    %3315 = vmatprep.subr.mxu0 0.0
    %3316 = vmatpush1.msra.mxu0 0.0
    %3317 = vmatprep.subr.mxu0 0.0
    %3318 = vmatpush1.msra.mxu0 0.0
    %3319 = vmatprep.subr.mxu0 0.0
    %3320 = vmatpush1.msra.mxu0 0.0
    %3321 = vmatprep.subr.mxu0 0.0
    %3322 = vmatpush1.msra.mxu0 0.0
    %3323 = vmatprep.subr.mxu0 0.0
    %3324 = vmatpush1.msra.mxu0 0.0
    %3325 = vmatprep.subr.mxu0 0.0
    %3326 = vmatpush1.msra.mxu0 0.0
    %3327 = vmatprep.subr.mxu0 0.0
    %3328 = vmatpush1.msra.mxu0 0.0
    %3329 = vmatprep.subr.mxu0 0.0
    %3330 = vmatpush1.msra.mxu0 0.0
    %3331 = vmatprep.subr.mxu0 0.0
    %3332 = vmatpush1.msra.mxu0 0.0
    %3333 = vmatprep.subr.mxu0 0.0
    %3334 = vmatpush1.msra.mxu0 0.0
    %3335 = vmatprep.subr.mxu0 0.0
    %3336 = vmatpush1.msra.mxu0 0.0
    %3337 = vmatprep.subr.mxu0 0.0
    %3338 = vmatpush1.msra.mxu0 0.0
    %3339 = vmatprep.subr.mxu0 0.0
    %3340 = vmatpush1.msra.mxu0 0.0
    %3341 = vmatprep.subr.mxu0 0.0
    %3342 = vmatpush1.msra.mxu0 0.0
    %3343 = vmatprep.subr.mxu0 0.0
    %3344 = vmatpush1.msra.mxu0 0.0
    %3345 = vmatprep.subr.mxu0 0.0
    %3346 = vmatpush1.msra.mxu0 0.0
    %3347 = vmatprep.subr.mxu0 0.0
    %3348 = vmatpush1.msra.mxu0 0.0
    %3349 = vmatprep.mubr.f32.mxu0 0.0
    %3350 = vmatmul.mubr.f32.gmra.mrb[0].mxu0 %v3283
    %v3351 = vpop.f32.mrb[0].mxu0
    %v3352 = vadd.f32 0.0, %v3351
    %v3353 = vpop.f32.mrb[0].mxu0
    %3354 = vdwg.mxu0
    %v3355 = vadd.f32 %v3279, %v3352
    %v3356 = vxor.u32 %v3355, 2147483648
    %v3357 = vmul.f32 %v3356, 1.442695
    %v3358 = vpow.pop %v3357
    %v3359 = vadd.f32 %v3358, 1.0
    %v3360 = vrcp.pop %v3359
    %v3361 = vmul.f32 1.0, %v3360
    %v3362 = vadd.f32 %v3352, %v3246
    %3364 = vrot.lane.b32.xlu0 %v3362, 64
    %v3365 = vpop.permute.xlu0 %3364
    %v3367 = vmul.f32 %v3361, %v3365
    %3369 = vrot.lane.b32.xlu0 %v3367, 64
    %v3370 = vpop.permute.xlu0 %3369
    %v3372 = vadd.f32 %v3279, %v3370
    %v3373 = vtanh.pop %v3372
    %v3374 = vsub.f32 %v3278, %v3373
    %3376 = vrot.lane.b32.xlu0 %v3374, 96
    %v3377 = vpop.permute.xlu0 %3376
    %v3379 = vmul.f32 %v3361, %v3377
    %3381 = vrot.lane.b32.xlu0 %v3379, 32
    %v3382 = vpop.permute.xlu0 %3381
    %v3384 = vadd.f32 %v3373, %v3382
    %v3385 = vld [vmem:[%s433] sm:$0x3]
    %vm3386 = vcmp.ne.f32.partialorder %v3385, 0.0
    %v3387 = vsel %vm3386, 1, 0
    %3388 = vset.pattern.permute.xlu0 0
    %3389 = vperm.xlu0 %3388, %v3387
    %v3390 = vpop.permute.xlu0 %3389
    %vm3391 = vcmp.eq.s32.totalorder %v3390, 1
    %v3392 = vsel %vm3391, %v3384, %v3278
    %v3393 = vld [vmem:[%s705] sm:$0x3]
    %3395 = vrot.lane.b32.xlu0 %v3392, 64
    %v3396 = vpop.permute.xlu0 %3395
    %v3397 = vsel %vm139, %v3396, 0
    %3399 = vmatprep.subr.mxu0 0.0
    %3400 = vmatpush1.msra.mxu0 %v3156
    %3401 = vmatprep.subr.mxu0 0.0
    %3402 = vmatpush1.msra.mxu0 %v3157
    %3403 = vmatprep.subr.mxu0 0.0
    %3404 = vmatpush1.msra.mxu0 %v3158
    %3405 = vmatprep.subr.mxu0 0.0
    %3406 = vmatpush1.msra.mxu0 %v3159
    %3407 = vmatprep.subr.mxu0 0.0
    %3408 = vmatpush1.msra.mxu0 0.0
    %3409 = vmatprep.subr.mxu0 0.0
    %3410 = vmatpush1.msra.mxu0 0.0
    %3411 = vmatprep.subr.mxu0 0.0
    %3412 = vmatpush1.msra.mxu0 0.0
    %3413 = vmatprep.subr.mxu0 0.0
    %3414 = vmatpush1.msra.mxu0 0.0
    %3415 = vmatprep.subr.mxu0 0.0
    %3416 = vmatpush1.msra.mxu0 0.0
    %3417 = vmatprep.subr.mxu0 0.0
    %3418 = vmatpush1.msra.mxu0 0.0
    %3419 = vmatprep.subr.mxu0 0.0
    %3420 = vmatpush1.msra.mxu0 0.0
    %3421 = vmatprep.subr.mxu0 0.0
    %3422 = vmatpush1.msra.mxu0 0.0
    %3423 = vmatprep.subr.mxu0 0.0
    %3424 = vmatpush1.msra.mxu0 0.0
    %3425 = vmatprep.subr.mxu0 0.0
    %3426 = vmatpush1.msra.mxu0 0.0
    %3427 = vmatprep.subr.mxu0 0.0
    %3428 = vmatpush1.msra.mxu0 0.0
    %3429 = vmatprep.subr.mxu0 0.0
    %3430 = vmatpush1.msra.mxu0 0.0
    %3431 = vmatprep.subr.mxu0 0.0
    %3432 = vmatpush1.msra.mxu0 0.0
    %3433 = vmatprep.subr.mxu0 0.0
    %3434 = vmatpush1.msra.mxu0 0.0
    %3435 = vmatprep.subr.mxu0 0.0
    %3436 = vmatpush1.msra.mxu0 0.0
    %3437 = vmatprep.subr.mxu0 0.0
    %3438 = vmatpush1.msra.mxu0 0.0
    %3439 = vmatprep.subr.mxu0 0.0
    %3440 = vmatpush1.msra.mxu0 0.0
    %3441 = vmatprep.subr.mxu0 0.0
    %3442 = vmatpush1.msra.mxu0 0.0
    %3443 = vmatprep.subr.mxu0 0.0
    %3444 = vmatpush1.msra.mxu0 0.0
    %3445 = vmatprep.subr.mxu0 0.0
    %3446 = vmatpush1.msra.mxu0 0.0
    %3447 = vmatprep.subr.mxu0 0.0
    %3448 = vmatpush1.msra.mxu0 0.0
    %3449 = vmatprep.subr.mxu0 0.0
    %3450 = vmatpush1.msra.mxu0 0.0
    %3451 = vmatprep.subr.mxu0 0.0
    %3452 = vmatpush1.msra.mxu0 0.0
    %3453 = vmatprep.subr.mxu0 0.0
    %3454 = vmatpush1.msra.mxu0 0.0
    %3455 = vmatprep.subr.mxu0 0.0
    %3456 = vmatpush1.msra.mxu0 0.0
    %3457 = vmatprep.subr.mxu0 0.0
    %3458 = vmatpush1.msra.mxu0 0.0
    %3459 = vmatprep.subr.mxu0 0.0
    %3460 = vmatpush1.msra.mxu0 0.0
    %3461 = vmatprep.subr.mxu0 0.0
    %3462 = vmatpush1.msra.mxu0 0.0
    %3463 = vmatprep.mubr.f32.mxu0 0.0
    %3464 = vmatmul.mubr.f32.gmra.mrb[0].mxu0 %v3397
    %v3465 = vpop.f32.mrb[0].mxu0
    %v3466 = vadd.f32 0.0, %v3465
    %v3467 = vpop.f32.mrb[0].mxu0
    %3468 = vdwg.mxu0
    %v3469 = vadd.f32 %v3393, %v3466
    %v3470 = vxor.u32 %v3469, 2147483648
    %v3471 = vmul.f32 %v3470, 1.442695
    %v3472 = vpow.pop %v3471
    %v3473 = vadd.f32 %v3472, 1.0
    %v3474 = vrcp.pop %v3473
    %v3475 = vmul.f32 1.0, %v3474
    %v3476 = vadd.f32 %v3466, %v3246
    %3478 = vrot.lane.b32.xlu0 %v3476, 64
    %v3479 = vpop.permute.xlu0 %3478
    %v3481 = vmul.f32 %v3475, %v3479
    %3483 = vrot.lane.b32.xlu0 %v3481, 64
    %v3484 = vpop.permute.xlu0 %3483
    %v3486 = vadd.f32 %v3393, %v3484
    %v3487 = vtanh.pop %v3486
    %v3488 = vsub.f32 %v3392, %v3487
    %3490 = vrot.lane.b32.xlu0 %v3488, 96
    %v3491 = vpop.permute.xlu0 %3490
    %v3493 = vmul.f32 %v3475, %v3491
    %3495 = vrot.lane.b32.xlu0 %v3493, 32
    %v3496 = vpop.permute.xlu0 %3495
    %v3498 = vadd.f32 %v3487, %v3496
    %v3499 = vld [vmem:[%s621] sm:$0x3]
    %vm3500 = vcmp.ne.f32.partialorder %v3499, 0.0
    %v3501 = vsel %vm3500, 1, 0
    %3502 = vset.pattern.permute.xlu0 0
    %3503 = vperm.xlu0 %3502, %v3501
    %v3504 = vpop.permute.xlu0 %3503
    %vm3505 = vcmp.eq.s32.totalorder %v3504, 1
    %v3506 = vsel %vm3505, %v3498, %v3392
    %v3507 = vld [vmem:[%s893] sm:$0x3]
    %3509 = vrot.lane.b32.xlu0 %v3506, 64
    %v3510 = vpop.permute.xlu0 %3509
    %v3511 = vsel %vm139, %v3510, 0
    %3513 = vmatprep.subr.mxu0 0.0
    %3514 = vmatpush1.msra.mxu0 %v3156
    %3515 = vmatprep.subr.mxu0 0.0
    %3516 = vmatpush1.msra.mxu0 %v3157
    %3517 = vmatprep.subr.mxu0 0.0
    %3518 = vmatpush1.msra.mxu0 %v3158
    %3519 = vmatprep.subr.mxu0 0.0
    %3520 = vmatpush1.msra.mxu0 %v3159
    %3521 = vmatprep.subr.mxu0 0.0
    %3522 = vmatpush1.msra.mxu0 0.0
    %3523 = vmatprep.subr.mxu0 0.0
    %3524 = vmatpush1.msra.mxu0 0.0
    %3525 = vmatprep.subr.mxu0 0.0
    %3526 = vmatpush1.msra.mxu0 0.0
    %3527 = vmatprep.subr.mxu0 0.0
    %3528 = vmatpush1.msra.mxu0 0.0
    %3529 = vmatprep.subr.mxu0 0.0
    %3530 = vmatpush1.msra.mxu0 0.0
    %3531 = vmatprep.subr.mxu0 0.0
    %3532 = vmatpush1.msra.mxu0 0.0
    %3533 = vmatprep.subr.mxu0 0.0
    %3534 = vmatpush1.msra.mxu0 0.0
    %3535 = vmatprep.subr.mxu0 0.0
    %3536 = vmatpush1.msra.mxu0 0.0
    %3537 = vmatprep.subr.mxu0 0.0
    %3538 = vmatpush1.msra.mxu0 0.0
    %3539 = vmatprep.subr.mxu0 0.0
    %3540 = vmatpush1.msra.mxu0 0.0
    %3541 = vmatprep.subr.mxu0 0.0
    %3542 = vmatpush1.msra.mxu0 0.0
    %3543 = vmatprep.subr.mxu0 0.0
    %3544 = vmatpush1.msra.mxu0 0.0
    %3545 = vmatprep.subr.mxu0 0.0
    %3546 = vmatpush1.msra.mxu0 0.0
    %3547 = vmatprep.subr.mxu0 0.0
    %3548 = vmatpush1.msra.mxu0 0.0
    %3549 = vmatprep.subr.mxu0 0.0
    %3550 = vmatpush1.msra.mxu0 0.0
    %3551 = vmatprep.subr.mxu0 0.0
    %3552 = vmatpush1.msra.mxu0 0.0
    %3553 = vmatprep.subr.mxu0 0.0
    %3554 = vmatpush1.msra.mxu0 0.0
    %3555 = vmatprep.subr.mxu0 0.0
    %3556 = vmatpush1.msra.mxu0 0.0
    %3557 = vmatprep.subr.mxu0 0.0
    %3558 = vmatpush1.msra.mxu0 0.0
    %3559 = vmatprep.subr.mxu0 0.0
    %3560 = vmatpush1.msra.mxu0 0.0
    %3561 = vmatprep.subr.mxu0 0.0
    %3562 = vmatpush1.msra.mxu0 0.0
    %3563 = vmatprep.subr.mxu0 0.0
    %3564 = vmatpush1.msra.mxu0 0.0
    %3565 = vmatprep.subr.mxu0 0.0
    %3566 = vmatpush1.msra.mxu0 0.0
    %3567 = vmatprep.subr.mxu0 0.0
    %3568 = vmatpush1.msra.mxu0 0.0
    %3569 = vmatprep.subr.mxu0 0.0
    %3570 = vmatpush1.msra.mxu0 0.0
    %3571 = vmatprep.subr.mxu0 0.0
    %3572 = vmatpush1.msra.mxu0 0.0
    %3573 = vmatprep.subr.mxu0 0.0
    %3574 = vmatpush1.msra.mxu0 0.0
    %3575 = vmatprep.subr.mxu0 0.0
    %3576 = vmatpush1.msra.mxu0 0.0
    %3577 = vmatprep.mubr.f32.mxu0 0.0
    %3578 = vmatmul.mubr.f32.gmra.mrb[0].mxu0 %v3511
    %v3579 = vpop.f32.mrb[0].mxu0
    %v3580 = vadd.f32 0.0, %v3579
    %v3581 = vpop.f32.mrb[0].mxu0
    %3582 = vdwg.mxu0
    %v3583 = vadd.f32 %v3507, %v3580
    %v3584 = vxor.u32 %v3583, 2147483648
    %v3585 = vmul.f32 %v3584, 1.442695
    %v3586 = vpow.pop %v3585
    %v3587 = vadd.f32 %v3586, 1.0
    %v3588 = vrcp.pop %v3587
    %v3589 = vmul.f32 1.0, %v3588
    %v3590 = vadd.f32 %v3580, %v3246
    %3592 = vrot.lane.b32.xlu0 %v3590, 64
    %v3593 = vpop.permute.xlu0 %3592
    %v3595 = vmul.f32 %v3589, %v3593
    %3597 = vrot.lane.b32.xlu0 %v3595, 64
    %v3598 = vpop.permute.xlu0 %3597
    %v3600 = vadd.f32 %v3507, %v3598
    %v3601 = vtanh.pop %v3600
    %v3602 = vsub.f32 %v3506, %v3601
    %3604 = vrot.lane.b32.xlu0 %v3602, 96
    %v3605 = vpop.permute.xlu0 %3604
    %v3607 = vmul.f32 %v3589, %v3605
    %3609 = vrot.lane.b32.xlu0 %v3607, 32
    %v3610 = vpop.permute.xlu0 %3609
    %v3612 = vadd.f32 %v3601, %v3610
    %v3613 = vld [vmem:[%s809] sm:$0x3]
    %vm3614 = vcmp.ne.f32.partialorder %v3613, 0.0
    %v3615 = vsel %vm3614, 1, 0
    %3616 = vset.pattern.permute.xlu0 0
    %3617 = vperm.xlu0 %3616, %v3615
    %v3618 = vpop.permute.xlu0 %3617
    %vm3619 = vcmp.eq.s32.totalorder %v3618, 1
    %v3620 = vsel %vm3619, %v3612, %v3506
    %v3621 = vld [vmem:[%s1081] sm:$0x3]
    %3623 = vrot.lane.b32.xlu0 %v3620, 64
    %v3624 = vpop.permute.xlu0 %3623
    %v3625 = vsel %vm139, %v3624, 0
    %3627 = vmatprep.subr.mxu0 0.0
    %3628 = vmatpush1.msra.mxu0 %v3156
    %3629 = vmatprep.subr.mxu0 0.0
    %3630 = vmatpush1.msra.mxu0 %v3157
    %3631 = vmatprep.subr.mxu0 0.0
    %3632 = vmatpush1.msra.mxu0 %v3158
    %3633 = vmatprep.subr.mxu0 0.0
    %3634 = vmatpush1.msra.mxu0 %v3159
    %3635 = vmatprep.subr.mxu0 0.0
    %3636 = vmatpush1.msra.mxu0 0.0
    %3637 = vmatprep.subr.mxu0 0.0
    %3638 = vmatpush1.msra.mxu0 0.0
    %3639 = vmatprep.subr.mxu0 0.0
    %3640 = vmatpush1.msra.mxu0 0.0
    %3641 = vmatprep.subr.mxu0 0.0
    %3642 = vmatpush1.msra.mxu0 0.0
    %3643 = vmatprep.subr.mxu0 0.0
    %3644 = vmatpush1.msra.mxu0 0.0
    %3645 = vmatprep.subr.mxu0 0.0
    %3646 = vmatpush1.msra.mxu0 0.0
    %3647 = vmatprep.subr.mxu0 0.0
    %3648 = vmatpush1.msra.mxu0 0.0
    %3649 = vmatprep.subr.mxu0 0.0
    %3650 = vmatpush1.msra.mxu0 0.0
    %3651 = vmatprep.subr.mxu0 0.0
    %3652 = vmatpush1.msra.mxu0 0.0
    %3653 = vmatprep.subr.mxu0 0.0
    %3654 = vmatpush1.msra.mxu0 0.0
    %3655 = vmatprep.subr.mxu0 0.0
    %3656 = vmatpush1.msra.mxu0 0.0
    %3657 = vmatprep.subr.mxu0 0.0
    %3658 = vmatpush1.msra.mxu0 0.0
    %3659 = vmatprep.subr.mxu0 0.0
    %3660 = vmatpush1.msra.mxu0 0.0
    %3661 = vmatprep.subr.mxu0 0.0
    %3662 = vmatpush1.msra.mxu0 0.0
    %3663 = vmatprep.subr.mxu0 0.0
    %3664 = vmatpush1.msra.mxu0 0.0
    %3665 = vmatprep.subr.mxu0 0.0
    %3666 = vmatpush1.msra.mxu0 0.0
    %3667 = vmatprep.subr.mxu0 0.0
    %3668 = vmatpush1.msra.mxu0 0.0
    %3669 = vmatprep.subr.mxu0 0.0
    %3670 = vmatpush1.msra.mxu0 0.0
    %3671 = vmatprep.subr.mxu0 0.0
    %3672 = vmatpush1.msra.mxu0 0.0
    %3673 = vmatprep.subr.mxu0 0.0
    %3674 = vmatpush1.msra.mxu0 0.0
    %3675 = vmatprep.subr.mxu0 0.0
    %3676 = vmatpush1.msra.mxu0 0.0
    %3677 = vmatprep.subr.mxu0 0.0
    %3678 = vmatpush1.msra.mxu0 0.0
    %3679 = vmatprep.subr.mxu0 0.0
    %3680 = vmatpush1.msra.mxu0 0.0
    %3681 = vmatprep.subr.mxu0 0.0
    %3682 = vmatpush1.msra.mxu0 0.0
    %3683 = vmatprep.subr.mxu0 0.0
    %3684 = vmatpush1.msra.mxu0 0.0
    %3685 = vmatprep.subr.mxu0 0.0
    %3686 = vmatpush1.msra.mxu0 0.0
    %3687 = vmatprep.subr.mxu0 0.0
    %3688 = vmatpush1.msra.mxu0 0.0
    %3689 = vmatprep.subr.mxu0 0.0
    %3690 = vmatpush1.msra.mxu0 0.0
    %3691 = vmatprep.mubr.f32.mxu0 0.0
    %3692 = vmatmul.mubr.f32.gmra.mrb[0].mxu0 %v3625
    %v3693 = vpop.f32.mrb[0].mxu0
    %v3694 = vadd.f32 0.0, %v3693
    %v3695 = vpop.f32.mrb[0].mxu0
    %3696 = vdwg.mxu0
    %v3697 = vadd.f32 %v3621, %v3694
    %v3698 = vxor.u32 %v3697, 2147483648
    %v3699 = vmul.f32 %v3698, 1.442695
    %v3700 = vpow.pop %v3699
    %v3701 = vadd.f32 %v3700, 1.0
    %v3702 = vrcp.pop %v3701
    %v3703 = vmul.f32 1.0, %v3702
    %v3704 = vadd.f32 %v3694, %v3246
    %3706 = vrot.lane.b32.xlu0 %v3704, 64
    %v3707 = vpop.permute.xlu0 %3706
    %v3709 = vmul.f32 %v3703, %v3707
    %3711 = vrot.lane.b32.xlu0 %v3709, 64
    %v3712 = vpop.permute.xlu0 %3711
    %v3714 = vadd.f32 %v3621, %v3712
    %v3715 = vtanh.pop %v3714
    %v3716 = vsub.f32 %v3620, %v3715
    %3718 = vrot.lane.b32.xlu0 %v3716, 96
    %v3719 = vpop.permute.xlu0 %3718
    %v3721 = vmul.f32 %v3703, %v3719
    %3723 = vrot.lane.b32.xlu0 %v3721, 32
    %v3724 = vpop.permute.xlu0 %3723
    %v3726 = vadd.f32 %v3715, %v3724
    %v3727 = vld [vmem:[%s997] sm:$0x3]
    %vm3728 = vcmp.ne.f32.partialorder %v3727, 0.0
    %v3729 = vsel %vm3728, 1, 0
    %3730 = vset.pattern.permute.xlu0 0
    %3731 = vperm.xlu0 %3730, %v3729
    %v3732 = vpop.permute.xlu0 %3731
    %vm3733 = vcmp.eq.s32.totalorder %v3732, 1
    %v3734 = vsel %vm3733, %v3726, %v3620
    %v3735 = vld [vmem:[%s1269] sm:$0x3]
    %3737 = vrot.lane.b32.xlu0 %v3734, 64
    %v3738 = vpop.permute.xlu0 %3737
    %v3739 = vsel %vm139, %v3738, 0
    %3741 = vmatprep.subr.mxu0 0.0
    %3742 = vmatpush1.msra.mxu0 %v3156
    %3743 = vmatprep.subr.mxu0 0.0
    %3744 = vmatpush1.msra.mxu0 %v3157
    %3745 = vmatprep.subr.mxu0 0.0
    %3746 = vmatpush1.msra.mxu0 %v3158
    %3747 = vmatprep.subr.mxu0 0.0
    %3748 = vmatpush1.msra.mxu0 %v3159
    %3749 = vmatprep.subr.mxu0 0.0
    %3750 = vmatpush1.msra.mxu0 0.0
    %3751 = vmatprep.subr.mxu0 0.0
    %3752 = vmatpush1.msra.mxu0 0.0
    %3753 = vmatprep.subr.mxu0 0.0
    %3754 = vmatpush1.msra.mxu0 0.0
    %3755 = vmatprep.subr.mxu0 0.0
    %3756 = vmatpush1.msra.mxu0 0.0
    %3757 = vmatprep.subr.mxu0 0.0
    %3758 = vmatpush1.msra.mxu0 0.0
    %3759 = vmatprep.subr.mxu0 0.0
    %3760 = vmatpush1.msra.mxu0 0.0
    %3761 = vmatprep.subr.mxu0 0.0
    %3762 = vmatpush1.msra.mxu0 0.0
    %3763 = vmatprep.subr.mxu0 0.0
    %3764 = vmatpush1.msra.mxu0 0.0
    %3765 = vmatprep.subr.mxu0 0.0
    %3766 = vmatpush1.msra.mxu0 0.0
    %3767 = vmatprep.subr.mxu0 0.0
    %3768 = vmatpush1.msra.mxu0 0.0
    %3769 = vmatprep.subr.mxu0 0.0
    %3770 = vmatpush1.msra.mxu0 0.0
    %3771 = vmatprep.subr.mxu0 0.0
    %3772 = vmatpush1.msra.mxu0 0.0
    %3773 = vmatprep.subr.mxu0 0.0
    %3774 = vmatpush1.msra.mxu0 0.0
    %3775 = vmatprep.subr.mxu0 0.0
    %3776 = vmatpush1.msra.mxu0 0.0
    %3777 = vmatprep.subr.mxu0 0.0
    %3778 = vmatpush1.msra.mxu0 0.0
    %3779 = vmatprep.subr.mxu0 0.0
    %3780 = vmatpush1.msra.mxu0 0.0
    %3781 = vmatprep.subr.mxu0 0.0
    %3782 = vmatpush1.msra.mxu0 0.0
    %3783 = vmatprep.subr.mxu0 0.0
    %3784 = vmatpush1.msra.mxu0 0.0
    %3785 = vmatprep.subr.mxu0 0.0
    %3786 = vmatpush1.msra.mxu0 0.0
    %3787 = vmatprep.subr.mxu0 0.0
    %3788 = vmatpush1.msra.mxu0 0.0
    %3789 = vmatprep.subr.mxu0 0.0
    %3790 = vmatpush1.msra.mxu0 0.0
    %3791 = vmatprep.subr.mxu0 0.0
    %3792 = vmatpush1.msra.mxu0 0.0
    %3793 = vmatprep.subr.mxu0 0.0
    %3794 = vmatpush1.msra.mxu0 0.0
    %3795 = vmatprep.subr.mxu0 0.0
    %3796 = vmatpush1.msra.mxu0 0.0
    %3797 = vmatprep.subr.mxu0 0.0
    %3798 = vmatpush1.msra.mxu0 0.0
    %3799 = vmatprep.subr.mxu0 0.0
    %3800 = vmatpush1.msra.mxu0 0.0
    %3801 = vmatprep.subr.mxu0 0.0
    %3802 = vmatpush1.msra.mxu0 0.0
    %3803 = vmatprep.subr.mxu0 0.0
    %3804 = vmatpush1.msra.mxu0 0.0
    %3805 = vmatprep.mubr.f32.mxu0 0.0
    %3806 = vmatmul.mubr.f32.gmra.mrb[0].mxu0 %v3739
    %v3807 = vpop.f32.mrb[0].mxu0
    %v3808 = vadd.f32 0.0, %v3807
    %v3809 = vpop.f32.mrb[0].mxu0
    %3810 = vdwg.mxu0
    %v3811 = vadd.f32 %v3735, %v3808
    %v3812 = vxor.u32 %v3811, 2147483648
    %v3813 = vmul.f32 %v3812, 1.442695
    %v3814 = vpow.pop %v3813
    %v3815 = vadd.f32 %v3814, 1.0
    %v3816 = vrcp.pop %v3815
    %v3817 = vmul.f32 1.0, %v3816
    %v3818 = vadd.f32 %v3808, %v3246
    %3820 = vrot.lane.b32.xlu0 %v3818, 64
    %v3821 = vpop.permute.xlu0 %3820
    %v3823 = vmul.f32 %v3817, %v3821
    %3825 = vrot.lane.b32.xlu0 %v3823, 64
    %v3826 = vpop.permute.xlu0 %3825
    %v3828 = vadd.f32 %v3735, %v3826
    %v3829 = vtanh.pop %v3828
    %v3830 = vsub.f32 %v3734, %v3829
    %3832 = vrot.lane.b32.xlu0 %v3830, 96
    %v3833 = vpop.permute.xlu0 %3832
    %v3835 = vmul.f32 %v3817, %v3833
    %3837 = vrot.lane.b32.xlu0 %v3835, 32
    %v3838 = vpop.permute.xlu0 %3837
    %v3840 = vadd.f32 %v3829, %v3838
    %v3841 = vld [vmem:[%s1185] sm:$0x3]
    %vm3842 = vcmp.ne.f32.partialorder %v3841, 0.0
    %v3843 = vsel %vm3842, 1, 0
    %3844 = vset.pattern.permute.xlu0 0
    %3845 = vperm.xlu0 %3844, %v3843
    %v3846 = vpop.permute.xlu0 %3845
    %vm3847 = vcmp.eq.s32.totalorder %v3846, 1
    %v3848 = vsel %vm3847, %v3840, %v3734
    %v3849 = vld [vmem:[%s1457] sm:$0x3]
    %3851 = vrot.lane.b32.xlu0 %v3848, 64
    %v3852 = vpop.permute.xlu0 %3851
    %v3853 = vsel %vm139, %v3852, 0
    %3855 = vmatprep.subr.mxu0 0.0
    %3856 = vmatpush1.msra.mxu0 %v3156
    %3857 = vmatprep.subr.mxu0 0.0
    %3858 = vmatpush1.msra.mxu0 %v3157
    %3859 = vmatprep.subr.mxu0 0.0
    %3860 = vmatpush1.msra.mxu0 %v3158
    %3861 = vmatprep.subr.mxu0 0.0
    %3862 = vmatpush1.msra.mxu0 %v3159
    %3863 = vmatprep.subr.mxu0 0.0
    %3864 = vmatpush1.msra.mxu0 0.0
    %3865 = vmatprep.subr.mxu0 0.0
    %3866 = vmatpush1.msra.mxu0 0.0
    %3867 = vmatprep.subr.mxu0 0.0
    %3868 = vmatpush1.msra.mxu0 0.0
    %3869 = vmatprep.subr.mxu0 0.0
    %3870 = vmatpush1.msra.mxu0 0.0
    %3871 = vmatprep.subr.mxu0 0.0
    %3872 = vmatpush1.msra.mxu0 0.0
    %3873 = vmatprep.subr.mxu0 0.0
    %3874 = vmatpush1.msra.mxu0 0.0
    %3875 = vmatprep.subr.mxu0 0.0
    %3876 = vmatpush1.msra.mxu0 0.0
    %3877 = vmatprep.subr.mxu0 0.0
    %3878 = vmatpush1.msra.mxu0 0.0
    %3879 = vmatprep.subr.mxu0 0.0
    %3880 = vmatpush1.msra.mxu0 0.0
    %3881 = vmatprep.subr.mxu0 0.0
    %3882 = vmatpush1.msra.mxu0 0.0
    %3883 = vmatprep.subr.mxu0 0.0
    %3884 = vmatpush1.msra.mxu0 0.0
    %3885 = vmatprep.subr.mxu0 0.0
    %3886 = vmatpush1.msra.mxu0 0.0
    %3887 = vmatprep.subr.mxu0 0.0
    %3888 = vmatpush1.msra.mxu0 0.0
    %3889 = vmatprep.subr.mxu0 0.0
    %3890 = vmatpush1.msra.mxu0 0.0
    %3891 = vmatprep.subr.mxu0 0.0
    %3892 = vmatpush1.msra.mxu0 0.0
    %3893 = vmatprep.subr.mxu0 0.0
    %3894 = vmatpush1.msra.mxu0 0.0
    %3895 = vmatprep.subr.mxu0 0.0
    %3896 = vmatpush1.msra.mxu0 0.0
    %3897 = vmatprep.subr.mxu0 0.0
    %3898 = vmatpush1.msra.mxu0 0.0
    %3899 = vmatprep.subr.mxu0 0.0
    %3900 = vmatpush1.msra.mxu0 0.0
    %3901 = vmatprep.subr.mxu0 0.0
    %3902 = vmatpush1.msra.mxu0 0.0
    %3903 = vmatprep.subr.mxu0 0.0
    %3904 = vmatpush1.msra.mxu0 0.0
    %3905 = vmatprep.subr.mxu0 0.0
    %3906 = vmatpush1.msra.mxu0 0.0
    %3907 = vmatprep.subr.mxu0 0.0
    %3908 = vmatpush1.msra.mxu0 0.0
    %3909 = vmatprep.subr.mxu0 0.0
    %3910 = vmatpush1.msra.mxu0 0.0
    %3911 = vmatprep.subr.mxu0 0.0
    %3912 = vmatpush1.msra.mxu0 0.0
    %3913 = vmatprep.subr.mxu0 0.0
    %3914 = vmatpush1.msra.mxu0 0.0
    %3915 = vmatprep.subr.mxu0 0.0
    %3916 = vmatpush1.msra.mxu0 0.0
    %3917 = vmatprep.subr.mxu0 0.0
    %3918 = vmatpush1.msra.mxu0 0.0
    %3919 = vmatprep.mubr.f32.mxu0 0.0
    %3920 = vmatmul.mubr.f32.gmra.mrb[0].mxu0 %v3853
    %v3921 = vpop.f32.mrb[0].mxu0
    %v3922 = vadd.f32 0.0, %v3921
    %v3923 = vpop.f32.mrb[0].mxu0
    %3924 = vdwg.mxu0
    %v3925 = vadd.f32 %v3849, %v3922
    %v3926 = vxor.u32 %v3925, 2147483648
    %v3927 = vmul.f32 %v3926, 1.442695
    %v3928 = vpow.pop %v3927
    %v3929 = vadd.f32 %v3928, 1.0
    %v3930 = vrcp.pop %v3929
    %v3931 = vmul.f32 1.0, %v3930
    %v3932 = vadd.f32 %v3922, %v3246
    %3934 = vrot.lane.b32.xlu0 %v3932, 64
    %v3935 = vpop.permute.xlu0 %3934
    %v3937 = vmul.f32 %v3931, %v3935
    %3939 = vrot.lane.b32.xlu0 %v3937, 64
    %v3940 = vpop.permute.xlu0 %3939
    %v3942 = vadd.f32 %v3849, %v3940
    %v3943 = vtanh.pop %v3942
    %v3944 = vsub.f32 %v3848, %v3943
    %3946 = vrot.lane.b32.xlu0 %v3944, 96
    %v3947 = vpop.permute.xlu0 %3946
    %v3949 = vmul.f32 %v3931, %v3947
    %3951 = vrot.lane.b32.xlu0 %v3949, 32
    %v3952 = vpop.permute.xlu0 %3951
    %v3954 = vadd.f32 %v3943, %v3952
    %v3955 = vld [vmem:[%s1373] sm:$0x3]
    %vm3956 = vcmp.ne.f32.partialorder %v3955, 0.0
    %v3957 = vsel %vm3956, 1, 0
    %3958 = vset.pattern.permute.xlu0 0
    %3959 = vperm.xlu0 %3958, %v3957
    %v3960 = vpop.permute.xlu0 %3959
    %vm3961 = vcmp.eq.s32.totalorder %v3960, 1
    %v3962 = vsel %vm3961, %v3954, %v3848
    %v3963 = vld [vmem:[%s1645] sm:$0x3]
    %3965 = vrot.lane.b32.xlu0 %v3962, 64
    %v3966 = vpop.permute.xlu0 %3965
    %v3967 = vsel %vm139, %v3966, 0
    %3969 = vmatprep.subr.mxu0 0.0
    %3970 = vmatpush1.msra.mxu0 %v3156
    %3971 = vmatprep.subr.mxu0 0.0
    %3972 = vmatpush1.msra.mxu0 %v3157
    %3973 = vmatprep.subr.mxu0 0.0
    %3974 = vmatpush1.msra.mxu0 %v3158
    %3975 = vmatprep.subr.mxu0 0.0
    %3976 = vmatpush1.msra.mxu0 %v3159
    %3977 = vmatprep.subr.mxu0 0.0
    %3978 = vmatpush1.msra.mxu0 0.0
    %3979 = vmatprep.subr.mxu0 0.0
    %3980 = vmatpush1.msra.mxu0 0.0
    %3981 = vmatprep.subr.mxu0 0.0
    %3982 = vmatpush1.msra.mxu0 0.0
    %3983 = vmatprep.subr.mxu0 0.0
    %3984 = vmatpush1.msra.mxu0 0.0
    %3985 = vmatprep.subr.mxu0 0.0
    %3986 = vmatpush1.msra.mxu0 0.0
    %3987 = vmatprep.subr.mxu0 0.0
    %3988 = vmatpush1.msra.mxu0 0.0
    %3989 = vmatprep.subr.mxu0 0.0
    %3990 = vmatpush1.msra.mxu0 0.0
    %3991 = vmatprep.subr.mxu0 0.0
    %3992 = vmatpush1.msra.mxu0 0.0
    %3993 = vmatprep.subr.mxu0 0.0
    %3994 = vmatpush1.msra.mxu0 0.0
    %3995 = vmatprep.subr.mxu0 0.0
    %3996 = vmatpush1.msra.mxu0 0.0
    %3997 = vmatprep.subr.mxu0 0.0
    %3998 = vmatpush1.msra.mxu0 0.0
    %3999 = vmatprep.subr.mxu0 0.0
    %4000 = vmatpush1.msra.mxu0 0.0
    %4001 = vmatprep.subr.mxu0 0.0
    %4002 = vmatpush1.msra.mxu0 0.0
    %4003 = vmatprep.subr.mxu0 0.0
    %4004 = vmatpush1.msra.mxu0 0.0
    %4005 = vmatprep.subr.mxu0 0.0
    %4006 = vmatpush1.msra.mxu0 0.0
    %4007 = vmatprep.subr.mxu0 0.0
    %4008 = vmatpush1.msra.mxu0 0.0
    %4009 = vmatprep.subr.mxu0 0.0
    %4010 = vmatpush1.msra.mxu0 0.0
    %4011 = vmatprep.subr.mxu0 0.0
    %4012 = vmatpush1.msra.mxu0 0.0
    %4013 = vmatprep.subr.mxu0 0.0
    %4014 = vmatpush1.msra.mxu0 0.0
    %4015 = vmatprep.subr.mxu0 0.0
    %4016 = vmatpush1.msra.mxu0 0.0
    %4017 = vmatprep.subr.mxu0 0.0
    %4018 = vmatpush1.msra.mxu0 0.0
    %4019 = vmatprep.subr.mxu0 0.0
    %4020 = vmatpush1.msra.mxu0 0.0
    %4021 = vmatprep.subr.mxu0 0.0
    %4022 = vmatpush1.msra.mxu0 0.0
    %4023 = vmatprep.subr.mxu0 0.0
    %4024 = vmatpush1.msra.mxu0 0.0
    %4025 = vmatprep.subr.mxu0 0.0
    %4026 = vmatpush1.msra.mxu0 0.0
    %4027 = vmatprep.subr.mxu0 0.0
    %4028 = vmatpush1.msra.mxu0 0.0
    %4029 = vmatprep.subr.mxu0 0.0
    %4030 = vmatpush1.msra.mxu0 0.0
    %4031 = vmatprep.subr.mxu0 0.0
    %4032 = vmatpush1.msra.mxu0 0.0
    %4033 = vmatprep.mubr.f32.mxu0 0.0
    %4034 = vmatmul.mubr.f32.gmra.mrb[0].mxu0 %v3967
    %v4035 = vpop.f32.mrb[0].mxu0
    %v4036 = vadd.f32 0.0, %v4035
    %v4037 = vpop.f32.mrb[0].mxu0
    %4038 = vdwg.mxu0
    %v4039 = vadd.f32 %v3963, %v4036
    %v4040 = vxor.u32 %v4039, 2147483648
    %v4041 = vmul.f32 %v4040, 1.442695
    %v4042 = vpow.pop %v4041
    %v4043 = vadd.f32 %v4042, 1.0
    %v4044 = vrcp.pop %v4043
    %v4045 = vmul.f32 1.0, %v4044
    %v4046 = vadd.f32 %v4036, %v3246
    %4048 = vrot.lane.b32.xlu0 %v4046, 64
    %v4049 = vpop.permute.xlu0 %4048
    %v4051 = vmul.f32 %v4045, %v4049
    %4053 = vrot.lane.b32.xlu0 %v4051, 64
    %v4054 = vpop.permute.xlu0 %4053
    %v4056 = vadd.f32 %v3963, %v4054
    %v4057 = vtanh.pop %v4056
    %v4058 = vsub.f32 %v3962, %v4057
    %4060 = vrot.lane.b32.xlu0 %v4058, 96
    %v4061 = vpop.permute.xlu0 %4060
    %v4063 = vmul.f32 %v4045, %v4061
    %4065 = vrot.lane.b32.xlu0 %v4063, 32
    %v4066 = vpop.permute.xlu0 %4065
    %v4068 = vadd.f32 %v4057, %v4066
    %v4069 = vld [vmem:[%s1561] sm:$0x3]
    %vm4070 = vcmp.ne.f32.partialorder %v4069, 0.0
    %v4071 = vsel %vm4070, 1, 0
    %4072 = vset.pattern.permute.xlu0 0
    %4073 = vperm.xlu0 %4072, %v4071
    %v4074 = vpop.permute.xlu0 %4073
    %vm4075 = vcmp.eq.s32.totalorder %v4074, 1
    %v4076 = vsel %vm4075, %v4068, %v3962
    %v4077 = vld [vmem:[#allocation8] sm:$0xff]
    %v4078 = vld [vmem:[#allocation8 + $0x8] sm:$0xff]
    %v4079 = vld [vmem:[#allocation8 + $0x10] sm:$0xff]
    %v4080 = vld [vmem:[#allocation8 + $0x18] sm:$0xff]
    %v4081 = vld [vmem:[%s6] sm:$0x3]
    %4083 = vrot.lane.b32.xlu0 %v4076, 64
    %v4084 = vpop.permute.xlu0 %4083
    %v4085 = vsel %vm139, %v4084, 0
    %4087 = vmatprep.subr.mxu0 0.0
    %4088 = vmatpush1.msra.mxu0 %v4077
    %4089 = vmatprep.subr.mxu0 0.0
    %4090 = vmatpush1.msra.mxu0 %v4078
    %4091 = vmatprep.subr.mxu0 0.0
    %4092 = vmatpush1.msra.mxu0 %v4079
    %4093 = vmatprep.subr.mxu0 0.0
    %4094 = vmatpush1.msra.mxu0 %v4080
    %4095 = vmatprep.subr.mxu0 0.0
    %4096 = vmatpush1.msra.mxu0 0.0
    %4097 = vmatprep.subr.mxu0 0.0
    %4098 = vmatpush1.msra.mxu0 0.0
    %4099 = vmatprep.subr.mxu0 0.0
    %4100 = vmatpush1.msra.mxu0 0.0
    %4101 = vmatprep.subr.mxu0 0.0
    %4102 = vmatpush1.msra.mxu0 0.0
    %4103 = vmatprep.subr.mxu0 0.0
    %4104 = vmatpush1.msra.mxu0 0.0
    %4105 = vmatprep.subr.mxu0 0.0
    %4106 = vmatpush1.msra.mxu0 0.0
    %4107 = vmatprep.subr.mxu0 0.0
    %4108 = vmatpush1.msra.mxu0 0.0
    %4109 = vmatprep.subr.mxu0 0.0
    %4110 = vmatpush1.msra.mxu0 0.0
    %4111 = vmatprep.subr.mxu0 0.0
    %4112 = vmatpush1.msra.mxu0 0.0
    %4113 = vmatprep.subr.mxu0 0.0
    %4114 = vmatpush1.msra.mxu0 0.0
    %4115 = vmatprep.subr.mxu0 0.0
    %4116 = vmatpush1.msra.mxu0 0.0
    %4117 = vmatprep.subr.mxu0 0.0
    %4118 = vmatpush1.msra.mxu0 0.0
    %4119 = vmatprep.subr.mxu0 0.0
    %4120 = vmatpush1.msra.mxu0 0.0
    %4121 = vmatprep.subr.mxu0 0.0
    %4122 = vmatpush1.msra.mxu0 0.0
    %4123 = vmatprep.subr.mxu0 0.0
    %4124 = vmatpush1.msra.mxu0 0.0
    %4125 = vmatprep.subr.mxu0 0.0
    %4126 = vmatpush1.msra.mxu0 0.0
    %4127 = vmatprep.subr.mxu0 0.0
    %4128 = vmatpush1.msra.mxu0 0.0
    %4129 = vmatprep.subr.mxu0 0.0
    %4130 = vmatpush1.msra.mxu0 0.0
    %4131 = vmatprep.subr.mxu0 0.0
    %4132 = vmatpush1.msra.mxu0 0.0
    %4133 = vmatprep.subr.mxu0 0.0
    %4134 = vmatpush1.msra.mxu0 0.0
    %4135 = vmatprep.subr.mxu0 0.0
    %4136 = vmatpush1.msra.mxu0 0.0
    %4137 = vmatprep.subr.mxu0 0.0
    %4138 = vmatpush1.msra.mxu0 0.0
    %4139 = vmatprep.subr.mxu0 0.0
    %4140 = vmatpush1.msra.mxu0 0.0
    %4141 = vmatprep.subr.mxu0 0.0
    %4142 = vmatpush1.msra.mxu0 0.0
    %4143 = vmatprep.subr.mxu0 0.0
    %4144 = vmatpush1.msra.mxu0 0.0
    %4145 = vmatprep.subr.mxu0 0.0
    %4146 = vmatpush1.msra.mxu0 0.0
    %4147 = vmatprep.subr.mxu0 0.0
    %4148 = vmatpush1.msra.mxu0 0.0
    %4149 = vmatprep.subr.mxu0 0.0
    %4150 = vmatpush1.msra.mxu0 0.0
    %4151 = vmatprep.mubr.f32.mxu0 0.0
    %4152 = vmatmul.mubr.f32.gmra.mrb[0].mxu0 %v4085
    %v4153 = vpop.f32.mrb[0].mxu0
    %v4154 = vadd.f32 %v4081, %v4153
    %v4155 = vpop.f32.mrb[0].mxu0
    %4156 = vdwg.mxu0
    %v4157 = vmax.f32 %v4154, 0.0
    %v4158 = vld [vmem:[#allocation9] sm:$0xff]
    %v4159 = vld [vmem:[#allocation9 + $0x8] sm:$0xff]
    %v4160 = vld [vmem:[#allocation9 + $0x10] sm:$0xff]
    %v4161 = vld [vmem:[#allocation9 + $0x18] sm:$0xff]
    %v4162 = vld [vmem:[%s9] sm:$0x1]
    %v4164 = vlaneseq
    %v4165 = vshrl.u32 %v4164, 7
    %v4166 = vsub.s32 0, %v4165
    %v4167 = vrot.slane %v4162, %v4166
    %v4170 = vsel %vm139, %v4157, 0
    %4172 = vmatprep.subr.mxu0 0.0
    %4173 = vmatpush1.msra.mxu0 %v4158
    %4174 = vmatprep.subr.mxu0 0.0
    %4175 = vmatpush1.msra.mxu0 %v4159
    %4176 = vmatprep.subr.mxu0 0.0
    %4177 = vmatpush1.msra.mxu0 %v4160
    %4178 = vmatprep.subr.mxu0 0.0
    %4179 = vmatpush1.msra.mxu0 %v4161
    %4180 = vmatprep.subr.mxu0 0.0
    %4181 = vmatpush1.msra.mxu0 0.0
    %4182 = vmatprep.subr.mxu0 0.0
    %4183 = vmatpush1.msra.mxu0 0.0
    %4184 = vmatprep.subr.mxu0 0.0
    %4185 = vmatpush1.msra.mxu0 0.0
    %4186 = vmatprep.subr.mxu0 0.0
    %4187 = vmatpush1.msra.mxu0 0.0
    %4188 = vmatprep.subr.mxu0 0.0
    %4189 = vmatpush1.msra.mxu0 0.0
    %4190 = vmatprep.subr.mxu0 0.0
    %4191 = vmatpush1.msra.mxu0 0.0
    %4192 = vmatprep.subr.mxu0 0.0
    %4193 = vmatpush1.msra.mxu0 0.0
    %4194 = vmatprep.subr.mxu0 0.0
    %4195 = vmatpush1.msra.mxu0 0.0
    %4196 = vmatprep.subr.mxu0 0.0
    %4197 = vmatpush1.msra.mxu0 0.0
    %4198 = vmatprep.subr.mxu0 0.0
    %4199 = vmatpush1.msra.mxu0 0.0
    %4200 = vmatprep.subr.mxu0 0.0
    %4201 = vmatpush1.msra.mxu0 0.0
    %4202 = vmatprep.subr.mxu0 0.0
    %4203 = vmatpush1.msra.mxu0 0.0
    %4204 = vmatprep.subr.mxu0 0.0
    %4205 = vmatpush1.msra.mxu0 0.0
    %4206 = vmatprep.subr.mxu0 0.0
    %4207 = vmatpush1.msra.mxu0 0.0
    %4208 = vmatprep.subr.mxu0 0.0
    %4209 = vmatpush1.msra.mxu0 0.0
    %4210 = vmatprep.subr.mxu0 0.0
    %4211 = vmatpush1.msra.mxu0 0.0
    %4212 = vmatprep.subr.mxu0 0.0
    %4213 = vmatpush1.msra.mxu0 0.0
    %4214 = vmatprep.subr.mxu0 0.0
    %4215 = vmatpush1.msra.mxu0 0.0
    %4216 = vmatprep.subr.mxu0 0.0
    %4217 = vmatpush1.msra.mxu0 0.0
    %4218 = vmatprep.subr.mxu0 0.0
    %4219 = vmatpush1.msra.mxu0 0.0
    %4220 = vmatprep.subr.mxu0 0.0
    %4221 = vmatpush1.msra.mxu0 0.0
    %4222 = vmatprep.subr.mxu0 0.0
    %4223 = vmatpush1.msra.mxu0 0.0
    %4224 = vmatprep.subr.mxu0 0.0
    %4225 = vmatpush1.msra.mxu0 0.0
    %4226 = vmatprep.subr.mxu0 0.0
    %4227 = vmatpush1.msra.mxu0 0.0
    %4228 = vmatprep.subr.mxu0 0.0
    %4229 = vmatpush1.msra.mxu0 0.0
    %4230 = vmatprep.subr.mxu0 0.0
    %4231 = vmatpush1.msra.mxu0 0.0
    %4232 = vmatprep.subr.mxu0 0.0
    %4233 = vmatpush1.msra.mxu0 0.0
    %4234 = vmatprep.subr.mxu0 0.0
    %4235 = vmatpush1.msra.mxu0 0.0
    %4236 = vmatprep.mubr.f32.mxu0 0.0
    %4237 = vmatmul.mubr.f32.gmra.mrb[0].mxu0 %v4170
    %v4238 = vpop.f32.mrb[0].mxu0
    %v4239 = vadd.f32 %v4167, %v4238
    %v4240 = vpop.f32.mrb[0].mxu0
    %4241 = vdwg.mxu0
    %v4242 = vmax.f32 %v4239, 0.0
    %v4243 = vld [vmem:[#allocation11] sm:$0xff]
    %v4244 = vld [vmem:[#allocation11 + $0x8] sm:$0xff]
    %v4245 = vld [vmem:[#allocation11 + $0x10] sm:$0xff]
    %v4246 = vld [vmem:[#allocation11 + $0x18] sm:$0xff]
    %v4247 = vld [vmem:[%s11] sm:$0x1]
    %v4249 = vlaneseq
    %v4250 = vshrl.u32 %v4249, 7
    %v4251 = vsub.s32 0, %v4250
    %v4252 = vrot.slane %v4247, %v4251
    %v4255 = vsel %vm139, %v4242, 0
    %4257 = vmatprep.subr.mxu0 0.0
    %4258 = vmatpush1.msra.mxu0 %v4243
    %4259 = vmatprep.subr.mxu0 0.0
    %4260 = vmatpush1.msra.mxu0 %v4244
    %4261 = vmatprep.subr.mxu0 0.0
    %4262 = vmatpush1.msra.mxu0 %v4245
    %4263 = vmatprep.subr.mxu0 0.0
    %4264 = vmatpush1.msra.mxu0 %v4246
    %4265 = vmatprep.subr.mxu0 0.0
    %4266 = vmatpush1.msra.mxu0 0.0
    %4267 = vmatprep.subr.mxu0 0.0
    %4268 = vmatpush1.msra.mxu0 0.0
    %4269 = vmatprep.subr.mxu0 0.0
    %4270 = vmatpush1.msra.mxu0 0.0
    %4271 = vmatprep.subr.mxu0 0.0
    %4272 = vmatpush1.msra.mxu0 0.0
    %4273 = vmatprep.subr.mxu0 0.0
    %4274 = vmatpush1.msra.mxu0 0.0
    %4275 = vmatprep.subr.mxu0 0.0
    %4276 = vmatpush1.msra.mxu0 0.0
    %4277 = vmatprep.subr.mxu0 0.0
    %4278 = vmatpush1.msra.mxu0 0.0
    %4279 = vmatprep.subr.mxu0 0.0
    %4280 = vmatpush1.msra.mxu0 0.0
    %4281 = vmatprep.subr.mxu0 0.0
    %4282 = vmatpush1.msra.mxu0 0.0
    %4283 = vmatprep.subr.mxu0 0.0
    %4284 = vmatpush1.msra.mxu0 0.0
    %4285 = vmatprep.subr.mxu0 0.0
    %4286 = vmatpush1.msra.mxu0 0.0
    %4287 = vmatprep.subr.mxu0 0.0
    %4288 = vmatpush1.msra.mxu0 0.0
    %4289 = vmatprep.subr.mxu0 0.0
    %4290 = vmatpush1.msra.mxu0 0.0
    %4291 = vmatprep.subr.mxu0 0.0
    %4292 = vmatpush1.msra.mxu0 0.0
    %4293 = vmatprep.subr.mxu0 0.0
    %4294 = vmatpush1.msra.mxu0 0.0
    %4295 = vmatprep.subr.mxu0 0.0
    %4296 = vmatpush1.msra.mxu0 0.0
    %4297 = vmatprep.subr.mxu0 0.0
    %4298 = vmatpush1.msra.mxu0 0.0
    %4299 = vmatprep.subr.mxu0 0.0
    %4300 = vmatpush1.msra.mxu0 0.0
    %4301 = vmatprep.subr.mxu0 0.0
    %4302 = vmatpush1.msra.mxu0 0.0
    %4303 = vmatprep.subr.mxu0 0.0
    %4304 = vmatpush1.msra.mxu0 0.0
    %4305 = vmatprep.subr.mxu0 0.0
    %4306 = vmatpush1.msra.mxu0 0.0
    %4307 = vmatprep.subr.mxu0 0.0
    %4308 = vmatpush1.msra.mxu0 0.0
    %4309 = vmatprep.subr.mxu0 0.0
    %4310 = vmatpush1.msra.mxu0 0.0
    %4311 = vmatprep.subr.mxu0 0.0
    %4312 = vmatpush1.msra.mxu0 0.0
    %4313 = vmatprep.subr.mxu0 0.0
    %4314 = vmatpush1.msra.mxu0 0.0
    %4315 = vmatprep.subr.mxu0 0.0
    %4316 = vmatpush1.msra.mxu0 0.0
    %4317 = vmatprep.subr.mxu0 0.0
    %4318 = vmatpush1.msra.mxu0 0.0
    %4319 = vmatprep.subr.mxu0 0.0
    %4320 = vmatpush1.msra.mxu0 0.0
    %4321 = vmatprep.mubr.f32.mxu0 0.0
    %4322 = vmatmul.mubr.f32.gmra.mrb[0].mxu0 %v4255
    %v4323 = vpop.f32.mrb[0].mxu0
    %v4324 = vadd.f32 %v4252, %v4323
    %v4325 = vpop.f32.mrb[0].mxu0
    %4326 = vdwg.mxu0
    %v4327 = vmax.f32 %v4324, 0.0
    %v4328 = vld [vmem:[%s12] sm:$0xff]
    %v4329 = vld [vmem:[%s12 + $0x8] sm:$0xff]
    %v4330 = vld [vmem:[%s12 + $0x10] sm:$0xff]
    %v4331 = vld [vmem:[%s12 + $0x18] sm:$0xff]
    %v4332 = vld [vmem:[#allocation3] sm:$0x1]
    %v4334 = vlaneseq
    %v4335 = vshrl.u32 %v4334, 7
    %v4336 = vsub.s32 0, %v4335
    %v4337 = vrot.slane %v4332, %v4336
    %v4340 = vsel %vm139, %v4327, 0
    %4342 = vmatprep.subr.mxu0 0.0
    %4343 = vmatpush1.msra.mxu0 %v4328
    %4344 = vmatprep.subr.mxu0 0.0
    %4345 = vmatpush1.msra.mxu0 %v4329
    %4346 = vmatprep.subr.mxu0 0.0
    %4347 = vmatpush1.msra.mxu0 %v4330
    %4348 = vmatprep.subr.mxu0 0.0
    %4349 = vmatpush1.msra.mxu0 %v4331
    %4350 = vmatprep.subr.mxu0 0.0
    %4351 = vmatpush1.msra.mxu0 0.0
    %4352 = vmatprep.subr.mxu0 0.0
    %4353 = vmatpush1.msra.mxu0 0.0
    %4354 = vmatprep.subr.mxu0 0.0
    %4355 = vmatpush1.msra.mxu0 0.0
    %4356 = vmatprep.subr.mxu0 0.0
    %4357 = vmatpush1.msra.mxu0 0.0
    %4358 = vmatprep.subr.mxu0 0.0
    %4359 = vmatpush1.msra.mxu0 0.0
    %4360 = vmatprep.subr.mxu0 0.0
    %4361 = vmatpush1.msra.mxu0 0.0
    %4362 = vmatprep.subr.mxu0 0.0
    %4363 = vmatpush1.msra.mxu0 0.0
    %4364 = vmatprep.subr.mxu0 0.0
    %4365 = vmatpush1.msra.mxu0 0.0
    %4366 = vmatprep.subr.mxu0 0.0
    %4367 = vmatpush1.msra.mxu0 0.0
    %4368 = vmatprep.subr.mxu0 0.0
    %4369 = vmatpush1.msra.mxu0 0.0
    %4370 = vmatprep.subr.mxu0 0.0
    %4371 = vmatpush1.msra.mxu0 0.0
    %4372 = vmatprep.subr.mxu0 0.0
    %4373 = vmatpush1.msra.mxu0 0.0
    %4374 = vmatprep.subr.mxu0 0.0
    %4375 = vmatpush1.msra.mxu0 0.0
    %4376 = vmatprep.subr.mxu0 0.0
    %4377 = vmatpush1.msra.mxu0 0.0
    %4378 = vmatprep.subr.mxu0 0.0
    %4379 = vmatpush1.msra.mxu0 0.0
    %4380 = vmatprep.subr.mxu0 0.0
    %4381 = vmatpush1.msra.mxu0 0.0
    %4382 = vmatprep.subr.mxu0 0.0
    %4383 = vmatpush1.msra.mxu0 0.0
    %4384 = vmatprep.subr.mxu0 0.0
    %4385 = vmatpush1.msra.mxu0 0.0
    %4386 = vmatprep.subr.mxu0 0.0
    %4387 = vmatpush1.msra.mxu0 0.0
    %4388 = vmatprep.subr.mxu0 0.0
    %4389 = vmatpush1.msra.mxu0 0.0
    %4390 = vmatprep.subr.mxu0 0.0
    %4391 = vmatpush1.msra.mxu0 0.0
    %4392 = vmatprep.subr.mxu0 0.0
    %4393 = vmatpush1.msra.mxu0 0.0
    %4394 = vmatprep.subr.mxu0 0.0
    %4395 = vmatpush1.msra.mxu0 0.0
    %4396 = vmatprep.subr.mxu0 0.0
    %4397 = vmatpush1.msra.mxu0 0.0
    %4398 = vmatprep.subr.mxu0 0.0
    %4399 = vmatpush1.msra.mxu0 0.0
    %4400 = vmatprep.subr.mxu0 0.0
    %4401 = vmatpush1.msra.mxu0 0.0
    %4402 = vmatprep.subr.mxu0 0.0
    %4403 = vmatpush1.msra.mxu0 0.0
    %4404 = vmatprep.subr.mxu0 0.0
    %4405 = vmatpush1.msra.mxu0 0.0
    %4406 = vmatprep.mubr.f32.mxu0 0.0
    %4407 = vmatmul.mubr.f32.gmra.mrb[0].mxu0 %v4340
    %v4408 = vpop.f32.mrb[0].mxu0
    %v4409 = vadd.f32 %v4337, %v4408
    %v4410 = vpop.f32.mrb[0].mxu0
    %4411 = vdwg.mxu0
    %v4412 = vxor.u32 %v4409, 2147483648
    %v4413 = vmul.f32 %v4412, 1.442695
    %v4414 = vpow.pop %v4413
    %v4415 = vadd.f32 %v4414, 1.0
    %v4416 = vrcp.pop %v4415
    %v4417 = vmul.f32 1.0, %v4416
    %vm4418 = vcmask 1024
    %4419 = vst.msk [vmem:[%s14] sm:$0x3] %vm4418, %v4417
    // Predicated region
    $region78: #{tpu_custom_call.1} parent=1 // pred_check
      _
    $region79: #{tpu_custom_call.1} parent=1 // pred_check_branch
      %4421 = sbr.rel (0) target = $region81
    $region80: #{tpu_custom_call.1} parent=1 // pred_region
      _
    $region81: #{tpu_custom_call.1} parent=1 // pred_fallthru
      _
    // Predicated region
    $region82: #{tpu_custom_call.1} parent=1 // pred_check
      _
    $region83: #{tpu_custom_call.1} parent=1 // pred_check_branch
      %4423 = sbr.rel (0) target = $region85
    $region84: #{tpu_custom_call.1} parent=1 // pred_region
      _
    $region85: #{tpu_custom_call.1} parent=1 // pred_fallthru
      _
    %4424 = vsyncpa [#allocation5], 1
    %4425 = vsyncpa [#allocation7], 1
    %4426 = vsyncpa [#allocation10], 1

</llo_original>
